<compile_context>
chip_gen: v7x
topology: tpu7x:2x2x1
jax: 0.10.0
libtpu: 0.0.40
codegen_flags: <defaults>
</compile_context>

<pallas_src>
import jax
import jax.numpy as jnp
from jax.experimental import pallas as pl
from jax.experimental.pallas import tpu as pltpu


def _round_up(x, m):
    return ((x + m - 1) // m) * m


def make_uv_agg_kernel(Bn, H, D, NR, gather_tables, NV=0, NU=0):
    """Kernel over one block of Bn nodes; history flattened to (Bn*H, D)."""
    f32 = jnp.float32

    def rating_proj(hr_ref, rtab_ref):
        # e_r @ W_r1[D:] + b_r1 for every history row, via exact one-hot select
        # on the resident pre-projected rating table (NR is tiny).
        hr = hr_ref[...]                                        # (Bn, H) int32
        oh = (hr[:, :, None] ==
              jax.lax.broadcasted_iota(jnp.int32, (Bn, H, NR), 2))
        oh = oh.astype(rtab_ref.dtype).reshape(Bn * H, NR)
        return jnp.dot(oh, rtab_ref[...], preferred_element_type=f32)

    def attention_tail(o, uv_proj, wa1a_ref, wa2_ref, ba2_ref,
                       wa3_ref, ba3_ref, out_ref):
        # Attention MLP over cat(o_history, uv_rep); uv branch (uv_proj) was
        # computed once per node and is broadcast over the H history rows.
        a = jnp.dot(o.astype(wa1a_ref.dtype), wa1a_ref[...],
                    preferred_element_type=f32)                 # (Bn*H, D)
        a = a.reshape(Bn, H, D) + uv_proj[:, None, :]           # + att1_b folded
        a = jnp.maximum(a, 0.0).reshape(Bn * H, D)
        a = jnp.dot(a.astype(wa2_ref.dtype), wa2_ref[...],
                    preferred_element_type=f32)
        a = jnp.maximum(a + ba2_ref[...], 0.0)                  # (Bn*H, D) f32

        # D -> 1 score as a VPU multiply + lane reduction (no 1-col MXU matmul).
        s = jnp.sum(a * wa3_ref[...], axis=-1, keepdims=True) + ba3_ref[...]

        # Per-node softmax over the H history rows, then weighted sum.
        s3 = s.reshape(Bn, H, 1)
        s3 = s3 - jnp.max(s3, axis=1, keepdims=True)
        p = jnp.exp(s3)
        inv = pl.reciprocal(jnp.sum(p, axis=1, keepdims=True), approx=True)
        att = p * inv                                           # (Bn, H, 1)
        o3 = o.reshape(Bn, H, D)
        out_ref[...] = jnp.sum(o3 * att, axis=1).astype(out_ref.dtype)

    if gather_tables:
        # ---- in-kernel gather variant: int index blocks + resident tables ----
        def kernel(huv_ref, hr_ref, nid_ref,
                   uvtab_ref, rtab_ref, selftab_ref,
                   wr2_ref, br2_ref,
                   wa1a_ref, wa2_ref, ba2_ref,
                   wa3_ref, ba3_ref,
                   out_ref):
            huv = huv_ref[...]                                  # (Bn, H) int32
            oh_uv = (huv[:, :, None] ==
                     jax.lax.broadcasted_iota(jnp.int32, (Bn, H, NV), 2))
            oh_uv = oh_uv.astype(uvtab_ref.dtype).reshape(Bn * H, NV)

            # x = relu(e_uv @ W_r1[:D] + e_r @ W_r1[D:] + b_r1); both table
            # projections + b_r1 are folded into the resident tables.
            x = jnp.dot(oh_uv, uvtab_ref[...], preferred_element_type=f32)
            x = x + rating_proj(hr_ref, rtab_ref)
            x = jnp.maximum(x, 0.0)                             # (Bn*H, D) f32

            # o_history = relu(x @ W_r2 + b_r2)
            o = jnp.dot(x.astype(wr2_ref.dtype), wr2_ref[...],
                        preferred_element_type=f32)
            o = jnp.maximum(o + br2_ref[...], 0.0)              # (Bn*H, D) f32

            # uv branch: uv_rep @ att1_W[D:] + att1_b, one-hot on projected table.
            nid = nid_ref[...]                                  # (Bn, 1) int32
            oh_n = (nid == jax.lax.broadcasted_iota(jnp.int32, (Bn, NU), 1))
            oh_n = oh_n.astype(selftab_ref.dtype)
            uv_proj = jnp.dot(oh_n, selftab_ref[...],
                              preferred_element_type=f32)       # (Bn, D)

            attention_tail(o, uv_proj, wa1a_ref, wa2_ref, ba2_ref,
                           wa3_ref, ba3_ref, out_ref)
        return kernel

    # ---- fallback variant: embeddings pre-gathered by XLA (big tables) ----
    def kernel(e_uv_ref, hr_ref, uv_ref,
               rtab_ref,
               wr1a_ref, wr2_ref, br2_ref,
               wa1a_ref, wa1b_ref, ba1_ref,
               wa2_ref, ba2_ref,
               wa3_ref, ba3_ref,
               out_ref):
        x = jnp.dot(e_uv_ref[...], wr1a_ref[...], preferred_element_type=f32)
        x = x + rating_proj(hr_ref, rtab_ref)                   # includes b_r1
        x = jnp.maximum(x, 0.0)                                 # (Bn*H, D) f32

        o = jnp.dot(x.astype(wr2_ref.dtype), wr2_ref[...],
                    preferred_element_type=f32)
        o = jnp.maximum(o + br2_ref[...], 0.0)

        uv_proj = jnp.dot(uv_ref[...], wa1b_ref[...],
                          preferred_element_type=f32) + ba1_ref[...]  # (Bn, D)

        attention_tail(o, uv_proj, wa1a_ref, wa2_ref, ba2_ref,
                       wa3_ref, ba3_ref, out_ref)
    return kernel


def uv_aggregator_forward(nodes, history_uv, history_r, params, uv=True,
                          block_nodes=256, min_blocks=2, use_bf16=True,
                          out_dtype=None, max_onehot_rows=512,
                          vmem_limit_bytes=None):
    """nodes: (N,) int; history_uv: (N,H) int; history_r: (N,H) int rating ids."""
    v2e, r2e, u2e = params["v2e"], params["r2e"], params["u2e"]
    D = v2e.shape[1]
    main_tab, self_tab = (v2e, u2e) if uv else (u2e, v2e)
    NV, NU, NR = main_tab.shape[0], self_tab.shape[0], r2e.shape[0]

    N, H = history_uv.shape
    cdt = jnp.bfloat16 if use_bf16 else jnp.float32
    if out_dtype is None:
        out_dtype = cdt

    # ---- node block size: multiple of 8, and >= min_blocks grid steps when
    # possible so both v7x TensorCores get work (grid split via "parallel").
    tgt = _round_up(pl.cdiv(N, max(1, min_blocks)), 8)
    Bn = max(8, min(_round_up(block_nodes, 8), tgt))
    Np = _round_up(N, Bn)
    grid = Np // Bn
    pad = Np - N

    # ---- pad the tiny int index arrays, NOT the gathered embeddings.
    nodes_p = jnp.pad(nodes.astype(jnp.int32), (0, pad)).reshape(Np, 1)
    huv_p = jnp.pad(history_uv.astype(jnp.int32), ((0, pad), (0, 0)))
    hr_p = jnp.pad(history_r.astype(jnp.int32), ((0, pad), (0, 0)))

    # Rating table is always tiny: fold the rating half of W_r1 AND b_r1 into
    # it once, and keep it f32 (added into an f32 accumulator anyway).
    r_table_proj = jnp.dot(r2e, params["w_r1"][D:]) + params["b_r1"]   # (NR, D)

    # bf16 only on matmul weights / streamed activations (bandwidth, not MXU).
    wr2 = params["w_r2"].astype(cdt)
    wa1a = params["att1_w"][:D].astype(cdt)
    wa2 = params["att2_w"].astype(cdt)
    br2, ba2 = params["b_r2"], params["att2_b"]
    wa3row = params["att3_w"].T                                        # (1, D)
    ba3 = params["att3_b"]

    node_blk = pl.BlockSpec((Bn, D), lambda i: (i, 0))
    idx_blk = pl.BlockSpec((Bn, H), lambda i: (i, 0))
    nid_blk = pl.BlockSpec((Bn, 1), lambda i: (i, 0))
    full = lambda shape: pl.BlockSpec(shape, lambda i: (0, 0))
    # TODO(synk): add pipeline_mode=pl.Buffered(1) on the grid-invariant specs
    # at production D so weights/tables are not double-buffered in VMEM.

    cparams = pltpu.CompilerParams(
        dimension_semantics=("parallel",),
        vmem_limit_bytes=vmem_limit_bytes)

    gather_tables = (NV <= max_onehot_rows) and (NU <= max_onehot_rows)

    if gather_tables:
        # Pre-project the small tables once (exact: one-hot selects rows of the
        # projected table == projecting the selected rows).  Tables stay f32.
        uv_table_proj = jnp.dot(main_tab, params["w_r1"][:D])              # (NV, D)
        self_table_proj = jnp.dot(self_tab, params["att1_w"][D:]) + params["att1_b"]

        kern = make_uv_agg_kernel(Bn, H, D, NR, True, NV=NV, NU=NU)
        out = pl.pallas_call(
            kern,
            out_shape=jax.ShapeDtypeStruct((Np, D), out_dtype),
            grid_spec=pltpu.PrefetchScalarGridSpec(
                num_scalar_prefetch=0,
                grid=(grid,),
                in_specs=[
                    idx_blk,                 # history_uv ids   (Bn, H)
                    idx_blk,                 # history_r ids    (Bn, H)
                    nid_blk,                 # node ids         (Bn, 1)
                    full((NV, D)),           # main table @ W_r1[:D]
                    full((NR, D)),           # r2e @ W_r1[D:] + b_r1
                    full((NU, D)),           # self table @ att1_W[D:] + att1_b
                    full((D, D)),            # W_r2
                    full((1, D)),            # b_r2
                    full((D, D)),            # att1_W top half
                    full((D, D)),            # att2_W
                    full((1, D)),            # att2_b
                    full((1, D)),            # att3_W^T row
                    full((1, 1)),            # att3_b
                ],
                out_specs=node_blk),
            compiler_params=cparams,
        )(huv_p, hr_p, nodes_p,
          uv_table_proj, r_table_proj, self_table_proj,
          wr2, br2, wa1a, wa2, ba2, wa3row, ba3)
    else:
        # Big-table fallback: XLA gathers (on the padded indices) feed the kernel.
        # TODO(synk): replace with an in-kernel DMA gather for huge tables.
        main_c = main_tab.astype(cdt)
        self_c = self_tab.astype(cdt)
        e_uv2 = main_c[huv_p].reshape(Np * H, D)
        uv_rep = self_c[nodes_p[:, 0]]
        wr1a = params["w_r1"][:D].astype(cdt)
        wa1b = params["att1_w"][D:].astype(cdt)
        ba1 = params["att1_b"]

        kern = make_uv_agg_kernel(Bn, H, D, NR, False)
        hist_blk = pl.BlockSpec((Bn * H, D), lambda i: (i, 0))
        out = pl.pallas_call(
            kern,
            out_shape=jax.ShapeDtypeStruct((Np, D), out_dtype),
            grid_spec=pltpu.PrefetchScalarGridSpec(
                num_scalar_prefetch=0,
                grid=(grid,),
                in_specs=[
                    hist_blk,                # e_uv (flattened history)
                    idx_blk,                 # history_r ids
                    node_blk,                # uv_rep
                    full((NR, D)),           # r2e @ W_r1[D:] + b_r1
                    full((D, D)),            # W_r1 top half
                    full((D, D)),            # W_r2
                    full((1, D)),            # b_r2
                    full((D, D)),            # att1_W top half
                    full((D, D)),            # att1_W bottom half (uv branch)
                    full((1, D)),            # att1_b
                    full((D, D)),            # att2_W
                    full((1, D)),            # att2_b
                    full((1, D)),            # att3_W^T row
                    full((1, 1)),            # att3_b
                ],
                out_specs=node_blk),
            compiler_params=cparams,
        )(e_uv2, hr_p, uv_rep,
          r_table_proj, wr1a, wr2, br2,
          wa1a, wa1b, ba1, wa2, ba2, wa3row, ba3)

    return out[:N]


def reference_forward(nodes, history_uv, history_r, params, uv=True):
    v2e, r2e, u2e = params["v2e"], params["r2e"], params["u2e"]
    if uv:
        e_uv = v2e[history_uv]
        uv_rep = u2e[nodes]
    else:
        e_uv = u2e[history_uv]
        uv_rep = v2e[nodes]
    e_r = r2e[history_r]
    x = jnp.concatenate([e_uv, e_r], axis=-1)
    x = jax.nn.relu(jnp.einsum("nhk,kd->nhd", x, params["w_r1"]) + params["b_r1"][0])
    o = jax.nn.relu(jnp.einsum("nhd,de->nhe", x, params["w_r2"]) + params["b_r2"][0])
    uvb = jnp.broadcast_to(uv_rep[:, None, :], o.shape)
    a = jnp.concatenate([o, uvb], axis=-1)
    a = jax.nn.relu(jnp.einsum("nhk,kd->nhd", a, params["att1_w"]) + params["att1_b"][0])
    a = jax.nn.relu(jnp.einsum("nhd,de->nhe", a, params["att2_w"]) + params["att2_b"][0])
    s = jnp.einsum("nhd,do->nho", a, params["att3_w"]) + params["att3_b"][0]
    att = jax.nn.softmax(s, axis=1)
    return jnp.sum(o * att, axis=1)


if __name__ == "__main__":
    N, H, D = 100, 8, 32                 # nodes, history length, embed_dim
    num_users, num_items, num_ratings = 40, 50, 6

    key = jax.random.PRNGKey(0)
    keys = jax.random.split(key, 18)

    def lin_init(k, fan_in, shape):
        bound = 1.0 / jnp.sqrt(jnp.float32(fan_in))
        return jax.random.uniform(k, shape, jnp.float32, -bound, bound)

    params = {
        # embedding tables (v2e / u2e / r2e .weight)
        "v2e": jax.random.normal(keys[0], (num_items, D), jnp.float32),
        "u2e": jax.random.normal(keys[1], (num_users, D), jnp.float32),
        "r2e": jax.random.normal(keys[2], (num_ratings, D), jnp.float32),
        # nn.Linear weights stored transposed: (in_features, out_features)
        "w_r1": lin_init(keys[3], 2 * D, (2 * D, D)),
        "b_r1": lin_init(keys[4], 2 * D, (1, D)),
        "w_r2": lin_init(keys[5], D, (D, D)),
        "b_r2": lin_init(keys[6], D, (1, D)),
        "att1_w": lin_init(keys[7], 2 * D, (2 * D, D)),
        "att1_b": lin_init(keys[8], 2 * D, (1, D)),
        "att2_w": lin_init(keys[9], D, (D, D)),
        "att2_b": lin_init(keys[10], D, (1, D)),
        "att3_w": lin_init(keys[11], D, (D, 1)),
        "att3_b": lin_init(keys[12], D, (1, 1)),
    }

    nodes = jax.random.randint(keys[13], (N,), 0, num_users)
    history_uv = jax.random.randint(keys[14], (N, H), 0, num_items)
    history_r = jax.random.randint(keys[15], (N, H), 0, num_ratings)

    ref = reference_forward(nodes, history_uv, history_r, params, uv=True)

    # 1) f32, in-kernel one-hot gather path (grid=2, exercises index padding).
    out = uv_aggregator_forward(nodes, history_uv, history_r, params,
                                uv=True, use_bf16=False)
    out = jax.block_until_ready(out)
    assert out.shape == (N, D)
    assert jnp.allclose(out, ref, atol=2e-3, rtol=2e-3), "f32 mismatch vs reference"

    # 2) bf16 weights + bf16 output (bandwidth path) — looser tolerance.
    out_bf16 = uv_aggregator_forward(nodes, history_uv, history_r, params,
                                     uv=True, use_bf16=True)
    out_bf16 = jax.block_until_ready(out_bf16)
    assert out_bf16.shape == (N, D) and out_bf16.dtype == jnp.bfloat16
    err = float(jnp.max(jnp.abs(out_bf16.astype(jnp.float32) - ref)))
    assert err < 1e-1, f"bf16 mismatch vs reference (max abs err {err})"

    # 3) f32, forced big-table fallback path (XLA gather outside the kernel).
    out_fb = uv_aggregator_forward(nodes, history_uv, history_r, params,
                                   uv=True, use_bf16=False, max_onehot_rows=0)
    out_fb = jax.block_until_ready(out_fb)
    assert jnp.allclose(out_fb, ref, atol=2e-3, rtol=2e-3), "fallback mismatch"

    # 4) uv=False (user aggregator) in-kernel path.
    nodes_v = jax.random.randint(keys[16], (N,), 0, num_items)
    history_u = jax.random.randint(keys[17], (N, H), 0, num_users)
    ref_u = reference_forward(nodes_v, history_u, history_r, params, uv=False)
    out_u = uv_aggregator_forward(nodes_v, history_u, history_r, params,
                                  uv=False, use_bf16=False)
    out_u = jax.block_until_ready(out_u)
    assert jnp.allclose(out_u, ref_u, atol=2e-3, rtol=2e-3), "uv=False mismatch"

    print("KERNEL_OK")
</pallas_src>

<mosaic_0001>
module attributes {stable_mosaic.version = 11 : i64} {
  func.func @kernel(%arg0: i32, %arg1: memref<56x8xi32, #tpu.memory_space<vmem>>, %arg2: memref<56x8xi32, #tpu.memory_space<vmem>>, %arg3: memref<56x1xi32, #tpu.memory_space<vmem>>, %arg4: memref<50x32xf32, #tpu.memory_space<vmem>>, %arg5: memref<6x32xf32, #tpu.memory_space<vmem>>, %arg6: memref<40x32xf32, #tpu.memory_space<vmem>>, %arg7: memref<32x32xf32, #tpu.memory_space<vmem>>, %arg8: memref<1x32xf32, #tpu.memory_space<vmem>>, %arg9: memref<32x32xf32, #tpu.memory_space<vmem>>, %arg10: memref<32x32xf32, #tpu.memory_space<vmem>>, %arg11: memref<1x32xf32, #tpu.memory_space<vmem>>, %arg12: memref<1x32xf32, #tpu.memory_space<vmem>>, %arg13: memref<1x1xf32, #tpu.memory_space<vmem>>, %arg14: memref<56x32xf32, #tpu.memory_space<vmem>>) attributes {dimension_semantics = [#tpu.dimension_semantics<parallel>], iteration_bounds = array<i64: 2>, scalar_prefetch = 0 : i64, scratch_operands = 0 : i64, tpu.core_type = #tpu.core_type<tc>, window_params = [{transform_indices = @transform_0, window_bounds = array<i64: 56, 8>}, {transform_indices = @transform_1, window_bounds = array<i64: 56, 8>}, {transform_indices = @transform_2, window_bounds = array<i64: 56, 1>}, {pipeline_mode = #tpu.pipeline_mode<synchronous>, transform_indices = @transform_3, window_bounds = array<i64: 50, 32>}, {pipeline_mode = #tpu.pipeline_mode<synchronous>, transform_indices = @transform_4, window_bounds = array<i64: 6, 32>}, {pipeline_mode = #tpu.pipeline_mode<synchronous>, transform_indices = @transform_5, window_bounds = array<i64: 40, 32>}, {pipeline_mode = #tpu.pipeline_mode<synchronous>, transform_indices = @transform_6, window_bounds = array<i64: 32, 32>}, {pipeline_mode = #tpu.pipeline_mode<synchronous>, transform_indices = @transform_7, window_bounds = array<i64: 1, 32>}, {pipeline_mode = #tpu.pipeline_mode<synchronous>, transform_indices = @transform_8, window_bounds = array<i64: 32, 32>}, {pipeline_mode = #tpu.pipeline_mode<synchronous>, transform_indices = @transform_9, window_bounds = array<i64: 32, 32>}, {pipeline_mode = #tpu.pipeline_mode<synchronous>, transform_indices = @transform_10, window_bounds = array<i64: 1, 32>}, {pipeline_mode = #tpu.pipeline_mode<synchronous>, transform_indices = @transform_11, window_bounds = array<i64: 1, 32>}, {pipeline_mode = #tpu.pipeline_mode<synchronous>, transform_indices = @transform_12, window_bounds = array<i64: 1, 1>}, {transform_indices = @transform_13, window_bounds = array<i64: 56, 32>}]} {
    %c0 = arith.constant 0 : index
    %c0_0 = arith.constant 0 : index
    %0 = vector.load %arg1[%c0, %c0_0] : memref<56x8xi32, #tpu.memory_space<vmem>>, vector<56x8xi32>
    %1 = vector.shape_cast %0 : vector<56x8xi32> to vector<56x8x1xi32>
    %2 = tpu.iota {dimensions = array<i32: 2>} : vector<56x8x50xi32>
    %3 = vector.broadcast %1 : vector<56x8x1xi32> to vector<56x8x50xi32>
    %4 = arith.cmpi eq, %3, %2 : vector<56x8x50xi32>
    %5 = arith.extui %4 : vector<56x8x50xi1> to vector<56x8x50xi32>
    %6 = arith.sitofp %5 : vector<56x8x50xi32> to vector<56x8x50xf32>
    %7 = vector.shape_cast %6 : vector<56x8x50xf32> to vector<448x50xf32>
    %c0_1 = arith.constant 0 : index
    %c0_2 = arith.constant 0 : index
    %8 = vector.load %arg4[%c0_1, %c0_2] : memref<50x32xf32, #tpu.memory_space<vmem>>, vector<50x32xf32>
    %cst = arith.constant dense<0.000000e+00> : vector<448x32xf32>
    %9 = tpu.matmul %7, %8, %cst {dimension_numbers = #tpu.dot_dimension_numbers<[1], [0], [0], [1], [0, 0, 1, 1], [], []>} : vector<448x50xf32>, vector<50x32xf32>, vector<448x32xf32> -> vector<448x32xf32>
    %c0_3 = arith.constant 0 : index
    %c0_4 = arith.constant 0 : index
    %10 = vector.load %arg2[%c0_3, %c0_4] : memref<56x8xi32, #tpu.memory_space<vmem>>, vector<56x8xi32>
    %11 = vector.shape_cast %10 : vector<56x8xi32> to vector<56x8x1xi32>
    %12 = tpu.iota {dimensions = array<i32: 2>} : vector<56x8x6xi32>
    %13 = vector.broadcast %11 : vector<56x8x1xi32> to vector<56x8x6xi32>
    %14 = arith.cmpi eq, %13, %12 : vector<56x8x6xi32>
    %15 = arith.extui %14 : vector<56x8x6xi1> to vector<56x8x6xi32>
    %16 = arith.sitofp %15 : vector<56x8x6xi32> to vector<56x8x6xf32>
    %17 = vector.shape_cast %16 : vector<56x8x6xf32> to vector<448x6xf32>
    %c0_5 = arith.constant 0 : index
    %c0_6 = arith.constant 0 : index
    %18 = vector.load %arg5[%c0_5, %c0_6] : memref<6x32xf32, #tpu.memory_space<vmem>>, vector<6x32xf32>
    %cst_7 = arith.constant dense<0.000000e+00> : vector<448x32xf32>
    %19 = tpu.matmul %17, %18, %cst_7 {dimension_numbers = #tpu.dot_dimension_numbers<[1], [0], [0], [1], [0, 0, 1, 1], [], []>} : vector<448x6xf32>, vector<6x32xf32>, vector<448x32xf32> -> vector<448x32xf32>
    %20 = arith.addf %9, %19 : vector<448x32xf32>
    %cst_8 = arith.constant 0.000000e+00 : f32
    %21 = vector.broadcast %cst_8 : f32 to vector<448x32xf32>
    %22 = arith.maximumf %20, %21 : vector<448x32xf32>
    %c0_9 = arith.constant 0 : index
    %c0_10 = arith.constant 0 : index
    %23 = vector.load %arg7[%c0_9, %c0_10] : memref<32x32xf32, #tpu.memory_space<vmem>>, vector<32x32xf32>
    %cst_11 = arith.constant dense<0.000000e+00> : vector<448x32xf32>
    %24 = tpu.matmul %22, %23, %cst_11 {dimension_numbers = #tpu.dot_dimension_numbers<[1], [0], [0], [1], [0, 0, 1, 1], [], []>} : vector<448x32xf32>, vector<32x32xf32>, vector<448x32xf32> -> vector<448x32xf32>
    %c0_12 = arith.constant 0 : index
    %c0_13 = arith.constant 0 : index
    %25 = vector.load %arg8[%c0_12, %c0_13] : memref<1x32xf32, #tpu.memory_space<vmem>>, vector<1x32xf32>
    %26 = vector.broadcast %25 : vector<1x32xf32> to vector<448x32xf32>
    %27 = arith.addf %24, %26 : vector<448x32xf32>
    %cst_14 = arith.constant 0.000000e+00 : f32
    %28 = vector.broadcast %cst_14 : f32 to vector<448x32xf32>
    %29 = arith.maximumf %27, %28 : vector<448x32xf32>
    %c0_15 = arith.constant 0 : index
    %c0_16 = arith.constant 0 : index
    %30 = vector.load %arg3[%c0_15, %c0_16] : memref<56x1xi32, #tpu.memory_space<vmem>>, vector<56x1xi32>
    %31 = tpu.iota {dimensions = array<i32: 1>} : vector<56x40xi32>
    %32 = vector.broadcast %30 : vector<56x1xi32> to vector<56x40xi32>
    %33 = arith.cmpi eq, %32, %31 : vector<56x40xi32>
    %34 = arith.extui %33 : vector<56x40xi1> to vector<56x40xi32>
    %35 = arith.sitofp %34 : vector<56x40xi32> to vector<56x40xf32>
    %c0_17 = arith.constant 0 : index
    %c0_18 = arith.constant 0 : index
    %36 = vector.load %arg6[%c0_17, %c0_18] : memref<40x32xf32, #tpu.memory_space<vmem>>, vector<40x32xf32>
    %cst_19 = arith.constant dense<0.000000e+00> : vector<56x32xf32>
    %37 = tpu.matmul %35, %36, %cst_19 {dimension_numbers = #tpu.dot_dimension_numbers<[1], [0], [0], [1], [0, 0, 1, 1], [], []>} : vector<56x40xf32>, vector<40x32xf32>, vector<56x32xf32> -> vector<56x32xf32>
    %c0_20 = arith.constant 0 : index
    %c0_21 = arith.constant 0 : index
    %38 = vector.load %arg9[%c0_20, %c0_21] : memref<32x32xf32, #tpu.memory_space<vmem>>, vector<32x32xf32>
    %cst_22 = arith.constant dense<0.000000e+00> : vector<448x32xf32>
    %39 = tpu.matmul %29, %38, %cst_22 {dimension_numbers = #tpu.dot_dimension_numbers<[1], [0], [0], [1], [0, 0, 1, 1], [], []>} : vector<448x32xf32>, vector<32x32xf32>, vector<448x32xf32> -> vector<448x32xf32>
    %40 = vector.shape_cast %39 : vector<448x32xf32> to vector<56x8x32xf32>
    %41 = vector.shape_cast %37 : vector<56x32xf32> to vector<56x1x32xf32>
    %42 = vector.broadcast %41 : vector<56x1x32xf32> to vector<56x8x32xf32>
    %43 = arith.addf %40, %42 : vector<56x8x32xf32>
    %cst_23 = arith.constant 0.000000e+00 : f32
    %44 = vector.broadcast %cst_23 : f32 to vector<56x8x32xf32>
    %45 = arith.maximumf %43, %44 : vector<56x8x32xf32>
    %46 = vector.shape_cast %45 : vector<56x8x32xf32> to vector<448x32xf32>
    %c0_24 = arith.constant 0 : index
    %c0_25 = arith.constant 0 : index
    %47 = vector.load %arg10[%c0_24, %c0_25] : memref<32x32xf32, #tpu.memory_space<vmem>>, vector<32x32xf32>
    %cst_26 = arith.constant dense<0.000000e+00> : vector<448x32xf32>
    %48 = tpu.matmul %46, %47, %cst_26 {dimension_numbers = #tpu.dot_dimension_numbers<[1], [0], [0], [1], [0, 0, 1, 1], [], []>} : vector<448x32xf32>, vector<32x32xf32>, vector<448x32xf32> -> vector<448x32xf32>
    %c0_27 = arith.constant 0 : index
    %c0_28 = arith.constant 0 : index
    %49 = vector.load %arg11[%c0_27, %c0_28] : memref<1x32xf32, #tpu.memory_space<vmem>>, vector<1x32xf32>
    %50 = vector.broadcast %49 : vector<1x32xf32> to vector<448x32xf32>
    %51 = arith.addf %48, %50 : vector<448x32xf32>
    %cst_29 = arith.constant 0.000000e+00 : f32
    %52 = vector.broadcast %cst_29 : f32 to vector<448x32xf32>
    %53 = arith.maximumf %51, %52 : vector<448x32xf32>
    %c0_30 = arith.constant 0 : index
    %c0_31 = arith.constant 0 : index
    %54 = vector.load %arg12[%c0_30, %c0_31] : memref<1x32xf32, #tpu.memory_space<vmem>>, vector<1x32xf32>
    %55 = vector.broadcast %54 : vector<1x32xf32> to vector<448x32xf32>
    %56 = arith.mulf %53, %55 : vector<448x32xf32>
    %cst_32 = arith.constant dense<0.000000e+00> : vector<448xf32>
    %57 = vector.multi_reduction <add>, %56, %cst_32 [1] : vector<448x32xf32> to vector<448xf32>
    %58 = vector.shape_cast %57 : vector<448xf32> to vector<448x1xf32>
    %c0_33 = arith.constant 0 : index
    %c0_34 = arith.constant 0 : index
    %59 = vector.load %arg13[%c0_33, %c0_34] : memref<1x1xf32, #tpu.memory_space<vmem>>, vector<1x1xf32>
    %60 = vector.broadcast %59 : vector<1x1xf32> to vector<448x1xf32>
    %61 = arith.addf %58, %60 : vector<448x1xf32>
    %62 = vector.shape_cast %61 : vector<448x1xf32> to vector<56x8x1xf32>
    %cst_35 = arith.constant dense<0xFF800000> : vector<56x1xf32>
    %63 = vector.multi_reduction <maximumf>, %62, %cst_35 [1] : vector<56x8x1xf32> to vector<56x1xf32>
    %64 = vector.shape_cast %63 : vector<56x1xf32> to vector<56x1x1xf32>
    %65 = vector.broadcast %64 : vector<56x1x1xf32> to vector<56x8x1xf32>
    %66 = arith.subf %62, %65 : vector<56x8x1xf32>
    %67 = math.exp %66 : vector<56x8x1xf32>
    %cst_36 = arith.constant dense<0.000000e+00> : vector<56x1xf32>
    %68 = vector.multi_reduction <add>, %67, %cst_36 [1] : vector<56x8x1xf32> to vector<56x1xf32>
    %69 = vector.shape_cast %68 : vector<56x1xf32> to vector<56x1x1xf32>
    %70 = tpu.reciprocal %69 {approx = true} : vector<56x1x1xf32> -> vector<56x1x1xf32>
    %71 = vector.broadcast %70 : vector<56x1x1xf32> to vector<56x8x1xf32>
    %72 = arith.mulf %67, %71 : vector<56x8x1xf32>
    %73 = vector.shape_cast %29 : vector<448x32xf32> to vector<56x8x32xf32>
    %74 = vector.broadcast %72 : vector<56x8x1xf32> to vector<56x8x32xf32>
    %75 = arith.mulf %73, %74 : vector<56x8x32xf32>
    %cst_37 = arith.constant dense<0.000000e+00> : vector<56x32xf32>
    %76 = vector.multi_reduction <add>, %75, %cst_37 [1] : vector<56x8x32xf32> to vector<56x32xf32>
    %c0_38 = arith.constant 0 : index
    %c0_39 = arith.constant 0 : index
    %77 = vector.load %arg14[%c0_38, %c0_39] : memref<56x32xf32, #tpu.memory_space<vmem>>, vector<56x32xf32>
    tpu.vector_store %arg14[%c0_38, %c0_39], %76 {strides = array<i32>} : memref<56x32xf32, #tpu.memory_space<vmem>>, vector<56x32xf32>,
    return
  }
  func.func @transform_0(%arg0: i32) -> (i32, i32) {
    %c0_i32 = arith.constant 0 : i32
    %c0_i32_0 = arith.constant 0 : i32
    return %arg0, %c0_i32 : i32, i32
  }
  func.func @transform_1(%arg0: i32) -> (i32, i32) {
    %c0_i32 = arith.constant 0 : i32
    %c0_i32_0 = arith.constant 0 : i32
    return %arg0, %c0_i32 : i32, i32
  }
  func.func @transform_2(%arg0: i32) -> (i32, i32) {
    %c0_i32 = arith.constant 0 : i32
    %c0_i32_0 = arith.constant 0 : i32
    return %arg0, %c0_i32 : i32, i32
  }
  func.func @transform_3(%arg0: i32) -> (i32, i32) {
    %c0_i32 = arith.constant 0 : i32
    %c0_i32_0 = arith.constant 0 : i32
    %c0_i32_1 = arith.constant 0 : i32
    return %c0_i32, %c0_i32_0 : i32, i32
  }
  func.func @transform_4(%arg0: i32) -> (i32, i32) {
    %c0_i32 = arith.constant 0 : i32
    %c0_i32_0 = arith.constant 0 : i32
    %c0_i32_1 = arith.constant 0 : i32
    return %c0_i32, %c0_i32_0 : i32, i32
  }
  func.func @transform_5(%arg0: i32) -> (i32, i32) {
    %c0_i32 = arith.constant 0 : i32
    %c0_i32_0 = arith.constant 0 : i32
    %c0_i32_1 = arith.constant 0 : i32
    return %c0_i32, %c0_i32_0 : i32, i32
  }
  func.func @transform_6(%arg0: i32) -> (i32, i32) {
    %c0_i32 = arith.constant 0 : i32
    %c0_i32_0 = arith.constant 0 : i32
    %c0_i32_1 = arith.constant 0 : i32
    return %c0_i32, %c0_i32_0 : i32, i32
  }
  func.func @transform_7(%arg0: i32) -> (i32, i32) {
    %c0_i32 = arith.constant 0 : i32
    %c0_i32_0 = arith.constant 0 : i32
    %c0_i32_1 = arith.constant 0 : i32
    return %c0_i32, %c0_i32_0 : i32, i32
  }
  func.func @transform_8(%arg0: i32) -> (i32, i32) {
    %c0_i32 = arith.constant 0 : i32
    %c0_i32_0 = arith.constant 0 : i32
    %c0_i32_1 = arith.constant 0 : i32
    return %c0_i32, %c0_i32_0 : i32, i32
  }
  func.func @transform_9(%arg0: i32) -> (i32, i32) {
    %c0_i32 = arith.constant 0 : i32
    %c0_i32_0 = arith.constant 0 : i32
    %c0_i32_1 = arith.constant 0 : i32
    return %c0_i32, %c0_i32_0 : i32, i32
  }
  func.func @transform_10(%arg0: i32) -> (i32, i32) {
    %c0_i32 = arith.constant 0 : i32
    %c0_i32_0 = arith.constant 0 : i32
    %c0_i32_1 = arith.constant 0 : i32
    return %c0_i32, %c0_i32_0 : i32, i32
  }
  func.func @transform_11(%arg0: i32) -> (i32, i32) {
    %c0_i32 = arith.constant 0 : i32
    %c0_i32_0 = arith.constant 0 : i32
    %c0_i32_1 = arith.constant 0 : i32
    return %c0_i32, %c0_i32_0 : i32, i32
  }
  func.func @transform_12(%arg0: i32) -> (i32, i32) {
    %c0_i32 = arith.constant 0 : i32
    %c0_i32_0 = arith.constant 0 : i32
    %c0_i32_1 = arith.constant 0 : i32
    return %c0_i32, %c0_i32_0 : i32, i32
  }
  func.func @transform_13(%arg0: i32) -> (i32, i32) {
    %c0_i32 = arith.constant 0 : i32
    %c0_i32_0 = arith.constant 0 : i32
    return %arg0, %c0_i32 : i32, i32
  }
}

</mosaic_0001>

<llo_original>
// kernel: tpu_custom_call.1
$region0: #{tpu_custom_call.1}
  #allocation0 [shape = 'u32[]', space=smem, size = 0x4, offset = 0x4, fixed_abs, tag = 'smem constant byte address 0x4 - core index']
  #allocation1 [shape = 'u32[144,128]{1,0:T(1,128)}', space=vmem, size = 0x12000, scoped, tag = 'internal scratch']
  #allocation2 [shape = 'f32[1,1]{1,0:T(1,128)S(1)}', space=vmem, size = 0x200, scoped, tag = 'scoped memory for tpu_custom_call.1']
  %s0 = inlined_call_operand.vmem [shape: s32[112,8], index: 0, kind: input, shape index: {}]
  %s1 = inlined_call_operand.vmem [shape: s32[112,8], index: 1, kind: input, shape index: {}]
  %s2 = inlined_call_operand.vmem [shape: s32[112,1], index: 2, kind: input, shape index: {}]
  %s3 = inlined_call_operand.vmem [shape: f32[50,32], index: 3, kind: input, shape index: {}]
  %s4 = inlined_call_operand.vmem [shape: f32[6,32], index: 4, kind: input, shape index: {}]
  %s5 = inlined_call_operand.vmem [shape: f32[40,32], index: 5, kind: input, shape index: {}]
  %s6 = inlined_call_operand.vmem [shape: f32[32,32], index: 6, kind: input, shape index: {}]
  %s7 = inlined_call_operand.vmem [shape: f32[1,32], index: 7, kind: input, shape index: {}]
  %s8 = inlined_call_operand.vmem [shape: f32[32,32], index: 8, kind: input, shape index: {}]
  %s9 = inlined_call_operand.vmem [shape: f32[32,32], index: 9, kind: input, shape index: {}]
  %s10 = inlined_call_operand.vmem [shape: f32[1,32], index: 10, kind: input, shape index: {}]
  %s11 = inlined_call_operand.vmem [shape: f32[1,32], index: 11, kind: input, shape index: {}]
  %s12 = inlined_call_operand.<no memory space> [shape: f32[1,1], index: 12, kind: input, shape index: {}]
  %s13 = inlined_call_operand.vmem [shape: f32[112,32], index: 13, kind: output, shape index: {}]
  %s14 = sld [smem:[#allocation0]]
  $region85: #{tpu_custom_call.1} parent=0
    _
  %s16 = ssub.s32 1, %s14
  %s17 = scalar_select 0, %s16, %s14
  %v18 = vstv %s12
  %19 = vst [vmem:[#allocation2] sm:$0x1] %v18
  loop: start=0, step=1, limit=4
  $region2: #{tpu_custom_call.1} parent=0 // loop_pre_header
    _
  $region3: #{tpu_custom_call.1} parent=0 // loop_header
    %s21 = sphi 0, %s25
    %p22 = scmp.ge.s32.totalorder %s21, 4
    %s31 = sphi 0, %s33
    %s34 = sphi 0, %s31
    %s35 = sphi 0, %s34
    %s51 = sphi 0, %s35
    %s57 = sphi 0, %s59
    %s60 = sphi 0, %s57
    %s61 = sphi 0, %s60
    %s77 = sphi 0, %s61
    %s83 = sphi 0, %s85
    %s86 = sphi 0, %s83
    %s87 = sphi 0, %s86
    %s103 = sphi 0, %s87
    %s107 = sphi 0, %s107
    %s109 = sphi 0, %s107
    %s110 = sphi 0, %s109
    %s124 = sphi 0, %s110
    %s128 = sphi 0, %s128
    %s130 = sphi 0, %s128
    %s131 = sphi 0, %s130
    %s145 = sphi 0, %s131
    %s149 = sphi 0, %s149
    %s151 = sphi 0, %s149
    %s152 = sphi 0, %s151
    %s166 = sphi 0, %s152
    %s170 = sphi 0, %s170
    %s172 = sphi 0, %s170
    %s173 = sphi 0, %s172
    %s187 = sphi 0, %s173
    %s191 = sphi 0, %s191
    %s193 = sphi 0, %s191
    %s194 = sphi 0, %s193
    %s208 = sphi 0, %s194
    %s212 = sphi 0, %s212
    %s214 = sphi 0, %s212
    %s215 = sphi 0, %s214
    %s229 = sphi 0, %s215
    %s233 = sphi 0, %s233
    %s235 = sphi 0, %s233
    %s236 = sphi 0, %s235
    %s250 = sphi 0, %s236
    %s254 = sphi 0, %s254
    %s256 = sphi 0, %s254
    %s257 = sphi 0, %s256
    %s271 = sphi 0, %s257
    %s275 = sphi 0, %s275
    %s277 = sphi 0, %s275
    %s278 = sphi 0, %s277
    %s292 = sphi 0, %s278
    %s296 = sphi 0, %s296
    %s298 = sphi 0, %s296
    %s299 = sphi 0, %s298
    %s313 = sphi 0, %s299
    %s319 = sphi 0, %s321
    %s322 = sphi 0, %s319
    %s323 = sphi 0, %s322
    %s339 = sphi 0, %s323
  $region4: #{tpu_custom_call.1} parent=0 // loop_header_branch
    %24 = sbr.rel (%p22) target = $region8
  $region5: #{tpu_custom_call.1} parent=0 // loop_body
    %s26 = ssub.s32 %s21, 1
    %s27 = ssub.s32 %s21, 2
    %s28 = sadd.s32 %s21, 1
    %s29 = ssub.s32 %s21, %s28
    %p30 = scmp.eq.s32.totalorder %s29, 0
    %s32 = sadd.s32 %s31, 1
    %s33 = scalar_select %p30, %s31, %s32
    %p36 = pneg %p30
    %p37 = scmp.eq.s32.totalorder %s21, 1
    %p38 = por %p36, %p37
    %p39 = scmp.ne.s32.totalorder %s31, %s34
    %p40 = scmp.eq.s32.totalorder %s21, 0
    %p41 = por %p39, %p40
    %p42 = scmp.ne.s32.totalorder %s31, %s34
    %p43 = scmp.eq.s32.totalorder %s26, 1
    %p44 = por %p42, %p43
    %p45 = scmp.ne.s32.totalorder %s34, %s35
    %p46 = scmp.eq.s32.totalorder %s26, 0
    %p47 = por %p45, %p46
    %p48 = scmp.ne.s32.totalorder %s34, %s35
    %p49 = scmp.eq.s32.totalorder %s27, 1
    %p50 = por %p48, %p49
    %p52 = scmp.ne.s32.totalorder %s35, %s51
    %p53 = scmp.eq.s32.totalorder %s27, 0
    %p54 = por %p52, %p53
    %s55 = ssub.s32 %s21, %s28
    %p56 = scmp.eq.s32.totalorder %s55, 0
    %s58 = sadd.s32 %s57, 1
    %s59 = scalar_select %p56, %s57, %s58
    %p62 = pneg %p56
    %p63 = scmp.eq.s32.totalorder %s21, 1
    %p64 = por %p62, %p63
    %p65 = scmp.ne.s32.totalorder %s57, %s60
    %p66 = scmp.eq.s32.totalorder %s21, 0
    %p67 = por %p65, %p66
    %p68 = scmp.ne.s32.totalorder %s57, %s60
    %p69 = scmp.eq.s32.totalorder %s26, 1
    %p70 = por %p68, %p69
    %p71 = scmp.ne.s32.totalorder %s60, %s61
    %p72 = scmp.eq.s32.totalorder %s26, 0
    %p73 = por %p71, %p72
    %p74 = scmp.ne.s32.totalorder %s60, %s61
    %p75 = scmp.eq.s32.totalorder %s27, 1
    %p76 = por %p74, %p75
    %p78 = scmp.ne.s32.totalorder %s61, %s77
    %p79 = scmp.eq.s32.totalorder %s27, 0
    %p80 = por %p78, %p79
    %s81 = ssub.s32 %s21, %s28
    %p82 = scmp.eq.s32.totalorder %s81, 0
    %s84 = sadd.s32 %s83, 1
    %s85 = scalar_select %p82, %s83, %s84
    %p88 = pneg %p82
    %p89 = scmp.eq.s32.totalorder %s21, 1
    %p90 = por %p88, %p89
    %p91 = scmp.ne.s32.totalorder %s83, %s86
    %p92 = scmp.eq.s32.totalorder %s21, 0
    %p93 = por %p91, %p92
    %p94 = scmp.ne.s32.totalorder %s83, %s86
    %p95 = scmp.eq.s32.totalorder %s26, 1
    %p96 = por %p94, %p95
    %p97 = scmp.ne.s32.totalorder %s86, %s87
    %p98 = scmp.eq.s32.totalorder %s26, 0
    %p99 = por %p97, %p98
    %p100 = scmp.ne.s32.totalorder %s86, %s87
    %p101 = scmp.eq.s32.totalorder %s27, 1
    %p102 = por %p100, %p101
    %p104 = scmp.ne.s32.totalorder %s87, %s103
    %p105 = scmp.eq.s32.totalorder %s27, 0
    %p106 = por %p104, %p105
    %s108 = sadd.s32 %s107, 1
    %p111 = scmp.eq.s32.totalorder %s21, 1
    %p112 = scmp.ne.s32.totalorder %s107, %s109
    %p113 = scmp.eq.s32.totalorder %s21, 0
    %p114 = por %p112, %p113
    %p115 = scmp.ne.s32.totalorder %s107, %s109
    %p116 = scmp.eq.s32.totalorder %s26, 1
    %p117 = por %p115, %p116
    %p118 = scmp.ne.s32.totalorder %s109, %s110
    %p119 = scmp.eq.s32.totalorder %s26, 0
    %p120 = por %p118, %p119
    %p121 = scmp.ne.s32.totalorder %s109, %s110
    %p122 = scmp.eq.s32.totalorder %s27, 1
    %p123 = por %p121, %p122
    %p125 = scmp.ne.s32.totalorder %s110, %s124
    %p126 = scmp.eq.s32.totalorder %s27, 0
    %p127 = por %p125, %p126
    %s129 = sadd.s32 %s128, 1
    %p132 = scmp.eq.s32.totalorder %s21, 1
    %p133 = scmp.ne.s32.totalorder %s128, %s130
    %p134 = scmp.eq.s32.totalorder %s21, 0
    %p135 = por %p133, %p134
    %p136 = scmp.ne.s32.totalorder %s128, %s130
    %p137 = scmp.eq.s32.totalorder %s26, 1
    %p138 = por %p136, %p137
    %p139 = scmp.ne.s32.totalorder %s130, %s131
    %p140 = scmp.eq.s32.totalorder %s26, 0
    %p141 = por %p139, %p140
    %p142 = scmp.ne.s32.totalorder %s130, %s131
    %p143 = scmp.eq.s32.totalorder %s27, 1
    %p144 = por %p142, %p143
    %p146 = scmp.ne.s32.totalorder %s131, %s145
    %p147 = scmp.eq.s32.totalorder %s27, 0
    %p148 = por %p146, %p147
    %s150 = sadd.s32 %s149, 1
    %p153 = scmp.eq.s32.totalorder %s21, 1
    %p154 = scmp.ne.s32.totalorder %s149, %s151
    %p155 = scmp.eq.s32.totalorder %s21, 0
    %p156 = por %p154, %p155
    %p157 = scmp.ne.s32.totalorder %s149, %s151
    %p158 = scmp.eq.s32.totalorder %s26, 1
    %p159 = por %p157, %p158
    %p160 = scmp.ne.s32.totalorder %s151, %s152
    %p161 = scmp.eq.s32.totalorder %s26, 0
    %p162 = por %p160, %p161
    %p163 = scmp.ne.s32.totalorder %s151, %s152
    %p164 = scmp.eq.s32.totalorder %s27, 1
    %p165 = por %p163, %p164
    %p167 = scmp.ne.s32.totalorder %s152, %s166
    %p168 = scmp.eq.s32.totalorder %s27, 0
    %p169 = por %p167, %p168
    %s171 = sadd.s32 %s170, 1
    %p174 = scmp.eq.s32.totalorder %s21, 1
    %p175 = scmp.ne.s32.totalorder %s170, %s172
    %p176 = scmp.eq.s32.totalorder %s21, 0
    %p177 = por %p175, %p176
    %p178 = scmp.ne.s32.totalorder %s170, %s172
    %p179 = scmp.eq.s32.totalorder %s26, 1
    %p180 = por %p178, %p179
    %p181 = scmp.ne.s32.totalorder %s172, %s173
    %p182 = scmp.eq.s32.totalorder %s26, 0
    %p183 = por %p181, %p182
    %p184 = scmp.ne.s32.totalorder %s172, %s173
    %p185 = scmp.eq.s32.totalorder %s27, 1
    %p186 = por %p184, %p185
    %p188 = scmp.ne.s32.totalorder %s173, %s187
    %p189 = scmp.eq.s32.totalorder %s27, 0
    %p190 = por %p188, %p189
    %s192 = sadd.s32 %s191, 1
    %p195 = scmp.eq.s32.totalorder %s21, 1
    %p196 = scmp.ne.s32.totalorder %s191, %s193
    %p197 = scmp.eq.s32.totalorder %s21, 0
    %p198 = por %p196, %p197
    %p199 = scmp.ne.s32.totalorder %s191, %s193
    %p200 = scmp.eq.s32.totalorder %s26, 1
    %p201 = por %p199, %p200
    %p202 = scmp.ne.s32.totalorder %s193, %s194
    %p203 = scmp.eq.s32.totalorder %s26, 0
    %p204 = por %p202, %p203
    %p205 = scmp.ne.s32.totalorder %s193, %s194
    %p206 = scmp.eq.s32.totalorder %s27, 1
    %p207 = por %p205, %p206
    %p209 = scmp.ne.s32.totalorder %s194, %s208
    %p210 = scmp.eq.s32.totalorder %s27, 0
    %p211 = por %p209, %p210
    %s213 = sadd.s32 %s212, 1
    %p216 = scmp.eq.s32.totalorder %s21, 1
    %p217 = scmp.ne.s32.totalorder %s212, %s214
    %p218 = scmp.eq.s32.totalorder %s21, 0
    %p219 = por %p217, %p218
    %p220 = scmp.ne.s32.totalorder %s212, %s214
    %p221 = scmp.eq.s32.totalorder %s26, 1
    %p222 = por %p220, %p221
    %p223 = scmp.ne.s32.totalorder %s214, %s215
    %p224 = scmp.eq.s32.totalorder %s26, 0
    %p225 = por %p223, %p224
    %p226 = scmp.ne.s32.totalorder %s214, %s215
    %p227 = scmp.eq.s32.totalorder %s27, 1
    %p228 = por %p226, %p227
    %p230 = scmp.ne.s32.totalorder %s215, %s229
    %p231 = scmp.eq.s32.totalorder %s27, 0
    %p232 = por %p230, %p231
    %s234 = sadd.s32 %s233, 1
    %p237 = scmp.eq.s32.totalorder %s21, 1
    %p238 = scmp.ne.s32.totalorder %s233, %s235
    %p239 = scmp.eq.s32.totalorder %s21, 0
    %p240 = por %p238, %p239
    %p241 = scmp.ne.s32.totalorder %s233, %s235
    %p242 = scmp.eq.s32.totalorder %s26, 1
    %p243 = por %p241, %p242
    %p244 = scmp.ne.s32.totalorder %s235, %s236
    %p245 = scmp.eq.s32.totalorder %s26, 0
    %p246 = por %p244, %p245
    %p247 = scmp.ne.s32.totalorder %s235, %s236
    %p248 = scmp.eq.s32.totalorder %s27, 1
    %p249 = por %p247, %p248
    %p251 = scmp.ne.s32.totalorder %s236, %s250
    %p252 = scmp.eq.s32.totalorder %s27, 0
    %p253 = por %p251, %p252
    %s255 = sadd.s32 %s254, 1
    %p258 = scmp.eq.s32.totalorder %s21, 1
    %p259 = scmp.ne.s32.totalorder %s254, %s256
    %p260 = scmp.eq.s32.totalorder %s21, 0
    %p261 = por %p259, %p260
    %p262 = scmp.ne.s32.totalorder %s254, %s256
    %p263 = scmp.eq.s32.totalorder %s26, 1
    %p264 = por %p262, %p263
    %p265 = scmp.ne.s32.totalorder %s256, %s257
    %p266 = scmp.eq.s32.totalorder %s26, 0
    %p267 = por %p265, %p266
    %p268 = scmp.ne.s32.totalorder %s256, %s257
    %p269 = scmp.eq.s32.totalorder %s27, 1
    %p270 = por %p268, %p269
    %p272 = scmp.ne.s32.totalorder %s257, %s271
    %p273 = scmp.eq.s32.totalorder %s27, 0
    %p274 = por %p272, %p273
    %s276 = sadd.s32 %s275, 1
    %p279 = scmp.eq.s32.totalorder %s21, 1
    %p280 = scmp.ne.s32.totalorder %s275, %s277
    %p281 = scmp.eq.s32.totalorder %s21, 0
    %p282 = por %p280, %p281
    %p283 = scmp.ne.s32.totalorder %s275, %s277
    %p284 = scmp.eq.s32.totalorder %s26, 1
    %p285 = por %p283, %p284
    %p286 = scmp.ne.s32.totalorder %s277, %s278
    %p287 = scmp.eq.s32.totalorder %s26, 0
    %p288 = por %p286, %p287
    %p289 = scmp.ne.s32.totalorder %s277, %s278
    %p290 = scmp.eq.s32.totalorder %s27, 1
    %p291 = por %p289, %p290
    %p293 = scmp.ne.s32.totalorder %s278, %s292
    %p294 = scmp.eq.s32.totalorder %s27, 0
    %p295 = por %p293, %p294
    %s297 = sadd.s32 %s296, 1
    %p300 = scmp.eq.s32.totalorder %s21, 1
    %p301 = scmp.ne.s32.totalorder %s296, %s298
    %p302 = scmp.eq.s32.totalorder %s21, 0
    %p303 = por %p301, %p302
    %p304 = scmp.ne.s32.totalorder %s296, %s298
    %p305 = scmp.eq.s32.totalorder %s26, 1
    %p306 = por %p304, %p305
    %p307 = scmp.ne.s32.totalorder %s298, %s299
    %p308 = scmp.eq.s32.totalorder %s26, 0
    %p309 = por %p307, %p308
    %p310 = scmp.ne.s32.totalorder %s298, %s299
    %p311 = scmp.eq.s32.totalorder %s27, 1
    %p312 = por %p310, %p311
    %p314 = scmp.ne.s32.totalorder %s299, %s313
    %p315 = scmp.eq.s32.totalorder %s27, 0
    %p316 = por %p314, %p315
    %s317 = ssub.s32 %s21, %s28
    %p318 = scmp.eq.s32.totalorder %s317, 0
    %s320 = sadd.s32 %s319, 1
    %s321 = scalar_select %p318, %s319, %s320
    %p324 = pneg %p318
    %p325 = scmp.eq.s32.totalorder %s21, 1
    %p326 = por %p324, %p325
    %p327 = scmp.ne.s32.totalorder %s319, %s322
    %p328 = scmp.eq.s32.totalorder %s21, 0
    %p329 = por %p327, %p328
    %p330 = scmp.ne.s32.totalorder %s319, %s322
    %p331 = scmp.eq.s32.totalorder %s26, 1
    %p332 = por %p330, %p331
    %p333 = scmp.ne.s32.totalorder %s322, %s323
    %p334 = scmp.eq.s32.totalorder %s26, 0
    %p335 = por %p333, %p334
    %p336 = scmp.ne.s32.totalorder %s322, %s323
    %p337 = scmp.eq.s32.totalorder %s27, 1
    %p338 = por %p336, %p337
    %p340 = scmp.ne.s32.totalorder %s323, %s339
    %p341 = scmp.eq.s32.totalorder %s27, 0
    %p342 = por %p340, %p341
    %p343 = scmp.le.s32.totalorder 1, %s21
    %p344 = scmp.lt.s32.totalorder %s21, 3
    %p345 = pnand %p343, %p344
    %p346 = pneg %p345
    // Predicated region
    $region9: #{tpu_custom_call.1} parent=5 // pred_check
      _
    $region10: #{tpu_custom_call.1} parent=5 // pred_check_branch
      %348 = sbr.rel (%p345) target = $region12
    $region11: #{tpu_custom_call.1} parent=5 // pred_region
      %s349 = ssub.s32 %s21, 1
      // Predicated region
      $region13: #{tpu_custom_call.1} parent=11 // pred_check
        %p350 = pneg %p120
      $region14: #{tpu_custom_call.1} parent=11 // pred_check_branch
        %352 = sbr.rel (%p350) target = $region16
      $region15: #{tpu_custom_call.1} parent=11 // pred_region
        _
      $region16: #{tpu_custom_call.1} parent=11 // pred_fallthru
        _
      // Predicated region
      $region17: #{tpu_custom_call.1} parent=11 // pred_check
        %p353 = pneg %p141
      $region18: #{tpu_custom_call.1} parent=11 // pred_check_branch
        %355 = sbr.rel (%p353) target = $region20
      $region19: #{tpu_custom_call.1} parent=11 // pred_region
        _
      $region20: #{tpu_custom_call.1} parent=11 // pred_fallthru
        _
      // Predicated region
      $region21: #{tpu_custom_call.1} parent=11 // pred_check
        %p356 = pneg %p162
      $region22: #{tpu_custom_call.1} parent=11 // pred_check_branch
        %358 = sbr.rel (%p356) target = $region24
      $region23: #{tpu_custom_call.1} parent=11 // pred_region
        _
      $region24: #{tpu_custom_call.1} parent=11 // pred_fallthru
        _
      // Predicated region
      $region25: #{tpu_custom_call.1} parent=11 // pred_check
        %p359 = pneg %p183
      $region26: #{tpu_custom_call.1} parent=11 // pred_check_branch
        %361 = sbr.rel (%p359) target = $region28
      $region27: #{tpu_custom_call.1} parent=11 // pred_region
        _
      $region28: #{tpu_custom_call.1} parent=11 // pred_fallthru
        _
      // Predicated region
      $region29: #{tpu_custom_call.1} parent=11 // pred_check
        %p362 = pneg %p204
      $region30: #{tpu_custom_call.1} parent=11 // pred_check_branch
        %364 = sbr.rel (%p362) target = $region32
      $region31: #{tpu_custom_call.1} parent=11 // pred_region
        _
      $region32: #{tpu_custom_call.1} parent=11 // pred_fallthru
        _
      // Predicated region
      $region33: #{tpu_custom_call.1} parent=11 // pred_check
        %p365 = pneg %p225
      $region34: #{tpu_custom_call.1} parent=11 // pred_check_branch
        %367 = sbr.rel (%p365) target = $region36
      $region35: #{tpu_custom_call.1} parent=11 // pred_region
        _
      $region36: #{tpu_custom_call.1} parent=11 // pred_fallthru
        _
      // Predicated region
      $region37: #{tpu_custom_call.1} parent=11 // pred_check
        %p368 = pneg %p246
      $region38: #{tpu_custom_call.1} parent=11 // pred_check_branch
        %370 = sbr.rel (%p368) target = $region40
      $region39: #{tpu_custom_call.1} parent=11 // pred_region
        _
      $region40: #{tpu_custom_call.1} parent=11 // pred_fallthru
        _
      // Predicated region
      $region41: #{tpu_custom_call.1} parent=11 // pred_check
        %p371 = pneg %p267
      $region42: #{tpu_custom_call.1} parent=11 // pred_check_branch
        %373 = sbr.rel (%p371) target = $region44
      $region43: #{tpu_custom_call.1} parent=11 // pred_region
        _
      $region44: #{tpu_custom_call.1} parent=11 // pred_fallthru
        _
      // Predicated region
      $region45: #{tpu_custom_call.1} parent=11 // pred_check
        %p374 = pneg %p288
      $region46: #{tpu_custom_call.1} parent=11 // pred_check_branch
        %376 = sbr.rel (%p374) target = $region48
      $region47: #{tpu_custom_call.1} parent=11 // pred_region
        _
      $region48: #{tpu_custom_call.1} parent=11 // pred_fallthru
        _
      // Predicated region
      $region49: #{tpu_custom_call.1} parent=11 // pred_check
        %p377 = pneg %p309
      $region50: #{tpu_custom_call.1} parent=11 // pred_check_branch
        %379 = sbr.rel (%p377) target = $region52
      $region51: #{tpu_custom_call.1} parent=11 // pred_region
        _
      $region52: #{tpu_custom_call.1} parent=11 // pred_fallthru
        _
    $region12: #{tpu_custom_call.1} parent=5 // pred_fallthru
      _
    %p380 = scmp.lt.s32.totalorder %s21, 2
    // Predicated region
    $region53: #{tpu_custom_call.1} parent=5 // pred_check
      %p381 = pneg %p380
    $region54: #{tpu_custom_call.1} parent=5 // pred_check_branch
      %383 = sbr.rel (%p381) target = $region56
    $region55: #{tpu_custom_call.1} parent=5 // pred_region
      // Predicated region
      $region57: #{tpu_custom_call.1} parent=55 // pred_check
        %p384 = pneg %p41
      $region58: #{tpu_custom_call.1} parent=55 // pred_check_branch
        %386 = sbr.rel (%p384) target = $region60
      $region59: #{tpu_custom_call.1} parent=55 // pred_region
        %s387 = smul.u32 7, %s21
        %p388 = scmp.lt.s32.totalorder %s387, 13
        %s389 = scalar_select %p388, %s387, 13
        %s390 = smul.addr %s389, 8
        %s391 = scalar_lea.vmem %s0, %s390
        %s392 = smul.u32 7, %s21
      $region60: #{tpu_custom_call.1} parent=55 // pred_fallthru
        _
      // Predicated region
      $region61: #{tpu_custom_call.1} parent=55 // pred_check
        %p393 = pneg %p67
      $region62: #{tpu_custom_call.1} parent=55 // pred_check_branch
        %395 = sbr.rel (%p393) target = $region64
      $region63: #{tpu_custom_call.1} parent=55 // pred_region
        %s396 = smul.u32 7, %s21
        %p397 = scmp.lt.s32.totalorder %s396, 13
        %s398 = scalar_select %p397, %s396, 13
        %s399 = smul.addr %s398, 8
        %s400 = scalar_lea.vmem %s1, %s399
        %s401 = smul.u32 7, %s21
      $region64: #{tpu_custom_call.1} parent=55 // pred_fallthru
        _
      // Predicated region
      $region65: #{tpu_custom_call.1} parent=55 // pred_check
        %p402 = pneg %p93
      $region66: #{tpu_custom_call.1} parent=55 // pred_check_branch
        %404 = sbr.rel (%p402) target = $region68
      $region67: #{tpu_custom_call.1} parent=55 // pred_region
        %s405 = smul.u32 7, %s21
        %p406 = scmp.lt.s32.totalorder %s405, 13
        %s407 = scalar_select %p406, %s405, 13
        %s408 = smul.addr %s407, 8
        %s409 = scalar_lea.vmem %s2, %s408
        %s410 = smul.u32 7, %s21
      $region68: #{tpu_custom_call.1} parent=55 // pred_fallthru
        _
    $region56: #{tpu_custom_call.1} parent=5 // pred_fallthru
      _
    %p411 = scmp.le.s32.totalorder 1, %s21
    %p412 = scmp.lt.s32.totalorder %s21, 3
    %p413 = pnand %p411, %p412
    %p414 = pneg %p413
    // Predicated region
    $region69: #{tpu_custom_call.1} parent=5 // pred_check
      _
    $region70: #{tpu_custom_call.1} parent=5 // pred_check_branch
      %416 = sbr.rel (%p413) target = $region72
    $region71: #{tpu_custom_call.1} parent=5 // pred_region
      %s417 = ssub.s32 %s21, 1
      %s418 = smul.u32 7, %s26
      %p419 = scmp.lt.s32.totalorder %s418, 13
      %s420 = scalar_select %p419, %s418, 13
      %s421 = smul.addr %s420, 8
      %s422 = scalar_lea.vmem %s0, %s421
      %p423 = pneg %p47
      %p424 = pneg %p44
      %s425 = smul.u32 7, %s26
      %p426 = scmp.lt.s32.totalorder %s425, 13
      %s427 = scalar_select %p426, %s425, 13
      %s428 = smul.addr %s427, 8
      %s429 = scalar_lea.vmem %s1, %s428
      %p430 = pneg %p73
      %p431 = pneg %p70
      %s432 = smul.u32 7, %s26
      %p433 = scmp.lt.s32.totalorder %s432, 13
      %s434 = scalar_select %p433, %s432, 13
      %s435 = smul.addr %s434, 8
      %s436 = scalar_lea.vmem %s2, %s435
      %p437 = pneg %p99
      %p438 = pneg %p96
      %p439 = pneg %p120
      %p440 = pneg %p117
      %p441 = pneg %p141
      %p442 = pneg %p138
      %p443 = pneg %p162
      %p444 = pneg %p159
      %p445 = pneg %p183
      %p446 = pneg %p180
      %p447 = pneg %p204
      %p448 = pneg %p201
      %p449 = pneg %p225
      %p450 = pneg %p222
      %p451 = pneg %p246
      %p452 = pneg %p243
      %p453 = pneg %p267
      %p454 = pneg %p264
      %p455 = pneg %p288
      %p456 = pneg %p285
      %p457 = pneg %p309
      %p458 = pneg %p306
      %p459 = pneg %p335
      %p460 = pneg %p332
      %s461 = smul.u32 7, %s26
      %p462 = scmp.lt.s32.totalorder %s461, 13
      %s463 = scalar_select %p462, %s461, 13
      %s464 = smul.addr %s463, 8
      %s465 = scalar_lea.vmem %s13, %s464
      %s466 = smul.u32 7, %s26
      %p467 = scmp.lt.s32.totalorder %s466, 13
      %s468 = scalar_select %p467, %s466, 13
      %s469 = smul.addr %s468, 8
      %s470 = scalar_lea.vmem %s0, %s469
      %s471 = smul.u32 7, %s26
      %s472 = smul.u32 7, %s26
      %p473 = scmp.lt.s32.totalorder %s472, 13
      %s474 = scalar_select %p473, %s472, 13
      %s475 = smul.addr %s474, 8
      %s476 = scalar_lea.vmem %s1, %s475
      %s477 = smul.u32 7, %s26
      %s478 = smul.u32 7, %s26
      %p479 = scmp.lt.s32.totalorder %s478, 13
      %s480 = scalar_select %p479, %s478, 13
      %s481 = smul.addr %s480, 8
      %s482 = scalar_lea.vmem %s2, %s481
      %s483 = smul.u32 7, %s26
      %s484 = smul.u32 7, %s26
      %p485 = scmp.lt.s32.totalorder %s484, 13
      %s486 = scalar_select %p485, %s484, 13
      %s487 = smul.addr %s486, 8
      %s488 = scalar_lea.vmem %s13, %s487
      %s489 = smul.u32 7, %s26
      %v490 = vld [vmem:[%s470] sm:$0xff]
      %v491 = vld [vmem:[%s470 + $0x8] sm:$0xff]
      %v492 = vld [vmem:[%s470 + $0x10] sm:$0xff]
      %v493 = vld [vmem:[%s470 + $0x18] sm:$0xff]
      %v494 = vld [vmem:[%s470 + $0x20] sm:$0xff]
      %v495 = vld [vmem:[%s470 + $0x28] sm:$0xff]
      %v496 = vld [vmem:[%s470 + $0x30] sm:$0xff]
      %v497 = vlaneseq
      %v498 = vshrl.u32 %v497, 7
      %v499 = vsub.s32 0, %v498
      %v500 = vrot.slane %v490, %v499
      %502 = vbcast.lane.b32.xlu0 %v500, 256
      %v503 = vpop.permute.xlu0 %502
      %v504 = vlaneseq
      %v505 = vshrl.u32 %v504, 7
      %v506 = vsub.s32 1, %v505
      %v507 = vrot.slane %v490, %v506
      %509 = vbcast.lane.b32.xlu0 %v507, 256
      %v510 = vpop.permute.xlu0 %509
      %v511 = vlaneseq
      %v512 = vshrl.u32 %v511, 7
      %v513 = vsub.s32 2, %v512
      %v514 = vrot.slane %v490, %v513
      %516 = vbcast.lane.b32.xlu0 %v514, 256
      %v517 = vpop.permute.xlu0 %516
      %v518 = vlaneseq
      %v519 = vshrl.u32 %v518, 7
      %v520 = vsub.s32 3, %v519
      %v521 = vrot.slane %v490, %v520
      %523 = vbcast.lane.b32.xlu0 %v521, 256
      %v524 = vpop.permute.xlu0 %523
      %v525 = vlaneseq
      %v526 = vshrl.u32 %v525, 7
      %v527 = vsub.s32 4, %v526
      %v528 = vrot.slane %v490, %v527
      %530 = vbcast.lane.b32.xlu0 %v528, 256
      %v531 = vpop.permute.xlu0 %530
      %v532 = vlaneseq
      %v533 = vshrl.u32 %v532, 7
      %v534 = vsub.s32 5, %v533
      %v535 = vrot.slane %v490, %v534
      %537 = vbcast.lane.b32.xlu0 %v535, 256
      %v538 = vpop.permute.xlu0 %537
      %v539 = vlaneseq
      %v540 = vshrl.u32 %v539, 7
      %v541 = vsub.s32 6, %v540
      %v542 = vrot.slane %v490, %v541
      %544 = vbcast.lane.b32.xlu0 %v542, 256
      %v545 = vpop.permute.xlu0 %544
      %v546 = vlaneseq
      %v547 = vshrl.u32 %v546, 7
      %v548 = vsub.s32 7, %v547
      %v549 = vrot.slane %v490, %v548
      %551 = vbcast.lane.b32.xlu0 %v549, 256
      %v552 = vpop.permute.xlu0 %551
      %v553 = vlaneseq
      %v554 = vshrl.u32 %v553, 7
      %v555 = vsub.s32 0, %v554
      %v556 = vrot.slane %v491, %v555
      %558 = vbcast.lane.b32.xlu0 %v556, 256
      %v559 = vpop.permute.xlu0 %558
      %v560 = vlaneseq
      %v561 = vshrl.u32 %v560, 7
      %v562 = vsub.s32 1, %v561
      %v563 = vrot.slane %v491, %v562
      %565 = vbcast.lane.b32.xlu0 %v563, 256
      %v566 = vpop.permute.xlu0 %565
      %v567 = vlaneseq
      %v568 = vshrl.u32 %v567, 7
      %v569 = vsub.s32 2, %v568
      %v570 = vrot.slane %v491, %v569
      %572 = vbcast.lane.b32.xlu0 %v570, 256
      %v573 = vpop.permute.xlu0 %572
      %v574 = vlaneseq
      %v575 = vshrl.u32 %v574, 7
      %v576 = vsub.s32 3, %v575
      %v577 = vrot.slane %v491, %v576
      %579 = vbcast.lane.b32.xlu0 %v577, 256
      %v580 = vpop.permute.xlu0 %579
      %v581 = vlaneseq
      %v582 = vshrl.u32 %v581, 7
      %v583 = vsub.s32 4, %v582
      %v584 = vrot.slane %v491, %v583
      %586 = vbcast.lane.b32.xlu0 %v584, 256
      %v587 = vpop.permute.xlu0 %586
      %v588 = vlaneseq
      %v589 = vshrl.u32 %v588, 7
      %v590 = vsub.s32 5, %v589
      %v591 = vrot.slane %v491, %v590
      %593 = vbcast.lane.b32.xlu0 %v591, 256
      %v594 = vpop.permute.xlu0 %593
      %v595 = vlaneseq
      %v596 = vshrl.u32 %v595, 7
      %v597 = vsub.s32 6, %v596
      %v598 = vrot.slane %v491, %v597
      %600 = vbcast.lane.b32.xlu0 %v598, 256
      %v601 = vpop.permute.xlu0 %600
      %v602 = vlaneseq
      %v603 = vshrl.u32 %v602, 7
      %v604 = vsub.s32 7, %v603
      %v605 = vrot.slane %v491, %v604
      %607 = vbcast.lane.b32.xlu0 %v605, 256
      %v608 = vpop.permute.xlu0 %607
      %v609 = vlaneseq
      %v610 = vshrl.u32 %v609, 7
      %v611 = vsub.s32 0, %v610
      %v612 = vrot.slane %v492, %v611
      %614 = vbcast.lane.b32.xlu0 %v612, 256
      %v615 = vpop.permute.xlu0 %614
      %v616 = vlaneseq
      %v617 = vshrl.u32 %v616, 7
      %v618 = vsub.s32 1, %v617
      %v619 = vrot.slane %v492, %v618
      %621 = vbcast.lane.b32.xlu0 %v619, 256
      %v622 = vpop.permute.xlu0 %621
      %v623 = vlaneseq
      %v624 = vshrl.u32 %v623, 7
      %v625 = vsub.s32 2, %v624
      %v626 = vrot.slane %v492, %v625
      %628 = vbcast.lane.b32.xlu0 %v626, 256
      %v629 = vpop.permute.xlu0 %628
      %v630 = vlaneseq
      %v631 = vshrl.u32 %v630, 7
      %v632 = vsub.s32 3, %v631
      %v633 = vrot.slane %v492, %v632
      %635 = vbcast.lane.b32.xlu0 %v633, 256
      %v636 = vpop.permute.xlu0 %635
      %v637 = vlaneseq
      %v638 = vshrl.u32 %v637, 7
      %v639 = vsub.s32 4, %v638
      %v640 = vrot.slane %v492, %v639
      %642 = vbcast.lane.b32.xlu0 %v640, 256
      %v643 = vpop.permute.xlu0 %642
      %v644 = vlaneseq
      %v645 = vshrl.u32 %v644, 7
      %v646 = vsub.s32 5, %v645
      %v647 = vrot.slane %v492, %v646
      %649 = vbcast.lane.b32.xlu0 %v647, 256
      %v650 = vpop.permute.xlu0 %649
      %v651 = vlaneseq
      %v652 = vshrl.u32 %v651, 7
      %v653 = vsub.s32 6, %v652
      %v654 = vrot.slane %v492, %v653
      %656 = vbcast.lane.b32.xlu0 %v654, 256
      %v657 = vpop.permute.xlu0 %656
      %v658 = vlaneseq
      %v659 = vshrl.u32 %v658, 7
      %v660 = vsub.s32 7, %v659
      %v661 = vrot.slane %v492, %v660
      %663 = vbcast.lane.b32.xlu0 %v661, 256
      %v664 = vpop.permute.xlu0 %663
      %v665 = vlaneseq
      %v666 = vshrl.u32 %v665, 7
      %v667 = vsub.s32 0, %v666
      %v668 = vrot.slane %v493, %v667
      %670 = vbcast.lane.b32.xlu0 %v668, 256
      %v671 = vpop.permute.xlu0 %670
      %v672 = vlaneseq
      %v673 = vshrl.u32 %v672, 7
      %v674 = vsub.s32 1, %v673
      %v675 = vrot.slane %v493, %v674
      %677 = vbcast.lane.b32.xlu0 %v675, 256
      %v678 = vpop.permute.xlu0 %677
      %v679 = vlaneseq
      %v680 = vshrl.u32 %v679, 7
      %v681 = vsub.s32 2, %v680
      %v682 = vrot.slane %v493, %v681
      %684 = vbcast.lane.b32.xlu0 %v682, 256
      %v685 = vpop.permute.xlu0 %684
      %v686 = vlaneseq
      %v687 = vshrl.u32 %v686, 7
      %v688 = vsub.s32 3, %v687
      %v689 = vrot.slane %v493, %v688
      %691 = vbcast.lane.b32.xlu0 %v689, 256
      %v692 = vpop.permute.xlu0 %691
      %v693 = vlaneseq
      %v694 = vshrl.u32 %v693, 7
      %v695 = vsub.s32 4, %v694
      %v696 = vrot.slane %v493, %v695
      %698 = vbcast.lane.b32.xlu0 %v696, 256
      %v699 = vpop.permute.xlu0 %698
      %v700 = vlaneseq
      %v701 = vshrl.u32 %v700, 7
      %v702 = vsub.s32 5, %v701
      %v703 = vrot.slane %v493, %v702
      %705 = vbcast.lane.b32.xlu0 %v703, 256
      %v706 = vpop.permute.xlu0 %705
      %v707 = vlaneseq
      %v708 = vshrl.u32 %v707, 7
      %v709 = vsub.s32 6, %v708
      %v710 = vrot.slane %v493, %v709
      %712 = vbcast.lane.b32.xlu0 %v710, 256
      %v713 = vpop.permute.xlu0 %712
      %v714 = vlaneseq
      %v715 = vshrl.u32 %v714, 7
      %v716 = vsub.s32 7, %v715
      %v717 = vrot.slane %v493, %v716
      %719 = vbcast.lane.b32.xlu0 %v717, 256
      %v720 = vpop.permute.xlu0 %719
      %v721 = vlaneseq
      %v722 = vshrl.u32 %v721, 7
      %v723 = vsub.s32 0, %v722
      %v724 = vrot.slane %v494, %v723
      %726 = vbcast.lane.b32.xlu0 %v724, 256
      %v727 = vpop.permute.xlu0 %726
      %v728 = vlaneseq
      %v729 = vshrl.u32 %v728, 7
      %v730 = vsub.s32 1, %v729
      %v731 = vrot.slane %v494, %v730
      %733 = vbcast.lane.b32.xlu0 %v731, 256
      %v734 = vpop.permute.xlu0 %733
      %v735 = vlaneseq
      %v736 = vshrl.u32 %v735, 7
      %v737 = vsub.s32 2, %v736
      %v738 = vrot.slane %v494, %v737
      %740 = vbcast.lane.b32.xlu0 %v738, 256
      %v741 = vpop.permute.xlu0 %740
      %v742 = vlaneseq
      %v743 = vshrl.u32 %v742, 7
      %v744 = vsub.s32 3, %v743
      %v745 = vrot.slane %v494, %v744
      %747 = vbcast.lane.b32.xlu0 %v745, 256
      %v748 = vpop.permute.xlu0 %747
      %v749 = vlaneseq
      %v750 = vshrl.u32 %v749, 7
      %v751 = vsub.s32 4, %v750
      %v752 = vrot.slane %v494, %v751
      %754 = vbcast.lane.b32.xlu0 %v752, 256
      %v755 = vpop.permute.xlu0 %754
      %v756 = vlaneseq
      %v757 = vshrl.u32 %v756, 7
      %v758 = vsub.s32 5, %v757
      %v759 = vrot.slane %v494, %v758
      %761 = vbcast.lane.b32.xlu0 %v759, 256
      %v762 = vpop.permute.xlu0 %761
      %v763 = vlaneseq
      %v764 = vshrl.u32 %v763, 7
      %v765 = vsub.s32 6, %v764
      %v766 = vrot.slane %v494, %v765
      %768 = vbcast.lane.b32.xlu0 %v766, 256
      %v769 = vpop.permute.xlu0 %768
      %v770 = vlaneseq
      %v771 = vshrl.u32 %v770, 7
      %v772 = vsub.s32 7, %v771
      %v773 = vrot.slane %v494, %v772
      %775 = vbcast.lane.b32.xlu0 %v773, 256
      %v776 = vpop.permute.xlu0 %775
      %v777 = vlaneseq
      %v778 = vshrl.u32 %v777, 7
      %v779 = vsub.s32 0, %v778
      %v780 = vrot.slane %v495, %v779
      %782 = vbcast.lane.b32.xlu0 %v780, 256
      %v783 = vpop.permute.xlu0 %782
      %v784 = vlaneseq
      %v785 = vshrl.u32 %v784, 7
      %v786 = vsub.s32 1, %v785
      %v787 = vrot.slane %v495, %v786
      %789 = vbcast.lane.b32.xlu0 %v787, 256
      %v790 = vpop.permute.xlu0 %789
      %v791 = vlaneseq
      %v792 = vshrl.u32 %v791, 7
      %v793 = vsub.s32 2, %v792
      %v794 = vrot.slane %v495, %v793
      %796 = vbcast.lane.b32.xlu0 %v794, 256
      %v797 = vpop.permute.xlu0 %796
      %v798 = vlaneseq
      %v799 = vshrl.u32 %v798, 7
      %v800 = vsub.s32 3, %v799
      %v801 = vrot.slane %v495, %v800
      %803 = vbcast.lane.b32.xlu0 %v801, 256
      %v804 = vpop.permute.xlu0 %803
      %v805 = vlaneseq
      %v806 = vshrl.u32 %v805, 7
      %v807 = vsub.s32 4, %v806
      %v808 = vrot.slane %v495, %v807
      %810 = vbcast.lane.b32.xlu0 %v808, 256
      %v811 = vpop.permute.xlu0 %810
      %v812 = vlaneseq
      %v813 = vshrl.u32 %v812, 7
      %v814 = vsub.s32 5, %v813
      %v815 = vrot.slane %v495, %v814
      %817 = vbcast.lane.b32.xlu0 %v815, 256
      %v818 = vpop.permute.xlu0 %817
      %v819 = vlaneseq
      %v820 = vshrl.u32 %v819, 7
      %v821 = vsub.s32 6, %v820
      %v822 = vrot.slane %v495, %v821
      %824 = vbcast.lane.b32.xlu0 %v822, 256
      %v825 = vpop.permute.xlu0 %824
      %v826 = vlaneseq
      %v827 = vshrl.u32 %v826, 7
      %v828 = vsub.s32 7, %v827
      %v829 = vrot.slane %v495, %v828
      %831 = vbcast.lane.b32.xlu0 %v829, 256
      %v832 = vpop.permute.xlu0 %831
      %v833 = vlaneseq
      %v834 = vshrl.u32 %v833, 7
      %v835 = vsub.s32 0, %v834
      %v836 = vrot.slane %v496, %v835
      %838 = vbcast.lane.b32.xlu0 %v836, 256
      %v839 = vpop.permute.xlu0 %838
      %v840 = vlaneseq
      %v841 = vshrl.u32 %v840, 7
      %v842 = vsub.s32 1, %v841
      %v843 = vrot.slane %v496, %v842
      %845 = vbcast.lane.b32.xlu0 %v843, 256
      %v846 = vpop.permute.xlu0 %845
      %v847 = vlaneseq
      %v848 = vshrl.u32 %v847, 7
      %v849 = vsub.s32 2, %v848
      %v850 = vrot.slane %v496, %v849
      %852 = vbcast.lane.b32.xlu0 %v850, 256
      %v853 = vpop.permute.xlu0 %852
      %v854 = vlaneseq
      %v855 = vshrl.u32 %v854, 7
      %v856 = vsub.s32 3, %v855
      %v857 = vrot.slane %v496, %v856
      %859 = vbcast.lane.b32.xlu0 %v857, 256
      %v860 = vpop.permute.xlu0 %859
      %v861 = vlaneseq
      %v862 = vshrl.u32 %v861, 7
      %v863 = vsub.s32 4, %v862
      %v864 = vrot.slane %v496, %v863
      %866 = vbcast.lane.b32.xlu0 %v864, 256
      %v867 = vpop.permute.xlu0 %866
      %v868 = vlaneseq
      %v869 = vshrl.u32 %v868, 7
      %v870 = vsub.s32 5, %v869
      %v871 = vrot.slane %v496, %v870
      %873 = vbcast.lane.b32.xlu0 %v871, 256
      %v874 = vpop.permute.xlu0 %873
      %v875 = vlaneseq
      %v876 = vshrl.u32 %v875, 7
      %v877 = vsub.s32 6, %v876
      %v878 = vrot.slane %v496, %v877
      %880 = vbcast.lane.b32.xlu0 %v878, 256
      %v881 = vpop.permute.xlu0 %880
      %v882 = vlaneseq
      %v883 = vshrl.u32 %v882, 7
      %v884 = vsub.s32 7, %v883
      %v885 = vrot.slane %v496, %v884
      %887 = vbcast.lane.b32.xlu0 %v885, 256
      %v888 = vpop.permute.xlu0 %887
      %v889 = vlaneseq
      %v890 = vand.u32 %v889, 127
      %vm891 = vcmp.eq.s32.totalorder %v503, %v890
      %vm892 = vcmp.eq.s32.totalorder %v510, %v890
      %vm893 = vcmp.eq.s32.totalorder %v517, %v890
      %vm894 = vcmp.eq.s32.totalorder %v524, %v890
      %vm895 = vcmp.eq.s32.totalorder %v531, %v890
      %vm896 = vcmp.eq.s32.totalorder %v538, %v890
      %vm897 = vcmp.eq.s32.totalorder %v545, %v890
      %vm898 = vcmp.eq.s32.totalorder %v552, %v890
      %vm899 = vcmp.eq.s32.totalorder %v559, %v890
      %vm900 = vcmp.eq.s32.totalorder %v566, %v890
      %vm901 = vcmp.eq.s32.totalorder %v573, %v890
      %vm902 = vcmp.eq.s32.totalorder %v580, %v890
      %vm903 = vcmp.eq.s32.totalorder %v587, %v890
      %vm904 = vcmp.eq.s32.totalorder %v594, %v890
      %vm905 = vcmp.eq.s32.totalorder %v601, %v890
      %vm906 = vcmp.eq.s32.totalorder %v608, %v890
      %vm907 = vcmp.eq.s32.totalorder %v615, %v890
      %vm908 = vcmp.eq.s32.totalorder %v622, %v890
      %vm909 = vcmp.eq.s32.totalorder %v629, %v890
      %vm910 = vcmp.eq.s32.totalorder %v636, %v890
      %vm911 = vcmp.eq.s32.totalorder %v643, %v890
      %vm912 = vcmp.eq.s32.totalorder %v650, %v890
      %vm913 = vcmp.eq.s32.totalorder %v657, %v890
      %vm914 = vcmp.eq.s32.totalorder %v664, %v890
      %vm915 = vcmp.eq.s32.totalorder %v671, %v890
      %vm916 = vcmp.eq.s32.totalorder %v678, %v890
      %vm917 = vcmp.eq.s32.totalorder %v685, %v890
      %vm918 = vcmp.eq.s32.totalorder %v692, %v890
      %vm919 = vcmp.eq.s32.totalorder %v699, %v890
      %vm920 = vcmp.eq.s32.totalorder %v706, %v890
      %vm921 = vcmp.eq.s32.totalorder %v713, %v890
      %vm922 = vcmp.eq.s32.totalorder %v720, %v890
      %vm923 = vcmp.eq.s32.totalorder %v727, %v890
      %vm924 = vcmp.eq.s32.totalorder %v734, %v890
      %vm925 = vcmp.eq.s32.totalorder %v741, %v890
      %vm926 = vcmp.eq.s32.totalorder %v748, %v890
      %vm927 = vcmp.eq.s32.totalorder %v755, %v890
      %vm928 = vcmp.eq.s32.totalorder %v762, %v890
      %vm929 = vcmp.eq.s32.totalorder %v769, %v890
      %vm930 = vcmp.eq.s32.totalorder %v776, %v890
      %vm931 = vcmp.eq.s32.totalorder %v783, %v890
      %vm932 = vcmp.eq.s32.totalorder %v790, %v890
      %vm933 = vcmp.eq.s32.totalorder %v797, %v890
      %vm934 = vcmp.eq.s32.totalorder %v804, %v890
      %vm935 = vcmp.eq.s32.totalorder %v811, %v890
      %vm936 = vcmp.eq.s32.totalorder %v818, %v890
      %vm937 = vcmp.eq.s32.totalorder %v825, %v890
      %vm938 = vcmp.eq.s32.totalorder %v832, %v890
      %vm939 = vcmp.eq.s32.totalorder %v839, %v890
      %vm940 = vcmp.eq.s32.totalorder %v846, %v890
      %vm941 = vcmp.eq.s32.totalorder %v853, %v890
      %vm942 = vcmp.eq.s32.totalorder %v860, %v890
      %vm943 = vcmp.eq.s32.totalorder %v867, %v890
      %vm944 = vcmp.eq.s32.totalorder %v874, %v890
      %vm945 = vcmp.eq.s32.totalorder %v881, %v890
      %vm946 = vcmp.eq.s32.totalorder %v888, %v890
      %v947 = vsel %vm891, 1, 0
      %v948 = vsel %vm892, 1, 0
      %v949 = vsel %vm893, 1, 0
      %v950 = vsel %vm894, 1, 0
      %v951 = vsel %vm895, 1, 0
      %v952 = vsel %vm896, 1, 0
      %v953 = vsel %vm897, 1, 0
      %v954 = vsel %vm898, 1, 0
      %v955 = vsel %vm899, 1, 0
      %v956 = vsel %vm900, 1, 0
      %v957 = vsel %vm901, 1, 0
      %v958 = vsel %vm902, 1, 0
      %v959 = vsel %vm903, 1, 0
      %v960 = vsel %vm904, 1, 0
      %v961 = vsel %vm905, 1, 0
      %v962 = vsel %vm906, 1, 0
      %v963 = vsel %vm907, 1, 0
      %v964 = vsel %vm908, 1, 0
      %v965 = vsel %vm909, 1, 0
      %v966 = vsel %vm910, 1, 0
      %v967 = vsel %vm911, 1, 0
      %v968 = vsel %vm912, 1, 0
      %v969 = vsel %vm913, 1, 0
      %v970 = vsel %vm914, 1, 0
      %v971 = vsel %vm915, 1, 0
      %v972 = vsel %vm916, 1, 0
      %v973 = vsel %vm917, 1, 0
      %v974 = vsel %vm918, 1, 0
      %v975 = vsel %vm919, 1, 0
      %v976 = vsel %vm920, 1, 0
      %v977 = vsel %vm921, 1, 0
      %v978 = vsel %vm922, 1, 0
      %v979 = vsel %vm923, 1, 0
      %v980 = vsel %vm924, 1, 0
      %v981 = vsel %vm925, 1, 0
      %v982 = vsel %vm926, 1, 0
      %v983 = vsel %vm927, 1, 0
      %v984 = vsel %vm928, 1, 0
      %v985 = vsel %vm929, 1, 0
      %v986 = vsel %vm930, 1, 0
      %v987 = vsel %vm931, 1, 0
      %v988 = vsel %vm932, 1, 0
      %v989 = vsel %vm933, 1, 0
      %v990 = vsel %vm934, 1, 0
      %v991 = vsel %vm935, 1, 0
      %v992 = vsel %vm936, 1, 0
      %v993 = vsel %vm937, 1, 0
      %v994 = vsel %vm938, 1, 0
      %v995 = vsel %vm939, 1, 0
      %v996 = vsel %vm940, 1, 0
      %v997 = vsel %vm941, 1, 0
      %v998 = vsel %vm942, 1, 0
      %v999 = vsel %vm943, 1, 0
      %v1000 = vsel %vm944, 1, 0
      %v1001 = vsel %vm945, 1, 0
      %v1002 = vsel %vm946, 1, 0
      %v1003 = vcvt.s32.f32 %v947
      %v1004 = vcvt.s32.f32 %v948
      %v1005 = vcvt.s32.f32 %v949
      %v1006 = vcvt.s32.f32 %v950
      %v1007 = vcvt.s32.f32 %v951
      %v1008 = vcvt.s32.f32 %v952
      %v1009 = vcvt.s32.f32 %v953
      %v1010 = vcvt.s32.f32 %v954
      %v1011 = vcvt.s32.f32 %v955
      %v1012 = vcvt.s32.f32 %v956
      %v1013 = vcvt.s32.f32 %v957
      %v1014 = vcvt.s32.f32 %v958
      %v1015 = vcvt.s32.f32 %v959
      %v1016 = vcvt.s32.f32 %v960
      %v1017 = vcvt.s32.f32 %v961
      %v1018 = vcvt.s32.f32 %v962
      %v1019 = vcvt.s32.f32 %v963
      %v1020 = vcvt.s32.f32 %v964
      %v1021 = vcvt.s32.f32 %v965
      %v1022 = vcvt.s32.f32 %v966
      %v1023 = vcvt.s32.f32 %v967
      %v1024 = vcvt.s32.f32 %v968
      %v1025 = vcvt.s32.f32 %v969
      %v1026 = vcvt.s32.f32 %v970
      %v1027 = vcvt.s32.f32 %v971
      %v1028 = vcvt.s32.f32 %v972
      %v1029 = vcvt.s32.f32 %v973
      %v1030 = vcvt.s32.f32 %v974
      %v1031 = vcvt.s32.f32 %v975
      %v1032 = vcvt.s32.f32 %v976
      %v1033 = vcvt.s32.f32 %v977
      %v1034 = vcvt.s32.f32 %v978
      %v1035 = vcvt.s32.f32 %v979
      %v1036 = vcvt.s32.f32 %v980
      %v1037 = vcvt.s32.f32 %v981
      %v1038 = vcvt.s32.f32 %v982
      %v1039 = vcvt.s32.f32 %v983
      %v1040 = vcvt.s32.f32 %v984
      %v1041 = vcvt.s32.f32 %v985
      %v1042 = vcvt.s32.f32 %v986
      %v1043 = vcvt.s32.f32 %v987
      %v1044 = vcvt.s32.f32 %v988
      %v1045 = vcvt.s32.f32 %v989
      %v1046 = vcvt.s32.f32 %v990
      %v1047 = vcvt.s32.f32 %v991
      %v1048 = vcvt.s32.f32 %v992
      %v1049 = vcvt.s32.f32 %v993
      %v1050 = vcvt.s32.f32 %v994
      %v1051 = vcvt.s32.f32 %v995
      %v1052 = vcvt.s32.f32 %v996
      %v1053 = vcvt.s32.f32 %v997
      %v1054 = vcvt.s32.f32 %v998
      %v1055 = vcvt.s32.f32 %v999
      %v1056 = vcvt.s32.f32 %v1000
      %v1057 = vcvt.s32.f32 %v1001
      %v1058 = vcvt.s32.f32 %v1002
      %v1059 = vld [vmem:[%s3] sm:$0xff]
      %v1060 = vld [vmem:[%s3 + $0x8] sm:$0xff]
      %v1061 = vld [vmem:[%s3 + $0x10] sm:$0xff]
      %v1062 = vld [vmem:[%s3 + $0x18] sm:$0xff]
      %v1063 = vld [vmem:[%s3 + $0x20] sm:$0xff]
      %v1064 = vld [vmem:[%s3 + $0x28] sm:$0xff]
      %v1065 = vld [vmem:[%s3 + $0x30] sm:$0x3]
      %v1066 = vld [vmem:[%s476] sm:$0xff]
      %v1067 = vld [vmem:[%s476 + $0x8] sm:$0xff]
      %v1068 = vld [vmem:[%s476 + $0x10] sm:$0xff]
      %v1069 = vld [vmem:[%s476 + $0x18] sm:$0xff]
      %v1070 = vld [vmem:[%s476 + $0x20] sm:$0xff]
      %v1071 = vld [vmem:[%s476 + $0x28] sm:$0xff]
      %v1072 = vld [vmem:[%s476 + $0x30] sm:$0xff]
      %v1073 = vlaneseq
      %v1074 = vshrl.u32 %v1073, 7
      %v1075 = vsub.s32 0, %v1074
      %v1076 = vrot.slane %v1066, %v1075
      %1078 = vbcast.lane.b32.xlu0 %v1076, 256
      %v1079 = vpop.permute.xlu0 %1078
      %v1080 = vlaneseq
      %v1081 = vshrl.u32 %v1080, 7
      %v1082 = vsub.s32 1, %v1081
      %v1083 = vrot.slane %v1066, %v1082
      %1085 = vbcast.lane.b32.xlu0 %v1083, 256
      %v1086 = vpop.permute.xlu0 %1085
      %v1087 = vlaneseq
      %v1088 = vshrl.u32 %v1087, 7
      %v1089 = vsub.s32 2, %v1088
      %v1090 = vrot.slane %v1066, %v1089
      %1092 = vbcast.lane.b32.xlu0 %v1090, 256
      %v1093 = vpop.permute.xlu0 %1092
      %v1094 = vlaneseq
      %v1095 = vshrl.u32 %v1094, 7
      %v1096 = vsub.s32 3, %v1095
      %v1097 = vrot.slane %v1066, %v1096
      %1099 = vbcast.lane.b32.xlu0 %v1097, 256
      %v1100 = vpop.permute.xlu0 %1099
      %v1101 = vlaneseq
      %v1102 = vshrl.u32 %v1101, 7
      %v1103 = vsub.s32 4, %v1102
      %v1104 = vrot.slane %v1066, %v1103
      %1106 = vbcast.lane.b32.xlu0 %v1104, 256
      %v1107 = vpop.permute.xlu0 %1106
      %v1108 = vlaneseq
      %v1109 = vshrl.u32 %v1108, 7
      %v1110 = vsub.s32 5, %v1109
      %v1111 = vrot.slane %v1066, %v1110
      %1113 = vbcast.lane.b32.xlu0 %v1111, 256
      %v1114 = vpop.permute.xlu0 %1113
      %v1115 = vlaneseq
      %v1116 = vshrl.u32 %v1115, 7
      %v1117 = vsub.s32 6, %v1116
      %v1118 = vrot.slane %v1066, %v1117
      %1120 = vbcast.lane.b32.xlu0 %v1118, 256
      %v1121 = vpop.permute.xlu0 %1120
      %v1122 = vlaneseq
      %v1123 = vshrl.u32 %v1122, 7
      %v1124 = vsub.s32 7, %v1123
      %v1125 = vrot.slane %v1066, %v1124
      %1127 = vbcast.lane.b32.xlu0 %v1125, 256
      %v1128 = vpop.permute.xlu0 %1127
      %v1129 = vlaneseq
      %v1130 = vshrl.u32 %v1129, 7
      %v1131 = vsub.s32 0, %v1130
      %v1132 = vrot.slane %v1067, %v1131
      %1134 = vbcast.lane.b32.xlu0 %v1132, 256
      %v1135 = vpop.permute.xlu0 %1134
      %v1136 = vlaneseq
      %v1137 = vshrl.u32 %v1136, 7
      %v1138 = vsub.s32 1, %v1137
      %v1139 = vrot.slane %v1067, %v1138
      %1141 = vbcast.lane.b32.xlu0 %v1139, 256
      %v1142 = vpop.permute.xlu0 %1141
      %v1143 = vlaneseq
      %v1144 = vshrl.u32 %v1143, 7
      %v1145 = vsub.s32 2, %v1144
      %v1146 = vrot.slane %v1067, %v1145
      %1148 = vbcast.lane.b32.xlu0 %v1146, 256
      %v1149 = vpop.permute.xlu0 %1148
      %v1150 = vlaneseq
      %v1151 = vshrl.u32 %v1150, 7
      %v1152 = vsub.s32 3, %v1151
      %v1153 = vrot.slane %v1067, %v1152
      %1155 = vbcast.lane.b32.xlu0 %v1153, 256
      %v1156 = vpop.permute.xlu0 %1155
      %v1157 = vlaneseq
      %v1158 = vshrl.u32 %v1157, 7
      %v1159 = vsub.s32 4, %v1158
      %v1160 = vrot.slane %v1067, %v1159
      %1162 = vbcast.lane.b32.xlu0 %v1160, 256
      %v1163 = vpop.permute.xlu0 %1162
      %v1164 = vlaneseq
      %v1165 = vshrl.u32 %v1164, 7
      %v1166 = vsub.s32 5, %v1165
      %v1167 = vrot.slane %v1067, %v1166
      %1169 = vbcast.lane.b32.xlu0 %v1167, 256
      %v1170 = vpop.permute.xlu0 %1169
      %v1171 = vlaneseq
      %v1172 = vshrl.u32 %v1171, 7
      %v1173 = vsub.s32 6, %v1172
      %v1174 = vrot.slane %v1067, %v1173
      %1176 = vbcast.lane.b32.xlu0 %v1174, 256
      %v1177 = vpop.permute.xlu0 %1176
      %v1178 = vlaneseq
      %v1179 = vshrl.u32 %v1178, 7
      %v1180 = vsub.s32 7, %v1179
      %v1181 = vrot.slane %v1067, %v1180
      %1183 = vbcast.lane.b32.xlu0 %v1181, 256
      %v1184 = vpop.permute.xlu0 %1183
      %v1185 = vlaneseq
      %v1186 = vshrl.u32 %v1185, 7
      %v1187 = vsub.s32 0, %v1186
      %v1188 = vrot.slane %v1068, %v1187
      %1190 = vbcast.lane.b32.xlu0 %v1188, 256
      %v1191 = vpop.permute.xlu0 %1190
      %v1192 = vlaneseq
      %v1193 = vshrl.u32 %v1192, 7
      %v1194 = vsub.s32 1, %v1193
      %v1195 = vrot.slane %v1068, %v1194
      %1197 = vbcast.lane.b32.xlu0 %v1195, 256
      %v1198 = vpop.permute.xlu0 %1197
      %v1199 = vlaneseq
      %v1200 = vshrl.u32 %v1199, 7
      %v1201 = vsub.s32 2, %v1200
      %v1202 = vrot.slane %v1068, %v1201
      %1204 = vbcast.lane.b32.xlu0 %v1202, 256
      %v1205 = vpop.permute.xlu0 %1204
      %v1206 = vlaneseq
      %v1207 = vshrl.u32 %v1206, 7
      %v1208 = vsub.s32 3, %v1207
      %v1209 = vrot.slane %v1068, %v1208
      %1211 = vbcast.lane.b32.xlu0 %v1209, 256
      %v1212 = vpop.permute.xlu0 %1211
      %v1213 = vlaneseq
      %v1214 = vshrl.u32 %v1213, 7
      %v1215 = vsub.s32 4, %v1214
      %v1216 = vrot.slane %v1068, %v1215
      %1218 = vbcast.lane.b32.xlu0 %v1216, 256
      %v1219 = vpop.permute.xlu0 %1218
      %v1220 = vlaneseq
      %v1221 = vshrl.u32 %v1220, 7
      %v1222 = vsub.s32 5, %v1221
      %v1223 = vrot.slane %v1068, %v1222
      %1225 = vbcast.lane.b32.xlu0 %v1223, 256
      %v1226 = vpop.permute.xlu0 %1225
      %v1227 = vlaneseq
      %v1228 = vshrl.u32 %v1227, 7
      %v1229 = vsub.s32 6, %v1228
      %v1230 = vrot.slane %v1068, %v1229
      %1232 = vbcast.lane.b32.xlu0 %v1230, 256
      %v1233 = vpop.permute.xlu0 %1232
      %v1234 = vlaneseq
      %v1235 = vshrl.u32 %v1234, 7
      %v1236 = vsub.s32 7, %v1235
      %v1237 = vrot.slane %v1068, %v1236
      %1239 = vbcast.lane.b32.xlu0 %v1237, 256
      %v1240 = vpop.permute.xlu0 %1239
      %v1241 = vlaneseq
      %v1242 = vshrl.u32 %v1241, 7
      %v1243 = vsub.s32 0, %v1242
      %v1244 = vrot.slane %v1069, %v1243
      %1246 = vbcast.lane.b32.xlu0 %v1244, 256
      %v1247 = vpop.permute.xlu0 %1246
      %v1248 = vlaneseq
      %v1249 = vshrl.u32 %v1248, 7
      %v1250 = vsub.s32 1, %v1249
      %v1251 = vrot.slane %v1069, %v1250
      %1253 = vbcast.lane.b32.xlu0 %v1251, 256
      %v1254 = vpop.permute.xlu0 %1253
      %v1255 = vlaneseq
      %v1256 = vshrl.u32 %v1255, 7
      %v1257 = vsub.s32 2, %v1256
      %v1258 = vrot.slane %v1069, %v1257
      %1260 = vbcast.lane.b32.xlu0 %v1258, 256
      %v1261 = vpop.permute.xlu0 %1260
      %v1262 = vlaneseq
      %v1263 = vshrl.u32 %v1262, 7
      %v1264 = vsub.s32 3, %v1263
      %v1265 = vrot.slane %v1069, %v1264
      %1267 = vbcast.lane.b32.xlu0 %v1265, 256
      %v1268 = vpop.permute.xlu0 %1267
      %v1269 = vlaneseq
      %v1270 = vshrl.u32 %v1269, 7
      %v1271 = vsub.s32 4, %v1270
      %v1272 = vrot.slane %v1069, %v1271
      %1274 = vbcast.lane.b32.xlu0 %v1272, 256
      %v1275 = vpop.permute.xlu0 %1274
      %v1276 = vlaneseq
      %v1277 = vshrl.u32 %v1276, 7
      %v1278 = vsub.s32 5, %v1277
      %v1279 = vrot.slane %v1069, %v1278
      %1281 = vbcast.lane.b32.xlu0 %v1279, 256
      %v1282 = vpop.permute.xlu0 %1281
      %v1283 = vlaneseq
      %v1284 = vshrl.u32 %v1283, 7
      %v1285 = vsub.s32 6, %v1284
      %v1286 = vrot.slane %v1069, %v1285
      %1288 = vbcast.lane.b32.xlu0 %v1286, 256
      %v1289 = vpop.permute.xlu0 %1288
      %v1290 = vlaneseq
      %v1291 = vshrl.u32 %v1290, 7
      %v1292 = vsub.s32 7, %v1291
      %v1293 = vrot.slane %v1069, %v1292
      %1295 = vbcast.lane.b32.xlu0 %v1293, 256
      %v1296 = vpop.permute.xlu0 %1295
      %v1297 = vlaneseq
      %v1298 = vshrl.u32 %v1297, 7
      %v1299 = vsub.s32 0, %v1298
      %v1300 = vrot.slane %v1070, %v1299
      %1302 = vbcast.lane.b32.xlu0 %v1300, 256
      %v1303 = vpop.permute.xlu0 %1302
      %v1304 = vlaneseq
      %v1305 = vshrl.u32 %v1304, 7
      %v1306 = vsub.s32 1, %v1305
      %v1307 = vrot.slane %v1070, %v1306
      %1309 = vbcast.lane.b32.xlu0 %v1307, 256
      %v1310 = vpop.permute.xlu0 %1309
      %v1311 = vlaneseq
      %v1312 = vshrl.u32 %v1311, 7
      %v1313 = vsub.s32 2, %v1312
      %v1314 = vrot.slane %v1070, %v1313
      %1316 = vbcast.lane.b32.xlu0 %v1314, 256
      %v1317 = vpop.permute.xlu0 %1316
      %v1318 = vlaneseq
      %v1319 = vshrl.u32 %v1318, 7
      %v1320 = vsub.s32 3, %v1319
      %v1321 = vrot.slane %v1070, %v1320
      %1323 = vbcast.lane.b32.xlu0 %v1321, 256
      %v1324 = vpop.permute.xlu0 %1323
      %v1325 = vlaneseq
      %v1326 = vshrl.u32 %v1325, 7
      %v1327 = vsub.s32 4, %v1326
      %v1328 = vrot.slane %v1070, %v1327
      %1330 = vbcast.lane.b32.xlu0 %v1328, 256
      %v1331 = vpop.permute.xlu0 %1330
      %v1332 = vlaneseq
      %v1333 = vshrl.u32 %v1332, 7
      %v1334 = vsub.s32 5, %v1333
      %v1335 = vrot.slane %v1070, %v1334
      %1337 = vbcast.lane.b32.xlu0 %v1335, 256
      %v1338 = vpop.permute.xlu0 %1337
      %v1339 = vlaneseq
      %v1340 = vshrl.u32 %v1339, 7
      %v1341 = vsub.s32 6, %v1340
      %v1342 = vrot.slane %v1070, %v1341
      %1344 = vbcast.lane.b32.xlu0 %v1342, 256
      %v1345 = vpop.permute.xlu0 %1344
      %v1346 = vlaneseq
      %v1347 = vshrl.u32 %v1346, 7
      %v1348 = vsub.s32 7, %v1347
      %v1349 = vrot.slane %v1070, %v1348
      %1351 = vbcast.lane.b32.xlu0 %v1349, 256
      %v1352 = vpop.permute.xlu0 %1351
      %v1353 = vlaneseq
      %v1354 = vshrl.u32 %v1353, 7
      %v1355 = vsub.s32 0, %v1354
      %v1356 = vrot.slane %v1071, %v1355
      %1358 = vbcast.lane.b32.xlu0 %v1356, 256
      %v1359 = vpop.permute.xlu0 %1358
      %v1360 = vlaneseq
      %v1361 = vshrl.u32 %v1360, 7
      %v1362 = vsub.s32 1, %v1361
      %v1363 = vrot.slane %v1071, %v1362
      %1365 = vbcast.lane.b32.xlu0 %v1363, 256
      %v1366 = vpop.permute.xlu0 %1365
      %v1367 = vlaneseq
      %v1368 = vshrl.u32 %v1367, 7
      %v1369 = vsub.s32 2, %v1368
      %v1370 = vrot.slane %v1071, %v1369
      %1372 = vbcast.lane.b32.xlu0 %v1370, 256
      %v1373 = vpop.permute.xlu0 %1372
      %v1374 = vlaneseq
      %v1375 = vshrl.u32 %v1374, 7
      %v1376 = vsub.s32 3, %v1375
      %v1377 = vrot.slane %v1071, %v1376
      %1379 = vbcast.lane.b32.xlu0 %v1377, 256
      %v1380 = vpop.permute.xlu0 %1379
      %v1381 = vlaneseq
      %v1382 = vshrl.u32 %v1381, 7
      %v1383 = vsub.s32 4, %v1382
      %v1384 = vrot.slane %v1071, %v1383
      %1386 = vbcast.lane.b32.xlu0 %v1384, 256
      %v1387 = vpop.permute.xlu0 %1386
      %v1388 = vlaneseq
      %v1389 = vshrl.u32 %v1388, 7
      %v1390 = vsub.s32 5, %v1389
      %v1391 = vrot.slane %v1071, %v1390
      %1393 = vbcast.lane.b32.xlu0 %v1391, 256
      %v1394 = vpop.permute.xlu0 %1393
      %v1395 = vlaneseq
      %v1396 = vshrl.u32 %v1395, 7
      %v1397 = vsub.s32 6, %v1396
      %v1398 = vrot.slane %v1071, %v1397
      %1400 = vbcast.lane.b32.xlu0 %v1398, 256
      %v1401 = vpop.permute.xlu0 %1400
      %v1402 = vlaneseq
      %v1403 = vshrl.u32 %v1402, 7
      %v1404 = vsub.s32 7, %v1403
      %v1405 = vrot.slane %v1071, %v1404
      %1407 = vbcast.lane.b32.xlu0 %v1405, 256
      %v1408 = vpop.permute.xlu0 %1407
      %v1409 = vlaneseq
      %v1410 = vshrl.u32 %v1409, 7
      %v1411 = vsub.s32 0, %v1410
      %v1412 = vrot.slane %v1072, %v1411
      %1414 = vbcast.lane.b32.xlu0 %v1412, 256
      %v1415 = vpop.permute.xlu0 %1414
      %v1416 = vlaneseq
      %v1417 = vshrl.u32 %v1416, 7
      %v1418 = vsub.s32 1, %v1417
      %v1419 = vrot.slane %v1072, %v1418
      %1421 = vbcast.lane.b32.xlu0 %v1419, 256
      %v1422 = vpop.permute.xlu0 %1421
      %v1423 = vlaneseq
      %v1424 = vshrl.u32 %v1423, 7
      %v1425 = vsub.s32 2, %v1424
      %v1426 = vrot.slane %v1072, %v1425
      %1428 = vbcast.lane.b32.xlu0 %v1426, 256
      %v1429 = vpop.permute.xlu0 %1428
      %v1430 = vlaneseq
      %v1431 = vshrl.u32 %v1430, 7
      %v1432 = vsub.s32 3, %v1431
      %v1433 = vrot.slane %v1072, %v1432
      %1435 = vbcast.lane.b32.xlu0 %v1433, 256
      %v1436 = vpop.permute.xlu0 %1435
      %v1437 = vlaneseq
      %v1438 = vshrl.u32 %v1437, 7
      %v1439 = vsub.s32 4, %v1438
      %v1440 = vrot.slane %v1072, %v1439
      %1442 = vbcast.lane.b32.xlu0 %v1440, 256
      %v1443 = vpop.permute.xlu0 %1442
      %v1444 = vlaneseq
      %v1445 = vshrl.u32 %v1444, 7
      %v1446 = vsub.s32 5, %v1445
      %v1447 = vrot.slane %v1072, %v1446
      %1449 = vbcast.lane.b32.xlu0 %v1447, 256
      %v1450 = vpop.permute.xlu0 %1449
      %v1451 = vlaneseq
      %v1452 = vshrl.u32 %v1451, 7
      %v1453 = vsub.s32 6, %v1452
      %v1454 = vrot.slane %v1072, %v1453
      %1456 = vbcast.lane.b32.xlu0 %v1454, 256
      %v1457 = vpop.permute.xlu0 %1456
      %v1458 = vlaneseq
      %v1459 = vshrl.u32 %v1458, 7
      %v1460 = vsub.s32 7, %v1459
      %v1461 = vrot.slane %v1072, %v1460
      %1463 = vbcast.lane.b32.xlu0 %v1461, 256
      %v1464 = vpop.permute.xlu0 %1463
      %vm1465 = vcmp.eq.s32.totalorder %v1079, %v890
      %vm1466 = vcmp.eq.s32.totalorder %v1086, %v890
      %vm1467 = vcmp.eq.s32.totalorder %v1093, %v890
      %vm1468 = vcmp.eq.s32.totalorder %v1100, %v890
      %vm1469 = vcmp.eq.s32.totalorder %v1107, %v890
      %vm1470 = vcmp.eq.s32.totalorder %v1114, %v890
      %vm1471 = vcmp.eq.s32.totalorder %v1121, %v890
      %vm1472 = vcmp.eq.s32.totalorder %v1128, %v890
      %vm1473 = vcmp.eq.s32.totalorder %v1135, %v890
      %vm1474 = vcmp.eq.s32.totalorder %v1142, %v890
      %vm1475 = vcmp.eq.s32.totalorder %v1149, %v890
      %vm1476 = vcmp.eq.s32.totalorder %v1156, %v890
      %vm1477 = vcmp.eq.s32.totalorder %v1163, %v890
      %vm1478 = vcmp.eq.s32.totalorder %v1170, %v890
      %vm1479 = vcmp.eq.s32.totalorder %v1177, %v890
      %vm1480 = vcmp.eq.s32.totalorder %v1184, %v890
      %vm1481 = vcmp.eq.s32.totalorder %v1191, %v890
      %vm1482 = vcmp.eq.s32.totalorder %v1198, %v890
      %vm1483 = vcmp.eq.s32.totalorder %v1205, %v890
      %vm1484 = vcmp.eq.s32.totalorder %v1212, %v890
      %vm1485 = vcmp.eq.s32.totalorder %v1219, %v890
      %vm1486 = vcmp.eq.s32.totalorder %v1226, %v890
      %vm1487 = vcmp.eq.s32.totalorder %v1233, %v890
      %vm1488 = vcmp.eq.s32.totalorder %v1240, %v890
      %vm1489 = vcmp.eq.s32.totalorder %v1247, %v890
      %vm1490 = vcmp.eq.s32.totalorder %v1254, %v890
      %vm1491 = vcmp.eq.s32.totalorder %v1261, %v890
      %vm1492 = vcmp.eq.s32.totalorder %v1268, %v890
      %vm1493 = vcmp.eq.s32.totalorder %v1275, %v890
      %vm1494 = vcmp.eq.s32.totalorder %v1282, %v890
      %vm1495 = vcmp.eq.s32.totalorder %v1289, %v890
      %vm1496 = vcmp.eq.s32.totalorder %v1296, %v890
      %vm1497 = vcmp.eq.s32.totalorder %v1303, %v890
      %vm1498 = vcmp.eq.s32.totalorder %v1310, %v890
      %vm1499 = vcmp.eq.s32.totalorder %v1317, %v890
      %vm1500 = vcmp.eq.s32.totalorder %v1324, %v890
      %vm1501 = vcmp.eq.s32.totalorder %v1331, %v890
      %vm1502 = vcmp.eq.s32.totalorder %v1338, %v890
      %vm1503 = vcmp.eq.s32.totalorder %v1345, %v890
      %vm1504 = vcmp.eq.s32.totalorder %v1352, %v890
      %vm1505 = vcmp.eq.s32.totalorder %v1359, %v890
      %vm1506 = vcmp.eq.s32.totalorder %v1366, %v890
      %vm1507 = vcmp.eq.s32.totalorder %v1373, %v890
      %vm1508 = vcmp.eq.s32.totalorder %v1380, %v890
      %vm1509 = vcmp.eq.s32.totalorder %v1387, %v890
      %vm1510 = vcmp.eq.s32.totalorder %v1394, %v890
      %vm1511 = vcmp.eq.s32.totalorder %v1401, %v890
      %vm1512 = vcmp.eq.s32.totalorder %v1408, %v890
      %vm1513 = vcmp.eq.s32.totalorder %v1415, %v890
      %vm1514 = vcmp.eq.s32.totalorder %v1422, %v890
      %vm1515 = vcmp.eq.s32.totalorder %v1429, %v890
      %vm1516 = vcmp.eq.s32.totalorder %v1436, %v890
      %vm1517 = vcmp.eq.s32.totalorder %v1443, %v890
      %vm1518 = vcmp.eq.s32.totalorder %v1450, %v890
      %vm1519 = vcmp.eq.s32.totalorder %v1457, %v890
      %vm1520 = vcmp.eq.s32.totalorder %v1464, %v890
      %v1521 = vsel %vm1465, 1, 0
      %v1522 = vsel %vm1466, 1, 0
      %v1523 = vsel %vm1467, 1, 0
      %v1524 = vsel %vm1468, 1, 0
      %v1525 = vsel %vm1469, 1, 0
      %v1526 = vsel %vm1470, 1, 0
      %v1527 = vsel %vm1471, 1, 0
      %v1528 = vsel %vm1472, 1, 0
      %v1529 = vsel %vm1473, 1, 0
      %v1530 = vsel %vm1474, 1, 0
      %v1531 = vsel %vm1475, 1, 0
      %v1532 = vsel %vm1476, 1, 0
      %v1533 = vsel %vm1477, 1, 0
      %v1534 = vsel %vm1478, 1, 0
      %v1535 = vsel %vm1479, 1, 0
      %v1536 = vsel %vm1480, 1, 0
      %v1537 = vsel %vm1481, 1, 0
      %v1538 = vsel %vm1482, 1, 0
      %v1539 = vsel %vm1483, 1, 0
      %v1540 = vsel %vm1484, 1, 0
      %v1541 = vsel %vm1485, 1, 0
      %v1542 = vsel %vm1486, 1, 0
      %v1543 = vsel %vm1487, 1, 0
      %v1544 = vsel %vm1488, 1, 0
      %v1545 = vsel %vm1489, 1, 0
      %v1546 = vsel %vm1490, 1, 0
      %v1547 = vsel %vm1491, 1, 0
      %v1548 = vsel %vm1492, 1, 0
      %v1549 = vsel %vm1493, 1, 0
      %v1550 = vsel %vm1494, 1, 0
      %v1551 = vsel %vm1495, 1, 0
      %v1552 = vsel %vm1496, 1, 0
      %v1553 = vsel %vm1497, 1, 0
      %v1554 = vsel %vm1498, 1, 0
      %v1555 = vsel %vm1499, 1, 0
      %v1556 = vsel %vm1500, 1, 0
      %v1557 = vsel %vm1501, 1, 0
      %v1558 = vsel %vm1502, 1, 0
      %v1559 = vsel %vm1503, 1, 0
      %v1560 = vsel %vm1504, 1, 0
      %v1561 = vsel %vm1505, 1, 0
      %v1562 = vsel %vm1506, 1, 0
      %v1563 = vsel %vm1507, 1, 0
      %v1564 = vsel %vm1508, 1, 0
      %v1565 = vsel %vm1509, 1, 0
      %v1566 = vsel %vm1510, 1, 0
      %v1567 = vsel %vm1511, 1, 0
      %v1568 = vsel %vm1512, 1, 0
      %v1569 = vsel %vm1513, 1, 0
      %v1570 = vsel %vm1514, 1, 0
      %v1571 = vsel %vm1515, 1, 0
      %v1572 = vsel %vm1516, 1, 0
      %v1573 = vsel %vm1517, 1, 0
      %v1574 = vsel %vm1518, 1, 0
      %v1575 = vsel %vm1519, 1, 0
      %v1576 = vsel %vm1520, 1, 0
      %v1577 = vcvt.s32.f32 %v1521
      %v1578 = vcvt.s32.f32 %v1522
      %v1579 = vcvt.s32.f32 %v1523
      %v1580 = vcvt.s32.f32 %v1524
      %v1581 = vcvt.s32.f32 %v1525
      %v1582 = vcvt.s32.f32 %v1526
      %v1583 = vcvt.s32.f32 %v1527
      %v1584 = vcvt.s32.f32 %v1528
      %v1585 = vcvt.s32.f32 %v1529
      %v1586 = vcvt.s32.f32 %v1530
      %v1587 = vcvt.s32.f32 %v1531
      %v1588 = vcvt.s32.f32 %v1532
      %v1589 = vcvt.s32.f32 %v1533
      %v1590 = vcvt.s32.f32 %v1534
      %v1591 = vcvt.s32.f32 %v1535
      %v1592 = vcvt.s32.f32 %v1536
      %v1593 = vcvt.s32.f32 %v1537
      %v1594 = vcvt.s32.f32 %v1538
      %v1595 = vcvt.s32.f32 %v1539
      %v1596 = vcvt.s32.f32 %v1540
      %v1597 = vcvt.s32.f32 %v1541
      %v1598 = vcvt.s32.f32 %v1542
      %v1599 = vcvt.s32.f32 %v1543
      %v1600 = vcvt.s32.f32 %v1544
      %v1601 = vcvt.s32.f32 %v1545
      %v1602 = vcvt.s32.f32 %v1546
      %v1603 = vcvt.s32.f32 %v1547
      %v1604 = vcvt.s32.f32 %v1548
      %v1605 = vcvt.s32.f32 %v1549
      %v1606 = vcvt.s32.f32 %v1550
      %v1607 = vcvt.s32.f32 %v1551
      %v1608 = vcvt.s32.f32 %v1552
      %v1609 = vcvt.s32.f32 %v1553
      %v1610 = vcvt.s32.f32 %v1554
      %v1611 = vcvt.s32.f32 %v1555
      %v1612 = vcvt.s32.f32 %v1556
      %v1613 = vcvt.s32.f32 %v1557
      %v1614 = vcvt.s32.f32 %v1558
      %v1615 = vcvt.s32.f32 %v1559
      %v1616 = vcvt.s32.f32 %v1560
      %v1617 = vcvt.s32.f32 %v1561
      %v1618 = vcvt.s32.f32 %v1562
      %v1619 = vcvt.s32.f32 %v1563
      %v1620 = vcvt.s32.f32 %v1564
      %v1621 = vcvt.s32.f32 %v1565
      %v1622 = vcvt.s32.f32 %v1566
      %v1623 = vcvt.s32.f32 %v1567
      %v1624 = vcvt.s32.f32 %v1568
      %v1625 = vcvt.s32.f32 %v1569
      %v1626 = vcvt.s32.f32 %v1570
      %v1627 = vcvt.s32.f32 %v1571
      %v1628 = vcvt.s32.f32 %v1572
      %v1629 = vcvt.s32.f32 %v1573
      %v1630 = vcvt.s32.f32 %v1574
      %v1631 = vcvt.s32.f32 %v1575
      %v1632 = vcvt.s32.f32 %v1576
      %v1633 = vld [vmem:[%s4] sm:$0x3f]
      %vm1634 = vcmask 48128
      %v1636 = vsel %vm1634, %v1577, 0
      %v1639 = vsel %vm1634, %v1578, 0
      %v1642 = vsel %vm1634, %v1579, 0
      %v1645 = vsel %vm1634, %v1580, 0
      %v1648 = vsel %vm1634, %v1581, 0
      %v1651 = vsel %vm1634, %v1582, 0
      %v1654 = vsel %vm1634, %v1583, 0
      %v1657 = vsel %vm1634, %v1584, 0
      %v1660 = vsel %vm1634, %v1585, 0
      %v1663 = vsel %vm1634, %v1586, 0
      %v1666 = vsel %vm1634, %v1587, 0
      %v1669 = vsel %vm1634, %v1588, 0
      %v1672 = vsel %vm1634, %v1589, 0
      %v1675 = vsel %vm1634, %v1590, 0
      %v1678 = vsel %vm1634, %v1591, 0
      %v1681 = vsel %vm1634, %v1592, 0
      %v1684 = vsel %vm1634, %v1593, 0
      %v1687 = vsel %vm1634, %v1594, 0
      %v1690 = vsel %vm1634, %v1595, 0
      %v1693 = vsel %vm1634, %v1596, 0
      %v1696 = vsel %vm1634, %v1597, 0
      %v1699 = vsel %vm1634, %v1598, 0
      %v1702 = vsel %vm1634, %v1599, 0
      %v1705 = vsel %vm1634, %v1600, 0
      %v1708 = vsel %vm1634, %v1601, 0
      %v1711 = vsel %vm1634, %v1602, 0
      %v1714 = vsel %vm1634, %v1603, 0
      %v1717 = vsel %vm1634, %v1604, 0
      %v1720 = vsel %vm1634, %v1605, 0
      %v1723 = vsel %vm1634, %v1606, 0
      %v1726 = vsel %vm1634, %v1607, 0
      %v1729 = vsel %vm1634, %v1608, 0
      %v1732 = vsel %vm1634, %v1609, 0
      %v1735 = vsel %vm1634, %v1610, 0
      %v1738 = vsel %vm1634, %v1611, 0
      %v1741 = vsel %vm1634, %v1612, 0
      %v1744 = vsel %vm1634, %v1613, 0
      %v1747 = vsel %vm1634, %v1614, 0
      %v1750 = vsel %vm1634, %v1615, 0
      %v1753 = vsel %vm1634, %v1616, 0
      %v1756 = vsel %vm1634, %v1617, 0
      %v1759 = vsel %vm1634, %v1618, 0
      %v1762 = vsel %vm1634, %v1619, 0
      %v1765 = vsel %vm1634, %v1620, 0
      %v1768 = vsel %vm1634, %v1621, 0
      %v1771 = vsel %vm1634, %v1622, 0
      %v1774 = vsel %vm1634, %v1623, 0
      %v1777 = vsel %vm1634, %v1624, 0
      %v1780 = vsel %vm1634, %v1625, 0
      %v1783 = vsel %vm1634, %v1626, 0
      %v1786 = vsel %vm1634, %v1627, 0
      %v1789 = vsel %vm1634, %v1628, 0
      %v1792 = vsel %vm1634, %v1629, 0
      %v1795 = vsel %vm1634, %v1630, 0
      %v1798 = vsel %vm1634, %v1631, 0
      %v1801 = vsel %vm1634, %v1632, 0
      %vm1803 = vcmask 1045504
      %v1805 = vsel %vm1803, %v1633, 0
      %1807 = vmatprep.subr.mxu0 0.0
      %1808 = vmatpush1.msra.mxu0 %v1805
      %1809 = vmatprep.subr.mxu0 0.0
      %1810 = vmatpush1.msra.mxu0 0.0
      %1811 = vmatprep.subr.mxu0 0.0
      %1812 = vmatpush1.msra.mxu0 0.0
      %1813 = vmatprep.subr.mxu0 0.0
      %1814 = vmatpush1.msra.mxu0 0.0
      %1815 = vmatprep.subr.mxu0 0.0
      %1816 = vmatpush1.msra.mxu0 0.0
      %1817 = vmatprep.subr.mxu0 0.0
      %1818 = vmatpush1.msra.mxu0 0.0
      %1819 = vmatprep.subr.mxu0 0.0
      %1820 = vmatpush1.msra.mxu0 0.0
      %1821 = vmatprep.subr.mxu0 0.0
      %1822 = vmatpush1.msra.mxu0 0.0
      %1823 = vmatprep.subr.mxu0 0.0
      %1824 = vmatpush1.msra.mxu0 0.0
      %1825 = vmatprep.subr.mxu0 0.0
      %1826 = vmatpush1.msra.mxu0 0.0
      %1827 = vmatprep.subr.mxu0 0.0
      %1828 = vmatpush1.msra.mxu0 0.0
      %1829 = vmatprep.subr.mxu0 0.0
      %1830 = vmatpush1.msra.mxu0 0.0
      %1831 = vmatprep.subr.mxu0 0.0
      %1832 = vmatpush1.msra.mxu0 0.0
      %1833 = vmatprep.subr.mxu0 0.0
      %1834 = vmatpush1.msra.mxu0 0.0
      %1835 = vmatprep.subr.mxu0 0.0
      %1836 = vmatpush1.msra.mxu0 0.0
      %1837 = vmatprep.subr.mxu0 0.0
      %1838 = vmatpush1.msra.mxu0 0.0
      %1839 = vmatprep.subr.mxu0 0.0
      %1840 = vmatpush1.msra.mxu0 0.0
      %1841 = vmatprep.subr.mxu0 0.0
      %1842 = vmatpush1.msra.mxu0 0.0
      %1843 = vmatprep.subr.mxu0 0.0
      %1844 = vmatpush1.msra.mxu0 0.0
      %1845 = vmatprep.subr.mxu0 0.0
      %1846 = vmatpush1.msra.mxu0 0.0
      %1847 = vmatprep.subr.mxu0 0.0
      %1848 = vmatpush1.msra.mxu0 0.0
      %1849 = vmatprep.subr.mxu0 0.0
      %1850 = vmatpush1.msra.mxu0 0.0
      %1851 = vmatprep.subr.mxu0 0.0
      %1852 = vmatpush1.msra.mxu0 0.0
      %1853 = vmatprep.subr.mxu0 0.0
      %1854 = vmatpush1.msra.mxu0 0.0
      %1855 = vmatprep.subr.mxu0 0.0
      %1856 = vmatpush1.msra.mxu0 0.0
      %1857 = vmatprep.subr.mxu0 0.0
      %1858 = vmatpush1.msra.mxu0 0.0
      %1859 = vmatprep.subr.mxu0 0.0
      %1860 = vmatpush1.msra.mxu0 0.0
      %1861 = vmatprep.subr.mxu0 0.0
      %1862 = vmatpush1.msra.mxu0 0.0
      %1863 = vmatprep.subr.mxu0 0.0
      %1864 = vmatpush1.msra.mxu0 0.0
      %1865 = vmatprep.subr.mxu0 0.0
      %1866 = vmatpush1.msra.mxu0 0.0
      %1867 = vmatprep.subr.mxu0 0.0
      %1868 = vmatpush1.msra.mxu0 0.0
      %1869 = vmatprep.subr.mxu0 0.0
      %1870 = vmatpush1.msra.mxu0 0.0
      %1871 = vmatprep.mubr.f32.mxu0 0.0
      %1872 = vmatmul.mubr.f32.gmra.mrb[0].mxu0 %v1636
      %v1873 = vpop.f32.mrb[0].mxu0
      %v1874 = vadd.f32 0.0, %v1873
      %v1875 = vpop.f32.mrb[0].mxu0
      %1876 = vmatprep.mubr.f32.mxu0 0.0
      %1877 = vmatmul.mubr.f32.gmra.mrb[0].mxu0 %v1639
      %v1878 = vpop.f32.mrb[0].mxu0
      %v1879 = vadd.f32 0.0, %v1878
      %v1880 = vpop.f32.mrb[0].mxu0
      %1881 = vmatprep.mubr.f32.mxu0 0.0
      %1882 = vmatmul.mubr.f32.gmra.mrb[0].mxu0 %v1642
      %v1883 = vpop.f32.mrb[0].mxu0
      %v1884 = vadd.f32 0.0, %v1883
      %v1885 = vpop.f32.mrb[0].mxu0
      %1886 = vmatprep.mubr.f32.mxu0 0.0
      %1887 = vmatmul.mubr.f32.gmra.mrb[0].mxu0 %v1645
      %v1888 = vpop.f32.mrb[0].mxu0
      %v1889 = vadd.f32 0.0, %v1888
      %v1890 = vpop.f32.mrb[0].mxu0
      %1891 = vmatprep.mubr.f32.mxu0 0.0
      %1892 = vmatmul.mubr.f32.gmra.mrb[0].mxu0 %v1648
      %v1893 = vpop.f32.mrb[0].mxu0
      %v1894 = vadd.f32 0.0, %v1893
      %v1895 = vpop.f32.mrb[0].mxu0
      %1896 = vmatprep.mubr.f32.mxu0 0.0
      %1897 = vmatmul.mubr.f32.gmra.mrb[0].mxu0 %v1651
      %v1898 = vpop.f32.mrb[0].mxu0
      %v1899 = vadd.f32 0.0, %v1898
      %v1900 = vpop.f32.mrb[0].mxu0
      %1901 = vmatprep.mubr.f32.mxu0 0.0
      %1902 = vmatmul.mubr.f32.gmra.mrb[0].mxu0 %v1654
      %v1903 = vpop.f32.mrb[0].mxu0
      %v1904 = vadd.f32 0.0, %v1903
      %v1905 = vpop.f32.mrb[0].mxu0
      %1906 = vmatprep.mubr.f32.mxu0 0.0
      %1907 = vmatmul.mubr.f32.gmra.mrb[0].mxu0 %v1657
      %v1908 = vpop.f32.mrb[0].mxu0
      %v1909 = vadd.f32 0.0, %v1908
      %v1910 = vpop.f32.mrb[0].mxu0
      %1911 = vmatprep.mubr.f32.mxu0 0.0
      %1912 = vmatmul.mubr.f32.gmra.mrb[0].mxu0 %v1660
      %v1913 = vpop.f32.mrb[0].mxu0
      %v1914 = vadd.f32 0.0, %v1913
      %v1915 = vpop.f32.mrb[0].mxu0
      %1916 = vmatprep.mubr.f32.mxu0 0.0
      %1917 = vmatmul.mubr.f32.gmra.mrb[0].mxu0 %v1663
      %v1918 = vpop.f32.mrb[0].mxu0
      %v1919 = vadd.f32 0.0, %v1918
      %v1920 = vpop.f32.mrb[0].mxu0
      %1921 = vmatprep.mubr.f32.mxu0 0.0
      %1922 = vmatmul.mubr.f32.gmra.mrb[0].mxu0 %v1666
      %v1923 = vpop.f32.mrb[0].mxu0
      %v1924 = vadd.f32 0.0, %v1923
      %v1925 = vpop.f32.mrb[0].mxu0
      %1926 = vmatprep.mubr.f32.mxu0 0.0
      %1927 = vmatmul.mubr.f32.gmra.mrb[0].mxu0 %v1669
      %v1928 = vpop.f32.mrb[0].mxu0
      %v1929 = vadd.f32 0.0, %v1928
      %v1930 = vpop.f32.mrb[0].mxu0
      %1931 = vmatprep.mubr.f32.mxu0 0.0
      %1932 = vmatmul.mubr.f32.gmra.mrb[0].mxu0 %v1672
      %v1933 = vpop.f32.mrb[0].mxu0
      %v1934 = vadd.f32 0.0, %v1933
      %v1935 = vpop.f32.mrb[0].mxu0
      %1936 = vmatprep.mubr.f32.mxu0 0.0
      %1937 = vmatmul.mubr.f32.gmra.mrb[0].mxu0 %v1675
      %v1938 = vpop.f32.mrb[0].mxu0
      %v1939 = vadd.f32 0.0, %v1938
      %v1940 = vpop.f32.mrb[0].mxu0
      %1941 = vmatprep.mubr.f32.mxu0 0.0
      %1942 = vmatmul.mubr.f32.gmra.mrb[0].mxu0 %v1678
      %v1943 = vpop.f32.mrb[0].mxu0
      %v1944 = vadd.f32 0.0, %v1943
      %v1945 = vpop.f32.mrb[0].mxu0
      %1946 = vmatprep.mubr.f32.mxu0 0.0
      %1947 = vmatmul.mubr.f32.gmra.mrb[0].mxu0 %v1681
      %v1948 = vpop.f32.mrb[0].mxu0
      %v1949 = vadd.f32 0.0, %v1948
      %v1950 = vpop.f32.mrb[0].mxu0
      %1951 = vmatprep.mubr.f32.mxu0 0.0
      %1952 = vmatmul.mubr.f32.gmra.mrb[0].mxu0 %v1684
      %v1953 = vpop.f32.mrb[0].mxu0
      %v1954 = vadd.f32 0.0, %v1953
      %v1955 = vpop.f32.mrb[0].mxu0
      %1956 = vmatprep.mubr.f32.mxu0 0.0
      %1957 = vmatmul.mubr.f32.gmra.mrb[0].mxu0 %v1687
      %v1958 = vpop.f32.mrb[0].mxu0
      %v1959 = vadd.f32 0.0, %v1958
      %v1960 = vpop.f32.mrb[0].mxu0
      %1961 = vmatprep.mubr.f32.mxu0 0.0
      %1962 = vmatmul.mubr.f32.gmra.mrb[0].mxu0 %v1690
      %v1963 = vpop.f32.mrb[0].mxu0
      %v1964 = vadd.f32 0.0, %v1963
      %v1965 = vpop.f32.mrb[0].mxu0
      %1966 = vmatprep.mubr.f32.mxu0 0.0
      %1967 = vmatmul.mubr.f32.gmra.mrb[0].mxu0 %v1693
      %v1968 = vpop.f32.mrb[0].mxu0
      %v1969 = vadd.f32 0.0, %v1968
      %v1970 = vpop.f32.mrb[0].mxu0
      %1971 = vmatprep.mubr.f32.mxu0 0.0
      %1972 = vmatmul.mubr.f32.gmra.mrb[0].mxu0 %v1696
      %v1973 = vpop.f32.mrb[0].mxu0
      %v1974 = vadd.f32 0.0, %v1973
      %v1975 = vpop.f32.mrb[0].mxu0
      %1976 = vmatprep.mubr.f32.mxu0 0.0
      %1977 = vmatmul.mubr.f32.gmra.mrb[0].mxu0 %v1699
      %v1978 = vpop.f32.mrb[0].mxu0
      %v1979 = vadd.f32 0.0, %v1978
      %v1980 = vpop.f32.mrb[0].mxu0
      %1981 = vmatprep.mubr.f32.mxu0 0.0
      %1982 = vmatmul.mubr.f32.gmra.mrb[0].mxu0 %v1702
      %v1983 = vpop.f32.mrb[0].mxu0
      %v1984 = vadd.f32 0.0, %v1983
      %v1985 = vpop.f32.mrb[0].mxu0
      %1986 = vmatprep.mubr.f32.mxu0 0.0
      %1987 = vmatmul.mubr.f32.gmra.mrb[0].mxu0 %v1705
      %v1988 = vpop.f32.mrb[0].mxu0
      %v1989 = vadd.f32 0.0, %v1988
      %v1990 = vpop.f32.mrb[0].mxu0
      %1991 = vmatprep.mubr.f32.mxu0 0.0
      %1992 = vmatmul.mubr.f32.gmra.mrb[0].mxu0 %v1708
      %v1993 = vpop.f32.mrb[0].mxu0
      %v1994 = vadd.f32 0.0, %v1993
      %v1995 = vpop.f32.mrb[0].mxu0
      %1996 = vmatprep.mubr.f32.mxu0 0.0
      %1997 = vmatmul.mubr.f32.gmra.mrb[0].mxu0 %v1711
      %v1998 = vpop.f32.mrb[0].mxu0
      %v1999 = vadd.f32 0.0, %v1998
      %v2000 = vpop.f32.mrb[0].mxu0
      %2001 = vmatprep.mubr.f32.mxu0 0.0
      %2002 = vmatmul.mubr.f32.gmra.mrb[0].mxu0 %v1714
      %v2003 = vpop.f32.mrb[0].mxu0
      %v2004 = vadd.f32 0.0, %v2003
      %v2005 = vpop.f32.mrb[0].mxu0
      %2006 = vmatprep.mubr.f32.mxu0 0.0
      %2007 = vmatmul.mubr.f32.gmra.mrb[0].mxu0 %v1717
      %v2008 = vpop.f32.mrb[0].mxu0
      %v2009 = vadd.f32 0.0, %v2008
      %v2010 = vpop.f32.mrb[0].mxu0
      %2011 = vmatprep.mubr.f32.mxu0 0.0
      %2012 = vmatmul.mubr.f32.gmra.mrb[0].mxu0 %v1720
      %v2013 = vpop.f32.mrb[0].mxu0
      %v2014 = vadd.f32 0.0, %v2013
      %v2015 = vpop.f32.mrb[0].mxu0
      %2016 = vmatprep.mubr.f32.mxu0 0.0
      %2017 = vmatmul.mubr.f32.gmra.mrb[0].mxu0 %v1723
      %v2018 = vpop.f32.mrb[0].mxu0
      %v2019 = vadd.f32 0.0, %v2018
      %v2020 = vpop.f32.mrb[0].mxu0
      %2021 = vmatprep.mubr.f32.mxu0 0.0
      %2022 = vmatmul.mubr.f32.gmra.mrb[0].mxu0 %v1726
      %v2023 = vpop.f32.mrb[0].mxu0
      %v2024 = vadd.f32 0.0, %v2023
      %v2025 = vpop.f32.mrb[0].mxu0
      %2026 = vmatprep.mubr.f32.mxu0 0.0
      %2027 = vmatmul.mubr.f32.gmra.mrb[0].mxu0 %v1729
      %v2028 = vpop.f32.mrb[0].mxu0
      %v2029 = vadd.f32 0.0, %v2028
      %v2030 = vpop.f32.mrb[0].mxu0
      %2031 = vmatprep.mubr.f32.mxu0 0.0
      %2032 = vmatmul.mubr.f32.gmra.mrb[0].mxu0 %v1732
      %v2033 = vpop.f32.mrb[0].mxu0
      %v2034 = vadd.f32 0.0, %v2033
      %v2035 = vpop.f32.mrb[0].mxu0
      %2036 = vmatprep.mubr.f32.mxu0 0.0
      %2037 = vmatmul.mubr.f32.gmra.mrb[0].mxu0 %v1735
      %v2038 = vpop.f32.mrb[0].mxu0
      %v2039 = vadd.f32 0.0, %v2038
      %v2040 = vpop.f32.mrb[0].mxu0
      %2041 = vmatprep.mubr.f32.mxu0 0.0
      %2042 = vmatmul.mubr.f32.gmra.mrb[0].mxu0 %v1738
      %v2043 = vpop.f32.mrb[0].mxu0
      %v2044 = vadd.f32 0.0, %v2043
      %v2045 = vpop.f32.mrb[0].mxu0
      %2046 = vmatprep.mubr.f32.mxu0 0.0
      %2047 = vmatmul.mubr.f32.gmra.mrb[0].mxu0 %v1741
      %v2048 = vpop.f32.mrb[0].mxu0
      %v2049 = vadd.f32 0.0, %v2048
      %v2050 = vpop.f32.mrb[0].mxu0
      %2051 = vmatprep.mubr.f32.mxu0 0.0
      %2052 = vmatmul.mubr.f32.gmra.mrb[0].mxu0 %v1744
      %v2053 = vpop.f32.mrb[0].mxu0
      %v2054 = vadd.f32 0.0, %v2053
      %v2055 = vpop.f32.mrb[0].mxu0
      %2056 = vmatprep.mubr.f32.mxu0 0.0
      %2057 = vmatmul.mubr.f32.gmra.mrb[0].mxu0 %v1747
      %v2058 = vpop.f32.mrb[0].mxu0
      %v2059 = vadd.f32 0.0, %v2058
      %v2060 = vpop.f32.mrb[0].mxu0
      %2061 = vmatprep.mubr.f32.mxu0 0.0
      %2062 = vmatmul.mubr.f32.gmra.mrb[0].mxu0 %v1750
      %v2063 = vpop.f32.mrb[0].mxu0
      %v2064 = vadd.f32 0.0, %v2063
      %v2065 = vpop.f32.mrb[0].mxu0
      %2066 = vmatprep.mubr.f32.mxu0 0.0
      %2067 = vmatmul.mubr.f32.gmra.mrb[0].mxu0 %v1753
      %v2068 = vpop.f32.mrb[0].mxu0
      %v2069 = vadd.f32 0.0, %v2068
      %v2070 = vpop.f32.mrb[0].mxu0
      %2071 = vmatprep.mubr.f32.mxu0 0.0
      %2072 = vmatmul.mubr.f32.gmra.mrb[0].mxu0 %v1756
      %v2073 = vpop.f32.mrb[0].mxu0
      %v2074 = vadd.f32 0.0, %v2073
      %v2075 = vpop.f32.mrb[0].mxu0
      %2076 = vmatprep.mubr.f32.mxu0 0.0
      %2077 = vmatmul.mubr.f32.gmra.mrb[0].mxu0 %v1759
      %v2078 = vpop.f32.mrb[0].mxu0
      %v2079 = vadd.f32 0.0, %v2078
      %v2080 = vpop.f32.mrb[0].mxu0
      %2081 = vmatprep.mubr.f32.mxu0 0.0
      %2082 = vmatmul.mubr.f32.gmra.mrb[0].mxu0 %v1762
      %v2083 = vpop.f32.mrb[0].mxu0
      %v2084 = vadd.f32 0.0, %v2083
      %v2085 = vpop.f32.mrb[0].mxu0
      %2086 = vmatprep.mubr.f32.mxu0 0.0
      %2087 = vmatmul.mubr.f32.gmra.mrb[0].mxu0 %v1765
      %v2088 = vpop.f32.mrb[0].mxu0
      %v2089 = vadd.f32 0.0, %v2088
      %v2090 = vpop.f32.mrb[0].mxu0
      %2091 = vmatprep.mubr.f32.mxu0 0.0
      %2092 = vmatmul.mubr.f32.gmra.mrb[0].mxu0 %v1768
      %v2093 = vpop.f32.mrb[0].mxu0
      %v2094 = vadd.f32 0.0, %v2093
      %v2095 = vpop.f32.mrb[0].mxu0
      %2096 = vmatprep.mubr.f32.mxu0 0.0
      %2097 = vmatmul.mubr.f32.gmra.mrb[0].mxu0 %v1771
      %v2098 = vpop.f32.mrb[0].mxu0
      %v2099 = vadd.f32 0.0, %v2098
      %v2100 = vpop.f32.mrb[0].mxu0
      %2101 = vmatprep.mubr.f32.mxu0 0.0
      %2102 = vmatmul.mubr.f32.gmra.mrb[0].mxu0 %v1774
      %v2103 = vpop.f32.mrb[0].mxu0
      %v2104 = vadd.f32 0.0, %v2103
      %v2105 = vpop.f32.mrb[0].mxu0
      %2106 = vmatprep.mubr.f32.mxu0 0.0
      %2107 = vmatmul.mubr.f32.gmra.mrb[0].mxu0 %v1777
      %v2108 = vpop.f32.mrb[0].mxu0
      %v2109 = vadd.f32 0.0, %v2108
      %v2110 = vpop.f32.mrb[0].mxu0
      %2111 = vmatprep.mubr.f32.mxu0 0.0
      %2112 = vmatmul.mubr.f32.gmra.mrb[0].mxu0 %v1780
      %v2113 = vpop.f32.mrb[0].mxu0
      %v2114 = vadd.f32 0.0, %v2113
      %v2115 = vpop.f32.mrb[0].mxu0
      %2116 = vmatprep.mubr.f32.mxu0 0.0
      %2117 = vmatmul.mubr.f32.gmra.mrb[0].mxu0 %v1783
      %v2118 = vpop.f32.mrb[0].mxu0
      %v2119 = vadd.f32 0.0, %v2118
      %v2120 = vpop.f32.mrb[0].mxu0
      %2121 = vmatprep.mubr.f32.mxu0 0.0
      %2122 = vmatmul.mubr.f32.gmra.mrb[0].mxu0 %v1786
      %v2123 = vpop.f32.mrb[0].mxu0
      %v2124 = vadd.f32 0.0, %v2123
      %v2125 = vpop.f32.mrb[0].mxu0
      %2126 = vmatprep.mubr.f32.mxu0 0.0
      %2127 = vmatmul.mubr.f32.gmra.mrb[0].mxu0 %v1789
      %v2128 = vpop.f32.mrb[0].mxu0
      %v2129 = vadd.f32 0.0, %v2128
      %v2130 = vpop.f32.mrb[0].mxu0
      %2131 = vmatprep.mubr.f32.mxu0 0.0
      %2132 = vmatmul.mubr.f32.gmra.mrb[0].mxu0 %v1792
      %v2133 = vpop.f32.mrb[0].mxu0
      %v2134 = vadd.f32 0.0, %v2133
      %v2135 = vpop.f32.mrb[0].mxu0
      %2136 = vmatprep.mubr.f32.mxu0 0.0
      %2137 = vmatmul.mubr.f32.gmra.mrb[0].mxu0 %v1795
      %v2138 = vpop.f32.mrb[0].mxu0
      %v2139 = vadd.f32 0.0, %v2138
      %v2140 = vpop.f32.mrb[0].mxu0
      %2141 = vmatprep.mubr.f32.mxu0 0.0
      %2142 = vmatmul.mubr.f32.gmra.mrb[0].mxu0 %v1798
      %v2143 = vpop.f32.mrb[0].mxu0
      %v2144 = vadd.f32 0.0, %v2143
      %v2145 = vpop.f32.mrb[0].mxu0
      %2146 = vmatprep.mubr.f32.mxu0 0.0
      %2147 = vmatmul.mubr.f32.gmra.mrb[0].mxu0 %v1801
      %v2148 = vpop.f32.mrb[0].mxu0
      %v2149 = vadd.f32 0.0, %v2148
      %v2150 = vpop.f32.mrb[0].mxu0
      %2151 = vdwg.mxu0
      %vm2152 = vcmask 408576
      %v2154 = vsel %vm2152, %v1003, 0
      %v2157 = vsel %vm2152, %v1004, 0
      %v2160 = vsel %vm2152, %v1005, 0
      %v2163 = vsel %vm2152, %v1006, 0
      %v2166 = vsel %vm2152, %v1007, 0
      %v2169 = vsel %vm2152, %v1008, 0
      %v2172 = vsel %vm2152, %v1009, 0
      %v2175 = vsel %vm2152, %v1010, 0
      %v2178 = vsel %vm2152, %v1011, 0
      %v2181 = vsel %vm2152, %v1012, 0
      %v2184 = vsel %vm2152, %v1013, 0
      %v2187 = vsel %vm2152, %v1014, 0
      %v2190 = vsel %vm2152, %v1015, 0
      %v2193 = vsel %vm2152, %v1016, 0
      %v2196 = vsel %vm2152, %v1017, 0
      %v2199 = vsel %vm2152, %v1018, 0
      %v2202 = vsel %vm2152, %v1019, 0
      %v2205 = vsel %vm2152, %v1020, 0
      %v2208 = vsel %vm2152, %v1021, 0
      %v2211 = vsel %vm2152, %v1022, 0
      %v2214 = vsel %vm2152, %v1023, 0
      %v2217 = vsel %vm2152, %v1024, 0
      %v2220 = vsel %vm2152, %v1025, 0
      %v2223 = vsel %vm2152, %v1026, 0
      %v2226 = vsel %vm2152, %v1027, 0
      %v2229 = vsel %vm2152, %v1028, 0
      %v2232 = vsel %vm2152, %v1029, 0
      %v2235 = vsel %vm2152, %v1030, 0
      %v2238 = vsel %vm2152, %v1031, 0
      %v2241 = vsel %vm2152, %v1032, 0
      %v2244 = vsel %vm2152, %v1033, 0
      %v2247 = vsel %vm2152, %v1034, 0
      %v2250 = vsel %vm2152, %v1035, 0
      %v2253 = vsel %vm2152, %v1036, 0
      %v2256 = vsel %vm2152, %v1037, 0
      %v2259 = vsel %vm2152, %v1038, 0
      %v2262 = vsel %vm2152, %v1039, 0
      %v2265 = vsel %vm2152, %v1040, 0
      %v2268 = vsel %vm2152, %v1041, 0
      %v2271 = vsel %vm2152, %v1042, 0
      %v2274 = vsel %vm2152, %v1043, 0
      %v2277 = vsel %vm2152, %v1044, 0
      %v2280 = vsel %vm2152, %v1045, 0
      %v2283 = vsel %vm2152, %v1046, 0
      %v2286 = vsel %vm2152, %v1047, 0
      %v2289 = vsel %vm2152, %v1048, 0
      %v2292 = vsel %vm2152, %v1049, 0
      %v2295 = vsel %vm2152, %v1050, 0
      %v2298 = vsel %vm2152, %v1051, 0
      %v2301 = vsel %vm2152, %v1052, 0
      %v2304 = vsel %vm2152, %v1053, 0
      %v2307 = vsel %vm2152, %v1054, 0
      %v2310 = vsel %vm2152, %v1055, 0
      %v2313 = vsel %vm2152, %v1056, 0
      %v2316 = vsel %vm2152, %v1057, 0
      %v2319 = vsel %vm2152, %v1058, 0
      %vm2321 = vcmask 1041408
      %v2323 = vsel %vm2321, %v1065, 0
      %2325 = vmatprep.subr.mxu0 0.0
      %2326 = vmatpush1.msra.mxu0 %v1059
      %2327 = vmatprep.subr.mxu0 0.0
      %2328 = vmatpush1.msra.mxu0 %v1060
      %2329 = vmatprep.subr.mxu0 0.0
      %2330 = vmatpush1.msra.mxu0 %v1061
      %2331 = vmatprep.subr.mxu0 0.0
      %2332 = vmatpush1.msra.mxu0 %v1062
      %2333 = vmatprep.subr.mxu0 0.0
      %2334 = vmatpush1.msra.mxu0 %v1063
      %2335 = vmatprep.subr.mxu0 0.0
      %2336 = vmatpush1.msra.mxu0 %v1064
      %2337 = vmatprep.subr.mxu0 0.0
      %2338 = vmatpush1.msra.mxu0 %v2323
      %2339 = vmatprep.subr.mxu0 0.0
      %2340 = vmatpush1.msra.mxu0 0.0
      %2341 = vmatprep.subr.mxu0 0.0
      %2342 = vmatpush1.msra.mxu0 0.0
      %2343 = vmatprep.subr.mxu0 0.0
      %2344 = vmatpush1.msra.mxu0 0.0
      %2345 = vmatprep.subr.mxu0 0.0
      %2346 = vmatpush1.msra.mxu0 0.0
      %2347 = vmatprep.subr.mxu0 0.0
      %2348 = vmatpush1.msra.mxu0 0.0
      %2349 = vmatprep.subr.mxu0 0.0
      %2350 = vmatpush1.msra.mxu0 0.0
      %2351 = vmatprep.subr.mxu0 0.0
      %2352 = vmatpush1.msra.mxu0 0.0
      %2353 = vmatprep.subr.mxu0 0.0
      %2354 = vmatpush1.msra.mxu0 0.0
      %2355 = vmatprep.subr.mxu0 0.0
      %2356 = vmatpush1.msra.mxu0 0.0
      %2357 = vmatprep.subr.mxu0 0.0
      %2358 = vmatpush1.msra.mxu0 0.0
      %2359 = vmatprep.subr.mxu0 0.0
      %2360 = vmatpush1.msra.mxu0 0.0
      %2361 = vmatprep.subr.mxu0 0.0
      %2362 = vmatpush1.msra.mxu0 0.0
      %2363 = vmatprep.subr.mxu0 0.0
      %2364 = vmatpush1.msra.mxu0 0.0
      %2365 = vmatprep.subr.mxu0 0.0
      %2366 = vmatpush1.msra.mxu0 0.0
      %2367 = vmatprep.subr.mxu0 0.0
      %2368 = vmatpush1.msra.mxu0 0.0
      %2369 = vmatprep.subr.mxu0 0.0
      %2370 = vmatpush1.msra.mxu0 0.0
      %2371 = vmatprep.subr.mxu0 0.0
      %2372 = vmatpush1.msra.mxu0 0.0
      %2373 = vmatprep.subr.mxu0 0.0
      %2374 = vmatpush1.msra.mxu0 0.0
      %2375 = vmatprep.subr.mxu0 0.0
      %2376 = vmatpush1.msra.mxu0 0.0
      %2377 = vmatprep.subr.mxu0 0.0
      %2378 = vmatpush1.msra.mxu0 0.0
      %2379 = vmatprep.subr.mxu0 0.0
      %2380 = vmatpush1.msra.mxu0 0.0
      %2381 = vmatprep.subr.mxu0 0.0
      %2382 = vmatpush1.msra.mxu0 0.0
      %2383 = vmatprep.subr.mxu0 0.0
      %2384 = vmatpush1.msra.mxu0 0.0
      %2385 = vmatprep.subr.mxu0 0.0
      %2386 = vmatpush1.msra.mxu0 0.0
      %2387 = vmatprep.subr.mxu0 0.0
      %2388 = vmatpush1.msra.mxu0 0.0
      %2389 = vmatprep.mubr.f32.mxu0 0.0
      %2390 = vmatmul.mubr.f32.gmra.mrb[0].mxu0 %v2154
      %v2391 = vpop.f32.mrb[0].mxu0
      %v2392 = vadd.f32 %v1874, %v2391
      %v2393 = vpop.f32.mrb[0].mxu0
      %2394 = vmatprep.mubr.f32.mxu0 0.0
      %2395 = vmatmul.mubr.f32.gmra.mrb[0].mxu0 %v2157
      %v2396 = vpop.f32.mrb[0].mxu0
      %v2397 = vadd.f32 %v1879, %v2396
      %v2398 = vpop.f32.mrb[0].mxu0
      %2399 = vmatprep.mubr.f32.mxu0 0.0
      %2400 = vmatmul.mubr.f32.gmra.mrb[0].mxu0 %v2160
      %v2401 = vpop.f32.mrb[0].mxu0
      %v2402 = vadd.f32 %v1884, %v2401
      %v2403 = vpop.f32.mrb[0].mxu0
      %2404 = vmatprep.mubr.f32.mxu0 0.0
      %2405 = vmatmul.mubr.f32.gmra.mrb[0].mxu0 %v2163
      %v2406 = vpop.f32.mrb[0].mxu0
      %v2407 = vadd.f32 %v1889, %v2406
      %v2408 = vpop.f32.mrb[0].mxu0
      %2409 = vmatprep.mubr.f32.mxu0 0.0
      %2410 = vmatmul.mubr.f32.gmra.mrb[0].mxu0 %v2166
      %v2411 = vpop.f32.mrb[0].mxu0
      %v2412 = vadd.f32 %v1894, %v2411
      %v2413 = vpop.f32.mrb[0].mxu0
      %2414 = vmatprep.mubr.f32.mxu0 0.0
      %2415 = vmatmul.mubr.f32.gmra.mrb[0].mxu0 %v2169
      %v2416 = vpop.f32.mrb[0].mxu0
      %v2417 = vadd.f32 %v1899, %v2416
      %v2418 = vpop.f32.mrb[0].mxu0
      %2419 = vmatprep.mubr.f32.mxu0 0.0
      %2420 = vmatmul.mubr.f32.gmra.mrb[0].mxu0 %v2172
      %v2421 = vpop.f32.mrb[0].mxu0
      %v2422 = vadd.f32 %v1904, %v2421
      %v2423 = vpop.f32.mrb[0].mxu0
      %2424 = vmatprep.mubr.f32.mxu0 0.0
      %2425 = vmatmul.mubr.f32.gmra.mrb[0].mxu0 %v2175
      %v2426 = vpop.f32.mrb[0].mxu0
      %v2427 = vadd.f32 %v1909, %v2426
      %v2428 = vpop.f32.mrb[0].mxu0
      %2429 = vmatprep.mubr.f32.mxu0 0.0
      %2430 = vmatmul.mubr.f32.gmra.mrb[0].mxu0 %v2178
      %v2431 = vpop.f32.mrb[0].mxu0
      %v2432 = vadd.f32 %v1914, %v2431
      %v2433 = vpop.f32.mrb[0].mxu0
      %2434 = vmatprep.mubr.f32.mxu0 0.0
      %2435 = vmatmul.mubr.f32.gmra.mrb[0].mxu0 %v2181
      %v2436 = vpop.f32.mrb[0].mxu0
      %v2437 = vadd.f32 %v1919, %v2436
      %v2438 = vpop.f32.mrb[0].mxu0
      %2439 = vmatprep.mubr.f32.mxu0 0.0
      %2440 = vmatmul.mubr.f32.gmra.mrb[0].mxu0 %v2184
      %v2441 = vpop.f32.mrb[0].mxu0
      %v2442 = vadd.f32 %v1924, %v2441
      %v2443 = vpop.f32.mrb[0].mxu0
      %2444 = vmatprep.mubr.f32.mxu0 0.0
      %2445 = vmatmul.mubr.f32.gmra.mrb[0].mxu0 %v2187
      %v2446 = vpop.f32.mrb[0].mxu0
      %v2447 = vadd.f32 %v1929, %v2446
      %v2448 = vpop.f32.mrb[0].mxu0
      %2449 = vmatprep.mubr.f32.mxu0 0.0
      %2450 = vmatmul.mubr.f32.gmra.mrb[0].mxu0 %v2190
      %v2451 = vpop.f32.mrb[0].mxu0
      %v2452 = vadd.f32 %v1934, %v2451
      %v2453 = vpop.f32.mrb[0].mxu0
      %2454 = vmatprep.mubr.f32.mxu0 0.0
      %2455 = vmatmul.mubr.f32.gmra.mrb[0].mxu0 %v2193
      %v2456 = vpop.f32.mrb[0].mxu0
      %v2457 = vadd.f32 %v1939, %v2456
      %v2458 = vpop.f32.mrb[0].mxu0
      %2459 = vmatprep.mubr.f32.mxu0 0.0
      %2460 = vmatmul.mubr.f32.gmra.mrb[0].mxu0 %v2196
      %v2461 = vpop.f32.mrb[0].mxu0
      %v2462 = vadd.f32 %v1944, %v2461
      %v2463 = vpop.f32.mrb[0].mxu0
      %2464 = vmatprep.mubr.f32.mxu0 0.0
      %2465 = vmatmul.mubr.f32.gmra.mrb[0].mxu0 %v2199
      %v2466 = vpop.f32.mrb[0].mxu0
      %v2467 = vadd.f32 %v1949, %v2466
      %v2468 = vpop.f32.mrb[0].mxu0
      %2469 = vmatprep.mubr.f32.mxu0 0.0
      %2470 = vmatmul.mubr.f32.gmra.mrb[0].mxu0 %v2202
      %v2471 = vpop.f32.mrb[0].mxu0
      %v2472 = vadd.f32 %v1954, %v2471
      %v2473 = vpop.f32.mrb[0].mxu0
      %2474 = vmatprep.mubr.f32.mxu0 0.0
      %2475 = vmatmul.mubr.f32.gmra.mrb[0].mxu0 %v2205
      %v2476 = vpop.f32.mrb[0].mxu0
      %v2477 = vadd.f32 %v1959, %v2476
      %v2478 = vpop.f32.mrb[0].mxu0
      %2479 = vmatprep.mubr.f32.mxu0 0.0
      %2480 = vmatmul.mubr.f32.gmra.mrb[0].mxu0 %v2208
      %v2481 = vpop.f32.mrb[0].mxu0
      %v2482 = vadd.f32 %v1964, %v2481
      %v2483 = vpop.f32.mrb[0].mxu0
      %2484 = vmatprep.mubr.f32.mxu0 0.0
      %2485 = vmatmul.mubr.f32.gmra.mrb[0].mxu0 %v2211
      %v2486 = vpop.f32.mrb[0].mxu0
      %v2487 = vadd.f32 %v1969, %v2486
      %v2488 = vpop.f32.mrb[0].mxu0
      %2489 = vmatprep.mubr.f32.mxu0 0.0
      %2490 = vmatmul.mubr.f32.gmra.mrb[0].mxu0 %v2214
      %v2491 = vpop.f32.mrb[0].mxu0
      %v2492 = vadd.f32 %v1974, %v2491
      %v2493 = vpop.f32.mrb[0].mxu0
      %2494 = vmatprep.mubr.f32.mxu0 0.0
      %2495 = vmatmul.mubr.f32.gmra.mrb[0].mxu0 %v2217
      %v2496 = vpop.f32.mrb[0].mxu0
      %v2497 = vadd.f32 %v1979, %v2496
      %v2498 = vpop.f32.mrb[0].mxu0
      %2499 = vmatprep.mubr.f32.mxu0 0.0
      %2500 = vmatmul.mubr.f32.gmra.mrb[0].mxu0 %v2220
      %v2501 = vpop.f32.mrb[0].mxu0
      %v2502 = vadd.f32 %v1984, %v2501
      %v2503 = vpop.f32.mrb[0].mxu0
      %2504 = vmatprep.mubr.f32.mxu0 0.0
      %2505 = vmatmul.mubr.f32.gmra.mrb[0].mxu0 %v2223
      %v2506 = vpop.f32.mrb[0].mxu0
      %v2507 = vadd.f32 %v1989, %v2506
      %v2508 = vpop.f32.mrb[0].mxu0
      %2509 = vmatprep.mubr.f32.mxu0 0.0
      %2510 = vmatmul.mubr.f32.gmra.mrb[0].mxu0 %v2226
      %v2511 = vpop.f32.mrb[0].mxu0
      %v2512 = vadd.f32 %v1994, %v2511
      %v2513 = vpop.f32.mrb[0].mxu0
      %2514 = vmatprep.mubr.f32.mxu0 0.0
      %2515 = vmatmul.mubr.f32.gmra.mrb[0].mxu0 %v2229
      %v2516 = vpop.f32.mrb[0].mxu0
      %v2517 = vadd.f32 %v1999, %v2516
      %v2518 = vpop.f32.mrb[0].mxu0
      %2519 = vmatprep.mubr.f32.mxu0 0.0
      %2520 = vmatmul.mubr.f32.gmra.mrb[0].mxu0 %v2232
      %v2521 = vpop.f32.mrb[0].mxu0
      %v2522 = vadd.f32 %v2004, %v2521
      %v2523 = vpop.f32.mrb[0].mxu0
      %2524 = vmatprep.mubr.f32.mxu0 0.0
      %2525 = vmatmul.mubr.f32.gmra.mrb[0].mxu0 %v2235
      %v2526 = vpop.f32.mrb[0].mxu0
      %v2527 = vadd.f32 %v2009, %v2526
      %v2528 = vpop.f32.mrb[0].mxu0
      %2529 = vmatprep.mubr.f32.mxu0 0.0
      %2530 = vmatmul.mubr.f32.gmra.mrb[0].mxu0 %v2238
      %v2531 = vpop.f32.mrb[0].mxu0
      %v2532 = vadd.f32 %v2014, %v2531
      %v2533 = vpop.f32.mrb[0].mxu0
      %2534 = vmatprep.mubr.f32.mxu0 0.0
      %2535 = vmatmul.mubr.f32.gmra.mrb[0].mxu0 %v2241
      %v2536 = vpop.f32.mrb[0].mxu0
      %v2537 = vadd.f32 %v2019, %v2536
      %v2538 = vpop.f32.mrb[0].mxu0
      %2539 = vmatprep.mubr.f32.mxu0 0.0
      %2540 = vmatmul.mubr.f32.gmra.mrb[0].mxu0 %v2244
      %v2541 = vpop.f32.mrb[0].mxu0
      %v2542 = vadd.f32 %v2024, %v2541
      %v2543 = vpop.f32.mrb[0].mxu0
      %2544 = vmatprep.mubr.f32.mxu0 0.0
      %2545 = vmatmul.mubr.f32.gmra.mrb[0].mxu0 %v2247
      %v2546 = vpop.f32.mrb[0].mxu0
      %v2547 = vadd.f32 %v2029, %v2546
      %v2548 = vpop.f32.mrb[0].mxu0
      %2549 = vmatprep.mubr.f32.mxu0 0.0
      %2550 = vmatmul.mubr.f32.gmra.mrb[0].mxu0 %v2250
      %v2551 = vpop.f32.mrb[0].mxu0
      %v2552 = vadd.f32 %v2034, %v2551
      %v2553 = vpop.f32.mrb[0].mxu0
      %2554 = vmatprep.mubr.f32.mxu0 0.0
      %2555 = vmatmul.mubr.f32.gmra.mrb[0].mxu0 %v2253
      %v2556 = vpop.f32.mrb[0].mxu0
      %v2557 = vadd.f32 %v2039, %v2556
      %v2558 = vpop.f32.mrb[0].mxu0
      %2559 = vmatprep.mubr.f32.mxu0 0.0
      %2560 = vmatmul.mubr.f32.gmra.mrb[0].mxu0 %v2256
      %v2561 = vpop.f32.mrb[0].mxu0
      %v2562 = vadd.f32 %v2044, %v2561
      %v2563 = vpop.f32.mrb[0].mxu0
      %2564 = vmatprep.mubr.f32.mxu0 0.0
      %2565 = vmatmul.mubr.f32.gmra.mrb[0].mxu0 %v2259
      %v2566 = vpop.f32.mrb[0].mxu0
      %v2567 = vadd.f32 %v2049, %v2566
      %v2568 = vpop.f32.mrb[0].mxu0
      %2569 = vmatprep.mubr.f32.mxu0 0.0
      %2570 = vmatmul.mubr.f32.gmra.mrb[0].mxu0 %v2262
      %v2571 = vpop.f32.mrb[0].mxu0
      %v2572 = vadd.f32 %v2054, %v2571
      %v2573 = vpop.f32.mrb[0].mxu0
      %2574 = vmatprep.mubr.f32.mxu0 0.0
      %2575 = vmatmul.mubr.f32.gmra.mrb[0].mxu0 %v2265
      %v2576 = vpop.f32.mrb[0].mxu0
      %v2577 = vadd.f32 %v2059, %v2576
      %v2578 = vpop.f32.mrb[0].mxu0
      %2579 = vmatprep.mubr.f32.mxu0 0.0
      %2580 = vmatmul.mubr.f32.gmra.mrb[0].mxu0 %v2268
      %v2581 = vpop.f32.mrb[0].mxu0
      %v2582 = vadd.f32 %v2064, %v2581
      %v2583 = vpop.f32.mrb[0].mxu0
      %2584 = vmatprep.mubr.f32.mxu0 0.0
      %2585 = vmatmul.mubr.f32.gmra.mrb[0].mxu0 %v2271
      %v2586 = vpop.f32.mrb[0].mxu0
      %v2587 = vadd.f32 %v2069, %v2586
      %v2588 = vpop.f32.mrb[0].mxu0
      %2589 = vmatprep.mubr.f32.mxu0 0.0
      %2590 = vmatmul.mubr.f32.gmra.mrb[0].mxu0 %v2274
      %v2591 = vpop.f32.mrb[0].mxu0
      %v2592 = vadd.f32 %v2074, %v2591
      %v2593 = vpop.f32.mrb[0].mxu0
      %2594 = vmatprep.mubr.f32.mxu0 0.0
      %2595 = vmatmul.mubr.f32.gmra.mrb[0].mxu0 %v2277
      %v2596 = vpop.f32.mrb[0].mxu0
      %v2597 = vadd.f32 %v2079, %v2596
      %v2598 = vpop.f32.mrb[0].mxu0
      %2599 = vmatprep.mubr.f32.mxu0 0.0
      %2600 = vmatmul.mubr.f32.gmra.mrb[0].mxu0 %v2280
      %v2601 = vpop.f32.mrb[0].mxu0
      %v2602 = vadd.f32 %v2084, %v2601
      %v2603 = vpop.f32.mrb[0].mxu0
      %2604 = vmatprep.mubr.f32.mxu0 0.0
      %2605 = vmatmul.mubr.f32.gmra.mrb[0].mxu0 %v2283
      %v2606 = vpop.f32.mrb[0].mxu0
      %v2607 = vadd.f32 %v2089, %v2606
      %v2608 = vpop.f32.mrb[0].mxu0
      %2609 = vmatprep.mubr.f32.mxu0 0.0
      %2610 = vmatmul.mubr.f32.gmra.mrb[0].mxu0 %v2286
      %v2611 = vpop.f32.mrb[0].mxu0
      %v2612 = vadd.f32 %v2094, %v2611
      %v2613 = vpop.f32.mrb[0].mxu0
      %2614 = vmatprep.mubr.f32.mxu0 0.0
      %2615 = vmatmul.mubr.f32.gmra.mrb[0].mxu0 %v2289
      %v2616 = vpop.f32.mrb[0].mxu0
      %v2617 = vadd.f32 %v2099, %v2616
      %v2618 = vpop.f32.mrb[0].mxu0
      %2619 = vmatprep.mubr.f32.mxu0 0.0
      %2620 = vmatmul.mubr.f32.gmra.mrb[0].mxu0 %v2292
      %v2621 = vpop.f32.mrb[0].mxu0
      %v2622 = vadd.f32 %v2104, %v2621
      %v2623 = vpop.f32.mrb[0].mxu0
      %2624 = vmatprep.mubr.f32.mxu0 0.0
      %2625 = vmatmul.mubr.f32.gmra.mrb[0].mxu0 %v2295
      %v2626 = vpop.f32.mrb[0].mxu0
      %v2627 = vadd.f32 %v2109, %v2626
      %v2628 = vpop.f32.mrb[0].mxu0
      %2629 = vmatprep.mubr.f32.mxu0 0.0
      %2630 = vmatmul.mubr.f32.gmra.mrb[0].mxu0 %v2298
      %v2631 = vpop.f32.mrb[0].mxu0
      %v2632 = vadd.f32 %v2114, %v2631
      %v2633 = vpop.f32.mrb[0].mxu0
      %2634 = vmatprep.mubr.f32.mxu0 0.0
      %2635 = vmatmul.mubr.f32.gmra.mrb[0].mxu0 %v2301
      %v2636 = vpop.f32.mrb[0].mxu0
      %v2637 = vadd.f32 %v2119, %v2636
      %v2638 = vpop.f32.mrb[0].mxu0
      %2639 = vmatprep.mubr.f32.mxu0 0.0
      %2640 = vmatmul.mubr.f32.gmra.mrb[0].mxu0 %v2304
      %v2641 = vpop.f32.mrb[0].mxu0
      %v2642 = vadd.f32 %v2124, %v2641
      %v2643 = vpop.f32.mrb[0].mxu0
      %2644 = vmatprep.mubr.f32.mxu0 0.0
      %2645 = vmatmul.mubr.f32.gmra.mrb[0].mxu0 %v2307
      %v2646 = vpop.f32.mrb[0].mxu0
      %v2647 = vadd.f32 %v2129, %v2646
      %v2648 = vpop.f32.mrb[0].mxu0
      %2649 = vmatprep.mubr.f32.mxu0 0.0
      %2650 = vmatmul.mubr.f32.gmra.mrb[0].mxu0 %v2310
      %v2651 = vpop.f32.mrb[0].mxu0
      %v2652 = vadd.f32 %v2134, %v2651
      %v2653 = vpop.f32.mrb[0].mxu0
      %2654 = vmatprep.mubr.f32.mxu0 0.0
      %2655 = vmatmul.mubr.f32.gmra.mrb[0].mxu0 %v2313
      %v2656 = vpop.f32.mrb[0].mxu0
      %v2657 = vadd.f32 %v2139, %v2656
      %v2658 = vpop.f32.mrb[0].mxu0
      %2659 = vmatprep.mubr.f32.mxu0 0.0
      %2660 = vmatmul.mubr.f32.gmra.mrb[0].mxu0 %v2316
      %v2661 = vpop.f32.mrb[0].mxu0
      %v2662 = vadd.f32 %v2144, %v2661
      %v2663 = vpop.f32.mrb[0].mxu0
      %2664 = vmatprep.mubr.f32.mxu0 0.0
      %2665 = vmatmul.mubr.f32.gmra.mrb[0].mxu0 %v2319
      %v2666 = vpop.f32.mrb[0].mxu0
      %v2667 = vadd.f32 %v2149, %v2666
      %v2668 = vpop.f32.mrb[0].mxu0
      %2669 = vdwg.mxu0
      %v2670 = vmax.f32 %v2392, 0.0
      %v2671 = vmax.f32 %v2397, 0.0
      %v2672 = vmax.f32 %v2402, 0.0
      %v2673 = vmax.f32 %v2407, 0.0
      %v2674 = vmax.f32 %v2412, 0.0
      %v2675 = vmax.f32 %v2417, 0.0
      %v2676 = vmax.f32 %v2422, 0.0
      %v2677 = vmax.f32 %v2427, 0.0
      %v2678 = vmax.f32 %v2432, 0.0
      %v2679 = vmax.f32 %v2437, 0.0
      %v2680 = vmax.f32 %v2442, 0.0
      %v2681 = vmax.f32 %v2447, 0.0
      %v2682 = vmax.f32 %v2452, 0.0
      %v2683 = vmax.f32 %v2457, 0.0
      %v2684 = vmax.f32 %v2462, 0.0
      %v2685 = vmax.f32 %v2467, 0.0
      %v2686 = vmax.f32 %v2472, 0.0
      %v2687 = vmax.f32 %v2477, 0.0
      %v2688 = vmax.f32 %v2482, 0.0
      %v2689 = vmax.f32 %v2487, 0.0
      %v2690 = vmax.f32 %v2492, 0.0
      %v2691 = vmax.f32 %v2497, 0.0
      %v2692 = vmax.f32 %v2502, 0.0
      %v2693 = vmax.f32 %v2507, 0.0
      %v2694 = vmax.f32 %v2512, 0.0
      %v2695 = vmax.f32 %v2517, 0.0
      %v2696 = vmax.f32 %v2522, 0.0
      %v2697 = vmax.f32 %v2527, 0.0
      %v2698 = vmax.f32 %v2532, 0.0
      %v2699 = vmax.f32 %v2537, 0.0
      %v2700 = vmax.f32 %v2542, 0.0
      %v2701 = vmax.f32 %v2547, 0.0
      %v2702 = vmax.f32 %v2552, 0.0
      %v2703 = vmax.f32 %v2557, 0.0
      %v2704 = vmax.f32 %v2562, 0.0
      %v2705 = vmax.f32 %v2567, 0.0
      %v2706 = vmax.f32 %v2572, 0.0
      %v2707 = vmax.f32 %v2577, 0.0
      %v2708 = vmax.f32 %v2582, 0.0
      %v2709 = vmax.f32 %v2587, 0.0
      %v2710 = vmax.f32 %v2592, 0.0
      %v2711 = vmax.f32 %v2597, 0.0
      %v2712 = vmax.f32 %v2602, 0.0
      %v2713 = vmax.f32 %v2607, 0.0
      %v2714 = vmax.f32 %v2612, 0.0
      %v2715 = vmax.f32 %v2617, 0.0
      %v2716 = vmax.f32 %v2622, 0.0
      %v2717 = vmax.f32 %v2627, 0.0
      %v2718 = vmax.f32 %v2632, 0.0
      %v2719 = vmax.f32 %v2637, 0.0
      %v2720 = vmax.f32 %v2642, 0.0
      %v2721 = vmax.f32 %v2647, 0.0
      %v2722 = vmax.f32 %v2652, 0.0
      %v2723 = vmax.f32 %v2657, 0.0
      %v2724 = vmax.f32 %v2662, 0.0
      %v2725 = vmax.f32 %v2667, 0.0
      %v2726 = vld [vmem:[%s6] sm:$0xff]
      %v2727 = vld [vmem:[%s6 + $0x8] sm:$0xff]
      %v2728 = vld [vmem:[%s6 + $0x10] sm:$0xff]
      %v2729 = vld [vmem:[%s6 + $0x18] sm:$0xff]
      %v2730 = vld [vmem:[%s7] sm:$0x1]
      %v2732 = vlaneseq
      %v2733 = vshrl.u32 %v2732, 7
      %v2734 = vsub.s32 0, %v2733
      %v2735 = vrot.slane %v2730, %v2734
      %vm2737 = vcmask 261120
      %v2739 = vsel %vm2737, %v2670, 0
      %v2742 = vsel %vm2737, %v2671, 0
      %v2745 = vsel %vm2737, %v2672, 0
      %v2748 = vsel %vm2737, %v2673, 0
      %v2751 = vsel %vm2737, %v2674, 0
      %v2754 = vsel %vm2737, %v2675, 0
      %v2757 = vsel %vm2737, %v2676, 0
      %v2760 = vsel %vm2737, %v2677, 0
      %v2763 = vsel %vm2737, %v2678, 0
      %v2766 = vsel %vm2737, %v2679, 0
      %v2769 = vsel %vm2737, %v2680, 0
      %v2772 = vsel %vm2737, %v2681, 0
      %v2775 = vsel %vm2737, %v2682, 0
      %v2778 = vsel %vm2737, %v2683, 0
      %v2781 = vsel %vm2737, %v2684, 0
      %v2784 = vsel %vm2737, %v2685, 0
      %v2787 = vsel %vm2737, %v2686, 0
      %v2790 = vsel %vm2737, %v2687, 0
      %v2793 = vsel %vm2737, %v2688, 0
      %v2796 = vsel %vm2737, %v2689, 0
      %v2799 = vsel %vm2737, %v2690, 0
      %v2802 = vsel %vm2737, %v2691, 0
      %v2805 = vsel %vm2737, %v2692, 0
      %v2808 = vsel %vm2737, %v2693, 0
      %v2811 = vsel %vm2737, %v2694, 0
      %v2814 = vsel %vm2737, %v2695, 0
      %v2817 = vsel %vm2737, %v2696, 0
      %v2820 = vsel %vm2737, %v2697, 0
      %v2823 = vsel %vm2737, %v2698, 0
      %v2826 = vsel %vm2737, %v2699, 0
      %v2829 = vsel %vm2737, %v2700, 0
      %v2832 = vsel %vm2737, %v2701, 0
      %v2835 = vsel %vm2737, %v2702, 0
      %v2838 = vsel %vm2737, %v2703, 0
      %v2841 = vsel %vm2737, %v2704, 0
      %v2844 = vsel %vm2737, %v2705, 0
      %v2847 = vsel %vm2737, %v2706, 0
      %v2850 = vsel %vm2737, %v2707, 0
      %v2853 = vsel %vm2737, %v2708, 0
      %v2856 = vsel %vm2737, %v2709, 0
      %v2859 = vsel %vm2737, %v2710, 0
      %v2862 = vsel %vm2737, %v2711, 0
      %v2865 = vsel %vm2737, %v2712, 0
      %v2868 = vsel %vm2737, %v2713, 0
      %v2871 = vsel %vm2737, %v2714, 0
      %v2874 = vsel %vm2737, %v2715, 0
      %v2877 = vsel %vm2737, %v2716, 0
      %v2880 = vsel %vm2737, %v2717, 0
      %v2883 = vsel %vm2737, %v2718, 0
      %v2886 = vsel %vm2737, %v2719, 0
      %v2889 = vsel %vm2737, %v2720, 0
      %v2892 = vsel %vm2737, %v2721, 0
      %v2895 = vsel %vm2737, %v2722, 0
      %v2898 = vsel %vm2737, %v2723, 0
      %v2901 = vsel %vm2737, %v2724, 0
      %v2904 = vsel %vm2737, %v2725, 0
      %2906 = vmatprep.subr.mxu0 0.0
      %2907 = vmatpush1.msra.mxu0 %v2726
      %2908 = vmatprep.subr.mxu0 0.0
      %2909 = vmatpush1.msra.mxu0 %v2727
      %2910 = vmatprep.subr.mxu0 0.0
      %2911 = vmatpush1.msra.mxu0 %v2728
      %2912 = vmatprep.subr.mxu0 0.0
      %2913 = vmatpush1.msra.mxu0 %v2729
      %2914 = vmatprep.subr.mxu0 0.0
      %2915 = vmatpush1.msra.mxu0 0.0
      %2916 = vmatprep.subr.mxu0 0.0
      %2917 = vmatpush1.msra.mxu0 0.0
      %2918 = vmatprep.subr.mxu0 0.0
      %2919 = vmatpush1.msra.mxu0 0.0
      %2920 = vmatprep.subr.mxu0 0.0
      %2921 = vmatpush1.msra.mxu0 0.0
      %2922 = vmatprep.subr.mxu0 0.0
      %2923 = vmatpush1.msra.mxu0 0.0
      %2924 = vmatprep.subr.mxu0 0.0
      %2925 = vmatpush1.msra.mxu0 0.0
      %2926 = vmatprep.subr.mxu0 0.0
      %2927 = vmatpush1.msra.mxu0 0.0
      %2928 = vmatprep.subr.mxu0 0.0
      %2929 = vmatpush1.msra.mxu0 0.0
      %2930 = vmatprep.subr.mxu0 0.0
      %2931 = vmatpush1.msra.mxu0 0.0
      %2932 = vmatprep.subr.mxu0 0.0
      %2933 = vmatpush1.msra.mxu0 0.0
      %2934 = vmatprep.subr.mxu0 0.0
      %2935 = vmatpush1.msra.mxu0 0.0
      %2936 = vmatprep.subr.mxu0 0.0
      %2937 = vmatpush1.msra.mxu0 0.0
      %2938 = vmatprep.subr.mxu0 0.0
      %2939 = vmatpush1.msra.mxu0 0.0
      %2940 = vmatprep.subr.mxu0 0.0
      %2941 = vmatpush1.msra.mxu0 0.0
      %2942 = vmatprep.subr.mxu0 0.0
      %2943 = vmatpush1.msra.mxu0 0.0
      %2944 = vmatprep.subr.mxu0 0.0
      %2945 = vmatpush1.msra.mxu0 0.0
      %2946 = vmatprep.subr.mxu0 0.0
      %2947 = vmatpush1.msra.mxu0 0.0
      %2948 = vmatprep.subr.mxu0 0.0
      %2949 = vmatpush1.msra.mxu0 0.0
      %2950 = vmatprep.subr.mxu0 0.0
      %2951 = vmatpush1.msra.mxu0 0.0
      %2952 = vmatprep.subr.mxu0 0.0
      %2953 = vmatpush1.msra.mxu0 0.0
      %2954 = vmatprep.subr.mxu0 0.0
      %2955 = vmatpush1.msra.mxu0 0.0
      %2956 = vmatprep.subr.mxu0 0.0
      %2957 = vmatpush1.msra.mxu0 0.0
      %2958 = vmatprep.subr.mxu0 0.0
      %2959 = vmatpush1.msra.mxu0 0.0
      %2960 = vmatprep.subr.mxu0 0.0
      %2961 = vmatpush1.msra.mxu0 0.0
      %2962 = vmatprep.subr.mxu0 0.0
      %2963 = vmatpush1.msra.mxu0 0.0
      %2964 = vmatprep.subr.mxu0 0.0
      %2965 = vmatpush1.msra.mxu0 0.0
      %2966 = vmatprep.subr.mxu0 0.0
      %2967 = vmatpush1.msra.mxu0 0.0
      %2968 = vmatprep.subr.mxu0 0.0
      %2969 = vmatpush1.msra.mxu0 0.0
      %2970 = vmatprep.mubr.f32.mxu0 0.0
      %2971 = vmatmul.mubr.f32.gmra.mrb[0].mxu0 %v2739
      %v2972 = vpop.f32.mrb[0].mxu0
      %v2973 = vadd.f32 %v2735, %v2972
      %v2974 = vpop.f32.mrb[0].mxu0
      %2975 = vmatprep.mubr.f32.mxu0 0.0
      %2976 = vmatmul.mubr.f32.gmra.mrb[0].mxu0 %v2742
      %v2977 = vpop.f32.mrb[0].mxu0
      %v2978 = vadd.f32 %v2735, %v2977
      %v2979 = vpop.f32.mrb[0].mxu0
      %2980 = vmatprep.mubr.f32.mxu0 0.0
      %2981 = vmatmul.mubr.f32.gmra.mrb[0].mxu0 %v2745
      %v2982 = vpop.f32.mrb[0].mxu0
      %v2983 = vadd.f32 %v2735, %v2982
      %v2984 = vpop.f32.mrb[0].mxu0
      %2985 = vmatprep.mubr.f32.mxu0 0.0
      %2986 = vmatmul.mubr.f32.gmra.mrb[0].mxu0 %v2748
      %v2987 = vpop.f32.mrb[0].mxu0
      %v2988 = vadd.f32 %v2735, %v2987
      %v2989 = vpop.f32.mrb[0].mxu0
      %2990 = vmatprep.mubr.f32.mxu0 0.0
      %2991 = vmatmul.mubr.f32.gmra.mrb[0].mxu0 %v2751
      %v2992 = vpop.f32.mrb[0].mxu0
      %v2993 = vadd.f32 %v2735, %v2992
      %v2994 = vpop.f32.mrb[0].mxu0
      %2995 = vmatprep.mubr.f32.mxu0 0.0
      %2996 = vmatmul.mubr.f32.gmra.mrb[0].mxu0 %v2754
      %v2997 = vpop.f32.mrb[0].mxu0
      %v2998 = vadd.f32 %v2735, %v2997
      %v2999 = vpop.f32.mrb[0].mxu0
      %3000 = vmatprep.mubr.f32.mxu0 0.0
      %3001 = vmatmul.mubr.f32.gmra.mrb[0].mxu0 %v2757
      %v3002 = vpop.f32.mrb[0].mxu0
      %v3003 = vadd.f32 %v2735, %v3002
      %v3004 = vpop.f32.mrb[0].mxu0
      %3005 = vmatprep.mubr.f32.mxu0 0.0
      %3006 = vmatmul.mubr.f32.gmra.mrb[0].mxu0 %v2760
      %v3007 = vpop.f32.mrb[0].mxu0
      %v3008 = vadd.f32 %v2735, %v3007
      %v3009 = vpop.f32.mrb[0].mxu0
      %3010 = vmatprep.mubr.f32.mxu0 0.0
      %3011 = vmatmul.mubr.f32.gmra.mrb[0].mxu0 %v2763
      %v3012 = vpop.f32.mrb[0].mxu0
      %v3013 = vadd.f32 %v2735, %v3012
      %v3014 = vpop.f32.mrb[0].mxu0
      %3015 = vmatprep.mubr.f32.mxu0 0.0
      %3016 = vmatmul.mubr.f32.gmra.mrb[0].mxu0 %v2766
      %v3017 = vpop.f32.mrb[0].mxu0
      %v3018 = vadd.f32 %v2735, %v3017
      %v3019 = vpop.f32.mrb[0].mxu0
      %3020 = vmatprep.mubr.f32.mxu0 0.0
      %3021 = vmatmul.mubr.f32.gmra.mrb[0].mxu0 %v2769
      %v3022 = vpop.f32.mrb[0].mxu0
      %v3023 = vadd.f32 %v2735, %v3022
      %v3024 = vpop.f32.mrb[0].mxu0
      %3025 = vmatprep.mubr.f32.mxu0 0.0
      %3026 = vmatmul.mubr.f32.gmra.mrb[0].mxu0 %v2772
      %v3027 = vpop.f32.mrb[0].mxu0
      %v3028 = vadd.f32 %v2735, %v3027
      %v3029 = vpop.f32.mrb[0].mxu0
      %3030 = vmatprep.mubr.f32.mxu0 0.0
      %3031 = vmatmul.mubr.f32.gmra.mrb[0].mxu0 %v2775
      %v3032 = vpop.f32.mrb[0].mxu0
      %v3033 = vadd.f32 %v2735, %v3032
      %v3034 = vpop.f32.mrb[0].mxu0
      %3035 = vmatprep.mubr.f32.mxu0 0.0
      %3036 = vmatmul.mubr.f32.gmra.mrb[0].mxu0 %v2778
      %v3037 = vpop.f32.mrb[0].mxu0
      %v3038 = vadd.f32 %v2735, %v3037
      %v3039 = vpop.f32.mrb[0].mxu0
      %3040 = vmatprep.mubr.f32.mxu0 0.0
      %3041 = vmatmul.mubr.f32.gmra.mrb[0].mxu0 %v2781
      %v3042 = vpop.f32.mrb[0].mxu0
      %v3043 = vadd.f32 %v2735, %v3042
      %v3044 = vpop.f32.mrb[0].mxu0
      %3045 = vmatprep.mubr.f32.mxu0 0.0
      %3046 = vmatmul.mubr.f32.gmra.mrb[0].mxu0 %v2784
      %v3047 = vpop.f32.mrb[0].mxu0
      %v3048 = vadd.f32 %v2735, %v3047
      %v3049 = vpop.f32.mrb[0].mxu0
      %3050 = vmatprep.mubr.f32.mxu0 0.0
      %3051 = vmatmul.mubr.f32.gmra.mrb[0].mxu0 %v2787
      %v3052 = vpop.f32.mrb[0].mxu0
      %v3053 = vadd.f32 %v2735, %v3052
      %v3054 = vpop.f32.mrb[0].mxu0
      %3055 = vmatprep.mubr.f32.mxu0 0.0
      %3056 = vmatmul.mubr.f32.gmra.mrb[0].mxu0 %v2790
      %v3057 = vpop.f32.mrb[0].mxu0
      %v3058 = vadd.f32 %v2735, %v3057
      %v3059 = vpop.f32.mrb[0].mxu0
      %3060 = vmatprep.mubr.f32.mxu0 0.0
      %3061 = vmatmul.mubr.f32.gmra.mrb[0].mxu0 %v2793
      %v3062 = vpop.f32.mrb[0].mxu0
      %v3063 = vadd.f32 %v2735, %v3062
      %v3064 = vpop.f32.mrb[0].mxu0
      %3065 = vmatprep.mubr.f32.mxu0 0.0
      %3066 = vmatmul.mubr.f32.gmra.mrb[0].mxu0 %v2796
      %v3067 = vpop.f32.mrb[0].mxu0
      %v3068 = vadd.f32 %v2735, %v3067
      %v3069 = vpop.f32.mrb[0].mxu0
      %3070 = vmatprep.mubr.f32.mxu0 0.0
      %3071 = vmatmul.mubr.f32.gmra.mrb[0].mxu0 %v2799
      %v3072 = vpop.f32.mrb[0].mxu0
      %v3073 = vadd.f32 %v2735, %v3072
      %v3074 = vpop.f32.mrb[0].mxu0
      %3075 = vmatprep.mubr.f32.mxu0 0.0
      %3076 = vmatmul.mubr.f32.gmra.mrb[0].mxu0 %v2802
      %v3077 = vpop.f32.mrb[0].mxu0
      %v3078 = vadd.f32 %v2735, %v3077
      %v3079 = vpop.f32.mrb[0].mxu0
      %3080 = vmatprep.mubr.f32.mxu0 0.0
      %3081 = vmatmul.mubr.f32.gmra.mrb[0].mxu0 %v2805
      %v3082 = vpop.f32.mrb[0].mxu0
      %v3083 = vadd.f32 %v2735, %v3082
      %v3084 = vpop.f32.mrb[0].mxu0
      %3085 = vmatprep.mubr.f32.mxu0 0.0
      %3086 = vmatmul.mubr.f32.gmra.mrb[0].mxu0 %v2808
      %v3087 = vpop.f32.mrb[0].mxu0
      %v3088 = vadd.f32 %v2735, %v3087
      %v3089 = vpop.f32.mrb[0].mxu0
      %3090 = vmatprep.mubr.f32.mxu0 0.0
      %3091 = vmatmul.mubr.f32.gmra.mrb[0].mxu0 %v2811
      %v3092 = vpop.f32.mrb[0].mxu0
      %v3093 = vadd.f32 %v2735, %v3092
      %v3094 = vpop.f32.mrb[0].mxu0
      %3095 = vmatprep.mubr.f32.mxu0 0.0
      %3096 = vmatmul.mubr.f32.gmra.mrb[0].mxu0 %v2814
      %v3097 = vpop.f32.mrb[0].mxu0
      %v3098 = vadd.f32 %v2735, %v3097
      %v3099 = vpop.f32.mrb[0].mxu0
      %3100 = vmatprep.mubr.f32.mxu0 0.0
      %3101 = vmatmul.mubr.f32.gmra.mrb[0].mxu0 %v2817
      %v3102 = vpop.f32.mrb[0].mxu0
      %v3103 = vadd.f32 %v2735, %v3102
      %v3104 = vpop.f32.mrb[0].mxu0
      %3105 = vmatprep.mubr.f32.mxu0 0.0
      %3106 = vmatmul.mubr.f32.gmra.mrb[0].mxu0 %v2820
      %v3107 = vpop.f32.mrb[0].mxu0
      %v3108 = vadd.f32 %v2735, %v3107
      %v3109 = vpop.f32.mrb[0].mxu0
      %3110 = vmatprep.mubr.f32.mxu0 0.0
      %3111 = vmatmul.mubr.f32.gmra.mrb[0].mxu0 %v2823
      %v3112 = vpop.f32.mrb[0].mxu0
      %v3113 = vadd.f32 %v2735, %v3112
      %v3114 = vpop.f32.mrb[0].mxu0
      %3115 = vmatprep.mubr.f32.mxu0 0.0
      %3116 = vmatmul.mubr.f32.gmra.mrb[0].mxu0 %v2826
      %v3117 = vpop.f32.mrb[0].mxu0
      %v3118 = vadd.f32 %v2735, %v3117
      %v3119 = vpop.f32.mrb[0].mxu0
      %3120 = vmatprep.mubr.f32.mxu0 0.0
      %3121 = vmatmul.mubr.f32.gmra.mrb[0].mxu0 %v2829
      %v3122 = vpop.f32.mrb[0].mxu0
      %v3123 = vadd.f32 %v2735, %v3122
      %v3124 = vpop.f32.mrb[0].mxu0
      %3125 = vmatprep.mubr.f32.mxu0 0.0
      %3126 = vmatmul.mubr.f32.gmra.mrb[0].mxu0 %v2832
      %v3127 = vpop.f32.mrb[0].mxu0
      %v3128 = vadd.f32 %v2735, %v3127
      %v3129 = vpop.f32.mrb[0].mxu0
      %3130 = vmatprep.mubr.f32.mxu0 0.0
      %3131 = vmatmul.mubr.f32.gmra.mrb[0].mxu0 %v2835
      %v3132 = vpop.f32.mrb[0].mxu0
      %v3133 = vadd.f32 %v2735, %v3132
      %v3134 = vpop.f32.mrb[0].mxu0
      %3135 = vmatprep.mubr.f32.mxu0 0.0
      %3136 = vmatmul.mubr.f32.gmra.mrb[0].mxu0 %v2838
      %v3137 = vpop.f32.mrb[0].mxu0
      %v3138 = vadd.f32 %v2735, %v3137
      %v3139 = vpop.f32.mrb[0].mxu0
      %3140 = vmatprep.mubr.f32.mxu0 0.0
      %3141 = vmatmul.mubr.f32.gmra.mrb[0].mxu0 %v2841
      %v3142 = vpop.f32.mrb[0].mxu0
      %v3143 = vadd.f32 %v2735, %v3142
      %v3144 = vpop.f32.mrb[0].mxu0
      %3145 = vmatprep.mubr.f32.mxu0 0.0
      %3146 = vmatmul.mubr.f32.gmra.mrb[0].mxu0 %v2844
      %v3147 = vpop.f32.mrb[0].mxu0
      %v3148 = vadd.f32 %v2735, %v3147
      %v3149 = vpop.f32.mrb[0].mxu0
      %3150 = vmatprep.mubr.f32.mxu0 0.0
      %3151 = vmatmul.mubr.f32.gmra.mrb[0].mxu0 %v2847
      %v3152 = vpop.f32.mrb[0].mxu0
      %v3153 = vadd.f32 %v2735, %v3152
      %v3154 = vpop.f32.mrb[0].mxu0
      %3155 = vmatprep.mubr.f32.mxu0 0.0
      %3156 = vmatmul.mubr.f32.gmra.mrb[0].mxu0 %v2850
      %v3157 = vpop.f32.mrb[0].mxu0
      %v3158 = vadd.f32 %v2735, %v3157
      %v3159 = vpop.f32.mrb[0].mxu0
      %3160 = vmatprep.mubr.f32.mxu0 0.0
      %3161 = vmatmul.mubr.f32.gmra.mrb[0].mxu0 %v2853
      %v3162 = vpop.f32.mrb[0].mxu0
      %v3163 = vadd.f32 %v2735, %v3162
      %v3164 = vpop.f32.mrb[0].mxu0
      %3165 = vmatprep.mubr.f32.mxu0 0.0
      %3166 = vmatmul.mubr.f32.gmra.mrb[0].mxu0 %v2856
      %v3167 = vpop.f32.mrb[0].mxu0
      %v3168 = vadd.f32 %v2735, %v3167
      %v3169 = vpop.f32.mrb[0].mxu0
      %3170 = vmatprep.mubr.f32.mxu0 0.0
      %3171 = vmatmul.mubr.f32.gmra.mrb[0].mxu0 %v2859
      %v3172 = vpop.f32.mrb[0].mxu0
      %v3173 = vadd.f32 %v2735, %v3172
      %v3174 = vpop.f32.mrb[0].mxu0
      %3175 = vmatprep.mubr.f32.mxu0 0.0
      %3176 = vmatmul.mubr.f32.gmra.mrb[0].mxu0 %v2862
      %v3177 = vpop.f32.mrb[0].mxu0
      %v3178 = vadd.f32 %v2735, %v3177
      %v3179 = vpop.f32.mrb[0].mxu0
      %3180 = vmatprep.mubr.f32.mxu0 0.0
      %3181 = vmatmul.mubr.f32.gmra.mrb[0].mxu0 %v2865
      %v3182 = vpop.f32.mrb[0].mxu0
      %v3183 = vadd.f32 %v2735, %v3182
      %v3184 = vpop.f32.mrb[0].mxu0
      %3185 = vmatprep.mubr.f32.mxu0 0.0
      %3186 = vmatmul.mubr.f32.gmra.mrb[0].mxu0 %v2868
      %v3187 = vpop.f32.mrb[0].mxu0
      %v3188 = vadd.f32 %v2735, %v3187
      %v3189 = vpop.f32.mrb[0].mxu0
      %3190 = vmatprep.mubr.f32.mxu0 0.0
      %3191 = vmatmul.mubr.f32.gmra.mrb[0].mxu0 %v2871
      %v3192 = vpop.f32.mrb[0].mxu0
      %v3193 = vadd.f32 %v2735, %v3192
      %v3194 = vpop.f32.mrb[0].mxu0
      %3195 = vmatprep.mubr.f32.mxu0 0.0
      %3196 = vmatmul.mubr.f32.gmra.mrb[0].mxu0 %v2874
      %v3197 = vpop.f32.mrb[0].mxu0
      %v3198 = vadd.f32 %v2735, %v3197
      %v3199 = vpop.f32.mrb[0].mxu0
      %3200 = vmatprep.mubr.f32.mxu0 0.0
      %3201 = vmatmul.mubr.f32.gmra.mrb[0].mxu0 %v2877
      %v3202 = vpop.f32.mrb[0].mxu0
      %v3203 = vadd.f32 %v2735, %v3202
      %v3204 = vpop.f32.mrb[0].mxu0
      %3205 = vmatprep.mubr.f32.mxu0 0.0
      %3206 = vmatmul.mubr.f32.gmra.mrb[0].mxu0 %v2880
      %v3207 = vpop.f32.mrb[0].mxu0
      %v3208 = vadd.f32 %v2735, %v3207
      %v3209 = vpop.f32.mrb[0].mxu0
      %3210 = vmatprep.mubr.f32.mxu0 0.0
      %3211 = vmatmul.mubr.f32.gmra.mrb[0].mxu0 %v2883
      %v3212 = vpop.f32.mrb[0].mxu0
      %v3213 = vadd.f32 %v2735, %v3212
      %v3214 = vpop.f32.mrb[0].mxu0
      %3215 = vmatprep.mubr.f32.mxu0 0.0
      %3216 = vmatmul.mubr.f32.gmra.mrb[0].mxu0 %v2886
      %v3217 = vpop.f32.mrb[0].mxu0
      %v3218 = vadd.f32 %v2735, %v3217
      %v3219 = vpop.f32.mrb[0].mxu0
      %3220 = vmatprep.mubr.f32.mxu0 0.0
      %3221 = vmatmul.mubr.f32.gmra.mrb[0].mxu0 %v2889
      %v3222 = vpop.f32.mrb[0].mxu0
      %v3223 = vadd.f32 %v2735, %v3222
      %v3224 = vpop.f32.mrb[0].mxu0
      %3225 = vmatprep.mubr.f32.mxu0 0.0
      %3226 = vmatmul.mubr.f32.gmra.mrb[0].mxu0 %v2892
      %v3227 = vpop.f32.mrb[0].mxu0
      %v3228 = vadd.f32 %v2735, %v3227
      %v3229 = vpop.f32.mrb[0].mxu0
      %3230 = vmatprep.mubr.f32.mxu0 0.0
      %3231 = vmatmul.mubr.f32.gmra.mrb[0].mxu0 %v2895
      %v3232 = vpop.f32.mrb[0].mxu0
      %v3233 = vadd.f32 %v2735, %v3232
      %v3234 = vpop.f32.mrb[0].mxu0
      %3235 = vmatprep.mubr.f32.mxu0 0.0
      %3236 = vmatmul.mubr.f32.gmra.mrb[0].mxu0 %v2898
      %v3237 = vpop.f32.mrb[0].mxu0
      %v3238 = vadd.f32 %v2735, %v3237
      %v3239 = vpop.f32.mrb[0].mxu0
      %3240 = vmatprep.mubr.f32.mxu0 0.0
      %3241 = vmatmul.mubr.f32.gmra.mrb[0].mxu0 %v2901
      %v3242 = vpop.f32.mrb[0].mxu0
      %v3243 = vadd.f32 %v2735, %v3242
      %v3244 = vpop.f32.mrb[0].mxu0
      %3245 = vmatprep.mubr.f32.mxu0 0.0
      %3246 = vmatmul.mubr.f32.gmra.mrb[0].mxu0 %v2904
      %v3247 = vpop.f32.mrb[0].mxu0
      %v3248 = vadd.f32 %v2735, %v3247
      %v3249 = vpop.f32.mrb[0].mxu0
      %3250 = vdwg.mxu0
      %v3251 = vmax.f32 %v2973, 0.0
      %v3252 = vmax.f32 %v2978, 0.0
      %v3253 = vmax.f32 %v2983, 0.0
      %v3254 = vmax.f32 %v2988, 0.0
      %v3255 = vmax.f32 %v2993, 0.0
      %v3256 = vmax.f32 %v2998, 0.0
      %v3257 = vmax.f32 %v3003, 0.0
      %v3258 = vmax.f32 %v3008, 0.0
      %v3259 = vmax.f32 %v3013, 0.0
      %v3260 = vmax.f32 %v3018, 0.0
      %v3261 = vmax.f32 %v3023, 0.0
      %v3262 = vmax.f32 %v3028, 0.0
      %v3263 = vmax.f32 %v3033, 0.0
      %v3264 = vmax.f32 %v3038, 0.0
      %v3265 = vmax.f32 %v3043, 0.0
      %v3266 = vmax.f32 %v3048, 0.0
      %v3267 = vmax.f32 %v3053, 0.0
      %v3268 = vmax.f32 %v3058, 0.0
      %v3269 = vmax.f32 %v3063, 0.0
      %v3270 = vmax.f32 %v3068, 0.0
      %v3271 = vmax.f32 %v3073, 0.0
      %v3272 = vmax.f32 %v3078, 0.0
      %v3273 = vmax.f32 %v3083, 0.0
      %v3274 = vmax.f32 %v3088, 0.0
      %v3275 = vmax.f32 %v3093, 0.0
      %v3276 = vmax.f32 %v3098, 0.0
      %v3277 = vmax.f32 %v3103, 0.0
      %v3278 = vmax.f32 %v3108, 0.0
      %v3279 = vmax.f32 %v3113, 0.0
      %v3280 = vmax.f32 %v3118, 0.0
      %v3281 = vmax.f32 %v3123, 0.0
      %v3282 = vmax.f32 %v3128, 0.0
      %v3283 = vmax.f32 %v3133, 0.0
      %v3284 = vmax.f32 %v3138, 0.0
      %v3285 = vmax.f32 %v3143, 0.0
      %v3286 = vmax.f32 %v3148, 0.0
      %v3287 = vmax.f32 %v3153, 0.0
      %v3288 = vmax.f32 %v3158, 0.0
      %v3289 = vmax.f32 %v3163, 0.0
      %v3290 = vmax.f32 %v3168, 0.0
      %v3291 = vmax.f32 %v3173, 0.0
      %v3292 = vmax.f32 %v3178, 0.0
      %v3293 = vmax.f32 %v3183, 0.0
      %v3294 = vmax.f32 %v3188, 0.0
      %v3295 = vmax.f32 %v3193, 0.0
      %v3296 = vmax.f32 %v3198, 0.0
      %v3297 = vmax.f32 %v3203, 0.0
      %v3298 = vmax.f32 %v3208, 0.0
      %v3299 = vmax.f32 %v3213, 0.0
      %v3300 = vmax.f32 %v3218, 0.0
      %v3301 = vmax.f32 %v3223, 0.0
      %v3302 = vmax.f32 %v3228, 0.0
      %v3303 = vmax.f32 %v3233, 0.0
      %v3304 = vmax.f32 %v3238, 0.0
      %v3305 = vmax.f32 %v3243, 0.0
      %v3306 = vmax.f32 %v3248, 0.0
      %v3307 = vld [vmem:[%s482] sm:$0xff]
      %v3308 = vld [vmem:[%s482 + $0x8] sm:$0xff]
      %v3309 = vld [vmem:[%s482 + $0x10] sm:$0xff]
      %v3310 = vld [vmem:[%s482 + $0x18] sm:$0xff]
      %v3311 = vld [vmem:[%s482 + $0x20] sm:$0xff]
      %v3312 = vld [vmem:[%s482 + $0x28] sm:$0xff]
      %v3313 = vld [vmem:[%s482 + $0x30] sm:$0xff]
      %3314 = vset.pattern.permute.xlu0 0
      %3315 = vperm.xlu0 %3314, %v3307
      %v3316 = vpop.permute.xlu0 %3315
      %3317 = vset.pattern.permute.xlu0 0
      %3318 = vperm.xlu0 %3317, %v3308
      %v3319 = vpop.permute.xlu0 %3318
      %3320 = vset.pattern.permute.xlu0 0
      %3321 = vperm.xlu0 %3320, %v3309
      %v3322 = vpop.permute.xlu0 %3321
      %3323 = vset.pattern.permute.xlu0 0
      %3324 = vperm.xlu0 %3323, %v3310
      %v3325 = vpop.permute.xlu0 %3324
      %3326 = vset.pattern.permute.xlu0 0
      %3327 = vperm.xlu0 %3326, %v3311
      %v3328 = vpop.permute.xlu0 %3327
      %3329 = vset.pattern.permute.xlu0 0
      %3330 = vperm.xlu0 %3329, %v3312
      %v3331 = vpop.permute.xlu0 %3330
      %3332 = vset.pattern.permute.xlu0 0
      %3333 = vperm.xlu0 %3332, %v3313
      %v3334 = vpop.permute.xlu0 %3333
      %vm3335 = vcmp.eq.s32.totalorder %v3316, %v890
      %vm3336 = vcmp.eq.s32.totalorder %v3319, %v890
      %vm3337 = vcmp.eq.s32.totalorder %v3322, %v890
      %vm3338 = vcmp.eq.s32.totalorder %v3325, %v890
      %vm3339 = vcmp.eq.s32.totalorder %v3328, %v890
      %vm3340 = vcmp.eq.s32.totalorder %v3331, %v890
      %vm3341 = vcmp.eq.s32.totalorder %v3334, %v890
      %v3342 = vsel %vm3335, 1, 0
      %v3343 = vsel %vm3336, 1, 0
      %v3344 = vsel %vm3337, 1, 0
      %v3345 = vsel %vm3338, 1, 0
      %v3346 = vsel %vm3339, 1, 0
      %v3347 = vsel %vm3340, 1, 0
      %v3348 = vsel %vm3341, 1, 0
      %v3349 = vcvt.s32.f32 %v3342
      %v3350 = vcvt.s32.f32 %v3343
      %v3351 = vcvt.s32.f32 %v3344
      %v3352 = vcvt.s32.f32 %v3345
      %v3353 = vcvt.s32.f32 %v3346
      %v3354 = vcvt.s32.f32 %v3347
      %v3355 = vcvt.s32.f32 %v3348
      %v3356 = vld [vmem:[%s5] sm:$0xff]
      %v3357 = vld [vmem:[%s5 + $0x8] sm:$0xff]
      %v3358 = vld [vmem:[%s5 + $0x10] sm:$0xff]
      %v3359 = vld [vmem:[%s5 + $0x18] sm:$0xff]
      %v3360 = vld [vmem:[%s5 + $0x20] sm:$0xff]
      %vm3361 = vcmask 326656
      %v3363 = vsel %vm3361, %v3349, 0
      %v3366 = vsel %vm3361, %v3350, 0
      %v3369 = vsel %vm3361, %v3351, 0
      %v3372 = vsel %vm3361, %v3352, 0
      %v3375 = vsel %vm3361, %v3353, 0
      %v3378 = vsel %vm3361, %v3354, 0
      %v3381 = vsel %vm3361, %v3355, 0
      %3383 = vmatprep.subr.mxu0 0.0
      %3384 = vmatpush1.msra.mxu0 %v3356
      %3385 = vmatprep.subr.mxu0 0.0
      %3386 = vmatpush1.msra.mxu0 %v3357
      %3387 = vmatprep.subr.mxu0 0.0
      %3388 = vmatpush1.msra.mxu0 %v3358
      %3389 = vmatprep.subr.mxu0 0.0
      %3390 = vmatpush1.msra.mxu0 %v3359
      %3391 = vmatprep.subr.mxu0 0.0
      %3392 = vmatpush1.msra.mxu0 %v3360
      %3393 = vmatprep.subr.mxu0 0.0
      %3394 = vmatpush1.msra.mxu0 0.0
      %3395 = vmatprep.subr.mxu0 0.0
      %3396 = vmatpush1.msra.mxu0 0.0
      %3397 = vmatprep.subr.mxu0 0.0
      %3398 = vmatpush1.msra.mxu0 0.0
      %3399 = vmatprep.subr.mxu0 0.0
      %3400 = vmatpush1.msra.mxu0 0.0
      %3401 = vmatprep.subr.mxu0 0.0
      %3402 = vmatpush1.msra.mxu0 0.0
      %3403 = vmatprep.subr.mxu0 0.0
      %3404 = vmatpush1.msra.mxu0 0.0
      %3405 = vmatprep.subr.mxu0 0.0
      %3406 = vmatpush1.msra.mxu0 0.0
      %3407 = vmatprep.subr.mxu0 0.0
      %3408 = vmatpush1.msra.mxu0 0.0
      %3409 = vmatprep.subr.mxu0 0.0
      %3410 = vmatpush1.msra.mxu0 0.0
      %3411 = vmatprep.subr.mxu0 0.0
      %3412 = vmatpush1.msra.mxu0 0.0
      %3413 = vmatprep.subr.mxu0 0.0
      %3414 = vmatpush1.msra.mxu0 0.0
      %3415 = vmatprep.subr.mxu0 0.0
      %3416 = vmatpush1.msra.mxu0 0.0
      %3417 = vmatprep.subr.mxu0 0.0
      %3418 = vmatpush1.msra.mxu0 0.0
      %3419 = vmatprep.subr.mxu0 0.0
      %3420 = vmatpush1.msra.mxu0 0.0
      %3421 = vmatprep.subr.mxu0 0.0
      %3422 = vmatpush1.msra.mxu0 0.0
      %3423 = vmatprep.subr.mxu0 0.0
      %3424 = vmatpush1.msra.mxu0 0.0
      %3425 = vmatprep.subr.mxu0 0.0
      %3426 = vmatpush1.msra.mxu0 0.0
      %3427 = vmatprep.subr.mxu0 0.0
      %3428 = vmatpush1.msra.mxu0 0.0
      %3429 = vmatprep.subr.mxu0 0.0
      %3430 = vmatpush1.msra.mxu0 0.0
      %3431 = vmatprep.subr.mxu0 0.0
      %3432 = vmatpush1.msra.mxu0 0.0
      %3433 = vmatprep.subr.mxu0 0.0
      %3434 = vmatpush1.msra.mxu0 0.0
      %3435 = vmatprep.subr.mxu0 0.0
      %3436 = vmatpush1.msra.mxu0 0.0
      %3437 = vmatprep.subr.mxu0 0.0
      %3438 = vmatpush1.msra.mxu0 0.0
      %3439 = vmatprep.subr.mxu0 0.0
      %3440 = vmatpush1.msra.mxu0 0.0
      %3441 = vmatprep.subr.mxu0 0.0
      %3442 = vmatpush1.msra.mxu0 0.0
      %3443 = vmatprep.subr.mxu0 0.0
      %3444 = vmatpush1.msra.mxu0 0.0
      %3445 = vmatprep.subr.mxu0 0.0
      %3446 = vmatpush1.msra.mxu0 0.0
      %3447 = vmatprep.mubr.f32.mxu0 0.0
      %3448 = vmatmul.mubr.f32.gmra.mrb[0].mxu0 %v3363
      %v3449 = vpop.f32.mrb[0].mxu0
      %v3450 = vadd.f32 0.0, %v3449
      %v3451 = vpop.f32.mrb[0].mxu0
      %3452 = vmatprep.mubr.f32.mxu0 0.0
      %3453 = vmatmul.mubr.f32.gmra.mrb[0].mxu0 %v3366
      %v3454 = vpop.f32.mrb[0].mxu0
      %v3455 = vadd.f32 0.0, %v3454
      %v3456 = vpop.f32.mrb[0].mxu0
      %3457 = vmatprep.mubr.f32.mxu0 0.0
      %3458 = vmatmul.mubr.f32.gmra.mrb[0].mxu0 %v3369
      %v3459 = vpop.f32.mrb[0].mxu0
      %v3460 = vadd.f32 0.0, %v3459
      %v3461 = vpop.f32.mrb[0].mxu0
      %3462 = vmatprep.mubr.f32.mxu0 0.0
      %3463 = vmatmul.mubr.f32.gmra.mrb[0].mxu0 %v3372
      %v3464 = vpop.f32.mrb[0].mxu0
      %v3465 = vadd.f32 0.0, %v3464
      %v3466 = vpop.f32.mrb[0].mxu0
      %3467 = vmatprep.mubr.f32.mxu0 0.0
      %3468 = vmatmul.mubr.f32.gmra.mrb[0].mxu0 %v3375
      %v3469 = vpop.f32.mrb[0].mxu0
      %v3470 = vadd.f32 0.0, %v3469
      %v3471 = vpop.f32.mrb[0].mxu0
      %3472 = vmatprep.mubr.f32.mxu0 0.0
      %3473 = vmatmul.mubr.f32.gmra.mrb[0].mxu0 %v3378
      %v3474 = vpop.f32.mrb[0].mxu0
      %v3475 = vadd.f32 0.0, %v3474
      %v3476 = vpop.f32.mrb[0].mxu0
      %3477 = vmatprep.mubr.f32.mxu0 0.0
      %3478 = vmatmul.mubr.f32.gmra.mrb[0].mxu0 %v3381
      %v3479 = vpop.f32.mrb[0].mxu0
      %v3480 = vadd.f32 0.0, %v3479
      %v3481 = vpop.f32.mrb[0].mxu0
      %3482 = vdwg.mxu0
      %v3483 = vld [vmem:[%s8] sm:$0xff]
      %v3484 = vld [vmem:[%s8 + $0x8] sm:$0xff]
      %v3485 = vld [vmem:[%s8 + $0x10] sm:$0xff]
      %v3486 = vld [vmem:[%s8 + $0x18] sm:$0xff]
      %v3488 = vsel %vm2737, %v3251, 0
      %v3491 = vsel %vm2737, %v3252, 0
      %v3494 = vsel %vm2737, %v3253, 0
      %v3497 = vsel %vm2737, %v3254, 0
      %v3500 = vsel %vm2737, %v3255, 0
      %v3503 = vsel %vm2737, %v3256, 0
      %v3506 = vsel %vm2737, %v3257, 0
      %v3509 = vsel %vm2737, %v3258, 0
      %v3512 = vsel %vm2737, %v3259, 0
      %v3515 = vsel %vm2737, %v3260, 0
      %v3518 = vsel %vm2737, %v3261, 0
      %v3521 = vsel %vm2737, %v3262, 0
      %v3524 = vsel %vm2737, %v3263, 0
      %v3527 = vsel %vm2737, %v3264, 0
      %v3530 = vsel %vm2737, %v3265, 0
      %v3533 = vsel %vm2737, %v3266, 0
      %v3536 = vsel %vm2737, %v3267, 0
      %v3539 = vsel %vm2737, %v3268, 0
      %v3542 = vsel %vm2737, %v3269, 0
      %v3545 = vsel %vm2737, %v3270, 0
      %v3548 = vsel %vm2737, %v3271, 0
      %v3551 = vsel %vm2737, %v3272, 0
      %v3554 = vsel %vm2737, %v3273, 0
      %v3557 = vsel %vm2737, %v3274, 0
      %v3560 = vsel %vm2737, %v3275, 0
      %v3563 = vsel %vm2737, %v3276, 0
      %v3566 = vsel %vm2737, %v3277, 0
      %v3569 = vsel %vm2737, %v3278, 0
      %v3572 = vsel %vm2737, %v3279, 0
      %v3575 = vsel %vm2737, %v3280, 0
      %v3578 = vsel %vm2737, %v3281, 0
      %v3581 = vsel %vm2737, %v3282, 0
      %v3584 = vsel %vm2737, %v3283, 0
      %v3587 = vsel %vm2737, %v3284, 0
      %v3590 = vsel %vm2737, %v3285, 0
      %v3593 = vsel %vm2737, %v3286, 0
      %v3596 = vsel %vm2737, %v3287, 0
      %v3599 = vsel %vm2737, %v3288, 0
      %v3602 = vsel %vm2737, %v3289, 0
      %v3605 = vsel %vm2737, %v3290, 0
      %v3608 = vsel %vm2737, %v3291, 0
      %v3611 = vsel %vm2737, %v3292, 0
      %v3614 = vsel %vm2737, %v3293, 0
      %v3617 = vsel %vm2737, %v3294, 0
      %v3620 = vsel %vm2737, %v3295, 0
      %v3623 = vsel %vm2737, %v3296, 0
      %v3626 = vsel %vm2737, %v3297, 0
      %v3629 = vsel %vm2737, %v3298, 0
      %v3632 = vsel %vm2737, %v3299, 0
      %v3635 = vsel %vm2737, %v3300, 0
      %v3638 = vsel %vm2737, %v3301, 0
      %v3641 = vsel %vm2737, %v3302, 0
      %v3644 = vsel %vm2737, %v3303, 0
      %v3647 = vsel %vm2737, %v3304, 0
      %v3650 = vsel %vm2737, %v3305, 0
      %v3653 = vsel %vm2737, %v3306, 0
      %3655 = vmatprep.subr.mxu0 0.0
      %3656 = vmatpush1.msra.mxu0 %v3483
      %3657 = vmatprep.subr.mxu0 0.0
      %3658 = vmatpush1.msra.mxu0 %v3484
      %3659 = vmatprep.subr.mxu0 0.0
      %3660 = vmatpush1.msra.mxu0 %v3485
      %3661 = vmatprep.subr.mxu0 0.0
      %3662 = vmatpush1.msra.mxu0 %v3486
      %3663 = vmatprep.subr.mxu0 0.0
      %3664 = vmatpush1.msra.mxu0 0.0
      %3665 = vmatprep.subr.mxu0 0.0
      %3666 = vmatpush1.msra.mxu0 0.0
      %3667 = vmatprep.subr.mxu0 0.0
      %3668 = vmatpush1.msra.mxu0 0.0
      %3669 = vmatprep.subr.mxu0 0.0
      %3670 = vmatpush1.msra.mxu0 0.0
      %3671 = vmatprep.subr.mxu0 0.0
      %3672 = vmatpush1.msra.mxu0 0.0
      %3673 = vmatprep.subr.mxu0 0.0
      %3674 = vmatpush1.msra.mxu0 0.0
      %3675 = vmatprep.subr.mxu0 0.0
      %3676 = vmatpush1.msra.mxu0 0.0
      %3677 = vmatprep.subr.mxu0 0.0
      %3678 = vmatpush1.msra.mxu0 0.0
      %3679 = vmatprep.subr.mxu0 0.0
      %3680 = vmatpush1.msra.mxu0 0.0
      %3681 = vmatprep.subr.mxu0 0.0
      %3682 = vmatpush1.msra.mxu0 0.0
      %3683 = vmatprep.subr.mxu0 0.0
      %3684 = vmatpush1.msra.mxu0 0.0
      %3685 = vmatprep.subr.mxu0 0.0
      %3686 = vmatpush1.msra.mxu0 0.0
      %3687 = vmatprep.subr.mxu0 0.0
      %3688 = vmatpush1.msra.mxu0 0.0
      %3689 = vmatprep.subr.mxu0 0.0
      %3690 = vmatpush1.msra.mxu0 0.0
      %3691 = vmatprep.subr.mxu0 0.0
      %3692 = vmatpush1.msra.mxu0 0.0
      %3693 = vmatprep.subr.mxu0 0.0
      %3694 = vmatpush1.msra.mxu0 0.0
      %3695 = vmatprep.subr.mxu0 0.0
      %3696 = vmatpush1.msra.mxu0 0.0
      %3697 = vmatprep.subr.mxu0 0.0
      %3698 = vmatpush1.msra.mxu0 0.0
      %3699 = vmatprep.subr.mxu0 0.0
      %3700 = vmatpush1.msra.mxu0 0.0
      %3701 = vmatprep.subr.mxu0 0.0
      %3702 = vmatpush1.msra.mxu0 0.0
      %3703 = vmatprep.subr.mxu0 0.0
      %3704 = vmatpush1.msra.mxu0 0.0
      %3705 = vmatprep.subr.mxu0 0.0
      %3706 = vmatpush1.msra.mxu0 0.0
      %3707 = vmatprep.subr.mxu0 0.0
      %3708 = vmatpush1.msra.mxu0 0.0
      %3709 = vmatprep.subr.mxu0 0.0
      %3710 = vmatpush1.msra.mxu0 0.0
      %3711 = vmatprep.subr.mxu0 0.0
      %3712 = vmatpush1.msra.mxu0 0.0
      %3713 = vmatprep.subr.mxu0 0.0
      %3714 = vmatpush1.msra.mxu0 0.0
      %3715 = vmatprep.subr.mxu0 0.0
      %3716 = vmatpush1.msra.mxu0 0.0
      %3717 = vmatprep.subr.mxu0 0.0
      %3718 = vmatpush1.msra.mxu0 0.0
      %3719 = vmatprep.mubr.f32.mxu0 0.0
      %3720 = vmatmul.mubr.f32.gmra.mrb[0].mxu0 %v3488
      %v3721 = vpop.f32.mrb[0].mxu0
      %v3722 = vadd.f32 0.0, %v3721
      %v3723 = vpop.f32.mrb[0].mxu0
      %3724 = vmatprep.mubr.f32.mxu0 0.0
      %3725 = vmatmul.mubr.f32.gmra.mrb[0].mxu0 %v3491
      %v3726 = vpop.f32.mrb[0].mxu0
      %v3727 = vadd.f32 0.0, %v3726
      %v3728 = vpop.f32.mrb[0].mxu0
      %3729 = vmatprep.mubr.f32.mxu0 0.0
      %3730 = vmatmul.mubr.f32.gmra.mrb[0].mxu0 %v3494
      %v3731 = vpop.f32.mrb[0].mxu0
      %v3732 = vadd.f32 0.0, %v3731
      %v3733 = vpop.f32.mrb[0].mxu0
      %3734 = vmatprep.mubr.f32.mxu0 0.0
      %3735 = vmatmul.mubr.f32.gmra.mrb[0].mxu0 %v3497
      %v3736 = vpop.f32.mrb[0].mxu0
      %v3737 = vadd.f32 0.0, %v3736
      %v3738 = vpop.f32.mrb[0].mxu0
      %3739 = vmatprep.mubr.f32.mxu0 0.0
      %3740 = vmatmul.mubr.f32.gmra.mrb[0].mxu0 %v3500
      %v3741 = vpop.f32.mrb[0].mxu0
      %v3742 = vadd.f32 0.0, %v3741
      %v3743 = vpop.f32.mrb[0].mxu0
      %3744 = vmatprep.mubr.f32.mxu0 0.0
      %3745 = vmatmul.mubr.f32.gmra.mrb[0].mxu0 %v3503
      %v3746 = vpop.f32.mrb[0].mxu0
      %v3747 = vadd.f32 0.0, %v3746
      %v3748 = vpop.f32.mrb[0].mxu0
      %3749 = vmatprep.mubr.f32.mxu0 0.0
      %3750 = vmatmul.mubr.f32.gmra.mrb[0].mxu0 %v3506
      %v3751 = vpop.f32.mrb[0].mxu0
      %v3752 = vadd.f32 0.0, %v3751
      %v3753 = vpop.f32.mrb[0].mxu0
      %3754 = vmatprep.mubr.f32.mxu0 0.0
      %3755 = vmatmul.mubr.f32.gmra.mrb[0].mxu0 %v3509
      %v3756 = vpop.f32.mrb[0].mxu0
      %v3757 = vadd.f32 0.0, %v3756
      %v3758 = vpop.f32.mrb[0].mxu0
      %3759 = vmatprep.mubr.f32.mxu0 0.0
      %3760 = vmatmul.mubr.f32.gmra.mrb[0].mxu0 %v3512
      %v3761 = vpop.f32.mrb[0].mxu0
      %v3762 = vadd.f32 0.0, %v3761
      %v3763 = vpop.f32.mrb[0].mxu0
      %3764 = vmatprep.mubr.f32.mxu0 0.0
      %3765 = vmatmul.mubr.f32.gmra.mrb[0].mxu0 %v3515
      %v3766 = vpop.f32.mrb[0].mxu0
      %v3767 = vadd.f32 0.0, %v3766
      %v3768 = vpop.f32.mrb[0].mxu0
      %3769 = vmatprep.mubr.f32.mxu0 0.0
      %3770 = vmatmul.mubr.f32.gmra.mrb[0].mxu0 %v3518
      %v3771 = vpop.f32.mrb[0].mxu0
      %v3772 = vadd.f32 0.0, %v3771
      %v3773 = vpop.f32.mrb[0].mxu0
      %3774 = vmatprep.mubr.f32.mxu0 0.0
      %3775 = vmatmul.mubr.f32.gmra.mrb[0].mxu0 %v3521
      %v3776 = vpop.f32.mrb[0].mxu0
      %v3777 = vadd.f32 0.0, %v3776
      %v3778 = vpop.f32.mrb[0].mxu0
      %3779 = vmatprep.mubr.f32.mxu0 0.0
      %3780 = vmatmul.mubr.f32.gmra.mrb[0].mxu0 %v3524
      %v3781 = vpop.f32.mrb[0].mxu0
      %v3782 = vadd.f32 0.0, %v3781
      %v3783 = vpop.f32.mrb[0].mxu0
      %3784 = vmatprep.mubr.f32.mxu0 0.0
      %3785 = vmatmul.mubr.f32.gmra.mrb[0].mxu0 %v3527
      %v3786 = vpop.f32.mrb[0].mxu0
      %v3787 = vadd.f32 0.0, %v3786
      %v3788 = vpop.f32.mrb[0].mxu0
      %3789 = vmatprep.mubr.f32.mxu0 0.0
      %3790 = vmatmul.mubr.f32.gmra.mrb[0].mxu0 %v3530
      %v3791 = vpop.f32.mrb[0].mxu0
      %v3792 = vadd.f32 0.0, %v3791
      %v3793 = vpop.f32.mrb[0].mxu0
      %3794 = vmatprep.mubr.f32.mxu0 0.0
      %3795 = vmatmul.mubr.f32.gmra.mrb[0].mxu0 %v3533
      %v3796 = vpop.f32.mrb[0].mxu0
      %v3797 = vadd.f32 0.0, %v3796
      %v3798 = vpop.f32.mrb[0].mxu0
      %3799 = vmatprep.mubr.f32.mxu0 0.0
      %3800 = vmatmul.mubr.f32.gmra.mrb[0].mxu0 %v3536
      %v3801 = vpop.f32.mrb[0].mxu0
      %v3802 = vadd.f32 0.0, %v3801
      %v3803 = vpop.f32.mrb[0].mxu0
      %3804 = vmatprep.mubr.f32.mxu0 0.0
      %3805 = vmatmul.mubr.f32.gmra.mrb[0].mxu0 %v3539
      %v3806 = vpop.f32.mrb[0].mxu0
      %v3807 = vadd.f32 0.0, %v3806
      %v3808 = vpop.f32.mrb[0].mxu0
      %3809 = vmatprep.mubr.f32.mxu0 0.0
      %3810 = vmatmul.mubr.f32.gmra.mrb[0].mxu0 %v3542
      %v3811 = vpop.f32.mrb[0].mxu0
      %v3812 = vadd.f32 0.0, %v3811
      %v3813 = vpop.f32.mrb[0].mxu0
      %3814 = vmatprep.mubr.f32.mxu0 0.0
      %3815 = vmatmul.mubr.f32.gmra.mrb[0].mxu0 %v3545
      %v3816 = vpop.f32.mrb[0].mxu0
      %v3817 = vadd.f32 0.0, %v3816
      %v3818 = vpop.f32.mrb[0].mxu0
      %3819 = vmatprep.mubr.f32.mxu0 0.0
      %3820 = vmatmul.mubr.f32.gmra.mrb[0].mxu0 %v3548
      %v3821 = vpop.f32.mrb[0].mxu0
      %v3822 = vadd.f32 0.0, %v3821
      %v3823 = vpop.f32.mrb[0].mxu0
      %3824 = vmatprep.mubr.f32.mxu0 0.0
      %3825 = vmatmul.mubr.f32.gmra.mrb[0].mxu0 %v3551
      %v3826 = vpop.f32.mrb[0].mxu0
      %v3827 = vadd.f32 0.0, %v3826
      %v3828 = vpop.f32.mrb[0].mxu0
      %3829 = vmatprep.mubr.f32.mxu0 0.0
      %3830 = vmatmul.mubr.f32.gmra.mrb[0].mxu0 %v3554
      %v3831 = vpop.f32.mrb[0].mxu0
      %v3832 = vadd.f32 0.0, %v3831
      %v3833 = vpop.f32.mrb[0].mxu0
      %3834 = vmatprep.mubr.f32.mxu0 0.0
      %3835 = vmatmul.mubr.f32.gmra.mrb[0].mxu0 %v3557
      %v3836 = vpop.f32.mrb[0].mxu0
      %v3837 = vadd.f32 0.0, %v3836
      %v3838 = vpop.f32.mrb[0].mxu0
      %3839 = vmatprep.mubr.f32.mxu0 0.0
      %3840 = vmatmul.mubr.f32.gmra.mrb[0].mxu0 %v3560
      %v3841 = vpop.f32.mrb[0].mxu0
      %v3842 = vadd.f32 0.0, %v3841
      %v3843 = vpop.f32.mrb[0].mxu0
      %3844 = vmatprep.mubr.f32.mxu0 0.0
      %3845 = vmatmul.mubr.f32.gmra.mrb[0].mxu0 %v3563
      %v3846 = vpop.f32.mrb[0].mxu0
      %v3847 = vadd.f32 0.0, %v3846
      %v3848 = vpop.f32.mrb[0].mxu0
      %3849 = vmatprep.mubr.f32.mxu0 0.0
      %3850 = vmatmul.mubr.f32.gmra.mrb[0].mxu0 %v3566
      %v3851 = vpop.f32.mrb[0].mxu0
      %v3852 = vadd.f32 0.0, %v3851
      %v3853 = vpop.f32.mrb[0].mxu0
      %3854 = vmatprep.mubr.f32.mxu0 0.0
      %3855 = vmatmul.mubr.f32.gmra.mrb[0].mxu0 %v3569
      %v3856 = vpop.f32.mrb[0].mxu0
      %v3857 = vadd.f32 0.0, %v3856
      %v3858 = vpop.f32.mrb[0].mxu0
      %3859 = vmatprep.mubr.f32.mxu0 0.0
      %3860 = vmatmul.mubr.f32.gmra.mrb[0].mxu0 %v3572
      %v3861 = vpop.f32.mrb[0].mxu0
      %v3862 = vadd.f32 0.0, %v3861
      %v3863 = vpop.f32.mrb[0].mxu0
      %3864 = vmatprep.mubr.f32.mxu0 0.0
      %3865 = vmatmul.mubr.f32.gmra.mrb[0].mxu0 %v3575
      %v3866 = vpop.f32.mrb[0].mxu0
      %v3867 = vadd.f32 0.0, %v3866
      %v3868 = vpop.f32.mrb[0].mxu0
      %3869 = vmatprep.mubr.f32.mxu0 0.0
      %3870 = vmatmul.mubr.f32.gmra.mrb[0].mxu0 %v3578
      %v3871 = vpop.f32.mrb[0].mxu0
      %v3872 = vadd.f32 0.0, %v3871
      %v3873 = vpop.f32.mrb[0].mxu0
      %3874 = vmatprep.mubr.f32.mxu0 0.0
      %3875 = vmatmul.mubr.f32.gmra.mrb[0].mxu0 %v3581
      %v3876 = vpop.f32.mrb[0].mxu0
      %v3877 = vadd.f32 0.0, %v3876
      %v3878 = vpop.f32.mrb[0].mxu0
      %3879 = vmatprep.mubr.f32.mxu0 0.0
      %3880 = vmatmul.mubr.f32.gmra.mrb[0].mxu0 %v3584
      %v3881 = vpop.f32.mrb[0].mxu0
      %v3882 = vadd.f32 0.0, %v3881
      %v3883 = vpop.f32.mrb[0].mxu0
      %3884 = vmatprep.mubr.f32.mxu0 0.0
      %3885 = vmatmul.mubr.f32.gmra.mrb[0].mxu0 %v3587
      %v3886 = vpop.f32.mrb[0].mxu0
      %v3887 = vadd.f32 0.0, %v3886
      %v3888 = vpop.f32.mrb[0].mxu0
      %3889 = vmatprep.mubr.f32.mxu0 0.0
      %3890 = vmatmul.mubr.f32.gmra.mrb[0].mxu0 %v3590
      %v3891 = vpop.f32.mrb[0].mxu0
      %v3892 = vadd.f32 0.0, %v3891
      %v3893 = vpop.f32.mrb[0].mxu0
      %3894 = vmatprep.mubr.f32.mxu0 0.0
      %3895 = vmatmul.mubr.f32.gmra.mrb[0].mxu0 %v3593
      %v3896 = vpop.f32.mrb[0].mxu0
      %v3897 = vadd.f32 0.0, %v3896
      %v3898 = vpop.f32.mrb[0].mxu0
      %3899 = vmatprep.mubr.f32.mxu0 0.0
      %3900 = vmatmul.mubr.f32.gmra.mrb[0].mxu0 %v3596
      %v3901 = vpop.f32.mrb[0].mxu0
      %v3902 = vadd.f32 0.0, %v3901
      %v3903 = vpop.f32.mrb[0].mxu0
      %3904 = vmatprep.mubr.f32.mxu0 0.0
      %3905 = vmatmul.mubr.f32.gmra.mrb[0].mxu0 %v3599
      %v3906 = vpop.f32.mrb[0].mxu0
      %v3907 = vadd.f32 0.0, %v3906
      %v3908 = vpop.f32.mrb[0].mxu0
      %3909 = vmatprep.mubr.f32.mxu0 0.0
      %3910 = vmatmul.mubr.f32.gmra.mrb[0].mxu0 %v3602
      %v3911 = vpop.f32.mrb[0].mxu0
      %v3912 = vadd.f32 0.0, %v3911
      %v3913 = vpop.f32.mrb[0].mxu0
      %3914 = vmatprep.mubr.f32.mxu0 0.0
      %3915 = vmatmul.mubr.f32.gmra.mrb[0].mxu0 %v3605
      %v3916 = vpop.f32.mrb[0].mxu0
      %v3917 = vadd.f32 0.0, %v3916
      %v3918 = vpop.f32.mrb[0].mxu0
      %3919 = vmatprep.mubr.f32.mxu0 0.0
      %3920 = vmatmul.mubr.f32.gmra.mrb[0].mxu0 %v3608
      %v3921 = vpop.f32.mrb[0].mxu0
      %v3922 = vadd.f32 0.0, %v3921
      %v3923 = vpop.f32.mrb[0].mxu0
      %3924 = vmatprep.mubr.f32.mxu0 0.0
      %3925 = vmatmul.mubr.f32.gmra.mrb[0].mxu0 %v3611
      %v3926 = vpop.f32.mrb[0].mxu0
      %v3927 = vadd.f32 0.0, %v3926
      %v3928 = vpop.f32.mrb[0].mxu0
      %3929 = vmatprep.mubr.f32.mxu0 0.0
      %3930 = vmatmul.mubr.f32.gmra.mrb[0].mxu0 %v3614
      %v3931 = vpop.f32.mrb[0].mxu0
      %v3932 = vadd.f32 0.0, %v3931
      %v3933 = vpop.f32.mrb[0].mxu0
      %3934 = vmatprep.mubr.f32.mxu0 0.0
      %3935 = vmatmul.mubr.f32.gmra.mrb[0].mxu0 %v3617
      %v3936 = vpop.f32.mrb[0].mxu0
      %v3937 = vadd.f32 0.0, %v3936
      %v3938 = vpop.f32.mrb[0].mxu0
      %3939 = vmatprep.mubr.f32.mxu0 0.0
      %3940 = vmatmul.mubr.f32.gmra.mrb[0].mxu0 %v3620
      %v3941 = vpop.f32.mrb[0].mxu0
      %v3942 = vadd.f32 0.0, %v3941
      %v3943 = vpop.f32.mrb[0].mxu0
      %3944 = vmatprep.mubr.f32.mxu0 0.0
      %3945 = vmatmul.mubr.f32.gmra.mrb[0].mxu0 %v3623
      %v3946 = vpop.f32.mrb[0].mxu0
      %v3947 = vadd.f32 0.0, %v3946
      %v3948 = vpop.f32.mrb[0].mxu0
      %3949 = vmatprep.mubr.f32.mxu0 0.0
      %3950 = vmatmul.mubr.f32.gmra.mrb[0].mxu0 %v3626
      %v3951 = vpop.f32.mrb[0].mxu0
      %v3952 = vadd.f32 0.0, %v3951
      %v3953 = vpop.f32.mrb[0].mxu0
      %3954 = vmatprep.mubr.f32.mxu0 0.0
      %3955 = vmatmul.mubr.f32.gmra.mrb[0].mxu0 %v3629
      %v3956 = vpop.f32.mrb[0].mxu0
      %v3957 = vadd.f32 0.0, %v3956
      %v3958 = vpop.f32.mrb[0].mxu0
      %3959 = vmatprep.mubr.f32.mxu0 0.0
      %3960 = vmatmul.mubr.f32.gmra.mrb[0].mxu0 %v3632
      %v3961 = vpop.f32.mrb[0].mxu0
      %v3962 = vadd.f32 0.0, %v3961
      %v3963 = vpop.f32.mrb[0].mxu0
      %3964 = vmatprep.mubr.f32.mxu0 0.0
      %3965 = vmatmul.mubr.f32.gmra.mrb[0].mxu0 %v3635
      %v3966 = vpop.f32.mrb[0].mxu0
      %v3967 = vadd.f32 0.0, %v3966
      %v3968 = vpop.f32.mrb[0].mxu0
      %3969 = vmatprep.mubr.f32.mxu0 0.0
      %3970 = vmatmul.mubr.f32.gmra.mrb[0].mxu0 %v3638
      %v3971 = vpop.f32.mrb[0].mxu0
      %v3972 = vadd.f32 0.0, %v3971
      %v3973 = vpop.f32.mrb[0].mxu0
      %3974 = vmatprep.mubr.f32.mxu0 0.0
      %3975 = vmatmul.mubr.f32.gmra.mrb[0].mxu0 %v3641
      %v3976 = vpop.f32.mrb[0].mxu0
      %v3977 = vadd.f32 0.0, %v3976
      %v3978 = vpop.f32.mrb[0].mxu0
      %3979 = vmatprep.mubr.f32.mxu0 0.0
      %3980 = vmatmul.mubr.f32.gmra.mrb[0].mxu0 %v3644
      %v3981 = vpop.f32.mrb[0].mxu0
      %v3982 = vadd.f32 0.0, %v3981
      %v3983 = vpop.f32.mrb[0].mxu0
      %3984 = vmatprep.mubr.f32.mxu0 0.0
      %3985 = vmatmul.mubr.f32.gmra.mrb[0].mxu0 %v3647
      %v3986 = vpop.f32.mrb[0].mxu0
      %v3987 = vadd.f32 0.0, %v3986
      %v3988 = vpop.f32.mrb[0].mxu0
      %3989 = vmatprep.mubr.f32.mxu0 0.0
      %3990 = vmatmul.mubr.f32.gmra.mrb[0].mxu0 %v3650
      %v3991 = vpop.f32.mrb[0].mxu0
      %v3992 = vadd.f32 0.0, %v3991
      %v3993 = vpop.f32.mrb[0].mxu0
      %3994 = vmatprep.mubr.f32.mxu0 0.0
      %3995 = vmatmul.mubr.f32.gmra.mrb[0].mxu0 %v3653
      %v3996 = vpop.f32.mrb[0].mxu0
      %v3997 = vadd.f32 0.0, %v3996
      %v3998 = vpop.f32.mrb[0].mxu0
      %3999 = vdwg.mxu0
      %v4007 = vcombine.high %v3450, %v3450
      %v4009 = vunpack.c.l.s4 1966171168
      %v4010 = vunpack.c.0.s8 %v4009
      %v4011 = vlaneseq
      %v4012 = vshrl.u32 %v4011, 7
      %v4013 = vsub.s32 %v4010, %v4012
      %v4014 = vrot.slane %v3450, %v4013
      %v4016 = vunpack.c.l.s4 1966171168
      %v4017 = vunpack.c.0.s8 %v4016
      %v4018 = vlaneseq
      %v4019 = vshrl.u32 %v4018, 7
      %v4020 = vsub.s32 %v4017, %v4019
      %v4021 = vrot.slane %v4007, %v4020
      %v4022 = vcombine.high %v4014, %v4014
      %v4023 = vcombine.high %v4021, %v4021
      %v4025 = vunpack.c.l.s4 1966171168
      %v4026 = vunpack.c.0.s8 %v4025
      %v4027 = vlaneseq
      %v4028 = vshrl.u32 %v4027, 7
      %v4029 = vsub.s32 %v4026, %v4028
      %v4030 = vrot.slane %v4014, %v4029
      %v4032 = vunpack.c.l.s4 1966171168
      %v4033 = vunpack.c.0.s8 %v4032
      %v4034 = vlaneseq
      %v4035 = vshrl.u32 %v4034, 7
      %v4036 = vsub.s32 %v4033, %v4035
      %v4037 = vrot.slane %v4021, %v4036
      %v4039 = vunpack.c.l.s4 1966171168
      %v4040 = vunpack.c.0.s8 %v4039
      %v4041 = vlaneseq
      %v4042 = vshrl.u32 %v4041, 7
      %v4043 = vsub.s32 %v4040, %v4042
      %v4044 = vrot.slane %v4022, %v4043
      %v4046 = vunpack.c.l.s4 1966171168
      %v4047 = vunpack.c.0.s8 %v4046
      %v4048 = vlaneseq
      %v4049 = vshrl.u32 %v4048, 7
      %v4050 = vsub.s32 %v4047, %v4049
      %v4051 = vrot.slane %v4023, %v4050
      %v4052 = vcombine.high %v4030, %v4030
      %v4053 = vcombine.high %v4037, %v4037
      %v4054 = vcombine.high %v4044, %v4044
      %v4055 = vcombine.high %v4051, %v4051
      %v4056 = vcombine.high %v3455, %v3455
      %v4058 = vunpack.c.l.s4 1966171168
      %v4059 = vunpack.c.0.s8 %v4058
      %v4060 = vlaneseq
      %v4061 = vshrl.u32 %v4060, 7
      %v4062 = vsub.s32 %v4059, %v4061
      %v4063 = vrot.slane %v3455, %v4062
      %v4065 = vunpack.c.l.s4 1966171168
      %v4066 = vunpack.c.0.s8 %v4065
      %v4067 = vlaneseq
      %v4068 = vshrl.u32 %v4067, 7
      %v4069 = vsub.s32 %v4066, %v4068
      %v4070 = vrot.slane %v4056, %v4069
      %v4071 = vcombine.high %v4063, %v4063
      %v4072 = vcombine.high %v4070, %v4070
      %v4074 = vunpack.c.l.s4 1966171168
      %v4075 = vunpack.c.0.s8 %v4074
      %v4076 = vlaneseq
      %v4077 = vshrl.u32 %v4076, 7
      %v4078 = vsub.s32 %v4075, %v4077
      %v4079 = vrot.slane %v4063, %v4078
      %v4081 = vunpack.c.l.s4 1966171168
      %v4082 = vunpack.c.0.s8 %v4081
      %v4083 = vlaneseq
      %v4084 = vshrl.u32 %v4083, 7
      %v4085 = vsub.s32 %v4082, %v4084
      %v4086 = vrot.slane %v4070, %v4085
      %v4088 = vunpack.c.l.s4 1966171168
      %v4089 = vunpack.c.0.s8 %v4088
      %v4090 = vlaneseq
      %v4091 = vshrl.u32 %v4090, 7
      %v4092 = vsub.s32 %v4089, %v4091
      %v4093 = vrot.slane %v4071, %v4092
      %v4095 = vunpack.c.l.s4 1966171168
      %v4096 = vunpack.c.0.s8 %v4095
      %v4097 = vlaneseq
      %v4098 = vshrl.u32 %v4097, 7
      %v4099 = vsub.s32 %v4096, %v4098
      %v4100 = vrot.slane %v4072, %v4099
      %v4101 = vcombine.high %v4079, %v4079
      %v4102 = vcombine.high %v4086, %v4086
      %v4103 = vcombine.high %v4093, %v4093
      %v4104 = vcombine.high %v4100, %v4100
      %v4105 = vcombine.high %v3460, %v3460
      %v4107 = vunpack.c.l.s4 1966171168
      %v4108 = vunpack.c.0.s8 %v4107
      %v4109 = vlaneseq
      %v4110 = vshrl.u32 %v4109, 7
      %v4111 = vsub.s32 %v4108, %v4110
      %v4112 = vrot.slane %v3460, %v4111
      %v4114 = vunpack.c.l.s4 1966171168
      %v4115 = vunpack.c.0.s8 %v4114
      %v4116 = vlaneseq
      %v4117 = vshrl.u32 %v4116, 7
      %v4118 = vsub.s32 %v4115, %v4117
      %v4119 = vrot.slane %v4105, %v4118
      %v4120 = vcombine.high %v4112, %v4112
      %v4121 = vcombine.high %v4119, %v4119
      %v4123 = vunpack.c.l.s4 1966171168
      %v4124 = vunpack.c.0.s8 %v4123
      %v4125 = vlaneseq
      %v4126 = vshrl.u32 %v4125, 7
      %v4127 = vsub.s32 %v4124, %v4126
      %v4128 = vrot.slane %v4112, %v4127
      %v4130 = vunpack.c.l.s4 1966171168
      %v4131 = vunpack.c.0.s8 %v4130
      %v4132 = vlaneseq
      %v4133 = vshrl.u32 %v4132, 7
      %v4134 = vsub.s32 %v4131, %v4133
      %v4135 = vrot.slane %v4119, %v4134
      %v4137 = vunpack.c.l.s4 1966171168
      %v4138 = vunpack.c.0.s8 %v4137
      %v4139 = vlaneseq
      %v4140 = vshrl.u32 %v4139, 7
      %v4141 = vsub.s32 %v4138, %v4140
      %v4142 = vrot.slane %v4120, %v4141
      %v4144 = vunpack.c.l.s4 1966171168
      %v4145 = vunpack.c.0.s8 %v4144
      %v4146 = vlaneseq
      %v4147 = vshrl.u32 %v4146, 7
      %v4148 = vsub.s32 %v4145, %v4147
      %v4149 = vrot.slane %v4121, %v4148
      %v4150 = vcombine.high %v4128, %v4128
      %v4151 = vcombine.high %v4135, %v4135
      %v4152 = vcombine.high %v4142, %v4142
      %v4153 = vcombine.high %v4149, %v4149
      %v4154 = vcombine.high %v3465, %v3465
      %v4156 = vunpack.c.l.s4 1966171168
      %v4157 = vunpack.c.0.s8 %v4156
      %v4158 = vlaneseq
      %v4159 = vshrl.u32 %v4158, 7
      %v4160 = vsub.s32 %v4157, %v4159
      %v4161 = vrot.slane %v3465, %v4160
      %v4163 = vunpack.c.l.s4 1966171168
      %v4164 = vunpack.c.0.s8 %v4163
      %v4165 = vlaneseq
      %v4166 = vshrl.u32 %v4165, 7
      %v4167 = vsub.s32 %v4164, %v4166
      %v4168 = vrot.slane %v4154, %v4167
      %v4169 = vcombine.high %v4161, %v4161
      %v4170 = vcombine.high %v4168, %v4168
      %v4172 = vunpack.c.l.s4 1966171168
      %v4173 = vunpack.c.0.s8 %v4172
      %v4174 = vlaneseq
      %v4175 = vshrl.u32 %v4174, 7
      %v4176 = vsub.s32 %v4173, %v4175
      %v4177 = vrot.slane %v4161, %v4176
      %v4179 = vunpack.c.l.s4 1966171168
      %v4180 = vunpack.c.0.s8 %v4179
      %v4181 = vlaneseq
      %v4182 = vshrl.u32 %v4181, 7
      %v4183 = vsub.s32 %v4180, %v4182
      %v4184 = vrot.slane %v4168, %v4183
      %v4186 = vunpack.c.l.s4 1966171168
      %v4187 = vunpack.c.0.s8 %v4186
      %v4188 = vlaneseq
      %v4189 = vshrl.u32 %v4188, 7
      %v4190 = vsub.s32 %v4187, %v4189
      %v4191 = vrot.slane %v4169, %v4190
      %v4193 = vunpack.c.l.s4 1966171168
      %v4194 = vunpack.c.0.s8 %v4193
      %v4195 = vlaneseq
      %v4196 = vshrl.u32 %v4195, 7
      %v4197 = vsub.s32 %v4194, %v4196
      %v4198 = vrot.slane %v4170, %v4197
      %v4199 = vcombine.high %v4177, %v4177
      %v4200 = vcombine.high %v4184, %v4184
      %v4201 = vcombine.high %v4191, %v4191
      %v4202 = vcombine.high %v4198, %v4198
      %v4203 = vcombine.high %v3470, %v3470
      %v4205 = vunpack.c.l.s4 1966171168
      %v4206 = vunpack.c.0.s8 %v4205
      %v4207 = vlaneseq
      %v4208 = vshrl.u32 %v4207, 7
      %v4209 = vsub.s32 %v4206, %v4208
      %v4210 = vrot.slane %v3470, %v4209
      %v4212 = vunpack.c.l.s4 1966171168
      %v4213 = vunpack.c.0.s8 %v4212
      %v4214 = vlaneseq
      %v4215 = vshrl.u32 %v4214, 7
      %v4216 = vsub.s32 %v4213, %v4215
      %v4217 = vrot.slane %v4203, %v4216
      %v4218 = vcombine.high %v4210, %v4210
      %v4219 = vcombine.high %v4217, %v4217
      %v4221 = vunpack.c.l.s4 1966171168
      %v4222 = vunpack.c.0.s8 %v4221
      %v4223 = vlaneseq
      %v4224 = vshrl.u32 %v4223, 7
      %v4225 = vsub.s32 %v4222, %v4224
      %v4226 = vrot.slane %v4210, %v4225
      %v4228 = vunpack.c.l.s4 1966171168
      %v4229 = vunpack.c.0.s8 %v4228
      %v4230 = vlaneseq
      %v4231 = vshrl.u32 %v4230, 7
      %v4232 = vsub.s32 %v4229, %v4231
      %v4233 = vrot.slane %v4217, %v4232
      %v4235 = vunpack.c.l.s4 1966171168
      %v4236 = vunpack.c.0.s8 %v4235
      %v4237 = vlaneseq
      %v4238 = vshrl.u32 %v4237, 7
      %v4239 = vsub.s32 %v4236, %v4238
      %v4240 = vrot.slane %v4218, %v4239
      %v4242 = vunpack.c.l.s4 1966171168
      %v4243 = vunpack.c.0.s8 %v4242
      %v4244 = vlaneseq
      %v4245 = vshrl.u32 %v4244, 7
      %v4246 = vsub.s32 %v4243, %v4245
      %v4247 = vrot.slane %v4219, %v4246
      %v4248 = vcombine.high %v4226, %v4226
      %v4249 = vcombine.high %v4233, %v4233
      %v4250 = vcombine.high %v4240, %v4240
      %v4251 = vcombine.high %v4247, %v4247
      %v4252 = vcombine.high %v3475, %v3475
      %v4254 = vunpack.c.l.s4 1966171168
      %v4255 = vunpack.c.0.s8 %v4254
      %v4256 = vlaneseq
      %v4257 = vshrl.u32 %v4256, 7
      %v4258 = vsub.s32 %v4255, %v4257
      %v4259 = vrot.slane %v3475, %v4258
      %v4261 = vunpack.c.l.s4 1966171168
      %v4262 = vunpack.c.0.s8 %v4261
      %v4263 = vlaneseq
      %v4264 = vshrl.u32 %v4263, 7
      %v4265 = vsub.s32 %v4262, %v4264
      %v4266 = vrot.slane %v4252, %v4265
      %v4267 = vcombine.high %v4259, %v4259
      %v4268 = vcombine.high %v4266, %v4266
      %v4270 = vunpack.c.l.s4 1966171168
      %v4271 = vunpack.c.0.s8 %v4270
      %v4272 = vlaneseq
      %v4273 = vshrl.u32 %v4272, 7
      %v4274 = vsub.s32 %v4271, %v4273
      %v4275 = vrot.slane %v4259, %v4274
      %v4277 = vunpack.c.l.s4 1966171168
      %v4278 = vunpack.c.0.s8 %v4277
      %v4279 = vlaneseq
      %v4280 = vshrl.u32 %v4279, 7
      %v4281 = vsub.s32 %v4278, %v4280
      %v4282 = vrot.slane %v4266, %v4281
      %v4284 = vunpack.c.l.s4 1966171168
      %v4285 = vunpack.c.0.s8 %v4284
      %v4286 = vlaneseq
      %v4287 = vshrl.u32 %v4286, 7
      %v4288 = vsub.s32 %v4285, %v4287
      %v4289 = vrot.slane %v4267, %v4288
      %v4291 = vunpack.c.l.s4 1966171168
      %v4292 = vunpack.c.0.s8 %v4291
      %v4293 = vlaneseq
      %v4294 = vshrl.u32 %v4293, 7
      %v4295 = vsub.s32 %v4292, %v4294
      %v4296 = vrot.slane %v4268, %v4295
      %v4297 = vcombine.high %v4275, %v4275
      %v4298 = vcombine.high %v4282, %v4282
      %v4299 = vcombine.high %v4289, %v4289
      %v4300 = vcombine.high %v4296, %v4296
      %v4301 = vcombine.high %v3480, %v3480
      %v4303 = vunpack.c.l.s4 1966171168
      %v4304 = vunpack.c.0.s8 %v4303
      %v4305 = vlaneseq
      %v4306 = vshrl.u32 %v4305, 7
      %v4307 = vsub.s32 %v4304, %v4306
      %v4308 = vrot.slane %v3480, %v4307
      %v4310 = vunpack.c.l.s4 1966171168
      %v4311 = vunpack.c.0.s8 %v4310
      %v4312 = vlaneseq
      %v4313 = vshrl.u32 %v4312, 7
      %v4314 = vsub.s32 %v4311, %v4313
      %v4315 = vrot.slane %v4301, %v4314
      %v4316 = vcombine.high %v4308, %v4308
      %v4317 = vcombine.high %v4315, %v4315
      %v4319 = vunpack.c.l.s4 1966171168
      %v4320 = vunpack.c.0.s8 %v4319
      %v4321 = vlaneseq
      %v4322 = vshrl.u32 %v4321, 7
      %v4323 = vsub.s32 %v4320, %v4322
      %v4324 = vrot.slane %v4308, %v4323
      %v4326 = vunpack.c.l.s4 1966171168
      %v4327 = vunpack.c.0.s8 %v4326
      %v4328 = vlaneseq
      %v4329 = vshrl.u32 %v4328, 7
      %v4330 = vsub.s32 %v4327, %v4329
      %v4331 = vrot.slane %v4315, %v4330
      %v4333 = vunpack.c.l.s4 1966171168
      %v4334 = vunpack.c.0.s8 %v4333
      %v4335 = vlaneseq
      %v4336 = vshrl.u32 %v4335, 7
      %v4337 = vsub.s32 %v4334, %v4336
      %v4338 = vrot.slane %v4316, %v4337
      %v4340 = vunpack.c.l.s4 1966171168
      %v4341 = vunpack.c.0.s8 %v4340
      %v4342 = vlaneseq
      %v4343 = vshrl.u32 %v4342, 7
      %v4344 = vsub.s32 %v4341, %v4343
      %v4345 = vrot.slane %v4317, %v4344
      %v4346 = vcombine.high %v4324, %v4324
      %v4347 = vcombine.high %v4331, %v4331
      %v4348 = vcombine.high %v4338, %v4338
      %v4349 = vcombine.high %v4345, %v4345
      %v4350 = vlaneseq
      %v4351 = vshrl.u32 %v4350, 7
      %v4352 = vsub.s32 0, %v4351
      %v4353 = vrot.slane %v4030, %v4352
      %v4354 = vlaneseq
      %v4355 = vshrl.u32 %v4354, 7
      %v4356 = vsub.s32 0, %v4355
      %v4357 = vrot.slane %v4044, %v4356
      %v4358 = vlaneseq
      %v4359 = vshrl.u32 %v4358, 7
      %v4360 = vsub.s32 0, %v4359
      %v4361 = vrot.slane %v4052, %v4360
      %v4362 = vlaneseq
      %v4363 = vshrl.u32 %v4362, 7
      %v4364 = vsub.s32 0, %v4363
      %v4365 = vrot.slane %v4054, %v4364
      %v4366 = vlaneseq
      %v4367 = vshrl.u32 %v4366, 7
      %v4368 = vsub.s32 0, %v4367
      %v4369 = vrot.slane %v4037, %v4368
      %v4370 = vlaneseq
      %v4371 = vshrl.u32 %v4370, 7
      %v4372 = vsub.s32 0, %v4371
      %v4373 = vrot.slane %v4051, %v4372
      %v4374 = vlaneseq
      %v4375 = vshrl.u32 %v4374, 7
      %v4376 = vsub.s32 0, %v4375
      %v4377 = vrot.slane %v4053, %v4376
      %v4378 = vlaneseq
      %v4379 = vshrl.u32 %v4378, 7
      %v4380 = vsub.s32 0, %v4379
      %v4381 = vrot.slane %v4055, %v4380
      %v4382 = vlaneseq
      %v4383 = vshrl.u32 %v4382, 7
      %v4384 = vsub.s32 0, %v4383
      %v4385 = vrot.slane %v4079, %v4384
      %v4386 = vlaneseq
      %v4387 = vshrl.u32 %v4386, 7
      %v4388 = vsub.s32 0, %v4387
      %v4389 = vrot.slane %v4093, %v4388
      %v4390 = vlaneseq
      %v4391 = vshrl.u32 %v4390, 7
      %v4392 = vsub.s32 0, %v4391
      %v4393 = vrot.slane %v4101, %v4392
      %v4394 = vlaneseq
      %v4395 = vshrl.u32 %v4394, 7
      %v4396 = vsub.s32 0, %v4395
      %v4397 = vrot.slane %v4103, %v4396
      %v4398 = vlaneseq
      %v4399 = vshrl.u32 %v4398, 7
      %v4400 = vsub.s32 0, %v4399
      %v4401 = vrot.slane %v4086, %v4400
      %v4402 = vlaneseq
      %v4403 = vshrl.u32 %v4402, 7
      %v4404 = vsub.s32 0, %v4403
      %v4405 = vrot.slane %v4100, %v4404
      %v4406 = vlaneseq
      %v4407 = vshrl.u32 %v4406, 7
      %v4408 = vsub.s32 0, %v4407
      %v4409 = vrot.slane %v4102, %v4408
      %v4410 = vlaneseq
      %v4411 = vshrl.u32 %v4410, 7
      %v4412 = vsub.s32 0, %v4411
      %v4413 = vrot.slane %v4104, %v4412
      %v4414 = vlaneseq
      %v4415 = vshrl.u32 %v4414, 7
      %v4416 = vsub.s32 0, %v4415
      %v4417 = vrot.slane %v4128, %v4416
      %v4418 = vlaneseq
      %v4419 = vshrl.u32 %v4418, 7
      %v4420 = vsub.s32 0, %v4419
      %v4421 = vrot.slane %v4142, %v4420
      %v4422 = vlaneseq
      %v4423 = vshrl.u32 %v4422, 7
      %v4424 = vsub.s32 0, %v4423
      %v4425 = vrot.slane %v4150, %v4424
      %v4426 = vlaneseq
      %v4427 = vshrl.u32 %v4426, 7
      %v4428 = vsub.s32 0, %v4427
      %v4429 = vrot.slane %v4152, %v4428
      %v4430 = vlaneseq
      %v4431 = vshrl.u32 %v4430, 7
      %v4432 = vsub.s32 0, %v4431
      %v4433 = vrot.slane %v4135, %v4432
      %v4434 = vlaneseq
      %v4435 = vshrl.u32 %v4434, 7
      %v4436 = vsub.s32 0, %v4435
      %v4437 = vrot.slane %v4149, %v4436
      %v4438 = vlaneseq
      %v4439 = vshrl.u32 %v4438, 7
      %v4440 = vsub.s32 0, %v4439
      %v4441 = vrot.slane %v4151, %v4440
      %v4442 = vlaneseq
      %v4443 = vshrl.u32 %v4442, 7
      %v4444 = vsub.s32 0, %v4443
      %v4445 = vrot.slane %v4153, %v4444
      %v4446 = vlaneseq
      %v4447 = vshrl.u32 %v4446, 7
      %v4448 = vsub.s32 0, %v4447
      %v4449 = vrot.slane %v4177, %v4448
      %v4450 = vlaneseq
      %v4451 = vshrl.u32 %v4450, 7
      %v4452 = vsub.s32 0, %v4451
      %v4453 = vrot.slane %v4191, %v4452
      %v4454 = vlaneseq
      %v4455 = vshrl.u32 %v4454, 7
      %v4456 = vsub.s32 0, %v4455
      %v4457 = vrot.slane %v4199, %v4456
      %v4458 = vlaneseq
      %v4459 = vshrl.u32 %v4458, 7
      %v4460 = vsub.s32 0, %v4459
      %v4461 = vrot.slane %v4201, %v4460
      %v4462 = vlaneseq
      %v4463 = vshrl.u32 %v4462, 7
      %v4464 = vsub.s32 0, %v4463
      %v4465 = vrot.slane %v4184, %v4464
      %v4466 = vlaneseq
      %v4467 = vshrl.u32 %v4466, 7
      %v4468 = vsub.s32 0, %v4467
      %v4469 = vrot.slane %v4198, %v4468
      %v4470 = vlaneseq
      %v4471 = vshrl.u32 %v4470, 7
      %v4472 = vsub.s32 0, %v4471
      %v4473 = vrot.slane %v4200, %v4472
      %v4474 = vlaneseq
      %v4475 = vshrl.u32 %v4474, 7
      %v4476 = vsub.s32 0, %v4475
      %v4477 = vrot.slane %v4202, %v4476
      %v4478 = vlaneseq
      %v4479 = vshrl.u32 %v4478, 7
      %v4480 = vsub.s32 0, %v4479
      %v4481 = vrot.slane %v4226, %v4480
      %v4482 = vlaneseq
      %v4483 = vshrl.u32 %v4482, 7
      %v4484 = vsub.s32 0, %v4483
      %v4485 = vrot.slane %v4240, %v4484
      %v4486 = vlaneseq
      %v4487 = vshrl.u32 %v4486, 7
      %v4488 = vsub.s32 0, %v4487
      %v4489 = vrot.slane %v4248, %v4488
      %v4490 = vlaneseq
      %v4491 = vshrl.u32 %v4490, 7
      %v4492 = vsub.s32 0, %v4491
      %v4493 = vrot.slane %v4250, %v4492
      %v4494 = vlaneseq
      %v4495 = vshrl.u32 %v4494, 7
      %v4496 = vsub.s32 0, %v4495
      %v4497 = vrot.slane %v4233, %v4496
      %v4498 = vlaneseq
      %v4499 = vshrl.u32 %v4498, 7
      %v4500 = vsub.s32 0, %v4499
      %v4501 = vrot.slane %v4247, %v4500
      %v4502 = vlaneseq
      %v4503 = vshrl.u32 %v4502, 7
      %v4504 = vsub.s32 0, %v4503
      %v4505 = vrot.slane %v4249, %v4504
      %v4506 = vlaneseq
      %v4507 = vshrl.u32 %v4506, 7
      %v4508 = vsub.s32 0, %v4507
      %v4509 = vrot.slane %v4251, %v4508
      %v4510 = vlaneseq
      %v4511 = vshrl.u32 %v4510, 7
      %v4512 = vsub.s32 0, %v4511
      %v4513 = vrot.slane %v4275, %v4512
      %v4514 = vlaneseq
      %v4515 = vshrl.u32 %v4514, 7
      %v4516 = vsub.s32 0, %v4515
      %v4517 = vrot.slane %v4289, %v4516
      %v4518 = vlaneseq
      %v4519 = vshrl.u32 %v4518, 7
      %v4520 = vsub.s32 0, %v4519
      %v4521 = vrot.slane %v4297, %v4520
      %v4522 = vlaneseq
      %v4523 = vshrl.u32 %v4522, 7
      %v4524 = vsub.s32 0, %v4523
      %v4525 = vrot.slane %v4299, %v4524
      %v4526 = vlaneseq
      %v4527 = vshrl.u32 %v4526, 7
      %v4528 = vsub.s32 0, %v4527
      %v4529 = vrot.slane %v4282, %v4528
      %v4530 = vlaneseq
      %v4531 = vshrl.u32 %v4530, 7
      %v4532 = vsub.s32 0, %v4531
      %v4533 = vrot.slane %v4296, %v4532
      %v4534 = vlaneseq
      %v4535 = vshrl.u32 %v4534, 7
      %v4536 = vsub.s32 0, %v4535
      %v4537 = vrot.slane %v4298, %v4536
      %v4538 = vlaneseq
      %v4539 = vshrl.u32 %v4538, 7
      %v4540 = vsub.s32 0, %v4539
      %v4541 = vrot.slane %v4300, %v4540
      %v4542 = vlaneseq
      %v4543 = vshrl.u32 %v4542, 7
      %v4544 = vsub.s32 0, %v4543
      %v4545 = vrot.slane %v4324, %v4544
      %v4546 = vlaneseq
      %v4547 = vshrl.u32 %v4546, 7
      %v4548 = vsub.s32 0, %v4547
      %v4549 = vrot.slane %v4338, %v4548
      %v4550 = vlaneseq
      %v4551 = vshrl.u32 %v4550, 7
      %v4552 = vsub.s32 0, %v4551
      %v4553 = vrot.slane %v4346, %v4552
      %v4554 = vlaneseq
      %v4555 = vshrl.u32 %v4554, 7
      %v4556 = vsub.s32 0, %v4555
      %v4557 = vrot.slane %v4348, %v4556
      %v4558 = vlaneseq
      %v4559 = vshrl.u32 %v4558, 7
      %v4560 = vsub.s32 0, %v4559
      %v4561 = vrot.slane %v4331, %v4560
      %v4562 = vlaneseq
      %v4563 = vshrl.u32 %v4562, 7
      %v4564 = vsub.s32 0, %v4563
      %v4565 = vrot.slane %v4345, %v4564
      %v4566 = vlaneseq
      %v4567 = vshrl.u32 %v4566, 7
      %v4568 = vsub.s32 0, %v4567
      %v4569 = vrot.slane %v4347, %v4568
      %v4570 = vlaneseq
      %v4571 = vshrl.u32 %v4570, 7
      %v4572 = vsub.s32 0, %v4571
      %v4573 = vrot.slane %v4349, %v4572
      %v4630 = vadd.f32 %v3722, %v4353
      %v4631 = vadd.f32 %v3727, %v4357
      %v4632 = vadd.f32 %v3732, %v4361
      %v4633 = vadd.f32 %v3737, %v4365
      %v4634 = vadd.f32 %v3742, %v4369
      %v4635 = vadd.f32 %v3747, %v4373
      %v4636 = vadd.f32 %v3752, %v4377
      %v4637 = vadd.f32 %v3757, %v4381
      %v4638 = vadd.f32 %v3762, %v4385
      %v4639 = vadd.f32 %v3767, %v4389
      %v4640 = vadd.f32 %v3772, %v4393
      %v4641 = vadd.f32 %v3777, %v4397
      %v4642 = vadd.f32 %v3782, %v4401
      %v4643 = vadd.f32 %v3787, %v4405
      %v4644 = vadd.f32 %v3792, %v4409
      %v4645 = vadd.f32 %v3797, %v4413
      %v4646 = vadd.f32 %v3802, %v4417
      %v4647 = vadd.f32 %v3807, %v4421
      %v4648 = vadd.f32 %v3812, %v4425
      %v4649 = vadd.f32 %v3817, %v4429
      %v4650 = vadd.f32 %v3822, %v4433
      %v4651 = vadd.f32 %v3827, %v4437
      %v4652 = vadd.f32 %v3832, %v4441
      %v4653 = vadd.f32 %v3837, %v4445
      %v4654 = vadd.f32 %v3842, %v4449
      %v4655 = vadd.f32 %v3847, %v4453
      %v4656 = vadd.f32 %v3852, %v4457
      %v4657 = vadd.f32 %v3857, %v4461
      %v4658 = vadd.f32 %v3862, %v4465
      %v4659 = vadd.f32 %v3867, %v4469
      %v4660 = vadd.f32 %v3872, %v4473
      %v4661 = vadd.f32 %v3877, %v4477
      %v4662 = vadd.f32 %v3882, %v4481
      %v4663 = vadd.f32 %v3887, %v4485
      %v4664 = vadd.f32 %v3892, %v4489
      %v4665 = vadd.f32 %v3897, %v4493
      %v4666 = vadd.f32 %v3902, %v4497
      %v4667 = vadd.f32 %v3907, %v4501
      %v4668 = vadd.f32 %v3912, %v4505
      %v4669 = vadd.f32 %v3917, %v4509
      %v4670 = vadd.f32 %v3922, %v4513
      %v4671 = vadd.f32 %v3927, %v4517
      %v4672 = vadd.f32 %v3932, %v4521
      %v4673 = vadd.f32 %v3937, %v4525
      %v4674 = vadd.f32 %v3942, %v4529
      %v4675 = vadd.f32 %v3947, %v4533
      %v4676 = vadd.f32 %v3952, %v4537
      %v4677 = vadd.f32 %v3957, %v4541
      %v4678 = vadd.f32 %v3962, %v4545
      %v4679 = vadd.f32 %v3967, %v4549
      %v4680 = vadd.f32 %v3972, %v4553
      %v4681 = vadd.f32 %v3977, %v4557
      %v4682 = vadd.f32 %v3982, %v4561
      %v4683 = vadd.f32 %v3987, %v4565
      %v4684 = vadd.f32 %v3992, %v4569
      %v4685 = vadd.f32 %v3997, %v4573
      %v4686 = vmax.f32 %v4630, 0.0
      %v4687 = vmax.f32 %v4631, 0.0
      %v4688 = vmax.f32 %v4632, 0.0
      %v4689 = vmax.f32 %v4633, 0.0
      %v4690 = vmax.f32 %v4634, 0.0
      %v4691 = vmax.f32 %v4635, 0.0
      %v4692 = vmax.f32 %v4636, 0.0
      %v4693 = vmax.f32 %v4637, 0.0
      %v4694 = vmax.f32 %v4638, 0.0
      %v4695 = vmax.f32 %v4639, 0.0
      %v4696 = vmax.f32 %v4640, 0.0
      %v4697 = vmax.f32 %v4641, 0.0
      %v4698 = vmax.f32 %v4642, 0.0
      %v4699 = vmax.f32 %v4643, 0.0
      %v4700 = vmax.f32 %v4644, 0.0
      %v4701 = vmax.f32 %v4645, 0.0
      %v4702 = vmax.f32 %v4646, 0.0
      %v4703 = vmax.f32 %v4647, 0.0
      %v4704 = vmax.f32 %v4648, 0.0
      %v4705 = vmax.f32 %v4649, 0.0
      %v4706 = vmax.f32 %v4650, 0.0
      %v4707 = vmax.f32 %v4651, 0.0
      %v4708 = vmax.f32 %v4652, 0.0
      %v4709 = vmax.f32 %v4653, 0.0
      %v4710 = vmax.f32 %v4654, 0.0
      %v4711 = vmax.f32 %v4655, 0.0
      %v4712 = vmax.f32 %v4656, 0.0
      %v4713 = vmax.f32 %v4657, 0.0
      %v4714 = vmax.f32 %v4658, 0.0
      %v4715 = vmax.f32 %v4659, 0.0
      %v4716 = vmax.f32 %v4660, 0.0
      %v4717 = vmax.f32 %v4661, 0.0
      %v4718 = vmax.f32 %v4662, 0.0
      %v4719 = vmax.f32 %v4663, 0.0
      %v4720 = vmax.f32 %v4664, 0.0
      %v4721 = vmax.f32 %v4665, 0.0
      %v4722 = vmax.f32 %v4666, 0.0
      %v4723 = vmax.f32 %v4667, 0.0
      %v4724 = vmax.f32 %v4668, 0.0
      %v4725 = vmax.f32 %v4669, 0.0
      %v4726 = vmax.f32 %v4670, 0.0
      %v4727 = vmax.f32 %v4671, 0.0
      %v4728 = vmax.f32 %v4672, 0.0
      %v4729 = vmax.f32 %v4673, 0.0
      %v4730 = vmax.f32 %v4674, 0.0
      %v4731 = vmax.f32 %v4675, 0.0
      %v4732 = vmax.f32 %v4676, 0.0
      %v4733 = vmax.f32 %v4677, 0.0
      %v4734 = vmax.f32 %v4678, 0.0
      %v4735 = vmax.f32 %v4679, 0.0
      %v4736 = vmax.f32 %v4680, 0.0
      %v4737 = vmax.f32 %v4681, 0.0
      %v4738 = vmax.f32 %v4682, 0.0
      %v4739 = vmax.f32 %v4683, 0.0
      %v4740 = vmax.f32 %v4684, 0.0
      %v4741 = vmax.f32 %v4685, 0.0
      %v4742 = vld [vmem:[%s9] sm:$0xff]
      %v4743 = vld [vmem:[%s9 + $0x8] sm:$0xff]
      %v4744 = vld [vmem:[%s9 + $0x10] sm:$0xff]
      %v4745 = vld [vmem:[%s9 + $0x18] sm:$0xff]
      %v4746 = vld [vmem:[%s10] sm:$0x1]
      %v4748 = vlaneseq
      %v4749 = vshrl.u32 %v4748, 7
      %v4750 = vsub.s32 0, %v4749
      %v4751 = vrot.slane %v4746, %v4750
      %v4754 = vsel %vm2737, %v4686, 0
      %v4757 = vsel %vm2737, %v4687, 0
      %v4760 = vsel %vm2737, %v4688, 0
      %v4763 = vsel %vm2737, %v4689, 0
      %v4766 = vsel %vm2737, %v4690, 0
      %v4769 = vsel %vm2737, %v4691, 0
      %v4772 = vsel %vm2737, %v4692, 0
      %v4775 = vsel %vm2737, %v4693, 0
      %v4778 = vsel %vm2737, %v4694, 0
      %v4781 = vsel %vm2737, %v4695, 0
      %v4784 = vsel %vm2737, %v4696, 0
      %v4787 = vsel %vm2737, %v4697, 0
      %v4790 = vsel %vm2737, %v4698, 0
      %v4793 = vsel %vm2737, %v4699, 0
      %v4796 = vsel %vm2737, %v4700, 0
      %v4799 = vsel %vm2737, %v4701, 0
      %v4802 = vsel %vm2737, %v4702, 0
      %v4805 = vsel %vm2737, %v4703, 0
      %v4808 = vsel %vm2737, %v4704, 0
      %v4811 = vsel %vm2737, %v4705, 0
      %v4814 = vsel %vm2737, %v4706, 0
      %v4817 = vsel %vm2737, %v4707, 0
      %v4820 = vsel %vm2737, %v4708, 0
      %v4823 = vsel %vm2737, %v4709, 0
      %v4826 = vsel %vm2737, %v4710, 0
      %v4829 = vsel %vm2737, %v4711, 0
      %v4832 = vsel %vm2737, %v4712, 0
      %v4835 = vsel %vm2737, %v4713, 0
      %v4838 = vsel %vm2737, %v4714, 0
      %v4841 = vsel %vm2737, %v4715, 0
      %v4844 = vsel %vm2737, %v4716, 0
      %v4847 = vsel %vm2737, %v4717, 0
      %v4850 = vsel %vm2737, %v4718, 0
      %v4853 = vsel %vm2737, %v4719, 0
      %v4856 = vsel %vm2737, %v4720, 0
      %v4859 = vsel %vm2737, %v4721, 0
      %v4862 = vsel %vm2737, %v4722, 0
      %v4865 = vsel %vm2737, %v4723, 0
      %v4868 = vsel %vm2737, %v4724, 0
      %v4871 = vsel %vm2737, %v4725, 0
      %v4874 = vsel %vm2737, %v4726, 0
      %v4877 = vsel %vm2737, %v4727, 0
      %v4880 = vsel %vm2737, %v4728, 0
      %v4883 = vsel %vm2737, %v4729, 0
      %v4886 = vsel %vm2737, %v4730, 0
      %v4889 = vsel %vm2737, %v4731, 0
      %v4892 = vsel %vm2737, %v4732, 0
      %v4895 = vsel %vm2737, %v4733, 0
      %v4898 = vsel %vm2737, %v4734, 0
      %v4901 = vsel %vm2737, %v4735, 0
      %v4904 = vsel %vm2737, %v4736, 0
      %v4907 = vsel %vm2737, %v4737, 0
      %v4910 = vsel %vm2737, %v4738, 0
      %v4913 = vsel %vm2737, %v4739, 0
      %v4916 = vsel %vm2737, %v4740, 0
      %v4919 = vsel %vm2737, %v4741, 0
      %4921 = vmatprep.subr.mxu0 0.0
      %4922 = vmatpush1.msra.mxu0 %v4742
      %4923 = vmatprep.subr.mxu0 0.0
      %4924 = vmatpush1.msra.mxu0 %v4743
      %4925 = vmatprep.subr.mxu0 0.0
      %4926 = vmatpush1.msra.mxu0 %v4744
      %4927 = vmatprep.subr.mxu0 0.0
      %4928 = vmatpush1.msra.mxu0 %v4745
      %4929 = vmatprep.subr.mxu0 0.0
      %4930 = vmatpush1.msra.mxu0 0.0
      %4931 = vmatprep.subr.mxu0 0.0
      %4932 = vmatpush1.msra.mxu0 0.0
      %4933 = vmatprep.subr.mxu0 0.0
      %4934 = vmatpush1.msra.mxu0 0.0
      %4935 = vmatprep.subr.mxu0 0.0
      %4936 = vmatpush1.msra.mxu0 0.0
      %4937 = vmatprep.subr.mxu0 0.0
      %4938 = vmatpush1.msra.mxu0 0.0
      %4939 = vmatprep.subr.mxu0 0.0
      %4940 = vmatpush1.msra.mxu0 0.0
      %4941 = vmatprep.subr.mxu0 0.0
      %4942 = vmatpush1.msra.mxu0 0.0
      %4943 = vmatprep.subr.mxu0 0.0
      %4944 = vmatpush1.msra.mxu0 0.0
      %4945 = vmatprep.subr.mxu0 0.0
      %4946 = vmatpush1.msra.mxu0 0.0
      %4947 = vmatprep.subr.mxu0 0.0
      %4948 = vmatpush1.msra.mxu0 0.0
      %4949 = vmatprep.subr.mxu0 0.0
      %4950 = vmatpush1.msra.mxu0 0.0
      %4951 = vmatprep.subr.mxu0 0.0
      %4952 = vmatpush1.msra.mxu0 0.0
      %4953 = vmatprep.subr.mxu0 0.0
      %4954 = vmatpush1.msra.mxu0 0.0
      %4955 = vmatprep.subr.mxu0 0.0
      %4956 = vmatpush1.msra.mxu0 0.0
      %4957 = vmatprep.subr.mxu0 0.0
      %4958 = vmatpush1.msra.mxu0 0.0
      %4959 = vmatprep.subr.mxu0 0.0
      %4960 = vmatpush1.msra.mxu0 0.0
      %4961 = vmatprep.subr.mxu0 0.0
      %4962 = vmatpush1.msra.mxu0 0.0
      %4963 = vmatprep.subr.mxu0 0.0
      %4964 = vmatpush1.msra.mxu0 0.0
      %4965 = vmatprep.subr.mxu0 0.0
      %4966 = vmatpush1.msra.mxu0 0.0
      %4967 = vmatprep.subr.mxu0 0.0
      %4968 = vmatpush1.msra.mxu0 0.0
      %4969 = vmatprep.subr.mxu0 0.0
      %4970 = vmatpush1.msra.mxu0 0.0
      %4971 = vmatprep.subr.mxu0 0.0
      %4972 = vmatpush1.msra.mxu0 0.0
      %4973 = vmatprep.subr.mxu0 0.0
      %4974 = vmatpush1.msra.mxu0 0.0
      %4975 = vmatprep.subr.mxu0 0.0
      %4976 = vmatpush1.msra.mxu0 0.0
      %4977 = vmatprep.subr.mxu0 0.0
      %4978 = vmatpush1.msra.mxu0 0.0
      %4979 = vmatprep.subr.mxu0 0.0
      %4980 = vmatpush1.msra.mxu0 0.0
      %4981 = vmatprep.subr.mxu0 0.0
      %4982 = vmatpush1.msra.mxu0 0.0
      %4983 = vmatprep.subr.mxu0 0.0
      %4984 = vmatpush1.msra.mxu0 0.0
      %4985 = vmatprep.mubr.f32.mxu0 0.0
      %4986 = vmatmul.mubr.f32.gmra.mrb[0].mxu0 %v4754
      %v4987 = vpop.f32.mrb[0].mxu0
      %v4988 = vadd.f32 %v4751, %v4987
      %v4989 = vpop.f32.mrb[0].mxu0
      %4990 = vmatprep.mubr.f32.mxu0 0.0
      %4991 = vmatmul.mubr.f32.gmra.mrb[0].mxu0 %v4757
      %v4992 = vpop.f32.mrb[0].mxu0
      %v4993 = vadd.f32 %v4751, %v4992
      %v4994 = vpop.f32.mrb[0].mxu0
      %4995 = vmatprep.mubr.f32.mxu0 0.0
      %4996 = vmatmul.mubr.f32.gmra.mrb[0].mxu0 %v4760
      %v4997 = vpop.f32.mrb[0].mxu0
      %v4998 = vadd.f32 %v4751, %v4997
      %v4999 = vpop.f32.mrb[0].mxu0
      %5000 = vmatprep.mubr.f32.mxu0 0.0
      %5001 = vmatmul.mubr.f32.gmra.mrb[0].mxu0 %v4763
      %v5002 = vpop.f32.mrb[0].mxu0
      %v5003 = vadd.f32 %v4751, %v5002
      %v5004 = vpop.f32.mrb[0].mxu0
      %5005 = vmatprep.mubr.f32.mxu0 0.0
      %5006 = vmatmul.mubr.f32.gmra.mrb[0].mxu0 %v4766
      %v5007 = vpop.f32.mrb[0].mxu0
      %v5008 = vadd.f32 %v4751, %v5007
      %v5009 = vpop.f32.mrb[0].mxu0
      %5010 = vmatprep.mubr.f32.mxu0 0.0
      %5011 = vmatmul.mubr.f32.gmra.mrb[0].mxu0 %v4769
      %v5012 = vpop.f32.mrb[0].mxu0
      %v5013 = vadd.f32 %v4751, %v5012
      %v5014 = vpop.f32.mrb[0].mxu0
      %5015 = vmatprep.mubr.f32.mxu0 0.0
      %5016 = vmatmul.mubr.f32.gmra.mrb[0].mxu0 %v4772
      %v5017 = vpop.f32.mrb[0].mxu0
      %v5018 = vadd.f32 %v4751, %v5017
      %v5019 = vpop.f32.mrb[0].mxu0
      %5020 = vmatprep.mubr.f32.mxu0 0.0
      %5021 = vmatmul.mubr.f32.gmra.mrb[0].mxu0 %v4775
      %v5022 = vpop.f32.mrb[0].mxu0
      %v5023 = vadd.f32 %v4751, %v5022
      %v5024 = vpop.f32.mrb[0].mxu0
      %5025 = vmatprep.mubr.f32.mxu0 0.0
      %5026 = vmatmul.mubr.f32.gmra.mrb[0].mxu0 %v4778
      %v5027 = vpop.f32.mrb[0].mxu0
      %v5028 = vadd.f32 %v4751, %v5027
      %v5029 = vpop.f32.mrb[0].mxu0
      %5030 = vmatprep.mubr.f32.mxu0 0.0
      %5031 = vmatmul.mubr.f32.gmra.mrb[0].mxu0 %v4781
      %v5032 = vpop.f32.mrb[0].mxu0
      %v5033 = vadd.f32 %v4751, %v5032
      %v5034 = vpop.f32.mrb[0].mxu0
      %5035 = vmatprep.mubr.f32.mxu0 0.0
      %5036 = vmatmul.mubr.f32.gmra.mrb[0].mxu0 %v4784
      %v5037 = vpop.f32.mrb[0].mxu0
      %v5038 = vadd.f32 %v4751, %v5037
      %v5039 = vpop.f32.mrb[0].mxu0
      %5040 = vmatprep.mubr.f32.mxu0 0.0
      %5041 = vmatmul.mubr.f32.gmra.mrb[0].mxu0 %v4787
      %v5042 = vpop.f32.mrb[0].mxu0
      %v5043 = vadd.f32 %v4751, %v5042
      %v5044 = vpop.f32.mrb[0].mxu0
      %5045 = vmatprep.mubr.f32.mxu0 0.0
      %5046 = vmatmul.mubr.f32.gmra.mrb[0].mxu0 %v4790
      %v5047 = vpop.f32.mrb[0].mxu0
      %v5048 = vadd.f32 %v4751, %v5047
      %v5049 = vpop.f32.mrb[0].mxu0
      %5050 = vmatprep.mubr.f32.mxu0 0.0
      %5051 = vmatmul.mubr.f32.gmra.mrb[0].mxu0 %v4793
      %v5052 = vpop.f32.mrb[0].mxu0
      %v5053 = vadd.f32 %v4751, %v5052
      %v5054 = vpop.f32.mrb[0].mxu0
      %5055 = vmatprep.mubr.f32.mxu0 0.0
      %5056 = vmatmul.mubr.f32.gmra.mrb[0].mxu0 %v4796
      %v5057 = vpop.f32.mrb[0].mxu0
      %v5058 = vadd.f32 %v4751, %v5057
      %v5059 = vpop.f32.mrb[0].mxu0
      %5060 = vmatprep.mubr.f32.mxu0 0.0
      %5061 = vmatmul.mubr.f32.gmra.mrb[0].mxu0 %v4799
      %v5062 = vpop.f32.mrb[0].mxu0
      %v5063 = vadd.f32 %v4751, %v5062
      %v5064 = vpop.f32.mrb[0].mxu0
      %5065 = vmatprep.mubr.f32.mxu0 0.0
      %5066 = vmatmul.mubr.f32.gmra.mrb[0].mxu0 %v4802
      %v5067 = vpop.f32.mrb[0].mxu0
      %v5068 = vadd.f32 %v4751, %v5067
      %v5069 = vpop.f32.mrb[0].mxu0
      %5070 = vmatprep.mubr.f32.mxu0 0.0
      %5071 = vmatmul.mubr.f32.gmra.mrb[0].mxu0 %v4805
      %v5072 = vpop.f32.mrb[0].mxu0
      %v5073 = vadd.f32 %v4751, %v5072
      %v5074 = vpop.f32.mrb[0].mxu0
      %5075 = vmatprep.mubr.f32.mxu0 0.0
      %5076 = vmatmul.mubr.f32.gmra.mrb[0].mxu0 %v4808
      %v5077 = vpop.f32.mrb[0].mxu0
      %v5078 = vadd.f32 %v4751, %v5077
      %v5079 = vpop.f32.mrb[0].mxu0
      %5080 = vmatprep.mubr.f32.mxu0 0.0
      %5081 = vmatmul.mubr.f32.gmra.mrb[0].mxu0 %v4811
      %v5082 = vpop.f32.mrb[0].mxu0
      %v5083 = vadd.f32 %v4751, %v5082
      %v5084 = vpop.f32.mrb[0].mxu0
      %5085 = vmatprep.mubr.f32.mxu0 0.0
      %5086 = vmatmul.mubr.f32.gmra.mrb[0].mxu0 %v4814
      %v5087 = vpop.f32.mrb[0].mxu0
      %v5088 = vadd.f32 %v4751, %v5087
      %v5089 = vpop.f32.mrb[0].mxu0
      %5090 = vmatprep.mubr.f32.mxu0 0.0
      %5091 = vmatmul.mubr.f32.gmra.mrb[0].mxu0 %v4817
      %v5092 = vpop.f32.mrb[0].mxu0
      %v5093 = vadd.f32 %v4751, %v5092
      %v5094 = vpop.f32.mrb[0].mxu0
      %5095 = vmatprep.mubr.f32.mxu0 0.0
      %5096 = vmatmul.mubr.f32.gmra.mrb[0].mxu0 %v4820
      %v5097 = vpop.f32.mrb[0].mxu0
      %v5098 = vadd.f32 %v4751, %v5097
      %v5099 = vpop.f32.mrb[0].mxu0
      %5100 = vmatprep.mubr.f32.mxu0 0.0
      %5101 = vmatmul.mubr.f32.gmra.mrb[0].mxu0 %v4823
      %v5102 = vpop.f32.mrb[0].mxu0
      %v5103 = vadd.f32 %v4751, %v5102
      %v5104 = vpop.f32.mrb[0].mxu0
      %5105 = vmatprep.mubr.f32.mxu0 0.0
      %5106 = vmatmul.mubr.f32.gmra.mrb[0].mxu0 %v4826
      %v5107 = vpop.f32.mrb[0].mxu0
      %v5108 = vadd.f32 %v4751, %v5107
      %v5109 = vpop.f32.mrb[0].mxu0
      %5110 = vmatprep.mubr.f32.mxu0 0.0
      %5111 = vmatmul.mubr.f32.gmra.mrb[0].mxu0 %v4829
      %v5112 = vpop.f32.mrb[0].mxu0
      %v5113 = vadd.f32 %v4751, %v5112
      %v5114 = vpop.f32.mrb[0].mxu0
      %5115 = vmatprep.mubr.f32.mxu0 0.0
      %5116 = vmatmul.mubr.f32.gmra.mrb[0].mxu0 %v4832
      %v5117 = vpop.f32.mrb[0].mxu0
      %v5118 = vadd.f32 %v4751, %v5117
      %v5119 = vpop.f32.mrb[0].mxu0
      %5120 = vmatprep.mubr.f32.mxu0 0.0
      %5121 = vmatmul.mubr.f32.gmra.mrb[0].mxu0 %v4835
      %v5122 = vpop.f32.mrb[0].mxu0
      %v5123 = vadd.f32 %v4751, %v5122
      %v5124 = vpop.f32.mrb[0].mxu0
      %5125 = vmatprep.mubr.f32.mxu0 0.0
      %5126 = vmatmul.mubr.f32.gmra.mrb[0].mxu0 %v4838
      %v5127 = vpop.f32.mrb[0].mxu0
      %v5128 = vadd.f32 %v4751, %v5127
      %v5129 = vpop.f32.mrb[0].mxu0
      %5130 = vmatprep.mubr.f32.mxu0 0.0
      %5131 = vmatmul.mubr.f32.gmra.mrb[0].mxu0 %v4841
      %v5132 = vpop.f32.mrb[0].mxu0
      %v5133 = vadd.f32 %v4751, %v5132
      %v5134 = vpop.f32.mrb[0].mxu0
      %5135 = vmatprep.mubr.f32.mxu0 0.0
      %5136 = vmatmul.mubr.f32.gmra.mrb[0].mxu0 %v4844
      %v5137 = vpop.f32.mrb[0].mxu0
      %v5138 = vadd.f32 %v4751, %v5137
      %v5139 = vpop.f32.mrb[0].mxu0
      %5140 = vmatprep.mubr.f32.mxu0 0.0
      %5141 = vmatmul.mubr.f32.gmra.mrb[0].mxu0 %v4847
      %v5142 = vpop.f32.mrb[0].mxu0
      %v5143 = vadd.f32 %v4751, %v5142
      %v5144 = vpop.f32.mrb[0].mxu0
      %5145 = vmatprep.mubr.f32.mxu0 0.0
      %5146 = vmatmul.mubr.f32.gmra.mrb[0].mxu0 %v4850
      %v5147 = vpop.f32.mrb[0].mxu0
      %v5148 = vadd.f32 %v4751, %v5147
      %v5149 = vpop.f32.mrb[0].mxu0
      %5150 = vmatprep.mubr.f32.mxu0 0.0
      %5151 = vmatmul.mubr.f32.gmra.mrb[0].mxu0 %v4853
      %v5152 = vpop.f32.mrb[0].mxu0
      %v5153 = vadd.f32 %v4751, %v5152
      %v5154 = vpop.f32.mrb[0].mxu0
      %5155 = vmatprep.mubr.f32.mxu0 0.0
      %5156 = vmatmul.mubr.f32.gmra.mrb[0].mxu0 %v4856
      %v5157 = vpop.f32.mrb[0].mxu0
      %v5158 = vadd.f32 %v4751, %v5157
      %v5159 = vpop.f32.mrb[0].mxu0
      %5160 = vmatprep.mubr.f32.mxu0 0.0
      %5161 = vmatmul.mubr.f32.gmra.mrb[0].mxu0 %v4859
      %v5162 = vpop.f32.mrb[0].mxu0
      %v5163 = vadd.f32 %v4751, %v5162
      %v5164 = vpop.f32.mrb[0].mxu0
      %5165 = vmatprep.mubr.f32.mxu0 0.0
      %5166 = vmatmul.mubr.f32.gmra.mrb[0].mxu0 %v4862
      %v5167 = vpop.f32.mrb[0].mxu0
      %v5168 = vadd.f32 %v4751, %v5167
      %v5169 = vpop.f32.mrb[0].mxu0
      %5170 = vmatprep.mubr.f32.mxu0 0.0
      %5171 = vmatmul.mubr.f32.gmra.mrb[0].mxu0 %v4865
      %v5172 = vpop.f32.mrb[0].mxu0
      %v5173 = vadd.f32 %v4751, %v5172
      %v5174 = vpop.f32.mrb[0].mxu0
      %5175 = vmatprep.mubr.f32.mxu0 0.0
      %5176 = vmatmul.mubr.f32.gmra.mrb[0].mxu0 %v4868
      %v5177 = vpop.f32.mrb[0].mxu0
      %v5178 = vadd.f32 %v4751, %v5177
      %v5179 = vpop.f32.mrb[0].mxu0
      %5180 = vmatprep.mubr.f32.mxu0 0.0
      %5181 = vmatmul.mubr.f32.gmra.mrb[0].mxu0 %v4871
      %v5182 = vpop.f32.mrb[0].mxu0
      %v5183 = vadd.f32 %v4751, %v5182
      %v5184 = vpop.f32.mrb[0].mxu0
      %5185 = vmatprep.mubr.f32.mxu0 0.0
      %5186 = vmatmul.mubr.f32.gmra.mrb[0].mxu0 %v4874
      %v5187 = vpop.f32.mrb[0].mxu0
      %v5188 = vadd.f32 %v4751, %v5187
      %v5189 = vpop.f32.mrb[0].mxu0
      %5190 = vmatprep.mubr.f32.mxu0 0.0
      %5191 = vmatmul.mubr.f32.gmra.mrb[0].mxu0 %v4877
      %v5192 = vpop.f32.mrb[0].mxu0
      %v5193 = vadd.f32 %v4751, %v5192
      %v5194 = vpop.f32.mrb[0].mxu0
      %5195 = vmatprep.mubr.f32.mxu0 0.0
      %5196 = vmatmul.mubr.f32.gmra.mrb[0].mxu0 %v4880
      %v5197 = vpop.f32.mrb[0].mxu0
      %v5198 = vadd.f32 %v4751, %v5197
      %v5199 = vpop.f32.mrb[0].mxu0
      %5200 = vmatprep.mubr.f32.mxu0 0.0
      %5201 = vmatmul.mubr.f32.gmra.mrb[0].mxu0 %v4883
      %v5202 = vpop.f32.mrb[0].mxu0
      %v5203 = vadd.f32 %v4751, %v5202
      %v5204 = vpop.f32.mrb[0].mxu0
      %5205 = vmatprep.mubr.f32.mxu0 0.0
      %5206 = vmatmul.mubr.f32.gmra.mrb[0].mxu0 %v4886
      %v5207 = vpop.f32.mrb[0].mxu0
      %v5208 = vadd.f32 %v4751, %v5207
      %v5209 = vpop.f32.mrb[0].mxu0
      %5210 = vmatprep.mubr.f32.mxu0 0.0
      %5211 = vmatmul.mubr.f32.gmra.mrb[0].mxu0 %v4889
      %v5212 = vpop.f32.mrb[0].mxu0
      %v5213 = vadd.f32 %v4751, %v5212
      %v5214 = vpop.f32.mrb[0].mxu0
      %5215 = vmatprep.mubr.f32.mxu0 0.0
      %5216 = vmatmul.mubr.f32.gmra.mrb[0].mxu0 %v4892
      %v5217 = vpop.f32.mrb[0].mxu0
      %v5218 = vadd.f32 %v4751, %v5217
      %v5219 = vpop.f32.mrb[0].mxu0
      %5220 = vmatprep.mubr.f32.mxu0 0.0
      %5221 = vmatmul.mubr.f32.gmra.mrb[0].mxu0 %v4895
      %v5222 = vpop.f32.mrb[0].mxu0
      %v5223 = vadd.f32 %v4751, %v5222
      %v5224 = vpop.f32.mrb[0].mxu0
      %5225 = vmatprep.mubr.f32.mxu0 0.0
      %5226 = vmatmul.mubr.f32.gmra.mrb[0].mxu0 %v4898
      %v5227 = vpop.f32.mrb[0].mxu0
      %v5228 = vadd.f32 %v4751, %v5227
      %v5229 = vpop.f32.mrb[0].mxu0
      %5230 = vmatprep.mubr.f32.mxu0 0.0
      %5231 = vmatmul.mubr.f32.gmra.mrb[0].mxu0 %v4901
      %v5232 = vpop.f32.mrb[0].mxu0
      %v5233 = vadd.f32 %v4751, %v5232
      %v5234 = vpop.f32.mrb[0].mxu0
      %5235 = vmatprep.mubr.f32.mxu0 0.0
      %5236 = vmatmul.mubr.f32.gmra.mrb[0].mxu0 %v4904
      %v5237 = vpop.f32.mrb[0].mxu0
      %v5238 = vadd.f32 %v4751, %v5237
      %v5239 = vpop.f32.mrb[0].mxu0
      %5240 = vmatprep.mubr.f32.mxu0 0.0
      %5241 = vmatmul.mubr.f32.gmra.mrb[0].mxu0 %v4907
      %v5242 = vpop.f32.mrb[0].mxu0
      %v5243 = vadd.f32 %v4751, %v5242
      %v5244 = vpop.f32.mrb[0].mxu0
      %5245 = vmatprep.mubr.f32.mxu0 0.0
      %5246 = vmatmul.mubr.f32.gmra.mrb[0].mxu0 %v4910
      %v5247 = vpop.f32.mrb[0].mxu0
      %v5248 = vadd.f32 %v4751, %v5247
      %v5249 = vpop.f32.mrb[0].mxu0
      %5250 = vmatprep.mubr.f32.mxu0 0.0
      %5251 = vmatmul.mubr.f32.gmra.mrb[0].mxu0 %v4913
      %v5252 = vpop.f32.mrb[0].mxu0
      %v5253 = vadd.f32 %v4751, %v5252
      %v5254 = vpop.f32.mrb[0].mxu0
      %5255 = vmatprep.mubr.f32.mxu0 0.0
      %5256 = vmatmul.mubr.f32.gmra.mrb[0].mxu0 %v4916
      %v5257 = vpop.f32.mrb[0].mxu0
      %v5258 = vadd.f32 %v4751, %v5257
      %v5259 = vpop.f32.mrb[0].mxu0
      %5260 = vmatprep.mubr.f32.mxu0 0.0
      %5261 = vmatmul.mubr.f32.gmra.mrb[0].mxu0 %v4919
      %v5262 = vpop.f32.mrb[0].mxu0
      %v5263 = vadd.f32 %v4751, %v5262
      %v5264 = vpop.f32.mrb[0].mxu0
      %5265 = vdwg.mxu0
      %v5266 = vmax.f32 %v4988, 0.0
      %v5267 = vmax.f32 %v4993, 0.0
      %v5268 = vmax.f32 %v4998, 0.0
      %v5269 = vmax.f32 %v5003, 0.0
      %v5270 = vmax.f32 %v5008, 0.0
      %v5271 = vmax.f32 %v5013, 0.0
      %v5272 = vmax.f32 %v5018, 0.0
      %v5273 = vmax.f32 %v5023, 0.0
      %v5274 = vmax.f32 %v5028, 0.0
      %v5275 = vmax.f32 %v5033, 0.0
      %v5276 = vmax.f32 %v5038, 0.0
      %v5277 = vmax.f32 %v5043, 0.0
      %v5278 = vmax.f32 %v5048, 0.0
      %v5279 = vmax.f32 %v5053, 0.0
      %v5280 = vmax.f32 %v5058, 0.0
      %v5281 = vmax.f32 %v5063, 0.0
      %v5282 = vmax.f32 %v5068, 0.0
      %v5283 = vmax.f32 %v5073, 0.0
      %v5284 = vmax.f32 %v5078, 0.0
      %v5285 = vmax.f32 %v5083, 0.0
      %v5286 = vmax.f32 %v5088, 0.0
      %v5287 = vmax.f32 %v5093, 0.0
      %v5288 = vmax.f32 %v5098, 0.0
      %v5289 = vmax.f32 %v5103, 0.0
      %v5290 = vmax.f32 %v5108, 0.0
      %v5291 = vmax.f32 %v5113, 0.0
      %v5292 = vmax.f32 %v5118, 0.0
      %v5293 = vmax.f32 %v5123, 0.0
      %v5294 = vmax.f32 %v5128, 0.0
      %v5295 = vmax.f32 %v5133, 0.0
      %v5296 = vmax.f32 %v5138, 0.0
      %v5297 = vmax.f32 %v5143, 0.0
      %v5298 = vmax.f32 %v5148, 0.0
      %v5299 = vmax.f32 %v5153, 0.0
      %v5300 = vmax.f32 %v5158, 0.0
      %v5301 = vmax.f32 %v5163, 0.0
      %v5302 = vmax.f32 %v5168, 0.0
      %v5303 = vmax.f32 %v5173, 0.0
      %v5304 = vmax.f32 %v5178, 0.0
      %v5305 = vmax.f32 %v5183, 0.0
      %v5306 = vmax.f32 %v5188, 0.0
      %v5307 = vmax.f32 %v5193, 0.0
      %v5308 = vmax.f32 %v5198, 0.0
      %v5309 = vmax.f32 %v5203, 0.0
      %v5310 = vmax.f32 %v5208, 0.0
      %v5311 = vmax.f32 %v5213, 0.0
      %v5312 = vmax.f32 %v5218, 0.0
      %v5313 = vmax.f32 %v5223, 0.0
      %v5314 = vmax.f32 %v5228, 0.0
      %v5315 = vmax.f32 %v5233, 0.0
      %v5316 = vmax.f32 %v5238, 0.0
      %v5317 = vmax.f32 %v5243, 0.0
      %v5318 = vmax.f32 %v5248, 0.0
      %v5319 = vmax.f32 %v5253, 0.0
      %v5320 = vmax.f32 %v5258, 0.0
      %v5321 = vmax.f32 %v5263, 0.0
      %v5322 = vld [vmem:[%s11] sm:$0x1]
      %v5324 = vlaneseq
      %v5325 = vshrl.u32 %v5324, 7
      %v5326 = vsub.s32 0, %v5325
      %v5327 = vrot.slane %v5322, %v5326
      %v5329 = vmul.f32 %v5266, %v5327
      %v5330 = vmul.f32 %v5267, %v5327
      %v5331 = vmul.f32 %v5268, %v5327
      %v5332 = vmul.f32 %v5269, %v5327
      %v5333 = vmul.f32 %v5270, %v5327
      %v5334 = vmul.f32 %v5271, %v5327
      %v5335 = vmul.f32 %v5272, %v5327
      %v5336 = vmul.f32 %v5273, %v5327
      %v5337 = vmul.f32 %v5274, %v5327
      %v5338 = vmul.f32 %v5275, %v5327
      %v5339 = vmul.f32 %v5276, %v5327
      %v5340 = vmul.f32 %v5277, %v5327
      %v5341 = vmul.f32 %v5278, %v5327
      %v5342 = vmul.f32 %v5279, %v5327
      %v5343 = vmul.f32 %v5280, %v5327
      %v5344 = vmul.f32 %v5281, %v5327
      %v5345 = vmul.f32 %v5282, %v5327
      %v5346 = vmul.f32 %v5283, %v5327
      %v5347 = vmul.f32 %v5284, %v5327
      %v5348 = vmul.f32 %v5285, %v5327
      %v5349 = vmul.f32 %v5286, %v5327
      %v5350 = vmul.f32 %v5287, %v5327
      %v5351 = vmul.f32 %v5288, %v5327
      %v5352 = vmul.f32 %v5289, %v5327
      %v5353 = vmul.f32 %v5290, %v5327
      %v5354 = vmul.f32 %v5291, %v5327
      %v5355 = vmul.f32 %v5292, %v5327
      %v5356 = vmul.f32 %v5293, %v5327
      %v5357 = vmul.f32 %v5294, %v5327
      %v5358 = vmul.f32 %v5295, %v5327
      %v5359 = vmul.f32 %v5296, %v5327
      %v5360 = vmul.f32 %v5297, %v5327
      %v5361 = vmul.f32 %v5298, %v5327
      %v5362 = vmul.f32 %v5299, %v5327
      %v5363 = vmul.f32 %v5300, %v5327
      %v5364 = vmul.f32 %v5301, %v5327
      %v5365 = vmul.f32 %v5302, %v5327
      %v5366 = vmul.f32 %v5303, %v5327
      %v5367 = vmul.f32 %v5304, %v5327
      %v5368 = vmul.f32 %v5305, %v5327
      %v5369 = vmul.f32 %v5306, %v5327
      %v5370 = vmul.f32 %v5307, %v5327
      %v5371 = vmul.f32 %v5308, %v5327
      %v5372 = vmul.f32 %v5309, %v5327
      %v5373 = vmul.f32 %v5310, %v5327
      %v5374 = vmul.f32 %v5311, %v5327
      %v5375 = vmul.f32 %v5312, %v5327
      %v5376 = vmul.f32 %v5313, %v5327
      %v5377 = vmul.f32 %v5314, %v5327
      %v5378 = vmul.f32 %v5315, %v5327
      %v5379 = vmul.f32 %v5316, %v5327
      %v5380 = vmul.f32 %v5317, %v5327
      %v5381 = vmul.f32 %v5318, %v5327
      %v5382 = vmul.f32 %v5319, %v5327
      %v5383 = vmul.f32 %v5320, %v5327
      %v5384 = vmul.f32 %v5321, %v5327
      %v5385 = vsel %vm2737, %v5329, 0.0
      %5386 = vadd.xlane.f32.xlu0 %v5385
      %v5387 = vpop.xlane.xlu0 %5386
      %v5388 = vsel %vm2737, %v5330, 0.0
      %5389 = vadd.xlane.f32.xlu0 %v5388
      %v5390 = vpop.xlane.xlu0 %5389
      %v5391 = vsel %vm2737, %v5331, 0.0
      %5392 = vadd.xlane.f32.xlu0 %v5391
      %v5393 = vpop.xlane.xlu0 %5392
      %v5394 = vsel %vm2737, %v5332, 0.0
      %5395 = vadd.xlane.f32.xlu0 %v5394
      %v5396 = vpop.xlane.xlu0 %5395
      %v5397 = vsel %vm2737, %v5333, 0.0
      %5398 = vadd.xlane.f32.xlu0 %v5397
      %v5399 = vpop.xlane.xlu0 %5398
      %v5400 = vsel %vm2737, %v5334, 0.0
      %5401 = vadd.xlane.f32.xlu0 %v5400
      %v5402 = vpop.xlane.xlu0 %5401
      %v5403 = vsel %vm2737, %v5335, 0.0
      %5404 = vadd.xlane.f32.xlu0 %v5403
      %v5405 = vpop.xlane.xlu0 %5404
      %v5406 = vsel %vm2737, %v5336, 0.0
      %5407 = vadd.xlane.f32.xlu0 %v5406
      %v5408 = vpop.xlane.xlu0 %5407
      %v5409 = vsel %vm2737, %v5337, 0.0
      %5410 = vadd.xlane.f32.xlu0 %v5409
      %v5411 = vpop.xlane.xlu0 %5410
      %v5412 = vsel %vm2737, %v5338, 0.0
      %5413 = vadd.xlane.f32.xlu0 %v5412
      %v5414 = vpop.xlane.xlu0 %5413
      %v5415 = vsel %vm2737, %v5339, 0.0
      %5416 = vadd.xlane.f32.xlu0 %v5415
      %v5417 = vpop.xlane.xlu0 %5416
      %v5418 = vsel %vm2737, %v5340, 0.0
      %5419 = vadd.xlane.f32.xlu0 %v5418
      %v5420 = vpop.xlane.xlu0 %5419
      %v5421 = vsel %vm2737, %v5341, 0.0
      %5422 = vadd.xlane.f32.xlu0 %v5421
      %v5423 = vpop.xlane.xlu0 %5422
      %v5424 = vsel %vm2737, %v5342, 0.0
      %5425 = vadd.xlane.f32.xlu0 %v5424
      %v5426 = vpop.xlane.xlu0 %5425
      %v5427 = vsel %vm2737, %v5343, 0.0
      %5428 = vadd.xlane.f32.xlu0 %v5427
      %v5429 = vpop.xlane.xlu0 %5428
      %v5430 = vsel %vm2737, %v5344, 0.0
      %5431 = vadd.xlane.f32.xlu0 %v5430
      %v5432 = vpop.xlane.xlu0 %5431
      %v5433 = vsel %vm2737, %v5345, 0.0
      %5434 = vadd.xlane.f32.xlu0 %v5433
      %v5435 = vpop.xlane.xlu0 %5434
      %v5436 = vsel %vm2737, %v5346, 0.0
      %5437 = vadd.xlane.f32.xlu0 %v5436
      %v5438 = vpop.xlane.xlu0 %5437
      %v5439 = vsel %vm2737, %v5347, 0.0
      %5440 = vadd.xlane.f32.xlu0 %v5439
      %v5441 = vpop.xlane.xlu0 %5440
      %v5442 = vsel %vm2737, %v5348, 0.0
      %5443 = vadd.xlane.f32.xlu0 %v5442
      %v5444 = vpop.xlane.xlu0 %5443
      %v5445 = vsel %vm2737, %v5349, 0.0
      %5446 = vadd.xlane.f32.xlu0 %v5445
      %v5447 = vpop.xlane.xlu0 %5446
      %v5448 = vsel %vm2737, %v5350, 0.0
      %5449 = vadd.xlane.f32.xlu0 %v5448
      %v5450 = vpop.xlane.xlu0 %5449
      %v5451 = vsel %vm2737, %v5351, 0.0
      %5452 = vadd.xlane.f32.xlu0 %v5451
      %v5453 = vpop.xlane.xlu0 %5452
      %v5454 = vsel %vm2737, %v5352, 0.0
      %5455 = vadd.xlane.f32.xlu0 %v5454
      %v5456 = vpop.xlane.xlu0 %5455
      %v5457 = vsel %vm2737, %v5353, 0.0
      %5458 = vadd.xlane.f32.xlu0 %v5457
      %v5459 = vpop.xlane.xlu0 %5458
      %v5460 = vsel %vm2737, %v5354, 0.0
      %5461 = vadd.xlane.f32.xlu0 %v5460
      %v5462 = vpop.xlane.xlu0 %5461
      %v5463 = vsel %vm2737, %v5355, 0.0
      %5464 = vadd.xlane.f32.xlu0 %v5463
      %v5465 = vpop.xlane.xlu0 %5464
      %v5466 = vsel %vm2737, %v5356, 0.0
      %5467 = vadd.xlane.f32.xlu0 %v5466
      %v5468 = vpop.xlane.xlu0 %5467
      %v5469 = vsel %vm2737, %v5357, 0.0
      %5470 = vadd.xlane.f32.xlu0 %v5469
      %v5471 = vpop.xlane.xlu0 %5470
      %v5472 = vsel %vm2737, %v5358, 0.0
      %5473 = vadd.xlane.f32.xlu0 %v5472
      %v5474 = vpop.xlane.xlu0 %5473
      %v5475 = vsel %vm2737, %v5359, 0.0
      %5476 = vadd.xlane.f32.xlu0 %v5475
      %v5477 = vpop.xlane.xlu0 %5476
      %v5478 = vsel %vm2737, %v5360, 0.0
      %5479 = vadd.xlane.f32.xlu0 %v5478
      %v5480 = vpop.xlane.xlu0 %5479
      %v5481 = vsel %vm2737, %v5361, 0.0
      %5482 = vadd.xlane.f32.xlu0 %v5481
      %v5483 = vpop.xlane.xlu0 %5482
      %v5484 = vsel %vm2737, %v5362, 0.0
      %5485 = vadd.xlane.f32.xlu0 %v5484
      %v5486 = vpop.xlane.xlu0 %5485
      %v5487 = vsel %vm2737, %v5363, 0.0
      %5488 = vadd.xlane.f32.xlu0 %v5487
      %v5489 = vpop.xlane.xlu0 %5488
      %v5490 = vsel %vm2737, %v5364, 0.0
      %5491 = vadd.xlane.f32.xlu0 %v5490
      %v5492 = vpop.xlane.xlu0 %5491
      %v5493 = vsel %vm2737, %v5365, 0.0
      %5494 = vadd.xlane.f32.xlu0 %v5493
      %v5495 = vpop.xlane.xlu0 %5494
      %v5496 = vsel %vm2737, %v5366, 0.0
      %5497 = vadd.xlane.f32.xlu0 %v5496
      %v5498 = vpop.xlane.xlu0 %5497
      %v5499 = vsel %vm2737, %v5367, 0.0
      %5500 = vadd.xlane.f32.xlu0 %v5499
      %v5501 = vpop.xlane.xlu0 %5500
      %v5502 = vsel %vm2737, %v5368, 0.0
      %5503 = vadd.xlane.f32.xlu0 %v5502
      %v5504 = vpop.xlane.xlu0 %5503
      %v5505 = vsel %vm2737, %v5369, 0.0
      %5506 = vadd.xlane.f32.xlu0 %v5505
      %v5507 = vpop.xlane.xlu0 %5506
      %v5508 = vsel %vm2737, %v5370, 0.0
      %5509 = vadd.xlane.f32.xlu0 %v5508
      %v5510 = vpop.xlane.xlu0 %5509
      %v5511 = vsel %vm2737, %v5371, 0.0
      %5512 = vadd.xlane.f32.xlu0 %v5511
      %v5513 = vpop.xlane.xlu0 %5512
      %v5514 = vsel %vm2737, %v5372, 0.0
      %5515 = vadd.xlane.f32.xlu0 %v5514
      %v5516 = vpop.xlane.xlu0 %5515
      %v5517 = vsel %vm2737, %v5373, 0.0
      %5518 = vadd.xlane.f32.xlu0 %v5517
      %v5519 = vpop.xlane.xlu0 %5518
      %v5520 = vsel %vm2737, %v5374, 0.0
      %5521 = vadd.xlane.f32.xlu0 %v5520
      %v5522 = vpop.xlane.xlu0 %5521
      %v5523 = vsel %vm2737, %v5375, 0.0
      %5524 = vadd.xlane.f32.xlu0 %v5523
      %v5525 = vpop.xlane.xlu0 %5524
      %v5526 = vsel %vm2737, %v5376, 0.0
      %5527 = vadd.xlane.f32.xlu0 %v5526
      %v5528 = vpop.xlane.xlu0 %5527
      %v5529 = vsel %vm2737, %v5377, 0.0
      %5530 = vadd.xlane.f32.xlu0 %v5529
      %v5531 = vpop.xlane.xlu0 %5530
      %v5532 = vsel %vm2737, %v5378, 0.0
      %5533 = vadd.xlane.f32.xlu0 %v5532
      %v5534 = vpop.xlane.xlu0 %5533
      %v5535 = vsel %vm2737, %v5379, 0.0
      %5536 = vadd.xlane.f32.xlu0 %v5535
      %v5537 = vpop.xlane.xlu0 %5536
      %v5538 = vsel %vm2737, %v5380, 0.0
      %5539 = vadd.xlane.f32.xlu0 %v5538
      %v5540 = vpop.xlane.xlu0 %5539
      %v5541 = vsel %vm2737, %v5381, 0.0
      %5542 = vadd.xlane.f32.xlu0 %v5541
      %v5543 = vpop.xlane.xlu0 %5542
      %v5544 = vsel %vm2737, %v5382, 0.0
      %5545 = vadd.xlane.f32.xlu0 %v5544
      %v5546 = vpop.xlane.xlu0 %5545
      %v5547 = vsel %vm2737, %v5383, 0.0
      %5548 = vadd.xlane.f32.xlu0 %v5547
      %v5549 = vpop.xlane.xlu0 %5548
      %v5550 = vsel %vm2737, %v5384, 0.0
      %5551 = vadd.xlane.f32.xlu0 %v5550
      %v5552 = vpop.xlane.xlu0 %5551
      %v5553 = vld [vmem:[#allocation2] sm:$0x1]
      %v5555 = vlaneseq
      %v5556 = vshrl.u32 %v5555, 7
      %v5557 = vsub.s32 0, %v5556
      %v5558 = vrot.slane %v5553, %v5557
      %v5560 = vadd.f32 %v5387, %v5558
      %v5561 = vadd.f32 %v5390, %v5558
      %v5562 = vadd.f32 %v5393, %v5558
      %v5563 = vadd.f32 %v5396, %v5558
      %v5564 = vadd.f32 %v5399, %v5558
      %v5565 = vadd.f32 %v5402, %v5558
      %v5566 = vadd.f32 %v5405, %v5558
      %v5567 = vadd.f32 %v5408, %v5558
      %v5568 = vadd.f32 %v5411, %v5558
      %v5569 = vadd.f32 %v5414, %v5558
      %v5570 = vadd.f32 %v5417, %v5558
      %v5571 = vadd.f32 %v5420, %v5558
      %v5572 = vadd.f32 %v5423, %v5558
      %v5573 = vadd.f32 %v5426, %v5558
      %v5574 = vadd.f32 %v5429, %v5558
      %v5575 = vadd.f32 %v5432, %v5558
      %v5576 = vadd.f32 %v5435, %v5558
      %v5577 = vadd.f32 %v5438, %v5558
      %v5578 = vadd.f32 %v5441, %v5558
      %v5579 = vadd.f32 %v5444, %v5558
      %v5580 = vadd.f32 %v5447, %v5558
      %v5581 = vadd.f32 %v5450, %v5558
      %v5582 = vadd.f32 %v5453, %v5558
      %v5583 = vadd.f32 %v5456, %v5558
      %v5584 = vadd.f32 %v5459, %v5558
      %v5585 = vadd.f32 %v5462, %v5558
      %v5586 = vadd.f32 %v5465, %v5558
      %v5587 = vadd.f32 %v5468, %v5558
      %v5588 = vadd.f32 %v5471, %v5558
      %v5589 = vadd.f32 %v5474, %v5558
      %v5590 = vadd.f32 %v5477, %v5558
      %v5591 = vadd.f32 %v5480, %v5558
      %v5592 = vadd.f32 %v5483, %v5558
      %v5593 = vadd.f32 %v5486, %v5558
      %v5594 = vadd.f32 %v5489, %v5558
      %v5595 = vadd.f32 %v5492, %v5558
      %v5596 = vadd.f32 %v5495, %v5558
      %v5597 = vadd.f32 %v5498, %v5558
      %v5598 = vadd.f32 %v5501, %v5558
      %v5599 = vadd.f32 %v5504, %v5558
      %v5600 = vadd.f32 %v5507, %v5558
      %v5601 = vadd.f32 %v5510, %v5558
      %v5602 = vadd.f32 %v5513, %v5558
      %v5603 = vadd.f32 %v5516, %v5558
      %v5604 = vadd.f32 %v5519, %v5558
      %v5605 = vadd.f32 %v5522, %v5558
      %v5606 = vadd.f32 %v5525, %v5558
      %v5607 = vadd.f32 %v5528, %v5558
      %v5608 = vadd.f32 %v5531, %v5558
      %v5609 = vadd.f32 %v5534, %v5558
      %v5610 = vadd.f32 %v5537, %v5558
      %v5611 = vadd.f32 %v5540, %v5558
      %v5612 = vadd.f32 %v5543, %v5558
      %v5613 = vadd.f32 %v5546, %v5558
      %v5614 = vadd.f32 %v5549, %v5558
      %v5615 = vadd.f32 %v5552, %v5558
      %vm5616 = vcmask 7168
      %v5617 = vsel %vm5616, %v5560, -inf
      %v5618 = vrot.slane %v5617, 4
      %v5619 = vmax.f32 %v5617, %v5618
      %v5620 = vrot.slane %v5619, 2
      %v5621 = vmax.f32 %v5619, %v5620
      %v5622 = vrot.slane %v5621, 1
      %v5623 = vmax.f32 %v5621, %v5622
      %v5624 = vsel %vm5616, %v5561, -inf
      %v5625 = vrot.slane %v5624, 4
      %v5626 = vmax.f32 %v5624, %v5625
      %v5627 = vrot.slane %v5626, 2
      %v5628 = vmax.f32 %v5626, %v5627
      %v5629 = vrot.slane %v5628, 1
      %v5630 = vmax.f32 %v5628, %v5629
      %v5631 = vsel %vm5616, %v5562, -inf
      %v5632 = vrot.slane %v5631, 4
      %v5633 = vmax.f32 %v5631, %v5632
      %v5634 = vrot.slane %v5633, 2
      %v5635 = vmax.f32 %v5633, %v5634
      %v5636 = vrot.slane %v5635, 1
      %v5637 = vmax.f32 %v5635, %v5636
      %v5638 = vsel %vm5616, %v5563, -inf
      %v5639 = vrot.slane %v5638, 4
      %v5640 = vmax.f32 %v5638, %v5639
      %v5641 = vrot.slane %v5640, 2
      %v5642 = vmax.f32 %v5640, %v5641
      %v5643 = vrot.slane %v5642, 1
      %v5644 = vmax.f32 %v5642, %v5643
      %v5645 = vsel %vm5616, %v5564, -inf
      %v5646 = vrot.slane %v5645, 4
      %v5647 = vmax.f32 %v5645, %v5646
      %v5648 = vrot.slane %v5647, 2
      %v5649 = vmax.f32 %v5647, %v5648
      %v5650 = vrot.slane %v5649, 1
      %v5651 = vmax.f32 %v5649, %v5650
      %v5652 = vsel %vm5616, %v5565, -inf
      %v5653 = vrot.slane %v5652, 4
      %v5654 = vmax.f32 %v5652, %v5653
      %v5655 = vrot.slane %v5654, 2
      %v5656 = vmax.f32 %v5654, %v5655
      %v5657 = vrot.slane %v5656, 1
      %v5658 = vmax.f32 %v5656, %v5657
      %v5659 = vsel %vm5616, %v5566, -inf
      %v5660 = vrot.slane %v5659, 4
      %v5661 = vmax.f32 %v5659, %v5660
      %v5662 = vrot.slane %v5661, 2
      %v5663 = vmax.f32 %v5661, %v5662
      %v5664 = vrot.slane %v5663, 1
      %v5665 = vmax.f32 %v5663, %v5664
      %v5666 = vsel %vm5616, %v5567, -inf
      %v5667 = vrot.slane %v5666, 4
      %v5668 = vmax.f32 %v5666, %v5667
      %v5669 = vrot.slane %v5668, 2
      %v5670 = vmax.f32 %v5668, %v5669
      %v5671 = vrot.slane %v5670, 1
      %v5672 = vmax.f32 %v5670, %v5671
      %v5673 = vsel %vm5616, %v5568, -inf
      %v5674 = vrot.slane %v5673, 4
      %v5675 = vmax.f32 %v5673, %v5674
      %v5676 = vrot.slane %v5675, 2
      %v5677 = vmax.f32 %v5675, %v5676
      %v5678 = vrot.slane %v5677, 1
      %v5679 = vmax.f32 %v5677, %v5678
      %v5680 = vsel %vm5616, %v5569, -inf
      %v5681 = vrot.slane %v5680, 4
      %v5682 = vmax.f32 %v5680, %v5681
      %v5683 = vrot.slane %v5682, 2
      %v5684 = vmax.f32 %v5682, %v5683
      %v5685 = vrot.slane %v5684, 1
      %v5686 = vmax.f32 %v5684, %v5685
      %v5687 = vsel %vm5616, %v5570, -inf
      %v5688 = vrot.slane %v5687, 4
      %v5689 = vmax.f32 %v5687, %v5688
      %v5690 = vrot.slane %v5689, 2
      %v5691 = vmax.f32 %v5689, %v5690
      %v5692 = vrot.slane %v5691, 1
      %v5693 = vmax.f32 %v5691, %v5692
      %v5694 = vsel %vm5616, %v5571, -inf
      %v5695 = vrot.slane %v5694, 4
      %v5696 = vmax.f32 %v5694, %v5695
      %v5697 = vrot.slane %v5696, 2
      %v5698 = vmax.f32 %v5696, %v5697
      %v5699 = vrot.slane %v5698, 1
      %v5700 = vmax.f32 %v5698, %v5699
      %v5701 = vsel %vm5616, %v5572, -inf
      %v5702 = vrot.slane %v5701, 4
      %v5703 = vmax.f32 %v5701, %v5702
      %v5704 = vrot.slane %v5703, 2
      %v5705 = vmax.f32 %v5703, %v5704
      %v5706 = vrot.slane %v5705, 1
      %v5707 = vmax.f32 %v5705, %v5706
      %v5708 = vsel %vm5616, %v5573, -inf
      %v5709 = vrot.slane %v5708, 4
      %v5710 = vmax.f32 %v5708, %v5709
      %v5711 = vrot.slane %v5710, 2
      %v5712 = vmax.f32 %v5710, %v5711
      %v5713 = vrot.slane %v5712, 1
      %v5714 = vmax.f32 %v5712, %v5713
      %v5715 = vsel %vm5616, %v5574, -inf
      %v5716 = vrot.slane %v5715, 4
      %v5717 = vmax.f32 %v5715, %v5716
      %v5718 = vrot.slane %v5717, 2
      %v5719 = vmax.f32 %v5717, %v5718
      %v5720 = vrot.slane %v5719, 1
      %v5721 = vmax.f32 %v5719, %v5720
      %v5722 = vsel %vm5616, %v5575, -inf
      %v5723 = vrot.slane %v5722, 4
      %v5724 = vmax.f32 %v5722, %v5723
      %v5725 = vrot.slane %v5724, 2
      %v5726 = vmax.f32 %v5724, %v5725
      %v5727 = vrot.slane %v5726, 1
      %v5728 = vmax.f32 %v5726, %v5727
      %v5729 = vsel %vm5616, %v5576, -inf
      %v5730 = vrot.slane %v5729, 4
      %v5731 = vmax.f32 %v5729, %v5730
      %v5732 = vrot.slane %v5731, 2
      %v5733 = vmax.f32 %v5731, %v5732
      %v5734 = vrot.slane %v5733, 1
      %v5735 = vmax.f32 %v5733, %v5734
      %v5736 = vsel %vm5616, %v5577, -inf
      %v5737 = vrot.slane %v5736, 4
      %v5738 = vmax.f32 %v5736, %v5737
      %v5739 = vrot.slane %v5738, 2
      %v5740 = vmax.f32 %v5738, %v5739
      %v5741 = vrot.slane %v5740, 1
      %v5742 = vmax.f32 %v5740, %v5741
      %v5743 = vsel %vm5616, %v5578, -inf
      %v5744 = vrot.slane %v5743, 4
      %v5745 = vmax.f32 %v5743, %v5744
      %v5746 = vrot.slane %v5745, 2
      %v5747 = vmax.f32 %v5745, %v5746
      %v5748 = vrot.slane %v5747, 1
      %v5749 = vmax.f32 %v5747, %v5748
      %v5750 = vsel %vm5616, %v5579, -inf
      %v5751 = vrot.slane %v5750, 4
      %v5752 = vmax.f32 %v5750, %v5751
      %v5753 = vrot.slane %v5752, 2
      %v5754 = vmax.f32 %v5752, %v5753
      %v5755 = vrot.slane %v5754, 1
      %v5756 = vmax.f32 %v5754, %v5755
      %v5757 = vsel %vm5616, %v5580, -inf
      %v5758 = vrot.slane %v5757, 4
      %v5759 = vmax.f32 %v5757, %v5758
      %v5760 = vrot.slane %v5759, 2
      %v5761 = vmax.f32 %v5759, %v5760
      %v5762 = vrot.slane %v5761, 1
      %v5763 = vmax.f32 %v5761, %v5762
      %v5764 = vsel %vm5616, %v5581, -inf
      %v5765 = vrot.slane %v5764, 4
      %v5766 = vmax.f32 %v5764, %v5765
      %v5767 = vrot.slane %v5766, 2
      %v5768 = vmax.f32 %v5766, %v5767
      %v5769 = vrot.slane %v5768, 1
      %v5770 = vmax.f32 %v5768, %v5769
      %v5771 = vsel %vm5616, %v5582, -inf
      %v5772 = vrot.slane %v5771, 4
      %v5773 = vmax.f32 %v5771, %v5772
      %v5774 = vrot.slane %v5773, 2
      %v5775 = vmax.f32 %v5773, %v5774
      %v5776 = vrot.slane %v5775, 1
      %v5777 = vmax.f32 %v5775, %v5776
      %v5778 = vsel %vm5616, %v5583, -inf
      %v5779 = vrot.slane %v5778, 4
      %v5780 = vmax.f32 %v5778, %v5779
      %v5781 = vrot.slane %v5780, 2
      %v5782 = vmax.f32 %v5780, %v5781
      %v5783 = vrot.slane %v5782, 1
      %v5784 = vmax.f32 %v5782, %v5783
      %v5785 = vsel %vm5616, %v5584, -inf
      %v5786 = vrot.slane %v5785, 4
      %v5787 = vmax.f32 %v5785, %v5786
      %v5788 = vrot.slane %v5787, 2
      %v5789 = vmax.f32 %v5787, %v5788
      %v5790 = vrot.slane %v5789, 1
      %v5791 = vmax.f32 %v5789, %v5790
      %v5792 = vsel %vm5616, %v5585, -inf
      %v5793 = vrot.slane %v5792, 4
      %v5794 = vmax.f32 %v5792, %v5793
      %v5795 = vrot.slane %v5794, 2
      %v5796 = vmax.f32 %v5794, %v5795
      %v5797 = vrot.slane %v5796, 1
      %v5798 = vmax.f32 %v5796, %v5797
      %v5799 = vsel %vm5616, %v5586, -inf
      %v5800 = vrot.slane %v5799, 4
      %v5801 = vmax.f32 %v5799, %v5800
      %v5802 = vrot.slane %v5801, 2
      %v5803 = vmax.f32 %v5801, %v5802
      %v5804 = vrot.slane %v5803, 1
      %v5805 = vmax.f32 %v5803, %v5804
      %v5806 = vsel %vm5616, %v5587, -inf
      %v5807 = vrot.slane %v5806, 4
      %v5808 = vmax.f32 %v5806, %v5807
      %v5809 = vrot.slane %v5808, 2
      %v5810 = vmax.f32 %v5808, %v5809
      %v5811 = vrot.slane %v5810, 1
      %v5812 = vmax.f32 %v5810, %v5811
      %v5813 = vsel %vm5616, %v5588, -inf
      %v5814 = vrot.slane %v5813, 4
      %v5815 = vmax.f32 %v5813, %v5814
      %v5816 = vrot.slane %v5815, 2
      %v5817 = vmax.f32 %v5815, %v5816
      %v5818 = vrot.slane %v5817, 1
      %v5819 = vmax.f32 %v5817, %v5818
      %v5820 = vsel %vm5616, %v5589, -inf
      %v5821 = vrot.slane %v5820, 4
      %v5822 = vmax.f32 %v5820, %v5821
      %v5823 = vrot.slane %v5822, 2
      %v5824 = vmax.f32 %v5822, %v5823
      %v5825 = vrot.slane %v5824, 1
      %v5826 = vmax.f32 %v5824, %v5825
      %v5827 = vsel %vm5616, %v5590, -inf
      %v5828 = vrot.slane %v5827, 4
      %v5829 = vmax.f32 %v5827, %v5828
      %v5830 = vrot.slane %v5829, 2
      %v5831 = vmax.f32 %v5829, %v5830
      %v5832 = vrot.slane %v5831, 1
      %v5833 = vmax.f32 %v5831, %v5832
      %v5834 = vsel %vm5616, %v5591, -inf
      %v5835 = vrot.slane %v5834, 4
      %v5836 = vmax.f32 %v5834, %v5835
      %v5837 = vrot.slane %v5836, 2
      %v5838 = vmax.f32 %v5836, %v5837
      %v5839 = vrot.slane %v5838, 1
      %v5840 = vmax.f32 %v5838, %v5839
      %v5841 = vsel %vm5616, %v5592, -inf
      %v5842 = vrot.slane %v5841, 4
      %v5843 = vmax.f32 %v5841, %v5842
      %v5844 = vrot.slane %v5843, 2
      %v5845 = vmax.f32 %v5843, %v5844
      %v5846 = vrot.slane %v5845, 1
      %v5847 = vmax.f32 %v5845, %v5846
      %v5848 = vsel %vm5616, %v5593, -inf
      %v5849 = vrot.slane %v5848, 4
      %v5850 = vmax.f32 %v5848, %v5849
      %v5851 = vrot.slane %v5850, 2
      %v5852 = vmax.f32 %v5850, %v5851
      %v5853 = vrot.slane %v5852, 1
      %v5854 = vmax.f32 %v5852, %v5853
      %v5855 = vsel %vm5616, %v5594, -inf
      %v5856 = vrot.slane %v5855, 4
      %v5857 = vmax.f32 %v5855, %v5856
      %v5858 = vrot.slane %v5857, 2
      %v5859 = vmax.f32 %v5857, %v5858
      %v5860 = vrot.slane %v5859, 1
      %v5861 = vmax.f32 %v5859, %v5860
      %v5862 = vsel %vm5616, %v5595, -inf
      %v5863 = vrot.slane %v5862, 4
      %v5864 = vmax.f32 %v5862, %v5863
      %v5865 = vrot.slane %v5864, 2
      %v5866 = vmax.f32 %v5864, %v5865
      %v5867 = vrot.slane %v5866, 1
      %v5868 = vmax.f32 %v5866, %v5867
      %v5869 = vsel %vm5616, %v5596, -inf
      %v5870 = vrot.slane %v5869, 4
      %v5871 = vmax.f32 %v5869, %v5870
      %v5872 = vrot.slane %v5871, 2
      %v5873 = vmax.f32 %v5871, %v5872
      %v5874 = vrot.slane %v5873, 1
      %v5875 = vmax.f32 %v5873, %v5874
      %v5876 = vsel %vm5616, %v5597, -inf
      %v5877 = vrot.slane %v5876, 4
      %v5878 = vmax.f32 %v5876, %v5877
      %v5879 = vrot.slane %v5878, 2
      %v5880 = vmax.f32 %v5878, %v5879
      %v5881 = vrot.slane %v5880, 1
      %v5882 = vmax.f32 %v5880, %v5881
      %v5883 = vsel %vm5616, %v5598, -inf
      %v5884 = vrot.slane %v5883, 4
      %v5885 = vmax.f32 %v5883, %v5884
      %v5886 = vrot.slane %v5885, 2
      %v5887 = vmax.f32 %v5885, %v5886
      %v5888 = vrot.slane %v5887, 1
      %v5889 = vmax.f32 %v5887, %v5888
      %v5890 = vsel %vm5616, %v5599, -inf
      %v5891 = vrot.slane %v5890, 4
      %v5892 = vmax.f32 %v5890, %v5891
      %v5893 = vrot.slane %v5892, 2
      %v5894 = vmax.f32 %v5892, %v5893
      %v5895 = vrot.slane %v5894, 1
      %v5896 = vmax.f32 %v5894, %v5895
      %v5897 = vsel %vm5616, %v5600, -inf
      %v5898 = vrot.slane %v5897, 4
      %v5899 = vmax.f32 %v5897, %v5898
      %v5900 = vrot.slane %v5899, 2
      %v5901 = vmax.f32 %v5899, %v5900
      %v5902 = vrot.slane %v5901, 1
      %v5903 = vmax.f32 %v5901, %v5902
      %v5904 = vsel %vm5616, %v5601, -inf
      %v5905 = vrot.slane %v5904, 4
      %v5906 = vmax.f32 %v5904, %v5905
      %v5907 = vrot.slane %v5906, 2
      %v5908 = vmax.f32 %v5906, %v5907
      %v5909 = vrot.slane %v5908, 1
      %v5910 = vmax.f32 %v5908, %v5909
      %v5911 = vsel %vm5616, %v5602, -inf
      %v5912 = vrot.slane %v5911, 4
      %v5913 = vmax.f32 %v5911, %v5912
      %v5914 = vrot.slane %v5913, 2
      %v5915 = vmax.f32 %v5913, %v5914
      %v5916 = vrot.slane %v5915, 1
      %v5917 = vmax.f32 %v5915, %v5916
      %v5918 = vsel %vm5616, %v5603, -inf
      %v5919 = vrot.slane %v5918, 4
      %v5920 = vmax.f32 %v5918, %v5919
      %v5921 = vrot.slane %v5920, 2
      %v5922 = vmax.f32 %v5920, %v5921
      %v5923 = vrot.slane %v5922, 1
      %v5924 = vmax.f32 %v5922, %v5923
      %v5925 = vsel %vm5616, %v5604, -inf
      %v5926 = vrot.slane %v5925, 4
      %v5927 = vmax.f32 %v5925, %v5926
      %v5928 = vrot.slane %v5927, 2
      %v5929 = vmax.f32 %v5927, %v5928
      %v5930 = vrot.slane %v5929, 1
      %v5931 = vmax.f32 %v5929, %v5930
      %v5932 = vsel %vm5616, %v5605, -inf
      %v5933 = vrot.slane %v5932, 4
      %v5934 = vmax.f32 %v5932, %v5933
      %v5935 = vrot.slane %v5934, 2
      %v5936 = vmax.f32 %v5934, %v5935
      %v5937 = vrot.slane %v5936, 1
      %v5938 = vmax.f32 %v5936, %v5937
      %v5939 = vsel %vm5616, %v5606, -inf
      %v5940 = vrot.slane %v5939, 4
      %v5941 = vmax.f32 %v5939, %v5940
      %v5942 = vrot.slane %v5941, 2
      %v5943 = vmax.f32 %v5941, %v5942
      %v5944 = vrot.slane %v5943, 1
      %v5945 = vmax.f32 %v5943, %v5944
      %v5946 = vsel %vm5616, %v5607, -inf
      %v5947 = vrot.slane %v5946, 4
      %v5948 = vmax.f32 %v5946, %v5947
      %v5949 = vrot.slane %v5948, 2
      %v5950 = vmax.f32 %v5948, %v5949
      %v5951 = vrot.slane %v5950, 1
      %v5952 = vmax.f32 %v5950, %v5951
      %v5953 = vsel %vm5616, %v5608, -inf
      %v5954 = vrot.slane %v5953, 4
      %v5955 = vmax.f32 %v5953, %v5954
      %v5956 = vrot.slane %v5955, 2
      %v5957 = vmax.f32 %v5955, %v5956
      %v5958 = vrot.slane %v5957, 1
      %v5959 = vmax.f32 %v5957, %v5958
      %v5960 = vsel %vm5616, %v5609, -inf
      %v5961 = vrot.slane %v5960, 4
      %v5962 = vmax.f32 %v5960, %v5961
      %v5963 = vrot.slane %v5962, 2
      %v5964 = vmax.f32 %v5962, %v5963
      %v5965 = vrot.slane %v5964, 1
      %v5966 = vmax.f32 %v5964, %v5965
      %v5967 = vsel %vm5616, %v5610, -inf
      %v5968 = vrot.slane %v5967, 4
      %v5969 = vmax.f32 %v5967, %v5968
      %v5970 = vrot.slane %v5969, 2
      %v5971 = vmax.f32 %v5969, %v5970
      %v5972 = vrot.slane %v5971, 1
      %v5973 = vmax.f32 %v5971, %v5972
      %v5974 = vsel %vm5616, %v5611, -inf
      %v5975 = vrot.slane %v5974, 4
      %v5976 = vmax.f32 %v5974, %v5975
      %v5977 = vrot.slane %v5976, 2
      %v5978 = vmax.f32 %v5976, %v5977
      %v5979 = vrot.slane %v5978, 1
      %v5980 = vmax.f32 %v5978, %v5979
      %v5981 = vsel %vm5616, %v5612, -inf
      %v5982 = vrot.slane %v5981, 4
      %v5983 = vmax.f32 %v5981, %v5982
      %v5984 = vrot.slane %v5983, 2
      %v5985 = vmax.f32 %v5983, %v5984
      %v5986 = vrot.slane %v5985, 1
      %v5987 = vmax.f32 %v5985, %v5986
      %v5988 = vsel %vm5616, %v5613, -inf
      %v5989 = vrot.slane %v5988, 4
      %v5990 = vmax.f32 %v5988, %v5989
      %v5991 = vrot.slane %v5990, 2
      %v5992 = vmax.f32 %v5990, %v5991
      %v5993 = vrot.slane %v5992, 1
      %v5994 = vmax.f32 %v5992, %v5993
      %v5995 = vsel %vm5616, %v5614, -inf
      %v5996 = vrot.slane %v5995, 4
      %v5997 = vmax.f32 %v5995, %v5996
      %v5998 = vrot.slane %v5997, 2
      %v5999 = vmax.f32 %v5997, %v5998
      %v6000 = vrot.slane %v5999, 1
      %v6001 = vmax.f32 %v5999, %v6000
      %v6002 = vsel %vm5616, %v5615, -inf
      %v6003 = vrot.slane %v6002, 4
      %v6004 = vmax.f32 %v6002, %v6003
      %v6005 = vrot.slane %v6004, 2
      %v6006 = vmax.f32 %v6004, %v6005
      %v6007 = vrot.slane %v6006, 1
      %v6008 = vmax.f32 %v6006, %v6007
      %v6009 = vsub.f32 %v5560, %v5623
      %v6010 = vsub.f32 %v5561, %v5630
      %v6011 = vsub.f32 %v5562, %v5637
      %v6012 = vsub.f32 %v5563, %v5644
      %v6013 = vsub.f32 %v5564, %v5651
      %v6014 = vsub.f32 %v5565, %v5658
      %v6015 = vsub.f32 %v5566, %v5665
      %v6016 = vsub.f32 %v5567, %v5672
      %v6017 = vsub.f32 %v5568, %v5679
      %v6018 = vsub.f32 %v5569, %v5686
      %v6019 = vsub.f32 %v5570, %v5693
      %v6020 = vsub.f32 %v5571, %v5700
      %v6021 = vsub.f32 %v5572, %v5707
      %v6022 = vsub.f32 %v5573, %v5714
      %v6023 = vsub.f32 %v5574, %v5721
      %v6024 = vsub.f32 %v5575, %v5728
      %v6025 = vsub.f32 %v5576, %v5735
      %v6026 = vsub.f32 %v5577, %v5742
      %v6027 = vsub.f32 %v5578, %v5749
      %v6028 = vsub.f32 %v5579, %v5756
      %v6029 = vsub.f32 %v5580, %v5763
      %v6030 = vsub.f32 %v5581, %v5770
      %v6031 = vsub.f32 %v5582, %v5777
      %v6032 = vsub.f32 %v5583, %v5784
      %v6033 = vsub.f32 %v5584, %v5791
      %v6034 = vsub.f32 %v5585, %v5798
      %v6035 = vsub.f32 %v5586, %v5805
      %v6036 = vsub.f32 %v5587, %v5812
      %v6037 = vsub.f32 %v5588, %v5819
      %v6038 = vsub.f32 %v5589, %v5826
      %v6039 = vsub.f32 %v5590, %v5833
      %v6040 = vsub.f32 %v5591, %v5840
      %v6041 = vsub.f32 %v5592, %v5847
      %v6042 = vsub.f32 %v5593, %v5854
      %v6043 = vsub.f32 %v5594, %v5861
      %v6044 = vsub.f32 %v5595, %v5868
      %v6045 = vsub.f32 %v5596, %v5875
      %v6046 = vsub.f32 %v5597, %v5882
      %v6047 = vsub.f32 %v5598, %v5889
      %v6048 = vsub.f32 %v5599, %v5896
      %v6049 = vsub.f32 %v5600, %v5903
      %v6050 = vsub.f32 %v5601, %v5910
      %v6051 = vsub.f32 %v5602, %v5917
      %v6052 = vsub.f32 %v5603, %v5924
      %v6053 = vsub.f32 %v5604, %v5931
      %v6054 = vsub.f32 %v5605, %v5938
      %v6055 = vsub.f32 %v5606, %v5945
      %v6056 = vsub.f32 %v5607, %v5952
      %v6057 = vsub.f32 %v5608, %v5959
      %v6058 = vsub.f32 %v5609, %v5966
      %v6059 = vsub.f32 %v5610, %v5973
      %v6060 = vsub.f32 %v5611, %v5980
      %v6061 = vsub.f32 %v5612, %v5987
      %v6062 = vsub.f32 %v5613, %v5994
      %v6063 = vsub.f32 %v5614, %v6001
      %v6064 = vsub.f32 %v5615, %v6008
      %v6065 = vmul.f32 %v6009, 1.442695
      %v6066 = vpow.pop %v6065
      %v6067 = vmul.f32 %v6010, 1.442695
      %v6068 = vpow.pop %v6067
      %v6069 = vmul.f32 %v6011, 1.442695
      %v6070 = vpow.pop %v6069
      %v6071 = vmul.f32 %v6012, 1.442695
      %v6072 = vpow.pop %v6071
      %v6073 = vmul.f32 %v6013, 1.442695
      %v6074 = vpow.pop %v6073
      %v6075 = vmul.f32 %v6014, 1.442695
      %v6076 = vpow.pop %v6075
      %v6077 = vmul.f32 %v6015, 1.442695
      %v6078 = vpow.pop %v6077
      %v6079 = vmul.f32 %v6016, 1.442695
      %v6080 = vpow.pop %v6079
      %v6081 = vmul.f32 %v6017, 1.442695
      %v6082 = vpow.pop %v6081
      %v6083 = vmul.f32 %v6018, 1.442695
      %v6084 = vpow.pop %v6083
      %v6085 = vmul.f32 %v6019, 1.442695
      %v6086 = vpow.pop %v6085
      %v6087 = vmul.f32 %v6020, 1.442695
      %v6088 = vpow.pop %v6087
      %v6089 = vmul.f32 %v6021, 1.442695
      %v6090 = vpow.pop %v6089
      %v6091 = vmul.f32 %v6022, 1.442695
      %v6092 = vpow.pop %v6091
      %v6093 = vmul.f32 %v6023, 1.442695
      %v6094 = vpow.pop %v6093
      %v6095 = vmul.f32 %v6024, 1.442695
      %v6096 = vpow.pop %v6095
      %v6097 = vmul.f32 %v6025, 1.442695
      %v6098 = vpow.pop %v6097
      %v6099 = vmul.f32 %v6026, 1.442695
      %v6100 = vpow.pop %v6099
      %v6101 = vmul.f32 %v6027, 1.442695
      %v6102 = vpow.pop %v6101
      %v6103 = vmul.f32 %v6028, 1.442695
      %v6104 = vpow.pop %v6103
      %v6105 = vmul.f32 %v6029, 1.442695
      %v6106 = vpow.pop %v6105
      %v6107 = vmul.f32 %v6030, 1.442695
      %v6108 = vpow.pop %v6107
      %v6109 = vmul.f32 %v6031, 1.442695
      %v6110 = vpow.pop %v6109
      %v6111 = vmul.f32 %v6032, 1.442695
      %v6112 = vpow.pop %v6111
      %v6113 = vmul.f32 %v6033, 1.442695
      %v6114 = vpow.pop %v6113
      %v6115 = vmul.f32 %v6034, 1.442695
      %v6116 = vpow.pop %v6115
      %v6117 = vmul.f32 %v6035, 1.442695
      %v6118 = vpow.pop %v6117
      %v6119 = vmul.f32 %v6036, 1.442695
      %v6120 = vpow.pop %v6119
      %v6121 = vmul.f32 %v6037, 1.442695
      %v6122 = vpow.pop %v6121
      %v6123 = vmul.f32 %v6038, 1.442695
      %v6124 = vpow.pop %v6123
      %v6125 = vmul.f32 %v6039, 1.442695
      %v6126 = vpow.pop %v6125
      %v6127 = vmul.f32 %v6040, 1.442695
      %v6128 = vpow.pop %v6127
      %v6129 = vmul.f32 %v6041, 1.442695
      %v6130 = vpow.pop %v6129
      %v6131 = vmul.f32 %v6042, 1.442695
      %v6132 = vpow.pop %v6131
      %v6133 = vmul.f32 %v6043, 1.442695
      %v6134 = vpow.pop %v6133
      %v6135 = vmul.f32 %v6044, 1.442695
      %v6136 = vpow.pop %v6135
      %v6137 = vmul.f32 %v6045, 1.442695
      %v6138 = vpow.pop %v6137
      %v6139 = vmul.f32 %v6046, 1.442695
      %v6140 = vpow.pop %v6139
      %v6141 = vmul.f32 %v6047, 1.442695
      %v6142 = vpow.pop %v6141
      %v6143 = vmul.f32 %v6048, 1.442695
      %v6144 = vpow.pop %v6143
      %v6145 = vmul.f32 %v6049, 1.442695
      %v6146 = vpow.pop %v6145
      %v6147 = vmul.f32 %v6050, 1.442695
      %v6148 = vpow.pop %v6147
      %v6149 = vmul.f32 %v6051, 1.442695
      %v6150 = vpow.pop %v6149
      %v6151 = vmul.f32 %v6052, 1.442695
      %v6152 = vpow.pop %v6151
      %v6153 = vmul.f32 %v6053, 1.442695
      %v6154 = vpow.pop %v6153
      %v6155 = vmul.f32 %v6054, 1.442695
      %v6156 = vpow.pop %v6155
      %v6157 = vmul.f32 %v6055, 1.442695
      %v6158 = vpow.pop %v6157
      %v6159 = vmul.f32 %v6056, 1.442695
      %v6160 = vpow.pop %v6159
      %v6161 = vmul.f32 %v6057, 1.442695
      %v6162 = vpow.pop %v6161
      %v6163 = vmul.f32 %v6058, 1.442695
      %v6164 = vpow.pop %v6163
      %v6165 = vmul.f32 %v6059, 1.442695
      %v6166 = vpow.pop %v6165
      %v6167 = vmul.f32 %v6060, 1.442695
      %v6168 = vpow.pop %v6167
      %v6169 = vmul.f32 %v6061, 1.442695
      %v6170 = vpow.pop %v6169
      %v6171 = vmul.f32 %v6062, 1.442695
      %v6172 = vpow.pop %v6171
      %v6173 = vmul.f32 %v6063, 1.442695
      %v6174 = vpow.pop %v6173
      %v6175 = vmul.f32 %v6064, 1.442695
      %v6176 = vpow.pop %v6175
      %v6177 = vsel %vm5616, %v6066, 0.0
      %v6178 = vrot.slane %v6177, 4
      %v6179 = vadd.f32 %v6177, %v6178
      %v6180 = vrot.slane %v6179, 2
      %v6181 = vadd.f32 %v6179, %v6180
      %v6182 = vrot.slane %v6181, 1
      %v6183 = vadd.f32 %v6181, %v6182
      %v6184 = vsel %vm5616, %v6068, 0.0
      %v6185 = vrot.slane %v6184, 4
      %v6186 = vadd.f32 %v6184, %v6185
      %v6187 = vrot.slane %v6186, 2
      %v6188 = vadd.f32 %v6186, %v6187
      %v6189 = vrot.slane %v6188, 1
      %v6190 = vadd.f32 %v6188, %v6189
      %v6191 = vsel %vm5616, %v6070, 0.0
      %v6192 = vrot.slane %v6191, 4
      %v6193 = vadd.f32 %v6191, %v6192
      %v6194 = vrot.slane %v6193, 2
      %v6195 = vadd.f32 %v6193, %v6194
      %v6196 = vrot.slane %v6195, 1
      %v6197 = vadd.f32 %v6195, %v6196
      %v6198 = vsel %vm5616, %v6072, 0.0
      %v6199 = vrot.slane %v6198, 4
      %v6200 = vadd.f32 %v6198, %v6199
      %v6201 = vrot.slane %v6200, 2
      %v6202 = vadd.f32 %v6200, %v6201
      %v6203 = vrot.slane %v6202, 1
      %v6204 = vadd.f32 %v6202, %v6203
      %v6205 = vsel %vm5616, %v6074, 0.0
      %v6206 = vrot.slane %v6205, 4
      %v6207 = vadd.f32 %v6205, %v6206
      %v6208 = vrot.slane %v6207, 2
      %v6209 = vadd.f32 %v6207, %v6208
      %v6210 = vrot.slane %v6209, 1
      %v6211 = vadd.f32 %v6209, %v6210
      %v6212 = vsel %vm5616, %v6076, 0.0
      %v6213 = vrot.slane %v6212, 4
      %v6214 = vadd.f32 %v6212, %v6213
      %v6215 = vrot.slane %v6214, 2
      %v6216 = vadd.f32 %v6214, %v6215
      %v6217 = vrot.slane %v6216, 1
      %v6218 = vadd.f32 %v6216, %v6217
      %v6219 = vsel %vm5616, %v6078, 0.0
      %v6220 = vrot.slane %v6219, 4
      %v6221 = vadd.f32 %v6219, %v6220
      %v6222 = vrot.slane %v6221, 2
      %v6223 = vadd.f32 %v6221, %v6222
      %v6224 = vrot.slane %v6223, 1
      %v6225 = vadd.f32 %v6223, %v6224
      %v6226 = vsel %vm5616, %v6080, 0.0
      %v6227 = vrot.slane %v6226, 4
      %v6228 = vadd.f32 %v6226, %v6227
      %v6229 = vrot.slane %v6228, 2
      %v6230 = vadd.f32 %v6228, %v6229
      %v6231 = vrot.slane %v6230, 1
      %v6232 = vadd.f32 %v6230, %v6231
      %v6233 = vsel %vm5616, %v6082, 0.0
      %v6234 = vrot.slane %v6233, 4
      %v6235 = vadd.f32 %v6233, %v6234
      %v6236 = vrot.slane %v6235, 2
      %v6237 = vadd.f32 %v6235, %v6236
      %v6238 = vrot.slane %v6237, 1
      %v6239 = vadd.f32 %v6237, %v6238
      %v6240 = vsel %vm5616, %v6084, 0.0
      %v6241 = vrot.slane %v6240, 4
      %v6242 = vadd.f32 %v6240, %v6241
      %v6243 = vrot.slane %v6242, 2
      %v6244 = vadd.f32 %v6242, %v6243
      %v6245 = vrot.slane %v6244, 1
      %v6246 = vadd.f32 %v6244, %v6245
      %v6247 = vsel %vm5616, %v6086, 0.0
      %v6248 = vrot.slane %v6247, 4
      %v6249 = vadd.f32 %v6247, %v6248
      %v6250 = vrot.slane %v6249, 2
      %v6251 = vadd.f32 %v6249, %v6250
      %v6252 = vrot.slane %v6251, 1
      %v6253 = vadd.f32 %v6251, %v6252
      %v6254 = vsel %vm5616, %v6088, 0.0
      %v6255 = vrot.slane %v6254, 4
      %v6256 = vadd.f32 %v6254, %v6255
      %v6257 = vrot.slane %v6256, 2
      %v6258 = vadd.f32 %v6256, %v6257
      %v6259 = vrot.slane %v6258, 1
      %v6260 = vadd.f32 %v6258, %v6259
      %v6261 = vsel %vm5616, %v6090, 0.0
      %v6262 = vrot.slane %v6261, 4
      %v6263 = vadd.f32 %v6261, %v6262
      %v6264 = vrot.slane %v6263, 2
      %v6265 = vadd.f32 %v6263, %v6264
      %v6266 = vrot.slane %v6265, 1
      %v6267 = vadd.f32 %v6265, %v6266
      %v6268 = vsel %vm5616, %v6092, 0.0
      %v6269 = vrot.slane %v6268, 4
      %v6270 = vadd.f32 %v6268, %v6269
      %v6271 = vrot.slane %v6270, 2
      %v6272 = vadd.f32 %v6270, %v6271
      %v6273 = vrot.slane %v6272, 1
      %v6274 = vadd.f32 %v6272, %v6273
      %v6275 = vsel %vm5616, %v6094, 0.0
      %v6276 = vrot.slane %v6275, 4
      %v6277 = vadd.f32 %v6275, %v6276
      %v6278 = vrot.slane %v6277, 2
      %v6279 = vadd.f32 %v6277, %v6278
      %v6280 = vrot.slane %v6279, 1
      %v6281 = vadd.f32 %v6279, %v6280
      %v6282 = vsel %vm5616, %v6096, 0.0
      %v6283 = vrot.slane %v6282, 4
      %v6284 = vadd.f32 %v6282, %v6283
      %v6285 = vrot.slane %v6284, 2
      %v6286 = vadd.f32 %v6284, %v6285
      %v6287 = vrot.slane %v6286, 1
      %v6288 = vadd.f32 %v6286, %v6287
      %v6289 = vsel %vm5616, %v6098, 0.0
      %v6290 = vrot.slane %v6289, 4
      %v6291 = vadd.f32 %v6289, %v6290
      %v6292 = vrot.slane %v6291, 2
      %v6293 = vadd.f32 %v6291, %v6292
      %v6294 = vrot.slane %v6293, 1
      %v6295 = vadd.f32 %v6293, %v6294
      %v6296 = vsel %vm5616, %v6100, 0.0
      %v6297 = vrot.slane %v6296, 4
      %v6298 = vadd.f32 %v6296, %v6297
      %v6299 = vrot.slane %v6298, 2
      %v6300 = vadd.f32 %v6298, %v6299
      %v6301 = vrot.slane %v6300, 1
      %v6302 = vadd.f32 %v6300, %v6301
      %v6303 = vsel %vm5616, %v6102, 0.0
      %v6304 = vrot.slane %v6303, 4
      %v6305 = vadd.f32 %v6303, %v6304
      %v6306 = vrot.slane %v6305, 2
      %v6307 = vadd.f32 %v6305, %v6306
      %v6308 = vrot.slane %v6307, 1
      %v6309 = vadd.f32 %v6307, %v6308
      %v6310 = vsel %vm5616, %v6104, 0.0
      %v6311 = vrot.slane %v6310, 4
      %v6312 = vadd.f32 %v6310, %v6311
      %v6313 = vrot.slane %v6312, 2
      %v6314 = vadd.f32 %v6312, %v6313
      %v6315 = vrot.slane %v6314, 1
      %v6316 = vadd.f32 %v6314, %v6315
      %v6317 = vsel %vm5616, %v6106, 0.0
      %v6318 = vrot.slane %v6317, 4
      %v6319 = vadd.f32 %v6317, %v6318
      %v6320 = vrot.slane %v6319, 2
      %v6321 = vadd.f32 %v6319, %v6320
      %v6322 = vrot.slane %v6321, 1
      %v6323 = vadd.f32 %v6321, %v6322
      %v6324 = vsel %vm5616, %v6108, 0.0
      %v6325 = vrot.slane %v6324, 4
      %v6326 = vadd.f32 %v6324, %v6325
      %v6327 = vrot.slane %v6326, 2
      %v6328 = vadd.f32 %v6326, %v6327
      %v6329 = vrot.slane %v6328, 1
      %v6330 = vadd.f32 %v6328, %v6329
      %v6331 = vsel %vm5616, %v6110, 0.0
      %v6332 = vrot.slane %v6331, 4
      %v6333 = vadd.f32 %v6331, %v6332
      %v6334 = vrot.slane %v6333, 2
      %v6335 = vadd.f32 %v6333, %v6334
      %v6336 = vrot.slane %v6335, 1
      %v6337 = vadd.f32 %v6335, %v6336
      %v6338 = vsel %vm5616, %v6112, 0.0
      %v6339 = vrot.slane %v6338, 4
      %v6340 = vadd.f32 %v6338, %v6339
      %v6341 = vrot.slane %v6340, 2
      %v6342 = vadd.f32 %v6340, %v6341
      %v6343 = vrot.slane %v6342, 1
      %v6344 = vadd.f32 %v6342, %v6343
      %v6345 = vsel %vm5616, %v6114, 0.0
      %v6346 = vrot.slane %v6345, 4
      %v6347 = vadd.f32 %v6345, %v6346
      %v6348 = vrot.slane %v6347, 2
      %v6349 = vadd.f32 %v6347, %v6348
      %v6350 = vrot.slane %v6349, 1
      %v6351 = vadd.f32 %v6349, %v6350
      %v6352 = vsel %vm5616, %v6116, 0.0
      %v6353 = vrot.slane %v6352, 4
      %v6354 = vadd.f32 %v6352, %v6353
      %v6355 = vrot.slane %v6354, 2
      %v6356 = vadd.f32 %v6354, %v6355
      %v6357 = vrot.slane %v6356, 1
      %v6358 = vadd.f32 %v6356, %v6357
      %v6359 = vsel %vm5616, %v6118, 0.0
      %v6360 = vrot.slane %v6359, 4
      %v6361 = vadd.f32 %v6359, %v6360
      %v6362 = vrot.slane %v6361, 2
      %v6363 = vadd.f32 %v6361, %v6362
      %v6364 = vrot.slane %v6363, 1
      %v6365 = vadd.f32 %v6363, %v6364
      %v6366 = vsel %vm5616, %v6120, 0.0
      %v6367 = vrot.slane %v6366, 4
      %v6368 = vadd.f32 %v6366, %v6367
      %v6369 = vrot.slane %v6368, 2
      %v6370 = vadd.f32 %v6368, %v6369
      %v6371 = vrot.slane %v6370, 1
      %v6372 = vadd.f32 %v6370, %v6371
      %v6373 = vsel %vm5616, %v6122, 0.0
      %v6374 = vrot.slane %v6373, 4
      %v6375 = vadd.f32 %v6373, %v6374
      %v6376 = vrot.slane %v6375, 2
      %v6377 = vadd.f32 %v6375, %v6376
      %v6378 = vrot.slane %v6377, 1
      %v6379 = vadd.f32 %v6377, %v6378
      %v6380 = vsel %vm5616, %v6124, 0.0
      %v6381 = vrot.slane %v6380, 4
      %v6382 = vadd.f32 %v6380, %v6381
      %v6383 = vrot.slane %v6382, 2
      %v6384 = vadd.f32 %v6382, %v6383
      %v6385 = vrot.slane %v6384, 1
      %v6386 = vadd.f32 %v6384, %v6385
      %v6387 = vsel %vm5616, %v6126, 0.0
      %v6388 = vrot.slane %v6387, 4
      %v6389 = vadd.f32 %v6387, %v6388
      %v6390 = vrot.slane %v6389, 2
      %v6391 = vadd.f32 %v6389, %v6390
      %v6392 = vrot.slane %v6391, 1
      %v6393 = vadd.f32 %v6391, %v6392
      %v6394 = vsel %vm5616, %v6128, 0.0
      %v6395 = vrot.slane %v6394, 4
      %v6396 = vadd.f32 %v6394, %v6395
      %v6397 = vrot.slane %v6396, 2
      %v6398 = vadd.f32 %v6396, %v6397
      %v6399 = vrot.slane %v6398, 1
      %v6400 = vadd.f32 %v6398, %v6399
      %v6401 = vsel %vm5616, %v6130, 0.0
      %v6402 = vrot.slane %v6401, 4
      %v6403 = vadd.f32 %v6401, %v6402
      %v6404 = vrot.slane %v6403, 2
      %v6405 = vadd.f32 %v6403, %v6404
      %v6406 = vrot.slane %v6405, 1
      %v6407 = vadd.f32 %v6405, %v6406
      %v6408 = vsel %vm5616, %v6132, 0.0
      %v6409 = vrot.slane %v6408, 4
      %v6410 = vadd.f32 %v6408, %v6409
      %v6411 = vrot.slane %v6410, 2
      %v6412 = vadd.f32 %v6410, %v6411
      %v6413 = vrot.slane %v6412, 1
      %v6414 = vadd.f32 %v6412, %v6413
      %v6415 = vsel %vm5616, %v6134, 0.0
      %v6416 = vrot.slane %v6415, 4
      %v6417 = vadd.f32 %v6415, %v6416
      %v6418 = vrot.slane %v6417, 2
      %v6419 = vadd.f32 %v6417, %v6418
      %v6420 = vrot.slane %v6419, 1
      %v6421 = vadd.f32 %v6419, %v6420
      %v6422 = vsel %vm5616, %v6136, 0.0
      %v6423 = vrot.slane %v6422, 4
      %v6424 = vadd.f32 %v6422, %v6423
      %v6425 = vrot.slane %v6424, 2
      %v6426 = vadd.f32 %v6424, %v6425
      %v6427 = vrot.slane %v6426, 1
      %v6428 = vadd.f32 %v6426, %v6427
      %v6429 = vsel %vm5616, %v6138, 0.0
      %v6430 = vrot.slane %v6429, 4
      %v6431 = vadd.f32 %v6429, %v6430
      %v6432 = vrot.slane %v6431, 2
      %v6433 = vadd.f32 %v6431, %v6432
      %v6434 = vrot.slane %v6433, 1
      %v6435 = vadd.f32 %v6433, %v6434
      %v6436 = vsel %vm5616, %v6140, 0.0
      %v6437 = vrot.slane %v6436, 4
      %v6438 = vadd.f32 %v6436, %v6437
      %v6439 = vrot.slane %v6438, 2
      %v6440 = vadd.f32 %v6438, %v6439
      %v6441 = vrot.slane %v6440, 1
      %v6442 = vadd.f32 %v6440, %v6441
      %v6443 = vsel %vm5616, %v6142, 0.0
      %v6444 = vrot.slane %v6443, 4
      %v6445 = vadd.f32 %v6443, %v6444
      %v6446 = vrot.slane %v6445, 2
      %v6447 = vadd.f32 %v6445, %v6446
      %v6448 = vrot.slane %v6447, 1
      %v6449 = vadd.f32 %v6447, %v6448
      %v6450 = vsel %vm5616, %v6144, 0.0
      %v6451 = vrot.slane %v6450, 4
      %v6452 = vadd.f32 %v6450, %v6451
      %v6453 = vrot.slane %v6452, 2
      %v6454 = vadd.f32 %v6452, %v6453
      %v6455 = vrot.slane %v6454, 1
      %v6456 = vadd.f32 %v6454, %v6455
      %v6457 = vsel %vm5616, %v6146, 0.0
      %v6458 = vrot.slane %v6457, 4
      %v6459 = vadd.f32 %v6457, %v6458
      %v6460 = vrot.slane %v6459, 2
      %v6461 = vadd.f32 %v6459, %v6460
      %v6462 = vrot.slane %v6461, 1
      %v6463 = vadd.f32 %v6461, %v6462
      %v6464 = vsel %vm5616, %v6148, 0.0
      %v6465 = vrot.slane %v6464, 4
      %v6466 = vadd.f32 %v6464, %v6465
      %v6467 = vrot.slane %v6466, 2
      %v6468 = vadd.f32 %v6466, %v6467
      %v6469 = vrot.slane %v6468, 1
      %v6470 = vadd.f32 %v6468, %v6469
      %v6471 = vsel %vm5616, %v6150, 0.0
      %v6472 = vrot.slane %v6471, 4
      %v6473 = vadd.f32 %v6471, %v6472
      %v6474 = vrot.slane %v6473, 2
      %v6475 = vadd.f32 %v6473, %v6474
      %v6476 = vrot.slane %v6475, 1
      %v6477 = vadd.f32 %v6475, %v6476
      %v6478 = vsel %vm5616, %v6152, 0.0
      %v6479 = vrot.slane %v6478, 4
      %v6480 = vadd.f32 %v6478, %v6479
      %v6481 = vrot.slane %v6480, 2
      %v6482 = vadd.f32 %v6480, %v6481
      %v6483 = vrot.slane %v6482, 1
      %v6484 = vadd.f32 %v6482, %v6483
      %v6485 = vsel %vm5616, %v6154, 0.0
      %v6486 = vrot.slane %v6485, 4
      %v6487 = vadd.f32 %v6485, %v6486
      %v6488 = vrot.slane %v6487, 2
      %v6489 = vadd.f32 %v6487, %v6488
      %v6490 = vrot.slane %v6489, 1
      %v6491 = vadd.f32 %v6489, %v6490
      %v6492 = vsel %vm5616, %v6156, 0.0
      %v6493 = vrot.slane %v6492, 4
      %v6494 = vadd.f32 %v6492, %v6493
      %v6495 = vrot.slane %v6494, 2
      %v6496 = vadd.f32 %v6494, %v6495
      %v6497 = vrot.slane %v6496, 1
      %v6498 = vadd.f32 %v6496, %v6497
      %v6499 = vsel %vm5616, %v6158, 0.0
      %v6500 = vrot.slane %v6499, 4
      %v6501 = vadd.f32 %v6499, %v6500
      %v6502 = vrot.slane %v6501, 2
      %v6503 = vadd.f32 %v6501, %v6502
      %v6504 = vrot.slane %v6503, 1
      %v6505 = vadd.f32 %v6503, %v6504
      %v6506 = vsel %vm5616, %v6160, 0.0
      %v6507 = vrot.slane %v6506, 4
      %v6508 = vadd.f32 %v6506, %v6507
      %v6509 = vrot.slane %v6508, 2
      %v6510 = vadd.f32 %v6508, %v6509
      %v6511 = vrot.slane %v6510, 1
      %v6512 = vadd.f32 %v6510, %v6511
      %v6513 = vsel %vm5616, %v6162, 0.0
      %v6514 = vrot.slane %v6513, 4
      %v6515 = vadd.f32 %v6513, %v6514
      %v6516 = vrot.slane %v6515, 2
      %v6517 = vadd.f32 %v6515, %v6516
      %v6518 = vrot.slane %v6517, 1
      %v6519 = vadd.f32 %v6517, %v6518
      %v6520 = vsel %vm5616, %v6164, 0.0
      %v6521 = vrot.slane %v6520, 4
      %v6522 = vadd.f32 %v6520, %v6521
      %v6523 = vrot.slane %v6522, 2
      %v6524 = vadd.f32 %v6522, %v6523
      %v6525 = vrot.slane %v6524, 1
      %v6526 = vadd.f32 %v6524, %v6525
      %v6527 = vsel %vm5616, %v6166, 0.0
      %v6528 = vrot.slane %v6527, 4
      %v6529 = vadd.f32 %v6527, %v6528
      %v6530 = vrot.slane %v6529, 2
      %v6531 = vadd.f32 %v6529, %v6530
      %v6532 = vrot.slane %v6531, 1
      %v6533 = vadd.f32 %v6531, %v6532
      %v6534 = vsel %vm5616, %v6168, 0.0
      %v6535 = vrot.slane %v6534, 4
      %v6536 = vadd.f32 %v6534, %v6535
      %v6537 = vrot.slane %v6536, 2
      %v6538 = vadd.f32 %v6536, %v6537
      %v6539 = vrot.slane %v6538, 1
      %v6540 = vadd.f32 %v6538, %v6539
      %v6541 = vsel %vm5616, %v6170, 0.0
      %v6542 = vrot.slane %v6541, 4
      %v6543 = vadd.f32 %v6541, %v6542
      %v6544 = vrot.slane %v6543, 2
      %v6545 = vadd.f32 %v6543, %v6544
      %v6546 = vrot.slane %v6545, 1
      %v6547 = vadd.f32 %v6545, %v6546
      %v6548 = vsel %vm5616, %v6172, 0.0
      %v6549 = vrot.slane %v6548, 4
      %v6550 = vadd.f32 %v6548, %v6549
      %v6551 = vrot.slane %v6550, 2
      %v6552 = vadd.f32 %v6550, %v6551
      %v6553 = vrot.slane %v6552, 1
      %v6554 = vadd.f32 %v6552, %v6553
      %v6555 = vsel %vm5616, %v6174, 0.0
      %v6556 = vrot.slane %v6555, 4
      %v6557 = vadd.f32 %v6555, %v6556
      %v6558 = vrot.slane %v6557, 2
      %v6559 = vadd.f32 %v6557, %v6558
      %v6560 = vrot.slane %v6559, 1
      %v6561 = vadd.f32 %v6559, %v6560
      %v6562 = vsel %vm5616, %v6176, 0.0
      %v6563 = vrot.slane %v6562, 4
      %v6564 = vadd.f32 %v6562, %v6563
      %v6565 = vrot.slane %v6564, 2
      %v6566 = vadd.f32 %v6564, %v6565
      %v6567 = vrot.slane %v6566, 1
      %v6568 = vadd.f32 %v6566, %v6567
      %v6569 = vrcp.pop %v6183
      %v6570 = vrcp.pop %v6190
      %v6571 = vrcp.pop %v6197
      %v6572 = vrcp.pop %v6204
      %v6573 = vrcp.pop %v6211
      %v6574 = vrcp.pop %v6218
      %v6575 = vrcp.pop %v6225
      %v6576 = vrcp.pop %v6232
      %v6577 = vrcp.pop %v6239
      %v6578 = vrcp.pop %v6246
      %v6579 = vrcp.pop %v6253
      %v6580 = vrcp.pop %v6260
      %v6581 = vrcp.pop %v6267
      %v6582 = vrcp.pop %v6274
      %v6583 = vrcp.pop %v6281
      %v6584 = vrcp.pop %v6288
      %v6585 = vrcp.pop %v6295
      %v6586 = vrcp.pop %v6302
      %v6587 = vrcp.pop %v6309
      %v6588 = vrcp.pop %v6316
      %v6589 = vrcp.pop %v6323
      %v6590 = vrcp.pop %v6330
      %v6591 = vrcp.pop %v6337
      %v6592 = vrcp.pop %v6344
      %v6593 = vrcp.pop %v6351
      %v6594 = vrcp.pop %v6358
      %v6595 = vrcp.pop %v6365
      %v6596 = vrcp.pop %v6372
      %v6597 = vrcp.pop %v6379
      %v6598 = vrcp.pop %v6386
      %v6599 = vrcp.pop %v6393
      %v6600 = vrcp.pop %v6400
      %v6601 = vrcp.pop %v6407
      %v6602 = vrcp.pop %v6414
      %v6603 = vrcp.pop %v6421
      %v6604 = vrcp.pop %v6428
      %v6605 = vrcp.pop %v6435
      %v6606 = vrcp.pop %v6442
      %v6607 = vrcp.pop %v6449
      %v6608 = vrcp.pop %v6456
      %v6609 = vrcp.pop %v6463
      %v6610 = vrcp.pop %v6470
      %v6611 = vrcp.pop %v6477
      %v6612 = vrcp.pop %v6484
      %v6613 = vrcp.pop %v6491
      %v6614 = vrcp.pop %v6498
      %v6615 = vrcp.pop %v6505
      %v6616 = vrcp.pop %v6512
      %v6617 = vrcp.pop %v6519
      %v6618 = vrcp.pop %v6526
      %v6619 = vrcp.pop %v6533
      %v6620 = vrcp.pop %v6540
      %v6621 = vrcp.pop %v6547
      %v6622 = vrcp.pop %v6554
      %v6623 = vrcp.pop %v6561
      %v6624 = vrcp.pop %v6568
      %v6625 = vmul.f32 %v6066, %v6569
      %v6626 = vmul.f32 %v6068, %v6570
      %v6627 = vmul.f32 %v6070, %v6571
      %v6628 = vmul.f32 %v6072, %v6572
      %v6629 = vmul.f32 %v6074, %v6573
      %v6630 = vmul.f32 %v6076, %v6574
      %v6631 = vmul.f32 %v6078, %v6575
      %v6632 = vmul.f32 %v6080, %v6576
      %v6633 = vmul.f32 %v6082, %v6577
      %v6634 = vmul.f32 %v6084, %v6578
      %v6635 = vmul.f32 %v6086, %v6579
      %v6636 = vmul.f32 %v6088, %v6580
      %v6637 = vmul.f32 %v6090, %v6581
      %v6638 = vmul.f32 %v6092, %v6582
      %v6639 = vmul.f32 %v6094, %v6583
      %v6640 = vmul.f32 %v6096, %v6584
      %v6641 = vmul.f32 %v6098, %v6585
      %v6642 = vmul.f32 %v6100, %v6586
      %v6643 = vmul.f32 %v6102, %v6587
      %v6644 = vmul.f32 %v6104, %v6588
      %v6645 = vmul.f32 %v6106, %v6589
      %v6646 = vmul.f32 %v6108, %v6590
      %v6647 = vmul.f32 %v6110, %v6591
      %v6648 = vmul.f32 %v6112, %v6592
      %v6649 = vmul.f32 %v6114, %v6593
      %v6650 = vmul.f32 %v6116, %v6594
      %v6651 = vmul.f32 %v6118, %v6595
      %v6652 = vmul.f32 %v6120, %v6596
      %v6653 = vmul.f32 %v6122, %v6597
      %v6654 = vmul.f32 %v6124, %v6598
      %v6655 = vmul.f32 %v6126, %v6599
      %v6656 = vmul.f32 %v6128, %v6600
      %v6657 = vmul.f32 %v6130, %v6601
      %v6658 = vmul.f32 %v6132, %v6602
      %v6659 = vmul.f32 %v6134, %v6603
      %v6660 = vmul.f32 %v6136, %v6604
      %v6661 = vmul.f32 %v6138, %v6605
      %v6662 = vmul.f32 %v6140, %v6606
      %v6663 = vmul.f32 %v6142, %v6607
      %v6664 = vmul.f32 %v6144, %v6608
      %v6665 = vmul.f32 %v6146, %v6609
      %v6666 = vmul.f32 %v6148, %v6610
      %v6667 = vmul.f32 %v6150, %v6611
      %v6668 = vmul.f32 %v6152, %v6612
      %v6669 = vmul.f32 %v6154, %v6613
      %v6670 = vmul.f32 %v6156, %v6614
      %v6671 = vmul.f32 %v6158, %v6615
      %v6672 = vmul.f32 %v6160, %v6616
      %v6673 = vmul.f32 %v6162, %v6617
      %v6674 = vmul.f32 %v6164, %v6618
      %v6675 = vmul.f32 %v6166, %v6619
      %v6676 = vmul.f32 %v6168, %v6620
      %v6677 = vmul.f32 %v6170, %v6621
      %v6678 = vmul.f32 %v6172, %v6622
      %v6679 = vmul.f32 %v6174, %v6623
      %v6680 = vmul.f32 %v6176, %v6624
      %6682 = vset.pattern.permute.xlu0 0
      %6683 = vperm.xlu0 %6682, %v6625
      %v6684 = vpop.permute.xlu0 %6683
      %6687 = vset.pattern.permute.xlu0 0
      %6688 = vperm.xlu0 %6687, %v6626
      %v6689 = vpop.permute.xlu0 %6688
      %6692 = vset.pattern.permute.xlu0 0
      %6693 = vperm.xlu0 %6692, %v6627
      %v6694 = vpop.permute.xlu0 %6693
      %6697 = vset.pattern.permute.xlu0 0
      %6698 = vperm.xlu0 %6697, %v6628
      %v6699 = vpop.permute.xlu0 %6698
      %6702 = vset.pattern.permute.xlu0 0
      %6703 = vperm.xlu0 %6702, %v6629
      %v6704 = vpop.permute.xlu0 %6703
      %6707 = vset.pattern.permute.xlu0 0
      %6708 = vperm.xlu0 %6707, %v6630
      %v6709 = vpop.permute.xlu0 %6708
      %6712 = vset.pattern.permute.xlu0 0
      %6713 = vperm.xlu0 %6712, %v6631
      %v6714 = vpop.permute.xlu0 %6713
      %6717 = vset.pattern.permute.xlu0 0
      %6718 = vperm.xlu0 %6717, %v6632
      %v6719 = vpop.permute.xlu0 %6718
      %6722 = vset.pattern.permute.xlu0 0
      %6723 = vperm.xlu0 %6722, %v6633
      %v6724 = vpop.permute.xlu0 %6723
      %6727 = vset.pattern.permute.xlu0 0
      %6728 = vperm.xlu0 %6727, %v6634
      %v6729 = vpop.permute.xlu0 %6728
      %6732 = vset.pattern.permute.xlu0 0
      %6733 = vperm.xlu0 %6732, %v6635
      %v6734 = vpop.permute.xlu0 %6733
      %6737 = vset.pattern.permute.xlu0 0
      %6738 = vperm.xlu0 %6737, %v6636
      %v6739 = vpop.permute.xlu0 %6738
      %6742 = vset.pattern.permute.xlu0 0
      %6743 = vperm.xlu0 %6742, %v6637
      %v6744 = vpop.permute.xlu0 %6743
      %6747 = vset.pattern.permute.xlu0 0
      %6748 = vperm.xlu0 %6747, %v6638
      %v6749 = vpop.permute.xlu0 %6748
      %6752 = vset.pattern.permute.xlu0 0
      %6753 = vperm.xlu0 %6752, %v6639
      %v6754 = vpop.permute.xlu0 %6753
      %6757 = vset.pattern.permute.xlu0 0
      %6758 = vperm.xlu0 %6757, %v6640
      %v6759 = vpop.permute.xlu0 %6758
      %6762 = vset.pattern.permute.xlu0 0
      %6763 = vperm.xlu0 %6762, %v6641
      %v6764 = vpop.permute.xlu0 %6763
      %6767 = vset.pattern.permute.xlu0 0
      %6768 = vperm.xlu0 %6767, %v6642
      %v6769 = vpop.permute.xlu0 %6768
      %6772 = vset.pattern.permute.xlu0 0
      %6773 = vperm.xlu0 %6772, %v6643
      %v6774 = vpop.permute.xlu0 %6773
      %6777 = vset.pattern.permute.xlu0 0
      %6778 = vperm.xlu0 %6777, %v6644
      %v6779 = vpop.permute.xlu0 %6778
      %6782 = vset.pattern.permute.xlu0 0
      %6783 = vperm.xlu0 %6782, %v6645
      %v6784 = vpop.permute.xlu0 %6783
      %6787 = vset.pattern.permute.xlu0 0
      %6788 = vperm.xlu0 %6787, %v6646
      %v6789 = vpop.permute.xlu0 %6788
      %6792 = vset.pattern.permute.xlu0 0
      %6793 = vperm.xlu0 %6792, %v6647
      %v6794 = vpop.permute.xlu0 %6793
      %6797 = vset.pattern.permute.xlu0 0
      %6798 = vperm.xlu0 %6797, %v6648
      %v6799 = vpop.permute.xlu0 %6798
      %6802 = vset.pattern.permute.xlu0 0
      %6803 = vperm.xlu0 %6802, %v6649
      %v6804 = vpop.permute.xlu0 %6803
      %6807 = vset.pattern.permute.xlu0 0
      %6808 = vperm.xlu0 %6807, %v6650
      %v6809 = vpop.permute.xlu0 %6808
      %6812 = vset.pattern.permute.xlu0 0
      %6813 = vperm.xlu0 %6812, %v6651
      %v6814 = vpop.permute.xlu0 %6813
      %6817 = vset.pattern.permute.xlu0 0
      %6818 = vperm.xlu0 %6817, %v6652
      %v6819 = vpop.permute.xlu0 %6818
      %6822 = vset.pattern.permute.xlu0 0
      %6823 = vperm.xlu0 %6822, %v6653
      %v6824 = vpop.permute.xlu0 %6823
      %6827 = vset.pattern.permute.xlu0 0
      %6828 = vperm.xlu0 %6827, %v6654
      %v6829 = vpop.permute.xlu0 %6828
      %6832 = vset.pattern.permute.xlu0 0
      %6833 = vperm.xlu0 %6832, %v6655
      %v6834 = vpop.permute.xlu0 %6833
      %6837 = vset.pattern.permute.xlu0 0
      %6838 = vperm.xlu0 %6837, %v6656
      %v6839 = vpop.permute.xlu0 %6838
      %6842 = vset.pattern.permute.xlu0 0
      %6843 = vperm.xlu0 %6842, %v6657
      %v6844 = vpop.permute.xlu0 %6843
      %6847 = vset.pattern.permute.xlu0 0
      %6848 = vperm.xlu0 %6847, %v6658
      %v6849 = vpop.permute.xlu0 %6848
      %6852 = vset.pattern.permute.xlu0 0
      %6853 = vperm.xlu0 %6852, %v6659
      %v6854 = vpop.permute.xlu0 %6853
      %6857 = vset.pattern.permute.xlu0 0
      %6858 = vperm.xlu0 %6857, %v6660
      %v6859 = vpop.permute.xlu0 %6858
      %6862 = vset.pattern.permute.xlu0 0
      %6863 = vperm.xlu0 %6862, %v6661
      %v6864 = vpop.permute.xlu0 %6863
      %6867 = vset.pattern.permute.xlu0 0
      %6868 = vperm.xlu0 %6867, %v6662
      %v6869 = vpop.permute.xlu0 %6868
      %6872 = vset.pattern.permute.xlu0 0
      %6873 = vperm.xlu0 %6872, %v6663
      %v6874 = vpop.permute.xlu0 %6873
      %6877 = vset.pattern.permute.xlu0 0
      %6878 = vperm.xlu0 %6877, %v6664
      %v6879 = vpop.permute.xlu0 %6878
      %6882 = vset.pattern.permute.xlu0 0
      %6883 = vperm.xlu0 %6882, %v6665
      %v6884 = vpop.permute.xlu0 %6883
      %6887 = vset.pattern.permute.xlu0 0
      %6888 = vperm.xlu0 %6887, %v6666
      %v6889 = vpop.permute.xlu0 %6888
      %6892 = vset.pattern.permute.xlu0 0
      %6893 = vperm.xlu0 %6892, %v6667
      %v6894 = vpop.permute.xlu0 %6893
      %6897 = vset.pattern.permute.xlu0 0
      %6898 = vperm.xlu0 %6897, %v6668
      %v6899 = vpop.permute.xlu0 %6898
      %6902 = vset.pattern.permute.xlu0 0
      %6903 = vperm.xlu0 %6902, %v6669
      %v6904 = vpop.permute.xlu0 %6903
      %6907 = vset.pattern.permute.xlu0 0
      %6908 = vperm.xlu0 %6907, %v6670
      %v6909 = vpop.permute.xlu0 %6908
      %6912 = vset.pattern.permute.xlu0 0
      %6913 = vperm.xlu0 %6912, %v6671
      %v6914 = vpop.permute.xlu0 %6913
      %6917 = vset.pattern.permute.xlu0 0
      %6918 = vperm.xlu0 %6917, %v6672
      %v6919 = vpop.permute.xlu0 %6918
      %6922 = vset.pattern.permute.xlu0 0
      %6923 = vperm.xlu0 %6922, %v6673
      %v6924 = vpop.permute.xlu0 %6923
      %6927 = vset.pattern.permute.xlu0 0
      %6928 = vperm.xlu0 %6927, %v6674
      %v6929 = vpop.permute.xlu0 %6928
      %6932 = vset.pattern.permute.xlu0 0
      %6933 = vperm.xlu0 %6932, %v6675
      %v6934 = vpop.permute.xlu0 %6933
      %6937 = vset.pattern.permute.xlu0 0
      %6938 = vperm.xlu0 %6937, %v6676
      %v6939 = vpop.permute.xlu0 %6938
      %6942 = vset.pattern.permute.xlu0 0
      %6943 = vperm.xlu0 %6942, %v6677
      %v6944 = vpop.permute.xlu0 %6943
      %6947 = vset.pattern.permute.xlu0 0
      %6948 = vperm.xlu0 %6947, %v6678
      %v6949 = vpop.permute.xlu0 %6948
      %6952 = vset.pattern.permute.xlu0 0
      %6953 = vperm.xlu0 %6952, %v6679
      %v6954 = vpop.permute.xlu0 %6953
      %6957 = vset.pattern.permute.xlu0 0
      %6958 = vperm.xlu0 %6957, %v6680
      %v6959 = vpop.permute.xlu0 %6958
      %v6961 = vmul.f32 %v3251, %v6684
      %v6962 = vmul.f32 %v3252, %v6689
      %v6963 = vmul.f32 %v3253, %v6694
      %v6964 = vmul.f32 %v3254, %v6699
      %v6965 = vmul.f32 %v3255, %v6704
      %v6966 = vmul.f32 %v3256, %v6709
      %v6967 = vmul.f32 %v3257, %v6714
      %v6968 = vmul.f32 %v3258, %v6719
      %v6969 = vmul.f32 %v3259, %v6724
      %v6970 = vmul.f32 %v3260, %v6729
      %v6971 = vmul.f32 %v3261, %v6734
      %v6972 = vmul.f32 %v3262, %v6739
      %v6973 = vmul.f32 %v3263, %v6744
      %v6974 = vmul.f32 %v3264, %v6749
      %v6975 = vmul.f32 %v3265, %v6754
      %v6976 = vmul.f32 %v3266, %v6759
      %v6977 = vmul.f32 %v3267, %v6764
      %v6978 = vmul.f32 %v3268, %v6769
      %v6979 = vmul.f32 %v3269, %v6774
      %v6980 = vmul.f32 %v3270, %v6779
      %v6981 = vmul.f32 %v3271, %v6784
      %v6982 = vmul.f32 %v3272, %v6789
      %v6983 = vmul.f32 %v3273, %v6794
      %v6984 = vmul.f32 %v3274, %v6799
      %v6985 = vmul.f32 %v3275, %v6804
      %v6986 = vmul.f32 %v3276, %v6809
      %v6987 = vmul.f32 %v3277, %v6814
      %v6988 = vmul.f32 %v3278, %v6819
      %v6989 = vmul.f32 %v3279, %v6824
      %v6990 = vmul.f32 %v3280, %v6829
      %v6991 = vmul.f32 %v3281, %v6834
      %v6992 = vmul.f32 %v3282, %v6839
      %v6993 = vmul.f32 %v3283, %v6844
      %v6994 = vmul.f32 %v3284, %v6849
      %v6995 = vmul.f32 %v3285, %v6854
      %v6996 = vmul.f32 %v3286, %v6859
      %v6997 = vmul.f32 %v3287, %v6864
      %v6998 = vmul.f32 %v3288, %v6869
      %v6999 = vmul.f32 %v3289, %v6874
      %v7000 = vmul.f32 %v3290, %v6879
      %v7001 = vmul.f32 %v3291, %v6884
      %v7002 = vmul.f32 %v3292, %v6889
      %v7003 = vmul.f32 %v3293, %v6894
      %v7004 = vmul.f32 %v3294, %v6899
      %v7005 = vmul.f32 %v3295, %v6904
      %v7006 = vmul.f32 %v3296, %v6909
      %v7007 = vmul.f32 %v3297, %v6914
      %v7008 = vmul.f32 %v3298, %v6919
      %v7009 = vmul.f32 %v3299, %v6924
      %v7010 = vmul.f32 %v3300, %v6929
      %v7011 = vmul.f32 %v3301, %v6934
      %v7012 = vmul.f32 %v3302, %v6939
      %v7013 = vmul.f32 %v3303, %v6944
      %v7014 = vmul.f32 %v3304, %v6949
      %v7015 = vmul.f32 %v3305, %v6954
      %v7016 = vmul.f32 %v3306, %v6959
      %v7017 = vsel %vm2737, %v6961, 0.0
      %v7018 = vrot.slane %v7017, 4
      %v7019 = vadd.f32 %v7017, %v7018
      %v7020 = vrot.slane %v7019, 2
      %v7021 = vadd.f32 %v7019, %v7020
      %v7022 = vrot.slane %v7021, 1
      %v7023 = vadd.f32 %v7021, %v7022
      %v7024 = vsel %vm2737, %v6962, 0.0
      %v7025 = vrot.slane %v7024, 4
      %v7026 = vadd.f32 %v7024, %v7025
      %v7027 = vrot.slane %v7026, 2
      %v7028 = vadd.f32 %v7026, %v7027
      %v7029 = vrot.slane %v7028, 1
      %v7030 = vadd.f32 %v7028, %v7029
      %v7031 = vsel %vm2737, %v6963, 0.0
      %v7032 = vrot.slane %v7031, 4
      %v7033 = vadd.f32 %v7031, %v7032
      %v7034 = vrot.slane %v7033, 2
      %v7035 = vadd.f32 %v7033, %v7034
      %v7036 = vrot.slane %v7035, 1
      %v7037 = vadd.f32 %v7035, %v7036
      %v7038 = vsel %vm2737, %v6964, 0.0
      %v7039 = vrot.slane %v7038, 4
      %v7040 = vadd.f32 %v7038, %v7039
      %v7041 = vrot.slane %v7040, 2
      %v7042 = vadd.f32 %v7040, %v7041
      %v7043 = vrot.slane %v7042, 1
      %v7044 = vadd.f32 %v7042, %v7043
      %v7045 = vsel %vm2737, %v6965, 0.0
      %v7046 = vrot.slane %v7045, 4
      %v7047 = vadd.f32 %v7045, %v7046
      %v7048 = vrot.slane %v7047, 2
      %v7049 = vadd.f32 %v7047, %v7048
      %v7050 = vrot.slane %v7049, 1
      %v7051 = vadd.f32 %v7049, %v7050
      %v7052 = vsel %vm2737, %v6966, 0.0
      %v7053 = vrot.slane %v7052, 4
      %v7054 = vadd.f32 %v7052, %v7053
      %v7055 = vrot.slane %v7054, 2
      %v7056 = vadd.f32 %v7054, %v7055
      %v7057 = vrot.slane %v7056, 1
      %v7058 = vadd.f32 %v7056, %v7057
      %v7059 = vsel %vm2737, %v6967, 0.0
      %v7060 = vrot.slane %v7059, 4
      %v7061 = vadd.f32 %v7059, %v7060
      %v7062 = vrot.slane %v7061, 2
      %v7063 = vadd.f32 %v7061, %v7062
      %v7064 = vrot.slane %v7063, 1
      %v7065 = vadd.f32 %v7063, %v7064
      %v7066 = vsel %vm2737, %v6968, 0.0
      %v7067 = vrot.slane %v7066, 4
      %v7068 = vadd.f32 %v7066, %v7067
      %v7069 = vrot.slane %v7068, 2
      %v7070 = vadd.f32 %v7068, %v7069
      %v7071 = vrot.slane %v7070, 1
      %v7072 = vadd.f32 %v7070, %v7071
      %v7073 = vsel %vm2737, %v6969, 0.0
      %v7074 = vrot.slane %v7073, 4
      %v7075 = vadd.f32 %v7073, %v7074
      %v7076 = vrot.slane %v7075, 2
      %v7077 = vadd.f32 %v7075, %v7076
      %v7078 = vrot.slane %v7077, 1
      %v7079 = vadd.f32 %v7077, %v7078
      %v7080 = vsel %vm2737, %v6970, 0.0
      %v7081 = vrot.slane %v7080, 4
      %v7082 = vadd.f32 %v7080, %v7081
      %v7083 = vrot.slane %v7082, 2
      %v7084 = vadd.f32 %v7082, %v7083
      %v7085 = vrot.slane %v7084, 1
      %v7086 = vadd.f32 %v7084, %v7085
      %v7087 = vsel %vm2737, %v6971, 0.0
      %v7088 = vrot.slane %v7087, 4
      %v7089 = vadd.f32 %v7087, %v7088
      %v7090 = vrot.slane %v7089, 2
      %v7091 = vadd.f32 %v7089, %v7090
      %v7092 = vrot.slane %v7091, 1
      %v7093 = vadd.f32 %v7091, %v7092
      %v7094 = vsel %vm2737, %v6972, 0.0
      %v7095 = vrot.slane %v7094, 4
      %v7096 = vadd.f32 %v7094, %v7095
      %v7097 = vrot.slane %v7096, 2
      %v7098 = vadd.f32 %v7096, %v7097
      %v7099 = vrot.slane %v7098, 1
      %v7100 = vadd.f32 %v7098, %v7099
      %v7101 = vsel %vm2737, %v6973, 0.0
      %v7102 = vrot.slane %v7101, 4
      %v7103 = vadd.f32 %v7101, %v7102
      %v7104 = vrot.slane %v7103, 2
      %v7105 = vadd.f32 %v7103, %v7104
      %v7106 = vrot.slane %v7105, 1
      %v7107 = vadd.f32 %v7105, %v7106
      %v7108 = vsel %vm2737, %v6974, 0.0
      %v7109 = vrot.slane %v7108, 4
      %v7110 = vadd.f32 %v7108, %v7109
      %v7111 = vrot.slane %v7110, 2
      %v7112 = vadd.f32 %v7110, %v7111
      %v7113 = vrot.slane %v7112, 1
      %v7114 = vadd.f32 %v7112, %v7113
      %v7115 = vsel %vm2737, %v6975, 0.0
      %v7116 = vrot.slane %v7115, 4
      %v7117 = vadd.f32 %v7115, %v7116
      %v7118 = vrot.slane %v7117, 2
      %v7119 = vadd.f32 %v7117, %v7118
      %v7120 = vrot.slane %v7119, 1
      %v7121 = vadd.f32 %v7119, %v7120
      %v7122 = vsel %vm2737, %v6976, 0.0
      %v7123 = vrot.slane %v7122, 4
      %v7124 = vadd.f32 %v7122, %v7123
      %v7125 = vrot.slane %v7124, 2
      %v7126 = vadd.f32 %v7124, %v7125
      %v7127 = vrot.slane %v7126, 1
      %v7128 = vadd.f32 %v7126, %v7127
      %v7129 = vsel %vm2737, %v6977, 0.0
      %v7130 = vrot.slane %v7129, 4
      %v7131 = vadd.f32 %v7129, %v7130
      %v7132 = vrot.slane %v7131, 2
      %v7133 = vadd.f32 %v7131, %v7132
      %v7134 = vrot.slane %v7133, 1
      %v7135 = vadd.f32 %v7133, %v7134
      %v7136 = vsel %vm2737, %v6978, 0.0
      %v7137 = vrot.slane %v7136, 4
      %v7138 = vadd.f32 %v7136, %v7137
      %v7139 = vrot.slane %v7138, 2
      %v7140 = vadd.f32 %v7138, %v7139
      %v7141 = vrot.slane %v7140, 1
      %v7142 = vadd.f32 %v7140, %v7141
      %v7143 = vsel %vm2737, %v6979, 0.0
      %v7144 = vrot.slane %v7143, 4
      %v7145 = vadd.f32 %v7143, %v7144
      %v7146 = vrot.slane %v7145, 2
      %v7147 = vadd.f32 %v7145, %v7146
      %v7148 = vrot.slane %v7147, 1
      %v7149 = vadd.f32 %v7147, %v7148
      %v7150 = vsel %vm2737, %v6980, 0.0
      %v7151 = vrot.slane %v7150, 4
      %v7152 = vadd.f32 %v7150, %v7151
      %v7153 = vrot.slane %v7152, 2
      %v7154 = vadd.f32 %v7152, %v7153
      %v7155 = vrot.slane %v7154, 1
      %v7156 = vadd.f32 %v7154, %v7155
      %v7157 = vsel %vm2737, %v6981, 0.0
      %v7158 = vrot.slane %v7157, 4
      %v7159 = vadd.f32 %v7157, %v7158
      %v7160 = vrot.slane %v7159, 2
      %v7161 = vadd.f32 %v7159, %v7160
      %v7162 = vrot.slane %v7161, 1
      %v7163 = vadd.f32 %v7161, %v7162
      %v7164 = vsel %vm2737, %v6982, 0.0
      %v7165 = vrot.slane %v7164, 4
      %v7166 = vadd.f32 %v7164, %v7165
      %v7167 = vrot.slane %v7166, 2
      %v7168 = vadd.f32 %v7166, %v7167
      %v7169 = vrot.slane %v7168, 1
      %v7170 = vadd.f32 %v7168, %v7169
      %v7171 = vsel %vm2737, %v6983, 0.0
      %v7172 = vrot.slane %v7171, 4
      %v7173 = vadd.f32 %v7171, %v7172
      %v7174 = vrot.slane %v7173, 2
      %v7175 = vadd.f32 %v7173, %v7174
      %v7176 = vrot.slane %v7175, 1
      %v7177 = vadd.f32 %v7175, %v7176
      %v7178 = vsel %vm2737, %v6984, 0.0
      %v7179 = vrot.slane %v7178, 4
      %v7180 = vadd.f32 %v7178, %v7179
      %v7181 = vrot.slane %v7180, 2
      %v7182 = vadd.f32 %v7180, %v7181
      %v7183 = vrot.slane %v7182, 1
      %v7184 = vadd.f32 %v7182, %v7183
      %v7185 = vsel %vm2737, %v6985, 0.0
      %v7186 = vrot.slane %v7185, 4
      %v7187 = vadd.f32 %v7185, %v7186
      %v7188 = vrot.slane %v7187, 2
      %v7189 = vadd.f32 %v7187, %v7188
      %v7190 = vrot.slane %v7189, 1
      %v7191 = vadd.f32 %v7189, %v7190
      %v7192 = vsel %vm2737, %v6986, 0.0
      %v7193 = vrot.slane %v7192, 4
      %v7194 = vadd.f32 %v7192, %v7193
      %v7195 = vrot.slane %v7194, 2
      %v7196 = vadd.f32 %v7194, %v7195
      %v7197 = vrot.slane %v7196, 1
      %v7198 = vadd.f32 %v7196, %v7197
      %v7199 = vsel %vm2737, %v6987, 0.0
      %v7200 = vrot.slane %v7199, 4
      %v7201 = vadd.f32 %v7199, %v7200
      %v7202 = vrot.slane %v7201, 2
      %v7203 = vadd.f32 %v7201, %v7202
      %v7204 = vrot.slane %v7203, 1
      %v7205 = vadd.f32 %v7203, %v7204
      %v7206 = vsel %vm2737, %v6988, 0.0
      %v7207 = vrot.slane %v7206, 4
      %v7208 = vadd.f32 %v7206, %v7207
      %v7209 = vrot.slane %v7208, 2
      %v7210 = vadd.f32 %v7208, %v7209
      %v7211 = vrot.slane %v7210, 1
      %v7212 = vadd.f32 %v7210, %v7211
      %v7213 = vsel %vm2737, %v6989, 0.0
      %v7214 = vrot.slane %v7213, 4
      %v7215 = vadd.f32 %v7213, %v7214
      %v7216 = vrot.slane %v7215, 2
      %v7217 = vadd.f32 %v7215, %v7216
      %v7218 = vrot.slane %v7217, 1
      %v7219 = vadd.f32 %v7217, %v7218
      %v7220 = vsel %vm2737, %v6990, 0.0
      %v7221 = vrot.slane %v7220, 4
      %v7222 = vadd.f32 %v7220, %v7221
      %v7223 = vrot.slane %v7222, 2
      %v7224 = vadd.f32 %v7222, %v7223
      %v7225 = vrot.slane %v7224, 1
      %v7226 = vadd.f32 %v7224, %v7225
      %v7227 = vsel %vm2737, %v6991, 0.0
      %v7228 = vrot.slane %v7227, 4
      %v7229 = vadd.f32 %v7227, %v7228
      %v7230 = vrot.slane %v7229, 2
      %v7231 = vadd.f32 %v7229, %v7230
      %v7232 = vrot.slane %v7231, 1
      %v7233 = vadd.f32 %v7231, %v7232
      %v7234 = vsel %vm2737, %v6992, 0.0
      %v7235 = vrot.slane %v7234, 4
      %v7236 = vadd.f32 %v7234, %v7235
      %v7237 = vrot.slane %v7236, 2
      %v7238 = vadd.f32 %v7236, %v7237
      %v7239 = vrot.slane %v7238, 1
      %v7240 = vadd.f32 %v7238, %v7239
      %v7241 = vsel %vm2737, %v6993, 0.0
      %v7242 = vrot.slane %v7241, 4
      %v7243 = vadd.f32 %v7241, %v7242
      %v7244 = vrot.slane %v7243, 2
      %v7245 = vadd.f32 %v7243, %v7244
      %v7246 = vrot.slane %v7245, 1
      %v7247 = vadd.f32 %v7245, %v7246
      %v7248 = vsel %vm2737, %v6994, 0.0
      %v7249 = vrot.slane %v7248, 4
      %v7250 = vadd.f32 %v7248, %v7249
      %v7251 = vrot.slane %v7250, 2
      %v7252 = vadd.f32 %v7250, %v7251
      %v7253 = vrot.slane %v7252, 1
      %v7254 = vadd.f32 %v7252, %v7253
      %v7255 = vsel %vm2737, %v6995, 0.0
      %v7256 = vrot.slane %v7255, 4
      %v7257 = vadd.f32 %v7255, %v7256
      %v7258 = vrot.slane %v7257, 2
      %v7259 = vadd.f32 %v7257, %v7258
      %v7260 = vrot.slane %v7259, 1
      %v7261 = vadd.f32 %v7259, %v7260
      %v7262 = vsel %vm2737, %v6996, 0.0
      %v7263 = vrot.slane %v7262, 4
      %v7264 = vadd.f32 %v7262, %v7263
      %v7265 = vrot.slane %v7264, 2
      %v7266 = vadd.f32 %v7264, %v7265
      %v7267 = vrot.slane %v7266, 1
      %v7268 = vadd.f32 %v7266, %v7267
      %v7269 = vsel %vm2737, %v6997, 0.0
      %v7270 = vrot.slane %v7269, 4
      %v7271 = vadd.f32 %v7269, %v7270
      %v7272 = vrot.slane %v7271, 2
      %v7273 = vadd.f32 %v7271, %v7272
      %v7274 = vrot.slane %v7273, 1
      %v7275 = vadd.f32 %v7273, %v7274
      %v7276 = vsel %vm2737, %v6998, 0.0
      %v7277 = vrot.slane %v7276, 4
      %v7278 = vadd.f32 %v7276, %v7277
      %v7279 = vrot.slane %v7278, 2
      %v7280 = vadd.f32 %v7278, %v7279
      %v7281 = vrot.slane %v7280, 1
      %v7282 = vadd.f32 %v7280, %v7281
      %v7283 = vsel %vm2737, %v6999, 0.0
      %v7284 = vrot.slane %v7283, 4
      %v7285 = vadd.f32 %v7283, %v7284
      %v7286 = vrot.slane %v7285, 2
      %v7287 = vadd.f32 %v7285, %v7286
      %v7288 = vrot.slane %v7287, 1
      %v7289 = vadd.f32 %v7287, %v7288
      %v7290 = vsel %vm2737, %v7000, 0.0
      %v7291 = vrot.slane %v7290, 4
      %v7292 = vadd.f32 %v7290, %v7291
      %v7293 = vrot.slane %v7292, 2
      %v7294 = vadd.f32 %v7292, %v7293
      %v7295 = vrot.slane %v7294, 1
      %v7296 = vadd.f32 %v7294, %v7295
      %v7297 = vsel %vm2737, %v7001, 0.0
      %v7298 = vrot.slane %v7297, 4
      %v7299 = vadd.f32 %v7297, %v7298
      %v7300 = vrot.slane %v7299, 2
      %v7301 = vadd.f32 %v7299, %v7300
      %v7302 = vrot.slane %v7301, 1
      %v7303 = vadd.f32 %v7301, %v7302
      %v7304 = vsel %vm2737, %v7002, 0.0
      %v7305 = vrot.slane %v7304, 4
      %v7306 = vadd.f32 %v7304, %v7305
      %v7307 = vrot.slane %v7306, 2
      %v7308 = vadd.f32 %v7306, %v7307
      %v7309 = vrot.slane %v7308, 1
      %v7310 = vadd.f32 %v7308, %v7309
      %v7311 = vsel %vm2737, %v7003, 0.0
      %v7312 = vrot.slane %v7311, 4
      %v7313 = vadd.f32 %v7311, %v7312
      %v7314 = vrot.slane %v7313, 2
      %v7315 = vadd.f32 %v7313, %v7314
      %v7316 = vrot.slane %v7315, 1
      %v7317 = vadd.f32 %v7315, %v7316
      %v7318 = vsel %vm2737, %v7004, 0.0
      %v7319 = vrot.slane %v7318, 4
      %v7320 = vadd.f32 %v7318, %v7319
      %v7321 = vrot.slane %v7320, 2
      %v7322 = vadd.f32 %v7320, %v7321
      %v7323 = vrot.slane %v7322, 1
      %v7324 = vadd.f32 %v7322, %v7323
      %v7325 = vsel %vm2737, %v7005, 0.0
      %v7326 = vrot.slane %v7325, 4
      %v7327 = vadd.f32 %v7325, %v7326
      %v7328 = vrot.slane %v7327, 2
      %v7329 = vadd.f32 %v7327, %v7328
      %v7330 = vrot.slane %v7329, 1
      %v7331 = vadd.f32 %v7329, %v7330
      %v7332 = vsel %vm2737, %v7006, 0.0
      %v7333 = vrot.slane %v7332, 4
      %v7334 = vadd.f32 %v7332, %v7333
      %v7335 = vrot.slane %v7334, 2
      %v7336 = vadd.f32 %v7334, %v7335
      %v7337 = vrot.slane %v7336, 1
      %v7338 = vadd.f32 %v7336, %v7337
      %v7339 = vsel %vm2737, %v7007, 0.0
      %v7340 = vrot.slane %v7339, 4
      %v7341 = vadd.f32 %v7339, %v7340
      %v7342 = vrot.slane %v7341, 2
      %v7343 = vadd.f32 %v7341, %v7342
      %v7344 = vrot.slane %v7343, 1
      %v7345 = vadd.f32 %v7343, %v7344
      %v7346 = vsel %vm2737, %v7008, 0.0
      %v7347 = vrot.slane %v7346, 4
      %v7348 = vadd.f32 %v7346, %v7347
      %v7349 = vrot.slane %v7348, 2
      %v7350 = vadd.f32 %v7348, %v7349
      %v7351 = vrot.slane %v7350, 1
      %v7352 = vadd.f32 %v7350, %v7351
      %v7353 = vsel %vm2737, %v7009, 0.0
      %v7354 = vrot.slane %v7353, 4
      %v7355 = vadd.f32 %v7353, %v7354
      %v7356 = vrot.slane %v7355, 2
      %v7357 = vadd.f32 %v7355, %v7356
      %v7358 = vrot.slane %v7357, 1
      %v7359 = vadd.f32 %v7357, %v7358
      %v7360 = vsel %vm2737, %v7010, 0.0
      %v7361 = vrot.slane %v7360, 4
      %v7362 = vadd.f32 %v7360, %v7361
      %v7363 = vrot.slane %v7362, 2
      %v7364 = vadd.f32 %v7362, %v7363
      %v7365 = vrot.slane %v7364, 1
      %v7366 = vadd.f32 %v7364, %v7365
      %v7367 = vsel %vm2737, %v7011, 0.0
      %v7368 = vrot.slane %v7367, 4
      %v7369 = vadd.f32 %v7367, %v7368
      %v7370 = vrot.slane %v7369, 2
      %v7371 = vadd.f32 %v7369, %v7370
      %v7372 = vrot.slane %v7371, 1
      %v7373 = vadd.f32 %v7371, %v7372
      %v7374 = vsel %vm2737, %v7012, 0.0
      %v7375 = vrot.slane %v7374, 4
      %v7376 = vadd.f32 %v7374, %v7375
      %v7377 = vrot.slane %v7376, 2
      %v7378 = vadd.f32 %v7376, %v7377
      %v7379 = vrot.slane %v7378, 1
      %v7380 = vadd.f32 %v7378, %v7379
      %v7381 = vsel %vm2737, %v7013, 0.0
      %v7382 = vrot.slane %v7381, 4
      %v7383 = vadd.f32 %v7381, %v7382
      %v7384 = vrot.slane %v7383, 2
      %v7385 = vadd.f32 %v7383, %v7384
      %v7386 = vrot.slane %v7385, 1
      %v7387 = vadd.f32 %v7385, %v7386
      %v7388 = vsel %vm2737, %v7014, 0.0
      %v7389 = vrot.slane %v7388, 4
      %v7390 = vadd.f32 %v7388, %v7389
      %v7391 = vrot.slane %v7390, 2
      %v7392 = vadd.f32 %v7390, %v7391
      %v7393 = vrot.slane %v7392, 1
      %v7394 = vadd.f32 %v7392, %v7393
      %v7395 = vsel %vm2737, %v7015, 0.0
      %v7396 = vrot.slane %v7395, 4
      %v7397 = vadd.f32 %v7395, %v7396
      %v7398 = vrot.slane %v7397, 2
      %v7399 = vadd.f32 %v7397, %v7398
      %v7400 = vrot.slane %v7399, 1
      %v7401 = vadd.f32 %v7399, %v7400
      %v7402 = vsel %vm2737, %v7016, 0.0
      %v7403 = vrot.slane %v7402, 4
      %v7404 = vadd.f32 %v7402, %v7403
      %v7405 = vrot.slane %v7404, 2
      %v7406 = vadd.f32 %v7404, %v7405
      %v7407 = vrot.slane %v7406, 1
      %v7408 = vadd.f32 %v7406, %v7407
      %vm7465 = vcmask 1041409
      %v7466 = vsel %vm7465, %v7030, %v7023
      %vm7467 = vcmask 1042434
      %v7468 = vsel %vm7467, %v7037, %v7466
      %vm7469 = vcmask 1043459
      %v7470 = vsel %vm7469, %v7044, %v7468
      %vm7471 = vcmask 1044484
      %v7472 = vsel %vm7471, %v7051, %v7470
      %vm7473 = vcmask 1045509
      %v7474 = vsel %vm7473, %v7058, %v7472
      %vm7475 = vcmask 1046534
      %v7476 = vsel %vm7475, %v7065, %v7474
      %vm7477 = vcmask 1047559
      %v7478 = vsel %vm7477, %v7072, %v7476
      %v7479 = vsel %vm7465, %v7086, %v7079
      %v7480 = vsel %vm7467, %v7093, %v7479
      %v7481 = vsel %vm7469, %v7100, %v7480
      %v7482 = vsel %vm7471, %v7107, %v7481
      %v7483 = vsel %vm7473, %v7114, %v7482
      %v7484 = vsel %vm7475, %v7121, %v7483
      %v7485 = vsel %vm7477, %v7128, %v7484
      %v7486 = vsel %vm7465, %v7142, %v7135
      %v7487 = vsel %vm7467, %v7149, %v7486
      %v7488 = vsel %vm7469, %v7156, %v7487
      %v7489 = vsel %vm7471, %v7163, %v7488
      %v7490 = vsel %vm7473, %v7170, %v7489
      %v7491 = vsel %vm7475, %v7177, %v7490
      %v7492 = vsel %vm7477, %v7184, %v7491
      %v7493 = vsel %vm7465, %v7198, %v7191
      %v7494 = vsel %vm7467, %v7205, %v7493
      %v7495 = vsel %vm7469, %v7212, %v7494
      %v7496 = vsel %vm7471, %v7219, %v7495
      %v7497 = vsel %vm7473, %v7226, %v7496
      %v7498 = vsel %vm7475, %v7233, %v7497
      %v7499 = vsel %vm7477, %v7240, %v7498
      %v7500 = vsel %vm7465, %v7254, %v7247
      %v7501 = vsel %vm7467, %v7261, %v7500
      %v7502 = vsel %vm7469, %v7268, %v7501
      %v7503 = vsel %vm7471, %v7275, %v7502
      %v7504 = vsel %vm7473, %v7282, %v7503
      %v7505 = vsel %vm7475, %v7289, %v7504
      %v7506 = vsel %vm7477, %v7296, %v7505
      %v7507 = vsel %vm7465, %v7310, %v7303
      %v7508 = vsel %vm7467, %v7317, %v7507
      %v7509 = vsel %vm7469, %v7324, %v7508
      %v7510 = vsel %vm7471, %v7331, %v7509
      %v7511 = vsel %vm7473, %v7338, %v7510
      %v7512 = vsel %vm7475, %v7345, %v7511
      %v7513 = vsel %vm7477, %v7352, %v7512
      %v7514 = vsel %vm7465, %v7366, %v7359
      %v7515 = vsel %vm7467, %v7373, %v7514
      %v7516 = vsel %vm7469, %v7380, %v7515
      %v7517 = vsel %vm7471, %v7387, %v7516
      %v7518 = vsel %vm7473, %v7394, %v7517
      %v7519 = vsel %vm7475, %v7401, %v7518
      %v7520 = vsel %vm7477, %v7408, %v7519
      %7528 = vst.msk [vmem:[%s488] sm:$0xff] %vm2737, %v7478
      %7529 = vst.msk [vmem:[%s488 + $0x8] sm:$0xff] %vm2737, %v7485
      %7530 = vst.msk [vmem:[%s488 + $0x10] sm:$0xff] %vm2737, %v7492
      %7531 = vst.msk [vmem:[%s488 + $0x18] sm:$0xff] %vm2737, %v7499
      %7532 = vst.msk [vmem:[%s488 + $0x20] sm:$0xff] %vm2737, %v7506
      %7533 = vst.msk [vmem:[%s488 + $0x28] sm:$0xff] %vm2737, %v7513
      %7534 = vst.msk [vmem:[%s488 + $0x30] sm:$0xff] %vm2737, %v7520
      %s7535 = smul.u32 7, %s26
      %p7536 = scmp.lt.s32.totalorder %s7535, 13
      %s7537 = scalar_select %p7536, %s7535, 13
      %s7538 = smul.addr %s7537, 8
      %s7539 = scalar_lea.vmem %s13, %s7538
      // Predicated region
      $region73: #{tpu_custom_call.1} parent=71 // pred_check
        %p7540 = pneg %p332
      $region74: #{tpu_custom_call.1} parent=71 // pred_check_branch
        %7542 = sbr.rel (%p7540) target = $region76
      $region75: #{tpu_custom_call.1} parent=71 // pred_region
        %s7543 = smul.u32 7, %s26
      $region76: #{tpu_custom_call.1} parent=71 // pred_fallthru
        _
    $region72: #{tpu_custom_call.1} parent=5 // pred_fallthru
      _
    %p7544 = scmp.le.s32.totalorder 2, %s21
    // Predicated region
    $region77: #{tpu_custom_call.1} parent=5 // pred_check
      %p7545 = pneg %p7544
    $region78: #{tpu_custom_call.1} parent=5 // pred_check_branch
      %7547 = sbr.rel (%p7545) target = $region80
    $region79: #{tpu_custom_call.1} parent=5 // pred_region
      %s7548 = ssub.s32 %s21, 2
      // Predicated region
      $region81: #{tpu_custom_call.1} parent=79 // pred_check
        %p7549 = pneg %p338
      $region82: #{tpu_custom_call.1} parent=79 // pred_check_branch
        %7551 = sbr.rel (%p7549) target = $region84
      $region83: #{tpu_custom_call.1} parent=79 // pred_region
        %s7552 = smul.u32 7, %s27
        %p7553 = scmp.lt.s32.totalorder %s7552, 13
        %s7554 = scalar_select %p7553, %s7552, 13
        %s7555 = smul.addr %s7554, 8
        %s7556 = scalar_lea.vmem %s13, %s7555
      $region84: #{tpu_custom_call.1} parent=79 // pred_fallthru
        _
    $region80: #{tpu_custom_call.1} parent=5 // pred_fallthru
      _
  $region6: #{tpu_custom_call.1} parent=0 // loop_footer
    %s25 = sadd.s32 1, %s21
  $region7: #{tpu_custom_call.1} parent=0 // loop_footer_branch
    %20 = sbr.rel target = $region3
  $region8: #{tpu_custom_call.1} parent=0 // loop_exit
    _

</llo_original>
